<compile_context>
chip_gen: v6e
topology: v6e:2x2x1
jax: 0.10.0
libtpu: 0.0.40
codegen_flags: <defaults>
</compile_context>

<pallas_src>
import functools

import jax
import jax.numpy as jnp
from jax.experimental import pallas as pl
from jax.experimental.pallas import tpu as pltpu

# ----- DINO vit_small, patch_size=8 configuration (fixed by the reference forward) ----
PATCH = 8
EMBED_DIM = 384
DEPTH = 12
NUM_HEADS = 6
HEAD_DIM = EMBED_DIM // NUM_HEADS      # 64
MLP_DIM = EMBED_DIM * 4                # 1536
LN_EPS = 1e-6
ATTN_SCALE = HEAD_DIM ** -0.5
NEG_INF = -1e30


def _round_up(v, m):
    return ((v + m - 1) // m) * m


def _pick_row_tile(m):
    """Row (M) tile: full block for small M, else the largest <=256 divisor."""
    if m <= 256:
        return m
    for cand in range(256, 0, -16):
        if m % cand == 0:
            return cand
    for cand in range(256, 0, -8):
        if m % cand == 0:
            return cand
    return m


def _pick_col_tile(n):
    """Lane (N) tile: widest 128-multiple that divides N (MXU-friendly)."""
    for cand in (512, 384, 256, 128):
        if n % cand == 0:
            return cand
    return n


# ----------------------------- Pallas kernels ---------------------------------------

def _matmul_bias_kernel(gelu, x_ref, w_ref, b_ref, o_ref):
    x = x_ref[...].astype(jnp.bfloat16)
    y = jnp.dot(x, w_ref[...], preferred_element_type=jnp.float32) + b_ref[...]
    if gelu:  # exact (erf-based) GELU, matching torch.nn.GELU() default
        y = 0.5 * y * (1.0 + jax.lax.erf(y * (2.0 ** -0.5)))
    o_ref[...] = y.astype(o_ref.dtype)


def _ln_matmul_bias_kernel(gelu, x_ref, g_ref, bl_ref, w_ref, b_ref, o_ref):
    # LayerNorm (f32 statistics) fused as a prologue of the matmul.
    x = x_ref[...]
    mean = jnp.mean(x, axis=-1, keepdims=True)
    xc = x - mean
    var = jnp.mean(xc * xc, axis=-1, keepdims=True)
    h = xc * jax.lax.rsqrt(var + LN_EPS) * g_ref[...] + bl_ref[...]
    h = h.astype(jnp.bfloat16)
    y = jnp.dot(h, w_ref[...], preferred_element_type=jnp.float32) + b_ref[...]
    if gelu:
        y = 0.5 * y * (1.0 + jax.lax.erf(y * (2.0 ** -0.5)))
    o_ref[...] = y.astype(o_ref.dtype)


def _matmul_bias_res_kernel(x_ref, w_ref, b_ref, r_ref, o_ref):
    x = x_ref[...].astype(jnp.bfloat16)
    y = jnp.dot(x, w_ref[...], preferred_element_type=jnp.float32)
    o_ref[...] = (y + b_ref[...] + r_ref[...]).astype(o_ref.dtype)


def _attn_kernel(t_real, qkv_ref, o_ref):
    """Per-batch multi-head attention.  qkv_ref: (Tp, 3*D) bf16, o_ref: (Tp, D)."""
    tp = qkv_ref.shape[0]
    # Aligned 384-wide loads; per-head 64-wide slices happen at the value level.
    q_all = qkv_ref[:, 0:EMBED_DIM]
    k_all = qkv_ref[:, EMBED_DIM:2 * EMBED_DIM]
    v_all = qkv_ref[:, 2 * EMBED_DIM:3 * EMBED_DIM]
    mask_keys = t_real < tp
    if mask_keys:
        kidx = jax.lax.broadcasted_iota(jnp.int32, (1, tp), 1)
        kmask = kidx < t_real
    outs = []
    # TODO(synk): for T >~ 2K the per-head (T, T) score no longer fits VMEM
    # (esp. v7x 64 MiB) -- needs a KV-tiled online-softmax (flash) variant.
    for h in range(NUM_HEADS):
        sl = slice(h * HEAD_DIM, (h + 1) * HEAD_DIM)
        q, k, v = q_all[:, sl], k_all[:, sl], v_all[:, sl]
        s = jax.lax.dot_general(q, k, (((1,), (1,)), ((), ())),
                                preferred_element_type=jnp.float32) * ATTN_SCALE
        if mask_keys:
            s = jnp.where(kmask, s, jnp.float32(NEG_INF))
        s = s - jnp.max(s, axis=-1, keepdims=True)
        p = jnp.exp(s)
        p = p * pl.reciprocal(jnp.sum(p, axis=-1, keepdims=True), approx=True)
        outs.append(jnp.dot(p.astype(jnp.bfloat16), v,
                            preferred_element_type=jnp.float32))
    # Lane-dense (Tp, 384) token-major store: no (B,nh,T,hd) transpose needed.
    o_ref[...] = jnp.concatenate(outs, axis=-1).astype(o_ref.dtype)


def _attn_cls_kernel(t_real, qkv_ref, o_ref):
    """CLS-row-only attention probs of the last block.  o_ref: (nh, Tp)."""
    tp = qkv_ref.shape[0]
    q_cls = qkv_ref[0:1, 0:EMBED_DIM]                    # (1, D)
    k_all = qkv_ref[:, EMBED_DIM:2 * EMBED_DIM]          # (Tp, D)
    kidx = jax.lax.broadcasted_iota(jnp.int32, (1, tp), 1)
    kmask = kidx < t_real
    rows = []
    for h in range(NUM_HEADS):
        sl = slice(h * HEAD_DIM, (h + 1) * HEAD_DIM)
        q, k = q_cls[:, sl], k_all[:, sl]
        s = jax.lax.dot_general(q, k, (((1,), (1,)), ((), ())),
                                preferred_element_type=jnp.float32) * ATTN_SCALE
        s = jnp.where(kmask, s, jnp.float32(NEG_INF))
        s = s - jnp.max(s, axis=-1, keepdims=True)
        p = jnp.exp(s)
        rows.append(p * pl.reciprocal(jnp.sum(p, axis=-1, keepdims=True),
                                      approx=True))
    o_ref[...] = jnp.concatenate(rows, axis=0)           # (nh, Tp)


# ----------------------------- Pallas wrappers ---------------------------------------

def linear(x, w, b, *, ln=None, gelu=False, residual=None, out_dtype=jnp.float32):
    """y = [LN](x) @ w + b (+ residual) [GELU].  x:(M,K) f32/bf16, w:(K,N) bf16."""
    M, K = x.shape
    K2, N = w.shape
    assert K == K2 and M % 8 == 0
    tm = _pick_row_tile(M)
    tn = _pick_col_tile(N)
    grid = (M // tm, N // tn)
    b2 = b.reshape(1, N)

    x_spec = pl.BlockSpec((tm, K), lambda i, j: (i, 0))
    w_spec = pl.BlockSpec((K, tn), lambda i, j: (0, j))
    b_spec = pl.BlockSpec((1, tn), lambda i, j: (0, j))
    o_spec = pl.BlockSpec((tm, tn), lambda i, j: (i, j))
    out_shape = jax.ShapeDtypeStruct((M, N), out_dtype)
    cp = pltpu.CompilerParams(dimension_semantics=("parallel", "parallel"))

    if residual is not None:
        assert ln is None and not gelu
        r_spec = pl.BlockSpec((tm, tn), lambda i, j: (i, j))
        return pl.pallas_call(
            _matmul_bias_res_kernel, grid=grid,
            in_specs=[x_spec, w_spec, b_spec, r_spec],
            out_specs=o_spec, out_shape=out_shape, compiler_params=cp,
        )(x, w, b2, residual)

    if ln is not None:
        g, bl = ln
        ln_spec = pl.BlockSpec((1, K), lambda i, j: (0, 0))
        kern = functools.partial(_ln_matmul_bias_kernel, gelu)
        return pl.pallas_call(
            kern, grid=grid,
            in_specs=[x_spec, ln_spec, ln_spec, w_spec, b_spec],
            out_specs=o_spec, out_shape=out_shape, compiler_params=cp,
        )(x, g.reshape(1, K), bl.reshape(1, K), w, b2)

    kern = functools.partial(_matmul_bias_kernel, gelu)
    return pl.pallas_call(
        kern, grid=grid,
        in_specs=[x_spec, w_spec, b_spec],
        out_specs=o_spec, out_shape=out_shape, compiler_params=cp,
    )(x, w, b2)


def attention(qkv, t_real):
    """qkv: (B, Tp, 3D) bf16 -> token-major attention output (B, Tp, D) bf16."""
    B, Tp, threeD = qkv.shape
    kern = functools.partial(_attn_kernel, t_real)
    return pl.pallas_call(
        kern, grid=(B,),
        in_specs=[pl.BlockSpec((None, Tp, threeD), lambda b: (b, 0, 0))],
        out_specs=pl.BlockSpec((None, Tp, EMBED_DIM), lambda b: (b, 0, 0)),
        out_shape=jax.ShapeDtypeStruct((B, Tp, EMBED_DIM), jnp.bfloat16),
        compiler_params=pltpu.CompilerParams(dimension_semantics=("parallel",)),
    )(qkv)


def attention_cls_probs(qkv, t_real):
    """qkv: (B, Tp, 3D) bf16 -> CLS-row attention probs (B, nh, Tp) f32."""
    B, Tp, threeD = qkv.shape
    kern = functools.partial(_attn_cls_kernel, t_real)
    return pl.pallas_call(
        kern, grid=(B,),
        in_specs=[pl.BlockSpec((None, Tp, threeD), lambda b: (b, 0, 0))],
        out_specs=pl.BlockSpec((None, NUM_HEADS, Tp), lambda b: (b, 0, 0)),
        out_shape=jax.ShapeDtypeStruct((B, NUM_HEADS, Tp), jnp.float32),
        compiler_params=pltpu.CompilerParams(dimension_semantics=("parallel",)),
    )(qkv)


# ----------------------------- ViT forward (DINO semantics) --------------------------

def _block(x, p, t_real):
    """One pre-norm transformer block (DINO Block.forward, eval/no-dropout)."""
    B, Tp, D = x.shape
    x2 = x.reshape(B * Tp, D)
    qkv = linear(x2, p['w_qkv'], p['b_qkv'],
                 ln=(p['ln1_g'], p['ln1_b']), out_dtype=jnp.bfloat16)
    o = attention(qkv.reshape(B, Tp, 3 * D), t_real)          # (B, Tp, D) bf16
    x2 = linear(o.reshape(B * Tp, D), p['w_proj'], p['b_proj'], residual=x2)
    h = linear(x2, p['w_fc1'], p['b_fc1'],
               ln=(p['ln2_g'], p['ln2_b']), gelu=True, out_dtype=jnp.bfloat16)
    x2 = linear(h, p['w_fc2'], p['b_fc2'], residual=x2)
    return x2.reshape(B, Tp, D)


def _last_self_attention(x, p, t_real):
    """blk(x, return_attention=True): CLS row of softmax(q k^T * scale)."""
    B, Tp, D = x.shape
    qkv = linear(x.reshape(B * Tp, D), p['w_qkv'], p['b_qkv'],
                 ln=(p['ln1_g'], p['ln1_b']), out_dtype=jnp.bfloat16)
    return attention_cls_probs(qkv.reshape(B, Tp, 3 * D), t_real)   # (B, nh, Tp)


def self_distillation_forward(img, params):
    """Equivalent of SelfDistillation.forward: (B,3,H,W) NCHW -> (B, nh, H, W)."""
    B, C, H, W = img.shape
    wf, hf = H // PATCH, W // PATCH                    # w_featmap, h_featmap
    N = wf * hf
    T = N + 1
    Tp = _round_up(T, 8) if T <= 256 else _round_up(T, 128)
    Np = _round_up(N, 8) if N <= 256 else _round_up(N, 128)

    # Patch embedding == Conv2d(3, 384, kernel=8, stride=8): extract patches (glue)
    # and run the matmul in Pallas.  Patch feature order is (c, kh, kw), row-major
    # over (wf, hf) — identical to PyTorch's conv + flatten(2).transpose(1,2).
    patches = img.reshape(B, C, wf, PATCH, hf, PATCH)
    patches = jnp.transpose(patches, (0, 2, 4, 1, 3, 5)).reshape(B, N, C * PATCH * PATCH)
    if Np != N:
        patches = jnp.pad(patches, ((0, 0), (0, Np - N), (0, 0)))
    pe = linear(patches.reshape(B * Np, C * PATCH * PATCH),
                params['w_patch'], params['b_patch'])
    pe = pe.reshape(B, Np, EMBED_DIM)[:, :N]

    cls = jnp.broadcast_to(params['cls_token'], (B, 1, EMBED_DIM))
    x = jnp.concatenate([cls, pe], axis=1) + params['pos_embed']   # (B, T, D)
    # TODO(synk): DINO's bicubic pos-embed interpolation is skipped — pos_embed is
    # synthesized for exactly this input resolution, so it is a no-op branch anyway.
    if Tp != T:
        # Pad tokens once; padded keys are masked inside the attention kernels.
        x = jnp.pad(x, ((0, 0), (0, Tp - T), (0, 0)))

    blocks = params['blocks']
    first = jax.tree_util.tree_map(lambda a: a[:DEPTH - 1], blocks)
    x, _ = jax.lax.scan(lambda c, p: (_block(c, p, T), None), x, first)

    last = jax.tree_util.tree_map(lambda a: a[DEPTH - 1], blocks)
    attn = _last_self_attention(x, last, T)            # (B, nh, Tp)

    # attentions[:, :, 0, 1:]  ->  (B, nh, wf, hf)
    amap = attn[:, :, 1:T].reshape(B, NUM_HEADS, wf, hf)

    # F.interpolate(scale_factor=8, mode='nearest'): pure data movement (JAX glue).
    up = jnp.broadcast_to(amap[:, :, :, None, :, None],
                          (B, NUM_HEADS, wf, PATCH, hf, PATCH))
    return up.reshape(B, NUM_HEADS, wf * PATCH, hf * PATCH)


# ----------------------------- deterministic synthetic weights -----------------------
# TODO(synk): the reference loads a DINO checkpoint from disk (torch.load); here the
# weights are synthesized deterministically (bf16 weights, f32 biases / LN params).

def init_params(key, num_tokens):
    D, MD, Cpp = EMBED_DIM, MLP_DIM, 3 * PATCH * PATCH
    ks = iter(jax.random.split(key, 16))

    def w(shape, std=0.02):
        return (std * jax.random.normal(next(ks), shape)).astype(jnp.bfloat16)

    def f32(shape, std=0.02):
        return (std * jax.random.normal(next(ks), shape)).astype(jnp.float32)

    blocks = {
        'ln1_g': jnp.ones((DEPTH, D), jnp.float32),
        'ln1_b': jnp.zeros((DEPTH, D), jnp.float32),
        'w_qkv': w((DEPTH, D, 3 * D)),
        'b_qkv': jnp.zeros((DEPTH, 3 * D), jnp.float32),
        'w_proj': w((DEPTH, D, D)),
        'b_proj': jnp.zeros((DEPTH, D), jnp.float32),
        'ln2_g': jnp.ones((DEPTH, D), jnp.float32),
        'ln2_b': jnp.zeros((DEPTH, D), jnp.float32),
        'w_fc1': w((DEPTH, D, MD)),
        'b_fc1': jnp.zeros((DEPTH, MD), jnp.float32),
        'w_fc2': w((DEPTH, MD, D)),
        'b_fc2': jnp.zeros((DEPTH, D), jnp.float32),
    }
    return {
        'w_patch': w((Cpp, D)),                       # Conv2d(3,384,8,8) weight, (in, out)
        'b_patch': jnp.zeros((D,), jnp.float32),
        'cls_token': f32((1, 1, D)),
        'pos_embed': f32((1, num_tokens, D)),
        'blocks': blocks,
    }


# ----------------------------- demo -------------------------------------------------

if __name__ == "__main__":
    key = jax.random.PRNGKey(0)
    k_img, k_par = jax.random.split(key)

    B, C, H, W = 2, 3, 32, 32                         # small, multiple of patch size 8
    img = jax.random.normal(k_img, (B, C, H, W), jnp.float32)
    num_tokens = (H // PATCH) * (W // PATCH) + 1
    params = init_params(k_par, num_tokens)

    fwd = jax.jit(self_distillation_forward)
    out = jax.block_until_ready(fwd(img, params))

    assert out.shape == (B, NUM_HEADS, H, W), out.shape
    assert out.dtype == jnp.float32
    assert bool(jnp.isfinite(out).all()) and bool(jnp.all(out >= 0.0))
    print("KERNEL_OK")
</pallas_src>

<mosaic_0001>
module attributes {stable_mosaic.version = 11 : i64} {
  func.func @_matmul_bias_kernel(%arg0: i32, %arg1: i32, %arg2: memref<32x192xf32, #tpu.memory_space<vmem>>, %arg3: memref<192x384xbf16, #tpu.memory_space<vmem>>, %arg4: memref<1x384xf32, #tpu.memory_space<vmem>>, %arg5: memref<32x384xf32, #tpu.memory_space<vmem>>) attributes {dimension_semantics = [#tpu.dimension_semantics<parallel>, #tpu.dimension_semantics<parallel>], iteration_bounds = array<i64: 1, 1>, scalar_prefetch = 0 : i64, scratch_operands = 0 : i64, tpu.core_type = #tpu.core_type<tc>, window_params = [{transform_indices = @transform_0, window_bounds = array<i64: 32, 192>}, {transform_indices = @transform_1, window_bounds = array<i64: 192, 384>}, {transform_indices = @transform_2, window_bounds = array<i64: 1, 384>}, {transform_indices = @transform_3, window_bounds = array<i64: 32, 384>}]} {
    %c0 = arith.constant 0 : index
    %c0_0 = arith.constant 0 : index
    %0 = vector.load %arg2[%c0, %c0_0] : memref<32x192xf32, #tpu.memory_space<vmem>>, vector<32x192xf32>
    %1 = arith.truncf %0 : vector<32x192xf32> to vector<32x192xbf16>
    %c0_1 = arith.constant 0 : index
    %c0_2 = arith.constant 0 : index
    %2 = vector.load %arg3[%c0_1, %c0_2] : memref<192x384xbf16, #tpu.memory_space<vmem>>, vector<192x384xbf16>
    %cst = arith.constant dense<0.000000e+00> : vector<32x384xf32>
    %3 = tpu.matmul %1, %2, %cst {dimension_numbers = #tpu.dot_dimension_numbers<[1], [0], [0], [1], [0, 0, 1, 1], [], []>} : vector<32x192xbf16>, vector<192x384xbf16>, vector<32x384xf32> -> vector<32x384xf32>
    %c0_3 = arith.constant 0 : index
    %c0_4 = arith.constant 0 : index
    %4 = vector.load %arg4[%c0_3, %c0_4] : memref<1x384xf32, #tpu.memory_space<vmem>>, vector<1x384xf32>
    %5 = vector.broadcast %4 : vector<1x384xf32> to vector<32x384xf32>
    %6 = arith.addf %3, %5 : vector<32x384xf32>
    %c0_5 = arith.constant 0 : index
    %c0_6 = arith.constant 0 : index
    %7 = vector.load %arg5[%c0_5, %c0_6] : memref<32x384xf32, #tpu.memory_space<vmem>>, vector<32x384xf32>
    tpu.vector_store %arg5[%c0_5, %c0_6], %6 {strides = array<i32>} : memref<32x384xf32, #tpu.memory_space<vmem>>, vector<32x384xf32>,
    return
  }
  func.func @transform_0(%arg0: i32, %arg1: i32) -> (i32, i32) {
    %c0_i32 = arith.constant 0 : i32
    %c0_i32_0 = arith.constant 0 : i32
    return %arg0, %c0_i32 : i32, i32
  }
  func.func @transform_1(%arg0: i32, %arg1: i32) -> (i32, i32) {
    %c0_i32 = arith.constant 0 : i32
    %c0_i32_0 = arith.constant 0 : i32
    return %c0_i32, %arg1 : i32, i32
  }
  func.func @transform_2(%arg0: i32, %arg1: i32) -> (i32, i32) {
    %c0_i32 = arith.constant 0 : i32
    %c0_i32_0 = arith.constant 0 : i32
    return %c0_i32, %arg1 : i32, i32
  }
  func.func @transform_3(%arg0: i32, %arg1: i32) -> (i32, i32) {
    %c0_i32 = arith.constant 0 : i32
    return %arg0, %arg1 : i32, i32
  }
}

module attributes {stable_mosaic.version = 11 : i64} {
  func.func @_ln_matmul_bias_kernel(%arg0: i32, %arg1: i32, %arg2: memref<48x384xf32, #tpu.memory_space<vmem>>, %arg3: memref<1x384xf32, #tpu.memory_space<vmem>>, %arg4: memref<1x384xf32, #tpu.memory_space<vmem>>, %arg5: memref<384x384xbf16, #tpu.memory_space<vmem>>, %arg6: memref<1x384xf32, #tpu.memory_space<vmem>>, %arg7: memref<48x384xbf16, #tpu.memory_space<vmem>>) attributes {dimension_semantics = [#tpu.dimension_semantics<parallel>, #tpu.dimension_semantics<parallel>], iteration_bounds = array<i64: 1, 3>, scalar_prefetch = 0 : i64, scratch_operands = 0 : i64, tpu.core_type = #tpu.core_type<tc>, window_params = [{transform_indices = @transform_0, window_bounds = array<i64: 48, 384>}, {pipeline_mode = #tpu.pipeline_mode<synchronous>, transform_indices = @transform_1, window_bounds = array<i64: 1, 384>}, {pipeline_mode = #tpu.pipeline_mode<synchronous>, transform_indices = @transform_2, window_bounds = array<i64: 1, 384>}, {transform_indices = @transform_3, window_bounds = array<i64: 384, 384>}, {transform_indices = @transform_4, window_bounds = array<i64: 1, 384>}, {transform_indices = @transform_5, window_bounds = array<i64: 48, 384>}]} {
    %c0 = arith.constant 0 : index
    %c0_0 = arith.constant 0 : index
    %0 = vector.load %arg2[%c0, %c0_0] : memref<48x384xf32, #tpu.memory_space<vmem>>, vector<48x384xf32>
    %cst = arith.constant dense<0.000000e+00> : vector<48xf32>
    %1 = vector.multi_reduction <add>, %0, %cst [1] : vector<48x384xf32> to vector<48xf32>
    %2 = vector.shape_cast %1 : vector<48xf32> to vector<48x1xf32>
    %cst_1 = arith.constant 3.840000e+02 : f32
    %3 = vector.broadcast %cst_1 : f32 to vector<48x1xf32>
    %4 = arith.divf %2, %3 : vector<48x1xf32>
    %5 = vector.broadcast %4 : vector<48x1xf32> to vector<48x384xf32>
    %6 = arith.subf %0, %5 : vector<48x384xf32>
    %7 = arith.mulf %6, %6 : vector<48x384xf32>
    %cst_2 = arith.constant dense<0.000000e+00> : vector<48xf32>
    %8 = vector.multi_reduction <add>, %7, %cst_2 [1] : vector<48x384xf32> to vector<48xf32>
    %9 = vector.shape_cast %8 : vector<48xf32> to vector<48x1xf32>
    %cst_3 = arith.constant 3.840000e+02 : f32
    %10 = vector.broadcast %cst_3 : f32 to vector<48x1xf32>
    %11 = arith.divf %9, %10 : vector<48x1xf32>
    %cst_4 = arith.constant 9.99999997E-7 : f32
    %12 = vector.broadcast %cst_4 : f32 to vector<48x1xf32>
    %13 = arith.addf %11, %12 : vector<48x1xf32>
    %14 = math.rsqrt %13 : vector<48x1xf32>
    %15 = vector.broadcast %14 : vector<48x1xf32> to vector<48x384xf32>
    %16 = arith.mulf %6, %15 : vector<48x384xf32>
    %c0_5 = arith.constant 0 : index
    %c0_6 = arith.constant 0 : index
    %17 = vector.load %arg3[%c0_5, %c0_6] : memref<1x384xf32, #tpu.memory_space<vmem>>, vector<1x384xf32>
    %18 = vector.broadcast %17 : vector<1x384xf32> to vector<48x384xf32>
    %19 = arith.mulf %16, %18 : vector<48x384xf32>
    %c0_7 = arith.constant 0 : index
    %c0_8 = arith.constant 0 : index
    %20 = vector.load %arg4[%c0_7, %c0_8] : memref<1x384xf32, #tpu.memory_space<vmem>>, vector<1x384xf32>
    %21 = vector.broadcast %20 : vector<1x384xf32> to vector<48x384xf32>
    %22 = arith.addf %19, %21 : vector<48x384xf32>
    %23 = arith.truncf %22 : vector<48x384xf32> to vector<48x384xbf16>
    %c0_9 = arith.constant 0 : index
    %c0_10 = arith.constant 0 : index
    %24 = vector.load %arg5[%c0_9, %c0_10] : memref<384x384xbf16, #tpu.memory_space<vmem>>, vector<384x384xbf16>
    %cst_11 = arith.constant dense<0.000000e+00> : vector<48x384xf32>
    %25 = tpu.matmul %23, %24, %cst_11 {dimension_numbers = #tpu.dot_dimension_numbers<[1], [0], [0], [1], [0, 0, 1, 1], [], []>} : vector<48x384xbf16>, vector<384x384xbf16>, vector<48x384xf32> -> vector<48x384xf32>
    %c0_12 = arith.constant 0 : index
    %c0_13 = arith.constant 0 : index
    %26 = vector.load %arg6[%c0_12, %c0_13] : memref<1x384xf32, #tpu.memory_space<vmem>>, vector<1x384xf32>
    %27 = vector.broadcast %26 : vector<1x384xf32> to vector<48x384xf32>
    %28 = arith.addf %25, %27 : vector<48x384xf32>
    %29 = arith.truncf %28 : vector<48x384xf32> to vector<48x384xbf16>
    %c0_14 = arith.constant 0 : index
    %c0_15 = arith.constant 0 : index
    %30 = vector.load %arg7[%c0_14, %c0_15] : memref<48x384xbf16, #tpu.memory_space<vmem>>, vector<48x384xbf16>
    tpu.vector_store %arg7[%c0_14, %c0_15], %29 {strides = array<i32>} : memref<48x384xbf16, #tpu.memory_space<vmem>>, vector<48x384xbf16>,
    return
  }
  func.func @transform_0(%arg0: i32, %arg1: i32) -> (i32, i32) {
    %c0_i32 = arith.constant 0 : i32
    %c0_i32_0 = arith.constant 0 : i32
    return %arg0, %c0_i32 : i32, i32
  }
  func.func @transform_1(%arg0: i32, %arg1: i32) -> (i32, i32) {
    %c0_i32 = arith.constant 0 : i32
    %c0_i32_0 = arith.constant 0 : i32
    %c0_i32_1 = arith.constant 0 : i32
    return %c0_i32, %c0_i32_0 : i32, i32
  }
  func.func @transform_2(%arg0: i32, %arg1: i32) -> (i32, i32) {
    %c0_i32 = arith.constant 0 : i32
    %c0_i32_0 = arith.constant 0 : i32
    %c0_i32_1 = arith.constant 0 : i32
    return %c0_i32, %c0_i32_0 : i32, i32
  }
  func.func @transform_3(%arg0: i32, %arg1: i32) -> (i32, i32) {
    %c0_i32 = arith.constant 0 : i32
    %c0_i32_0 = arith.constant 0 : i32
    return %c0_i32, %arg1 : i32, i32
  }
  func.func @transform_4(%arg0: i32, %arg1: i32) -> (i32, i32) {
    %c0_i32 = arith.constant 0 : i32
    %c0_i32_0 = arith.constant 0 : i32
    return %c0_i32, %arg1 : i32, i32
  }
  func.func @transform_5(%arg0: i32, %arg1: i32) -> (i32, i32) {
    %c0_i32 = arith.constant 0 : i32
    return %arg0, %arg1 : i32, i32
  }
}

module attributes {stable_mosaic.version = 11 : i64} {
  func.func @_matmul_bias_res_kernel(%arg0: i32, %arg1: i32, %arg2: memref<48x384xbf16, #tpu.memory_space<vmem>>, %arg3: memref<384x384xbf16, #tpu.memory_space<vmem>>, %arg4: memref<1x384xf32, #tpu.memory_space<vmem>>, %arg5: memref<48x384xf32, #tpu.memory_space<vmem>>, %arg6: memref<48x384xf32, #tpu.memory_space<vmem>>) attributes {dimension_semantics = [#tpu.dimension_semantics<parallel>, #tpu.dimension_semantics<parallel>], iteration_bounds = array<i64: 1, 1>, scalar_prefetch = 0 : i64, scratch_operands = 0 : i64, tpu.core_type = #tpu.core_type<tc>, window_params = [{transform_indices = @transform_0, window_bounds = array<i64: 48, 384>}, {transform_indices = @transform_1, window_bounds = array<i64: 384, 384>}, {transform_indices = @transform_2, window_bounds = array<i64: 1, 384>}, {transform_indices = @transform_3, window_bounds = array<i64: 48, 384>}, {transform_indices = @transform_4, window_bounds = array<i64: 48, 384>}]} {
    %c0 = arith.constant 0 : index
    %c0_0 = arith.constant 0 : index
    %0 = vector.load %arg2[%c0, %c0_0] : memref<48x384xbf16, #tpu.memory_space<vmem>>, vector<48x384xbf16>
    %c0_1 = arith.constant 0 : index
    %c0_2 = arith.constant 0 : index
    %1 = vector.load %arg3[%c0_1, %c0_2] : memref<384x384xbf16, #tpu.memory_space<vmem>>, vector<384x384xbf16>
    %cst = arith.constant dense<0.000000e+00> : vector<48x384xf32>
    %2 = tpu.matmul %0, %1, %cst {dimension_numbers = #tpu.dot_dimension_numbers<[1], [0], [0], [1], [0, 0, 1, 1], [], []>} : vector<48x384xbf16>, vector<384x384xbf16>, vector<48x384xf32> -> vector<48x384xf32>
    %c0_3 = arith.constant 0 : index
    %c0_4 = arith.constant 0 : index
    %3 = vector.load %arg4[%c0_3, %c0_4] : memref<1x384xf32, #tpu.memory_space<vmem>>, vector<1x384xf32>
    %4 = vector.broadcast %3 : vector<1x384xf32> to vector<48x384xf32>
    %5 = arith.addf %2, %4 : vector<48x384xf32>
    %c0_5 = arith.constant 0 : index
    %c0_6 = arith.constant 0 : index
    %6 = vector.load %arg5[%c0_5, %c0_6] : memref<48x384xf32, #tpu.memory_space<vmem>>, vector<48x384xf32>
    %7 = arith.addf %5, %6 : vector<48x384xf32>
    %c0_7 = arith.constant 0 : index
    %c0_8 = arith.constant 0 : index
    %8 = vector.load %arg6[%c0_7, %c0_8] : memref<48x384xf32, #tpu.memory_space<vmem>>, vector<48x384xf32>
    tpu.vector_store %arg6[%c0_7, %c0_8], %7 {strides = array<i32>} : memref<48x384xf32, #tpu.memory_space<vmem>>, vector<48x384xf32>,
    return
  }
  func.func @transform_0(%arg0: i32, %arg1: i32) -> (i32, i32) {
    %c0_i32 = arith.constant 0 : i32
    %c0_i32_0 = arith.constant 0 : i32
    return %arg0, %c0_i32 : i32, i32
  }
  func.func @transform_1(%arg0: i32, %arg1: i32) -> (i32, i32) {
    %c0_i32 = arith.constant 0 : i32
    %c0_i32_0 = arith.constant 0 : i32
    return %c0_i32, %arg1 : i32, i32
  }
  func.func @transform_2(%arg0: i32, %arg1: i32) -> (i32, i32) {
    %c0_i32 = arith.constant 0 : i32
    %c0_i32_0 = arith.constant 0 : i32
    return %c0_i32, %arg1 : i32, i32
  }
  func.func @transform_3(%arg0: i32, %arg1: i32) -> (i32, i32) {
    %c0_i32 = arith.constant 0 : i32
    return %arg0, %arg1 : i32, i32
  }
  func.func @transform_4(%arg0: i32, %arg1: i32) -> (i32, i32) {
    %c0_i32 = arith.constant 0 : i32
    return %arg0, %arg1 : i32, i32
  }
}

module attributes {stable_mosaic.version = 11 : i64} {
  func.func @_attn_kernel(%arg0: i32, %arg1: memref<1x24x1152xbf16, #tpu.memory_space<vmem>>, %arg2: memref<1x24x384xbf16, #tpu.memory_space<vmem>>) attributes {dimension_semantics = [#tpu.dimension_semantics<parallel>], iteration_bounds = array<i64: 2>, scalar_prefetch = 0 : i64, scratch_operands = 0 : i64, tpu.core_type = #tpu.core_type<tc>, window_params = [{transform_indices = @transform_0, window_bounds = array<i64: 1, 24, 1152>}, {transform_indices = @transform_1, window_bounds = array<i64: 1, 24, 384>}]} {
    %c0 = arith.constant 0 : index
    %c0_0 = arith.constant 0 : index
    %c0_1 = arith.constant 0 : index
    %0 = vector.load %arg1[%c0, %c0_0, %c0_1] : memref<1x24x1152xbf16, #tpu.memory_space<vmem>>, vector<1x24x384xbf16>
    %1 = vector.shape_cast %0 : vector<1x24x384xbf16> to vector<24x384xbf16>
    %c0_2 = arith.constant 0 : index
    %c0_3 = arith.constant 0 : index
    %c384 = arith.constant 384 : index
    %2 = vector.load %arg1[%c0_2, %c0_3, %c384] : memref<1x24x1152xbf16, #tpu.memory_space<vmem>>, vector<1x24x384xbf16>
    %3 = vector.shape_cast %2 : vector<1x24x384xbf16> to vector<24x384xbf16>
    %c0_4 = arith.constant 0 : index
    %c0_5 = arith.constant 0 : index
    %c768 = arith.constant 768 : index
    %4 = vector.load %arg1[%c0_4, %c0_5, %c768] : memref<1x24x1152xbf16, #tpu.memory_space<vmem>>, vector<1x24x384xbf16>
    %5 = vector.shape_cast %4 : vector<1x24x384xbf16> to vector<24x384xbf16>
    %6 = tpu.iota {dimensions = array<i32: 1>} : vector<1x24xi32>
    %c17_i32 = arith.constant 17 : i32
    %7 = vector.broadcast %c17_i32 : i32 to vector<1x24xi32>
    %8 = arith.cmpi slt, %6, %7 : vector<1x24xi32>
    %9 = vector.extract_strided_slice %1 {offsets = [0, 0], sizes = [24, 64], strides = [1, 1]} : vector<24x384xbf16> to vector<24x64xbf16>
    %10 = vector.extract_strided_slice %3 {offsets = [0, 0], sizes = [24, 64], strides = [1, 1]} : vector<24x384xbf16> to vector<24x64xbf16>
    %11 = vector.extract_strided_slice %5 {offsets = [0, 0], sizes = [24, 64], strides = [1, 1]} : vector<24x384xbf16> to vector<24x64xbf16>
    %cst = arith.constant dense<0.000000e+00> : vector<24x24xf32>
    %12 = tpu.matmul %9, %10, %cst {dimension_numbers = #tpu.dot_dimension_numbers<[1], [1], [0], [0], [0, 0, 1, 0], [], []>} : vector<24x64xbf16>, vector<24x64xbf16>, vector<24x24xf32> -> vector<24x24xf32>
    %cst_6 = arith.constant 1.250000e-01 : f32
    %13 = vector.broadcast %cst_6 : f32 to vector<24x24xf32>
    %14 = arith.mulf %12, %13 : vector<24x24xf32>
    %cst_7 = arith.constant -1.000000e+30 : f32
    %15 = vector.shape_cast %8 : vector<1x24xi1> to vector<1x24xi1>
    %16 = vector.broadcast %15 : vector<1x24xi1> to vector<24x24xi1>
    %17 = vector.broadcast %cst_7 : f32 to vector<24x24xf32>
    %18 = arith.select %16, %14, %17 : vector<24x24xi1>, vector<24x24xf32>
    %cst_8 = arith.constant dense<0xFF800000> : vector<24xf32>
    %19 = vector.multi_reduction <maximumf>, %18, %cst_8 [1] : vector<24x24xf32> to vector<24xf32>
    %20 = vector.shape_cast %19 : vector<24xf32> to vector<24x1xf32>
    %21 = vector.broadcast %20 : vector<24x1xf32> to vector<24x24xf32>
    %22 = arith.subf %18, %21 : vector<24x24xf32>
    %23 = math.exp %22 : vector<24x24xf32>
    %cst_9 = arith.constant dense<0.000000e+00> : vector<24xf32>
    %24 = vector.multi_reduction <add>, %23, %cst_9 [1] : vector<24x24xf32> to vector<24xf32>
    %25 = vector.shape_cast %24 : vector<24xf32> to vector<24x1xf32>
    %26 = tpu.reciprocal %25 {approx = true} : vector<24x1xf32> -> vector<24x1xf32>
    %27 = vector.broadcast %26 : vector<24x1xf32> to vector<24x24xf32>
    %28 = arith.mulf %23, %27 : vector<24x24xf32>
    %29 = arith.truncf %28 : vector<24x24xf32> to vector<24x24xbf16>
    %cst_10 = arith.constant dense<0.000000e+00> : vector<24x64xf32>
    %30 = tpu.matmul %29, %11, %cst_10 {dimension_numbers = #tpu.dot_dimension_numbers<[1], [0], [0], [1], [0, 0, 1, 1], [], []>} : vector<24x24xbf16>, vector<24x64xbf16>, vector<24x64xf32> -> vector<24x64xf32>
    %31 = vector.extract_strided_slice %1 {offsets = [0, 64], sizes = [24, 64], strides = [1, 1]} : vector<24x384xbf16> to vector<24x64xbf16>
    %32 = vector.extract_strided_slice %3 {offsets = [0, 64], sizes = [24, 64], strides = [1, 1]} : vector<24x384xbf16> to vector<24x64xbf16>
    %33 = vector.extract_strided_slice %5 {offsets = [0, 64], sizes = [24, 64], strides = [1, 1]} : vector<24x384xbf16> to vector<24x64xbf16>
    %cst_11 = arith.constant dense<0.000000e+00> : vector<24x24xf32>
    %34 = tpu.matmul %31, %32, %cst_11 {dimension_numbers = #tpu.dot_dimension_numbers<[1], [1], [0], [0], [0, 0, 1, 0], [], []>} : vector<24x64xbf16>, vector<24x64xbf16>, vector<24x24xf32> -> vector<24x24xf32>
    %cst_12 = arith.constant 1.250000e-01 : f32
    %35 = vector.broadcast %cst_12 : f32 to vector<24x24xf32>
    %36 = arith.mulf %34, %35 : vector<24x24xf32>
    %cst_13 = arith.constant -1.000000e+30 : f32
    %37 = vector.shape_cast %8 : vector<1x24xi1> to vector<1x24xi1>
    %38 = vector.broadcast %37 : vector<1x24xi1> to vector<24x24xi1>
    %39 = vector.broadcast %cst_13 : f32 to vector<24x24xf32>
    %40 = arith.select %38, %36, %39 : vector<24x24xi1>, vector<24x24xf32>
    %cst_14 = arith.constant dense<0xFF800000> : vector<24xf32>
    %41 = vector.multi_reduction <maximumf>, %40, %cst_14 [1] : vector<24x24xf32> to vector<24xf32>
    %42 = vector.shape_cast %41 : vector<24xf32> to vector<24x1xf32>
    %43 = vector.broadcast %42 : vector<24x1xf32> to vector<24x24xf32>
    %44 = arith.subf %40, %43 : vector<24x24xf32>
    %45 = math.exp %44 : vector<24x24xf32>
    %cst_15 = arith.constant dense<0.000000e+00> : vector<24xf32>
    %46 = vector.multi_reduction <add>, %45, %cst_15 [1] : vector<24x24xf32> to vector<24xf32>
    %47 = vector.shape_cast %46 : vector<24xf32> to vector<24x1xf32>
    %48 = tpu.reciprocal %47 {approx = true} : vector<24x1xf32> -> vector<24x1xf32>
    %49 = vector.broadcast %48 : vector<24x1xf32> to vector<24x24xf32>
    %50 = arith.mulf %45, %49 : vector<24x24xf32>
    %51 = arith.truncf %50 : vector<24x24xf32> to vector<24x24xbf16>
    %cst_16 = arith.constant dense<0.000000e+00> : vector<24x64xf32>
    %52 = tpu.matmul %51, %33, %cst_16 {dimension_numbers = #tpu.dot_dimension_numbers<[1], [0], [0], [1], [0, 0, 1, 1], [], []>} : vector<24x24xbf16>, vector<24x64xbf16>, vector<24x64xf32> -> vector<24x64xf32>
    %53 = vector.extract_strided_slice %1 {offsets = [0, 128], sizes = [24, 64], strides = [1, 1]} : vector<24x384xbf16> to vector<24x64xbf16>
    %54 = vector.extract_strided_slice %3 {offsets = [0, 128], sizes = [24, 64], strides = [1, 1]} : vector<24x384xbf16> to vector<24x64xbf16>
    %55 = vector.extract_strided_slice %5 {offsets = [0, 128], sizes = [24, 64], strides = [1, 1]} : vector<24x384xbf16> to vector<24x64xbf16>
    %cst_17 = arith.constant dense<0.000000e+00> : vector<24x24xf32>
    %56 = tpu.matmul %53, %54, %cst_17 {dimension_numbers = #tpu.dot_dimension_numbers<[1], [1], [0], [0], [0, 0, 1, 0], [], []>} : vector<24x64xbf16>, vector<24x64xbf16>, vector<24x24xf32> -> vector<24x24xf32>
    %cst_18 = arith.constant 1.250000e-01 : f32
    %57 = vector.broadcast %cst_18 : f32 to vector<24x24xf32>
    %58 = arith.mulf %56, %57 : vector<24x24xf32>
    %cst_19 = arith.constant -1.000000e+30 : f32
    %59 = vector.shape_cast %8 : vector<1x24xi1> to vector<1x24xi1>
    %60 = vector.broadcast %59 : vector<1x24xi1> to vector<24x24xi1>
    %61 = vector.broadcast %cst_19 : f32 to vector<24x24xf32>
    %62 = arith.select %60, %58, %61 : vector<24x24xi1>, vector<24x24xf32>
    %cst_20 = arith.constant dense<0xFF800000> : vector<24xf32>
    %63 = vector.multi_reduction <maximumf>, %62, %cst_20 [1] : vector<24x24xf32> to vector<24xf32>
    %64 = vector.shape_cast %63 : vector<24xf32> to vector<24x1xf32>
    %65 = vector.broadcast %64 : vector<24x1xf32> to vector<24x24xf32>
    %66 = arith.subf %62, %65 : vector<24x24xf32>
    %67 = math.exp %66 : vector<24x24xf32>
    %cst_21 = arith.constant dense<0.000000e+00> : vector<24xf32>
    %68 = vector.multi_reduction <add>, %67, %cst_21 [1] : vector<24x24xf32> to vector<24xf32>
    %69 = vector.shape_cast %68 : vector<24xf32> to vector<24x1xf32>
    %70 = tpu.reciprocal %69 {approx = true} : vector<24x1xf32> -> vector<24x1xf32>
    %71 = vector.broadcast %70 : vector<24x1xf32> to vector<24x24xf32>
    %72 = arith.mulf %67, %71 : vector<24x24xf32>
    %73 = arith.truncf %72 : vector<24x24xf32> to vector<24x24xbf16>
    %cst_22 = arith.constant dense<0.000000e+00> : vector<24x64xf32>
    %74 = tpu.matmul %73, %55, %cst_22 {dimension_numbers = #tpu.dot_dimension_numbers<[1], [0], [0], [1], [0, 0, 1, 1], [], []>} : vector<24x24xbf16>, vector<24x64xbf16>, vector<24x64xf32> -> vector<24x64xf32>
    %75 = vector.extract_strided_slice %1 {offsets = [0, 192], sizes = [24, 64], strides = [1, 1]} : vector<24x384xbf16> to vector<24x64xbf16>
    %76 = vector.extract_strided_slice %3 {offsets = [0, 192], sizes = [24, 64], strides = [1, 1]} : vector<24x384xbf16> to vector<24x64xbf16>
    %77 = vector.extract_strided_slice %5 {offsets = [0, 192], sizes = [24, 64], strides = [1, 1]} : vector<24x384xbf16> to vector<24x64xbf16>
    %cst_23 = arith.constant dense<0.000000e+00> : vector<24x24xf32>
    %78 = tpu.matmul %75, %76, %cst_23 {dimension_numbers = #tpu.dot_dimension_numbers<[1], [1], [0], [0], [0, 0, 1, 0], [], []>} : vector<24x64xbf16>, vector<24x64xbf16>, vector<24x24xf32> -> vector<24x24xf32>
    %cst_24 = arith.constant 1.250000e-01 : f32
    %79 = vector.broadcast %cst_24 : f32 to vector<24x24xf32>
    %80 = arith.mulf %78, %79 : vector<24x24xf32>
    %cst_25 = arith.constant -1.000000e+30 : f32
    %81 = vector.shape_cast %8 : vector<1x24xi1> to vector<1x24xi1>
    %82 = vector.broadcast %81 : vector<1x24xi1> to vector<24x24xi1>
    %83 = vector.broadcast %cst_25 : f32 to vector<24x24xf32>
    %84 = arith.select %82, %80, %83 : vector<24x24xi1>, vector<24x24xf32>
    %cst_26 = arith.constant dense<0xFF800000> : vector<24xf32>
    %85 = vector.multi_reduction <maximumf>, %84, %cst_26 [1] : vector<24x24xf32> to vector<24xf32>
    %86 = vector.shape_cast %85 : vector<24xf32> to vector<24x1xf32>
    %87 = vector.broadcast %86 : vector<24x1xf32> to vector<24x24xf32>
    %88 = arith.subf %84, %87 : vector<24x24xf32>
    %89 = math.exp %88 : vector<24x24xf32>
    %cst_27 = arith.constant dense<0.000000e+00> : vector<24xf32>
    %90 = vector.multi_reduction <add>, %89, %cst_27 [1] : vector<24x24xf32> to vector<24xf32>
    %91 = vector.shape_cast %90 : vector<24xf32> to vector<24x1xf32>
    %92 = tpu.reciprocal %91 {approx = true} : vector<24x1xf32> -> vector<24x1xf32>
    %93 = vector.broadcast %92 : vector<24x1xf32> to vector<24x24xf32>
    %94 = arith.mulf %89, %93 : vector<24x24xf32>
    %95 = arith.truncf %94 : vector<24x24xf32> to vector<24x24xbf16>
    %cst_28 = arith.constant dense<0.000000e+00> : vector<24x64xf32>
    %96 = tpu.matmul %95, %77, %cst_28 {dimension_numbers = #tpu.dot_dimension_numbers<[1], [0], [0], [1], [0, 0, 1, 1], [], []>} : vector<24x24xbf16>, vector<24x64xbf16>, vector<24x64xf32> -> vector<24x64xf32>
    %97 = vector.extract_strided_slice %1 {offsets = [0, 256], sizes = [24, 64], strides = [1, 1]} : vector<24x384xbf16> to vector<24x64xbf16>
    %98 = vector.extract_strided_slice %3 {offsets = [0, 256], sizes = [24, 64], strides = [1, 1]} : vector<24x384xbf16> to vector<24x64xbf16>
    %99 = vector.extract_strided_slice %5 {offsets = [0, 256], sizes = [24, 64], strides = [1, 1]} : vector<24x384xbf16> to vector<24x64xbf16>
    %cst_29 = arith.constant dense<0.000000e+00> : vector<24x24xf32>
    %100 = tpu.matmul %97, %98, %cst_29 {dimension_numbers = #tpu.dot_dimension_numbers<[1], [1], [0], [0], [0, 0, 1, 0], [], []>} : vector<24x64xbf16>, vector<24x64xbf16>, vector<24x24xf32> -> vector<24x24xf32>
    %cst_30 = arith.constant 1.250000e-01 : f32
    %101 = vector.broadcast %cst_30 : f32 to vector<24x24xf32>
    %102 = arith.mulf %100, %101 : vector<24x24xf32>
    %cst_31 = arith.constant -1.000000e+30 : f32
    %103 = vector.shape_cast %8 : vector<1x24xi1> to vector<1x24xi1>
    %104 = vector.broadcast %103 : vector<1x24xi1> to vector<24x24xi1>
    %105 = vector.broadcast %cst_31 : f32 to vector<24x24xf32>
    %106 = arith.select %104, %102, %105 : vector<24x24xi1>, vector<24x24xf32>
    %cst_32 = arith.constant dense<0xFF800000> : vector<24xf32>
    %107 = vector.multi_reduction <maximumf>, %106, %cst_32 [1] : vector<24x24xf32> to vector<24xf32>
    %108 = vector.shape_cast %107 : vector<24xf32> to vector<24x1xf32>
    %109 = vector.broadcast %108 : vector<24x1xf32> to vector<24x24xf32>
    %110 = arith.subf %106, %109 : vector<24x24xf32>
    %111 = math.exp %110 : vector<24x24xf32>
    %cst_33 = arith.constant dense<0.000000e+00> : vector<24xf32>
    %112 = vector.multi_reduction <add>, %111, %cst_33 [1] : vector<24x24xf32> to vector<24xf32>
    %113 = vector.shape_cast %112 : vector<24xf32> to vector<24x1xf32>
    %114 = tpu.reciprocal %113 {approx = true} : vector<24x1xf32> -> vector<24x1xf32>
    %115 = vector.broadcast %114 : vector<24x1xf32> to vector<24x24xf32>
    %116 = arith.mulf %111, %115 : vector<24x24xf32>
    %117 = arith.truncf %116 : vector<24x24xf32> to vector<24x24xbf16>
    %cst_34 = arith.constant dense<0.000000e+00> : vector<24x64xf32>
    %118 = tpu.matmul %117, %99, %cst_34 {dimension_numbers = #tpu.dot_dimension_numbers<[1], [0], [0], [1], [0, 0, 1, 1], [], []>} : vector<24x24xbf16>, vector<24x64xbf16>, vector<24x64xf32> -> vector<24x64xf32>
    %119 = vector.extract_strided_slice %1 {offsets = [0, 320], sizes = [24, 64], strides = [1, 1]} : vector<24x384xbf16> to vector<24x64xbf16>
    %120 = vector.extract_strided_slice %3 {offsets = [0, 320], sizes = [24, 64], strides = [1, 1]} : vector<24x384xbf16> to vector<24x64xbf16>
    %121 = vector.extract_strided_slice %5 {offsets = [0, 320], sizes = [24, 64], strides = [1, 1]} : vector<24x384xbf16> to vector<24x64xbf16>
    %cst_35 = arith.constant dense<0.000000e+00> : vector<24x24xf32>
    %122 = tpu.matmul %119, %120, %cst_35 {dimension_numbers = #tpu.dot_dimension_numbers<[1], [1], [0], [0], [0, 0, 1, 0], [], []>} : vector<24x64xbf16>, vector<24x64xbf16>, vector<24x24xf32> -> vector<24x24xf32>
    %cst_36 = arith.constant 1.250000e-01 : f32
    %123 = vector.broadcast %cst_36 : f32 to vector<24x24xf32>
    %124 = arith.mulf %122, %123 : vector<24x24xf32>
    %cst_37 = arith.constant -1.000000e+30 : f32
    %125 = vector.shape_cast %8 : vector<1x24xi1> to vector<1x24xi1>
    %126 = vector.broadcast %125 : vector<1x24xi1> to vector<24x24xi1>
    %127 = vector.broadcast %cst_37 : f32 to vector<24x24xf32>
    %128 = arith.select %126, %124, %127 : vector<24x24xi1>, vector<24x24xf32>
    %cst_38 = arith.constant dense<0xFF800000> : vector<24xf32>
    %129 = vector.multi_reduction <maximumf>, %128, %cst_38 [1] : vector<24x24xf32> to vector<24xf32>
    %130 = vector.shape_cast %129 : vector<24xf32> to vector<24x1xf32>
    %131 = vector.broadcast %130 : vector<24x1xf32> to vector<24x24xf32>
    %132 = arith.subf %128, %131 : vector<24x24xf32>
    %133 = math.exp %132 : vector<24x24xf32>
    %cst_39 = arith.constant dense<0.000000e+00> : vector<24xf32>
    %134 = vector.multi_reduction <add>, %133, %cst_39 [1] : vector<24x24xf32> to vector<24xf32>
    %135 = vector.shape_cast %134 : vector<24xf32> to vector<24x1xf32>
    %136 = tpu.reciprocal %135 {approx = true} : vector<24x1xf32> -> vector<24x1xf32>
    %137 = vector.broadcast %136 : vector<24x1xf32> to vector<24x24xf32>
    %138 = arith.mulf %133, %137 : vector<24x24xf32>
    %139 = arith.truncf %138 : vector<24x24xf32> to vector<24x24xbf16>
    %cst_40 = arith.constant dense<0.000000e+00> : vector<24x64xf32>
    %140 = tpu.matmul %139, %121, %cst_40 {dimension_numbers = #tpu.dot_dimension_numbers<[1], [0], [0], [1], [0, 0, 1, 1], [], []>} : vector<24x24xbf16>, vector<24x64xbf16>, vector<24x64xf32> -> vector<24x64xf32>
    %141 = tpu.concatenate %30, %52, %74, %96, %118, %140 in 1 : vector<24x64xf32>, vector<24x64xf32>, vector<24x64xf32>, vector<24x64xf32>, vector<24x64xf32>, vector<24x64xf32> -> vector<24x384xf32>
    %142 = arith.truncf %141 : vector<24x384xf32> to vector<24x384xbf16>
    %c0_41 = arith.constant 0 : index
    %c0_42 = arith.constant 0 : index
    %c0_43 = arith.constant 0 : index
    %143 = vector.load %arg2[%c0_41, %c0_42, %c0_43] : memref<1x24x384xbf16, #tpu.memory_space<vmem>>, vector<1x24x384xbf16>
    %144 = vector.shape_cast %143 : vector<1x24x384xbf16> to vector<24x384xbf16>
    %145 = vector.shape_cast %142 : vector<24x384xbf16> to vector<1x24x384xbf16>
    tpu.vector_store %arg2[%c0_41, %c0_42, %c0_43], %145 {strides = array<i32>} : memref<1x24x384xbf16, #tpu.memory_space<vmem>>, vector<1x24x384xbf16>,
    return
  }
  func.func @transform_0(%arg0: i32) -> (i32, i32, i32) {
    %c0_i32 = arith.constant 0 : i32
    %c0_i32_0 = arith.constant 0 : i32
    %c0_i32_1 = arith.constant 0 : i32
    return %arg0, %c0_i32, %c0_i32_0 : i32, i32, i32
  }
  func.func @transform_1(%arg0: i32) -> (i32, i32, i32) {
    %c0_i32 = arith.constant 0 : i32
    %c0_i32_0 = arith.constant 0 : i32
    %c0_i32_1 = arith.constant 0 : i32
    return %arg0, %c0_i32, %c0_i32_0 : i32, i32, i32
  }
}

module attributes {stable_mosaic.version = 11 : i64} {
  func.func @_ln_matmul_bias_kernel(%arg0: i32, %arg1: i32, %arg2: memref<48x384xf32, #tpu.memory_space<vmem>>, %arg3: memref<1x384xf32, #tpu.memory_space<vmem>>, %arg4: memref<1x384xf32, #tpu.memory_space<vmem>>, %arg5: memref<384x512xbf16, #tpu.memory_space<vmem>>, %arg6: memref<1x512xf32, #tpu.memory_space<vmem>>, %arg7: memref<48x512xbf16, #tpu.memory_space<vmem>>) attributes {dimension_semantics = [#tpu.dimension_semantics<parallel>, #tpu.dimension_semantics<parallel>], iteration_bounds = array<i64: 1, 3>, scalar_prefetch = 0 : i64, scratch_operands = 0 : i64, tpu.core_type = #tpu.core_type<tc>, window_params = [{transform_indices = @transform_0, window_bounds = array<i64: 48, 384>}, {pipeline_mode = #tpu.pipeline_mode<synchronous>, transform_indices = @transform_1, window_bounds = array<i64: 1, 384>}, {pipeline_mode = #tpu.pipeline_mode<synchronous>, transform_indices = @transform_2, window_bounds = array<i64: 1, 384>}, {transform_indices = @transform_3, window_bounds = array<i64: 384, 512>}, {transform_indices = @transform_4, window_bounds = array<i64: 1, 512>}, {transform_indices = @transform_5, window_bounds = array<i64: 48, 512>}]} {
    %c0 = arith.constant 0 : index
    %c0_0 = arith.constant 0 : index
    %0 = vector.load %arg2[%c0, %c0_0] : memref<48x384xf32, #tpu.memory_space<vmem>>, vector<48x384xf32>
    %cst = arith.constant dense<0.000000e+00> : vector<48xf32>
    %1 = vector.multi_reduction <add>, %0, %cst [1] : vector<48x384xf32> to vector<48xf32>
    %2 = vector.shape_cast %1 : vector<48xf32> to vector<48x1xf32>
    %cst_1 = arith.constant 3.840000e+02 : f32
    %3 = vector.broadcast %cst_1 : f32 to vector<48x1xf32>
    %4 = arith.divf %2, %3 : vector<48x1xf32>
    %5 = vector.broadcast %4 : vector<48x1xf32> to vector<48x384xf32>
    %6 = arith.subf %0, %5 : vector<48x384xf32>
    %7 = arith.mulf %6, %6 : vector<48x384xf32>
    %cst_2 = arith.constant dense<0.000000e+00> : vector<48xf32>
    %8 = vector.multi_reduction <add>, %7, %cst_2 [1] : vector<48x384xf32> to vector<48xf32>
    %9 = vector.shape_cast %8 : vector<48xf32> to vector<48x1xf32>
    %cst_3 = arith.constant 3.840000e+02 : f32
    %10 = vector.broadcast %cst_3 : f32 to vector<48x1xf32>
    %11 = arith.divf %9, %10 : vector<48x1xf32>
    %cst_4 = arith.constant 9.99999997E-7 : f32
    %12 = vector.broadcast %cst_4 : f32 to vector<48x1xf32>
    %13 = arith.addf %11, %12 : vector<48x1xf32>
    %14 = math.rsqrt %13 : vector<48x1xf32>
    %15 = vector.broadcast %14 : vector<48x1xf32> to vector<48x384xf32>
    %16 = arith.mulf %6, %15 : vector<48x384xf32>
    %c0_5 = arith.constant 0 : index
    %c0_6 = arith.constant 0 : index
    %17 = vector.load %arg3[%c0_5, %c0_6] : memref<1x384xf32, #tpu.memory_space<vmem>>, vector<1x384xf32>
    %18 = vector.broadcast %17 : vector<1x384xf32> to vector<48x384xf32>
    %19 = arith.mulf %16, %18 : vector<48x384xf32>
    %c0_7 = arith.constant 0 : index
    %c0_8 = arith.constant 0 : index
    %20 = vector.load %arg4[%c0_7, %c0_8] : memref<1x384xf32, #tpu.memory_space<vmem>>, vector<1x384xf32>
    %21 = vector.broadcast %20 : vector<1x384xf32> to vector<48x384xf32>
    %22 = arith.addf %19, %21 : vector<48x384xf32>
    %23 = arith.truncf %22 : vector<48x384xf32> to vector<48x384xbf16>
    %c0_9 = arith.constant 0 : index
    %c0_10 = arith.constant 0 : index
    %24 = vector.load %arg5[%c0_9, %c0_10] : memref<384x512xbf16, #tpu.memory_space<vmem>>, vector<384x512xbf16>
    %cst_11 = arith.constant dense<0.000000e+00> : vector<48x512xf32>
    %25 = tpu.matmul %23, %24, %cst_11 {dimension_numbers = #tpu.dot_dimension_numbers<[1], [0], [0], [1], [0, 0, 1, 1], [], []>} : vector<48x384xbf16>, vector<384x512xbf16>, vector<48x512xf32> -> vector<48x512xf32>
    %c0_12 = arith.constant 0 : index
    %c0_13 = arith.constant 0 : index
    %26 = vector.load %arg6[%c0_12, %c0_13] : memref<1x512xf32, #tpu.memory_space<vmem>>, vector<1x512xf32>
    %27 = vector.broadcast %26 : vector<1x512xf32> to vector<48x512xf32>
    %28 = arith.addf %25, %27 : vector<48x512xf32>
    %cst_14 = arith.constant 5.000000e-01 : f32
    %29 = vector.broadcast %cst_14 : f32 to vector<48x512xf32>
    %30 = arith.mulf %29, %28 : vector<48x512xf32>
    %cst_15 = arith.constant 0.707106769 : f32
    %31 = vector.broadcast %cst_15 : f32 to vector<48x512xf32>
    %32 = arith.mulf %28, %31 : vector<48x512xf32>
    %33 = math.erf %32 : vector<48x512xf32>
    %cst_16 = arith.constant 1.000000e+00 : f32
    %34 = vector.broadcast %cst_16 : f32 to vector<48x512xf32>
    %35 = arith.addf %34, %33 : vector<48x512xf32>
    %36 = arith.mulf %30, %35 : vector<48x512xf32>
    %37 = arith.truncf %36 : vector<48x512xf32> to vector<48x512xbf16>
    %c0_17 = arith.constant 0 : index
    %c0_18 = arith.constant 0 : index
    %38 = vector.load %arg7[%c0_17, %c0_18] : memref<48x512xbf16, #tpu.memory_space<vmem>>, vector<48x512xbf16>
    tpu.vector_store %arg7[%c0_17, %c0_18], %37 {strides = array<i32>} : memref<48x512xbf16, #tpu.memory_space<vmem>>, vector<48x512xbf16>,
    return
  }
  func.func @transform_0(%arg0: i32, %arg1: i32) -> (i32, i32) {
    %c0_i32 = arith.constant 0 : i32
    %c0_i32_0 = arith.constant 0 : i32
    return %arg0, %c0_i32 : i32, i32
  }
  func.func @transform_1(%arg0: i32, %arg1: i32) -> (i32, i32) {
    %c0_i32 = arith.constant 0 : i32
    %c0_i32_0 = arith.constant 0 : i32
    %c0_i32_1 = arith.constant 0 : i32
    return %c0_i32, %c0_i32_0 : i32, i32
  }
  func.func @transform_2(%arg0: i32, %arg1: i32) -> (i32, i32) {
    %c0_i32 = arith.constant 0 : i32
    %c0_i32_0 = arith.constant 0 : i32
    %c0_i32_1 = arith.constant 0 : i32
    return %c0_i32, %c0_i32_0 : i32, i32
  }
  func.func @transform_3(%arg0: i32, %arg1: i32) -> (i32, i32) {
    %c0_i32 = arith.constant 0 : i32
    %c0_i32_0 = arith.constant 0 : i32
    return %c0_i32, %arg1 : i32, i32
  }
  func.func @transform_4(%arg0: i32, %arg1: i32) -> (i32, i32) {
    %c0_i32 = arith.constant 0 : i32
    %c0_i32_0 = arith.constant 0 : i32
    return %c0_i32, %arg1 : i32, i32
  }
  func.func @transform_5(%arg0: i32, %arg1: i32) -> (i32, i32) {
    %c0_i32 = arith.constant 0 : i32
    return %arg0, %arg1 : i32, i32
  }
}

module attributes {stable_mosaic.version = 11 : i64} {
  func.func @_matmul_bias_res_kernel(%arg0: i32, %arg1: i32, %arg2: memref<48x1536xbf16, #tpu.memory_space<vmem>>, %arg3: memref<1536x384xbf16, #tpu.memory_space<vmem>>, %arg4: memref<1x384xf32, #tpu.memory_space<vmem>>, %arg5: memref<48x384xf32, #tpu.memory_space<vmem>>, %arg6: memref<48x384xf32, #tpu.memory_space<vmem>>) attributes {dimension_semantics = [#tpu.dimension_semantics<parallel>, #tpu.dimension_semantics<parallel>], iteration_bounds = array<i64: 1, 1>, scalar_prefetch = 0 : i64, scratch_operands = 0 : i64, tpu.core_type = #tpu.core_type<tc>, window_params = [{transform_indices = @transform_0, window_bounds = array<i64: 48, 1536>}, {transform_indices = @transform_1, window_bounds = array<i64: 1536, 384>}, {transform_indices = @transform_2, window_bounds = array<i64: 1, 384>}, {transform_indices = @transform_3, window_bounds = array<i64: 48, 384>}, {transform_indices = @transform_4, window_bounds = array<i64: 48, 384>}]} {
    %c0 = arith.constant 0 : index
    %c0_0 = arith.constant 0 : index
    %0 = vector.load %arg2[%c0, %c0_0] : memref<48x1536xbf16, #tpu.memory_space<vmem>>, vector<48x1536xbf16>
    %c0_1 = arith.constant 0 : index
    %c0_2 = arith.constant 0 : index
    %1 = vector.load %arg3[%c0_1, %c0_2] : memref<1536x384xbf16, #tpu.memory_space<vmem>>, vector<1536x384xbf16>
    %cst = arith.constant dense<0.000000e+00> : vector<48x384xf32>
    %2 = tpu.matmul %0, %1, %cst {dimension_numbers = #tpu.dot_dimension_numbers<[1], [0], [0], [1], [0, 0, 1, 1], [], []>} : vector<48x1536xbf16>, vector<1536x384xbf16>, vector<48x384xf32> -> vector<48x384xf32>
    %c0_3 = arith.constant 0 : index
    %c0_4 = arith.constant 0 : index
    %3 = vector.load %arg4[%c0_3, %c0_4] : memref<1x384xf32, #tpu.memory_space<vmem>>, vector<1x384xf32>
    %4 = vector.broadcast %3 : vector<1x384xf32> to vector<48x384xf32>
    %5 = arith.addf %2, %4 : vector<48x384xf32>
    %c0_5 = arith.constant 0 : index
    %c0_6 = arith.constant 0 : index
    %6 = vector.load %arg5[%c0_5, %c0_6] : memref<48x384xf32, #tpu.memory_space<vmem>>, vector<48x384xf32>
    %7 = arith.addf %5, %6 : vector<48x384xf32>
    %c0_7 = arith.constant 0 : index
    %c0_8 = arith.constant 0 : index
    %8 = vector.load %arg6[%c0_7, %c0_8] : memref<48x384xf32, #tpu.memory_space<vmem>>, vector<48x384xf32>
    tpu.vector_store %arg6[%c0_7, %c0_8], %7 {strides = array<i32>} : memref<48x384xf32, #tpu.memory_space<vmem>>, vector<48x384xf32>,
    return
  }
  func.func @transform_0(%arg0: i32, %arg1: i32) -> (i32, i32) {
    %c0_i32 = arith.constant 0 : i32
    %c0_i32_0 = arith.constant 0 : i32
    return %arg0, %c0_i32 : i32, i32
  }
  func.func @transform_1(%arg0: i32, %arg1: i32) -> (i32, i32) {
    %c0_i32 = arith.constant 0 : i32
    %c0_i32_0 = arith.constant 0 : i32
    return %c0_i32, %arg1 : i32, i32
  }
  func.func @transform_2(%arg0: i32, %arg1: i32) -> (i32, i32) {
    %c0_i32 = arith.constant 0 : i32
    %c0_i32_0 = arith.constant 0 : i32
    return %c0_i32, %arg1 : i32, i32
  }
  func.func @transform_3(%arg0: i32, %arg1: i32) -> (i32, i32) {
    %c0_i32 = arith.constant 0 : i32
    return %arg0, %arg1 : i32, i32
  }
  func.func @transform_4(%arg0: i32, %arg1: i32) -> (i32, i32) {
    %c0_i32 = arith.constant 0 : i32
    return %arg0, %arg1 : i32, i32
  }
}

module attributes {stable_mosaic.version = 11 : i64} {
  func.func @_attn_cls_kernel(%arg0: i32, %arg1: memref<1x24x1152xbf16, #tpu.memory_space<vmem>>, %arg2: memref<1x6x24xf32, #tpu.memory_space<vmem>>) attributes {dimension_semantics = [#tpu.dimension_semantics<parallel>], iteration_bounds = array<i64: 2>, scalar_prefetch = 0 : i64, scratch_operands = 0 : i64, tpu.core_type = #tpu.core_type<tc>, window_params = [{transform_indices = @transform_0, window_bounds = array<i64: 1, 24, 1152>}, {transform_indices = @transform_1, window_bounds = array<i64: 1, 6, 24>}]} {
    %c0 = arith.constant 0 : index
    %c0_0 = arith.constant 0 : index
    %c0_1 = arith.constant 0 : index
    %0 = vector.load %arg1[%c0, %c0_0, %c0_1] : memref<1x24x1152xbf16, #tpu.memory_space<vmem>>, vector<1x1x384xbf16>
    %1 = vector.shape_cast %0 : vector<1x1x384xbf16> to vector<1x384xbf16>
    %c0_2 = arith.constant 0 : index
    %c0_3 = arith.constant 0 : index
    %c384 = arith.constant 384 : index
    %2 = vector.load %arg1[%c0_2, %c0_3, %c384] : memref<1x24x1152xbf16, #tpu.memory_space<vmem>>, vector<1x24x384xbf16>
    %3 = vector.shape_cast %2 : vector<1x24x384xbf16> to vector<24x384xbf16>
    %4 = tpu.iota {dimensions = array<i32: 1>} : vector<1x24xi32>
    %c17_i32 = arith.constant 17 : i32
    %5 = vector.broadcast %c17_i32 : i32 to vector<1x24xi32>
    %6 = arith.cmpi slt, %4, %5 : vector<1x24xi32>
    %7 = vector.extract_strided_slice %1 {offsets = [0, 0], sizes = [1, 64], strides = [1, 1]} : vector<1x384xbf16> to vector<1x64xbf16>
    %8 = vector.extract_strided_slice %3 {offsets = [0, 0], sizes = [24, 64], strides = [1, 1]} : vector<24x384xbf16> to vector<24x64xbf16>
    %cst = arith.constant dense<0.000000e+00> : vector<1x24xf32>
    %9 = tpu.matmul %7, %8, %cst {dimension_numbers = #tpu.dot_dimension_numbers<[1], [1], [0], [0], [0, 0, 1, 0], [], []>} : vector<1x64xbf16>, vector<24x64xbf16>, vector<1x24xf32> -> vector<1x24xf32>
    %cst_4 = arith.constant 1.250000e-01 : f32
    %10 = vector.broadcast %cst_4 : f32 to vector<1x24xf32>
    %11 = arith.mulf %9, %10 : vector<1x24xf32>
    %cst_5 = arith.constant -1.000000e+30 : f32
    %12 = vector.broadcast %cst_5 : f32 to vector<1x24xf32>
    %13 = arith.select %6, %11, %12 : vector<1x24xi1>, vector<1x24xf32>
    %cst_6 = arith.constant dense<0xFF800000> : vector<1xf32>
    %14 = vector.multi_reduction <maximumf>, %13, %cst_6 [1] : vector<1x24xf32> to vector<1xf32>
    %15 = vector.shape_cast %14 : vector<1xf32> to vector<1x1xf32>
    %16 = vector.broadcast %15 : vector<1x1xf32> to vector<1x24xf32>
    %17 = arith.subf %13, %16 : vector<1x24xf32>
    %18 = math.exp %17 : vector<1x24xf32>
    %cst_7 = arith.constant dense<0.000000e+00> : vector<1xf32>
    %19 = vector.multi_reduction <add>, %18, %cst_7 [1] : vector<1x24xf32> to vector<1xf32>
    %20 = vector.shape_cast %19 : vector<1xf32> to vector<1x1xf32>
    %21 = tpu.reciprocal %20 {approx = true} : vector<1x1xf32> -> vector<1x1xf32>
    %22 = vector.broadcast %21 : vector<1x1xf32> to vector<1x24xf32>
    %23 = arith.mulf %18, %22 : vector<1x24xf32>
    %24 = vector.extract_strided_slice %1 {offsets = [0, 64], sizes = [1, 64], strides = [1, 1]} : vector<1x384xbf16> to vector<1x64xbf16>
    %25 = vector.extract_strided_slice %3 {offsets = [0, 64], sizes = [24, 64], strides = [1, 1]} : vector<24x384xbf16> to vector<24x64xbf16>
    %cst_8 = arith.constant dense<0.000000e+00> : vector<1x24xf32>
    %26 = tpu.matmul %24, %25, %cst_8 {dimension_numbers = #tpu.dot_dimension_numbers<[1], [1], [0], [0], [0, 0, 1, 0], [], []>} : vector<1x64xbf16>, vector<24x64xbf16>, vector<1x24xf32> -> vector<1x24xf32>
    %cst_9 = arith.constant 1.250000e-01 : f32
    %27 = vector.broadcast %cst_9 : f32 to vector<1x24xf32>
    %28 = arith.mulf %26, %27 : vector<1x24xf32>
    %cst_10 = arith.constant -1.000000e+30 : f32
    %29 = vector.broadcast %cst_10 : f32 to vector<1x24xf32>
    %30 = arith.select %6, %28, %29 : vector<1x24xi1>, vector<1x24xf32>
    %cst_11 = arith.constant dense<0xFF800000> : vector<1xf32>
    %31 = vector.multi_reduction <maximumf>, %30, %cst_11 [1] : vector<1x24xf32> to vector<1xf32>
    %32 = vector.shape_cast %31 : vector<1xf32> to vector<1x1xf32>
    %33 = vector.broadcast %32 : vector<1x1xf32> to vector<1x24xf32>
    %34 = arith.subf %30, %33 : vector<1x24xf32>
    %35 = math.exp %34 : vector<1x24xf32>
    %cst_12 = arith.constant dense<0.000000e+00> : vector<1xf32>
    %36 = vector.multi_reduction <add>, %35, %cst_12 [1] : vector<1x24xf32> to vector<1xf32>
    %37 = vector.shape_cast %36 : vector<1xf32> to vector<1x1xf32>
    %38 = tpu.reciprocal %37 {approx = true} : vector<1x1xf32> -> vector<1x1xf32>
    %39 = vector.broadcast %38 : vector<1x1xf32> to vector<1x24xf32>
    %40 = arith.mulf %35, %39 : vector<1x24xf32>
    %41 = vector.extract_strided_slice %1 {offsets = [0, 128], sizes = [1, 64], strides = [1, 1]} : vector<1x384xbf16> to vector<1x64xbf16>
    %42 = vector.extract_strided_slice %3 {offsets = [0, 128], sizes = [24, 64], strides = [1, 1]} : vector<24x384xbf16> to vector<24x64xbf16>
    %cst_13 = arith.constant dense<0.000000e+00> : vector<1x24xf32>
    %43 = tpu.matmul %41, %42, %cst_13 {dimension_numbers = #tpu.dot_dimension_numbers<[1], [1], [0], [0], [0, 0, 1, 0], [], []>} : vector<1x64xbf16>, vector<24x64xbf16>, vector<1x24xf32> -> vector<1x24xf32>
    %cst_14 = arith.constant 1.250000e-01 : f32
    %44 = vector.broadcast %cst_14 : f32 to vector<1x24xf32>
    %45 = arith.mulf %43, %44 : vector<1x24xf32>
    %cst_15 = arith.constant -1.000000e+30 : f32
    %46 = vector.broadcast %cst_15 : f32 to vector<1x24xf32>
    %47 = arith.select %6, %45, %46 : vector<1x24xi1>, vector<1x24xf32>
    %cst_16 = arith.constant dense<0xFF800000> : vector<1xf32>
    %48 = vector.multi_reduction <maximumf>, %47, %cst_16 [1] : vector<1x24xf32> to vector<1xf32>
    %49 = vector.shape_cast %48 : vector<1xf32> to vector<1x1xf32>
    %50 = vector.broadcast %49 : vector<1x1xf32> to vector<1x24xf32>
    %51 = arith.subf %47, %50 : vector<1x24xf32>
    %52 = math.exp %51 : vector<1x24xf32>
    %cst_17 = arith.constant dense<0.000000e+00> : vector<1xf32>
    %53 = vector.multi_reduction <add>, %52, %cst_17 [1] : vector<1x24xf32> to vector<1xf32>
    %54 = vector.shape_cast %53 : vector<1xf32> to vector<1x1xf32>
    %55 = tpu.reciprocal %54 {approx = true} : vector<1x1xf32> -> vector<1x1xf32>
    %56 = vector.broadcast %55 : vector<1x1xf32> to vector<1x24xf32>
    %57 = arith.mulf %52, %56 : vector<1x24xf32>
    %58 = vector.extract_strided_slice %1 {offsets = [0, 192], sizes = [1, 64], strides = [1, 1]} : vector<1x384xbf16> to vector<1x64xbf16>
    %59 = vector.extract_strided_slice %3 {offsets = [0, 192], sizes = [24, 64], strides = [1, 1]} : vector<24x384xbf16> to vector<24x64xbf16>
    %cst_18 = arith.constant dense<0.000000e+00> : vector<1x24xf32>
    %60 = tpu.matmul %58, %59, %cst_18 {dimension_numbers = #tpu.dot_dimension_numbers<[1], [1], [0], [0], [0, 0, 1, 0], [], []>} : vector<1x64xbf16>, vector<24x64xbf16>, vector<1x24xf32> -> vector<1x24xf32>
    %cst_19 = arith.constant 1.250000e-01 : f32
    %61 = vector.broadcast %cst_19 : f32 to vector<1x24xf32>
    %62 = arith.mulf %60, %61 : vector<1x24xf32>
    %cst_20 = arith.constant -1.000000e+30 : f32
    %63 = vector.broadcast %cst_20 : f32 to vector<1x24xf32>
    %64 = arith.select %6, %62, %63 : vector<1x24xi1>, vector<1x24xf32>
    %cst_21 = arith.constant dense<0xFF800000> : vector<1xf32>
    %65 = vector.multi_reduction <maximumf>, %64, %cst_21 [1] : vector<1x24xf32> to vector<1xf32>
    %66 = vector.shape_cast %65 : vector<1xf32> to vector<1x1xf32>
    %67 = vector.broadcast %66 : vector<1x1xf32> to vector<1x24xf32>
    %68 = arith.subf %64, %67 : vector<1x24xf32>
    %69 = math.exp %68 : vector<1x24xf32>
    %cst_22 = arith.constant dense<0.000000e+00> : vector<1xf32>
    %70 = vector.multi_reduction <add>, %69, %cst_22 [1] : vector<1x24xf32> to vector<1xf32>
    %71 = vector.shape_cast %70 : vector<1xf32> to vector<1x1xf32>
    %72 = tpu.reciprocal %71 {approx = true} : vector<1x1xf32> -> vector<1x1xf32>
    %73 = vector.broadcast %72 : vector<1x1xf32> to vector<1x24xf32>
    %74 = arith.mulf %69, %73 : vector<1x24xf32>
    %75 = vector.extract_strided_slice %1 {offsets = [0, 256], sizes = [1, 64], strides = [1, 1]} : vector<1x384xbf16> to vector<1x64xbf16>
    %76 = vector.extract_strided_slice %3 {offsets = [0, 256], sizes = [24, 64], strides = [1, 1]} : vector<24x384xbf16> to vector<24x64xbf16>
    %cst_23 = arith.constant dense<0.000000e+00> : vector<1x24xf32>
    %77 = tpu.matmul %75, %76, %cst_23 {dimension_numbers = #tpu.dot_dimension_numbers<[1], [1], [0], [0], [0, 0, 1, 0], [], []>} : vector<1x64xbf16>, vector<24x64xbf16>, vector<1x24xf32> -> vector<1x24xf32>
    %cst_24 = arith.constant 1.250000e-01 : f32
    %78 = vector.broadcast %cst_24 : f32 to vector<1x24xf32>
    %79 = arith.mulf %77, %78 : vector<1x24xf32>
    %cst_25 = arith.constant -1.000000e+30 : f32
    %80 = vector.broadcast %cst_25 : f32 to vector<1x24xf32>
    %81 = arith.select %6, %79, %80 : vector<1x24xi1>, vector<1x24xf32>
    %cst_26 = arith.constant dense<0xFF800000> : vector<1xf32>
    %82 = vector.multi_reduction <maximumf>, %81, %cst_26 [1] : vector<1x24xf32> to vector<1xf32>
    %83 = vector.shape_cast %82 : vector<1xf32> to vector<1x1xf32>
    %84 = vector.broadcast %83 : vector<1x1xf32> to vector<1x24xf32>
    %85 = arith.subf %81, %84 : vector<1x24xf32>
    %86 = math.exp %85 : vector<1x24xf32>
    %cst_27 = arith.constant dense<0.000000e+00> : vector<1xf32>
    %87 = vector.multi_reduction <add>, %86, %cst_27 [1] : vector<1x24xf32> to vector<1xf32>
    %88 = vector.shape_cast %87 : vector<1xf32> to vector<1x1xf32>
    %89 = tpu.reciprocal %88 {approx = true} : vector<1x1xf32> -> vector<1x1xf32>
    %90 = vector.broadcast %89 : vector<1x1xf32> to vector<1x24xf32>
    %91 = arith.mulf %86, %90 : vector<1x24xf32>
    %92 = vector.extract_strided_slice %1 {offsets = [0, 320], sizes = [1, 64], strides = [1, 1]} : vector<1x384xbf16> to vector<1x64xbf16>
    %93 = vector.extract_strided_slice %3 {offsets = [0, 320], sizes = [24, 64], strides = [1, 1]} : vector<24x384xbf16> to vector<24x64xbf16>
    %cst_28 = arith.constant dense<0.000000e+00> : vector<1x24xf32>
    %94 = tpu.matmul %92, %93, %cst_28 {dimension_numbers = #tpu.dot_dimension_numbers<[1], [1], [0], [0], [0, 0, 1, 0], [], []>} : vector<1x64xbf16>, vector<24x64xbf16>, vector<1x24xf32> -> vector<1x24xf32>
    %cst_29 = arith.constant 1.250000e-01 : f32
    %95 = vector.broadcast %cst_29 : f32 to vector<1x24xf32>
    %96 = arith.mulf %94, %95 : vector<1x24xf32>
    %cst_30 = arith.constant -1.000000e+30 : f32
    %97 = vector.broadcast %cst_30 : f32 to vector<1x24xf32>
    %98 = arith.select %6, %96, %97 : vector<1x24xi1>, vector<1x24xf32>
    %cst_31 = arith.constant dense<0xFF800000> : vector<1xf32>
    %99 = vector.multi_reduction <maximumf>, %98, %cst_31 [1] : vector<1x24xf32> to vector<1xf32>
    %100 = vector.shape_cast %99 : vector<1xf32> to vector<1x1xf32>
    %101 = vector.broadcast %100 : vector<1x1xf32> to vector<1x24xf32>
    %102 = arith.subf %98, %101 : vector<1x24xf32>
    %103 = math.exp %102 : vector<1x24xf32>
    %cst_32 = arith.constant dense<0.000000e+00> : vector<1xf32>
    %104 = vector.multi_reduction <add>, %103, %cst_32 [1] : vector<1x24xf32> to vector<1xf32>
    %105 = vector.shape_cast %104 : vector<1xf32> to vector<1x1xf32>
    %106 = tpu.reciprocal %105 {approx = true} : vector<1x1xf32> -> vector<1x1xf32>
    %107 = vector.broadcast %106 : vector<1x1xf32> to vector<1x24xf32>
    %108 = arith.mulf %103, %107 : vector<1x24xf32>
    %109 = tpu.concatenate %23, %40, %57, %74, %91, %108 in 0 : vector<1x24xf32>, vector<1x24xf32>, vector<1x24xf32>, vector<1x24xf32>, vector<1x24xf32>, vector<1x24xf32> -> vector<6x24xf32>
    %c0_33 = arith.constant 0 : index
    %c0_34 = arith.constant 0 : index
    %c0_35 = arith.constant 0 : index
    %110 = vector.load %arg2[%c0_33, %c0_34, %c0_35] : memref<1x6x24xf32, #tpu.memory_space<vmem>>, vector<1x6x24xf32>
    %111 = vector.shape_cast %110 : vector<1x6x24xf32> to vector<6x24xf32>
    %112 = vector.shape_cast %109 : vector<6x24xf32> to vector<1x6x24xf32>
    tpu.vector_store %arg2[%c0_33, %c0_34, %c0_35], %112 {strides = array<i32>} : memref<1x6x24xf32, #tpu.memory_space<vmem>>, vector<1x6x24xf32>,
    return
  }
  func.func @transform_0(%arg0: i32) -> (i32, i32, i32) {
    %c0_i32 = arith.constant 0 : i32
    %c0_i32_0 = arith.constant 0 : i32
    %c0_i32_1 = arith.constant 0 : i32
    return %arg0, %c0_i32, %c0_i32_0 : i32, i32, i32
  }
  func.func @transform_1(%arg0: i32) -> (i32, i32, i32) {
    %c0_i32 = arith.constant 0 : i32
    %c0_i32_0 = arith.constant 0 : i32
    %c0_i32_1 = arith.constant 0 : i32
    return %arg0, %c0_i32, %c0_i32_0 : i32, i32, i32
  }
}

</mosaic_0001>

<llo_original>
// kernel: self_distillation_forward.3
$region0: #{self_distillation_forward.3}
  #allocation0 [shape = 'u32[]', space=smem, size = 0x4, offset = 0x4, fixed_abs, tag = 'smem constant byte address 0x4 - core index']
  #allocation1 [shape = 'u32[144,128]{1,0:T(1,128)}', space=vmem, size = 0x12000, scoped, tag = 'internal scratch']
  %s0 = inlined_call_operand.vmem [shape: f32[32,192], index: 0, kind: input, shape index: {}]
  %s1 = inlined_call_operand.vmem [shape: bf16[192,384], index: 1, kind: input, shape index: {}]
  %s2 = inlined_call_operand.vmem [shape: f32[1,384], index: 2, kind: input, shape index: {}]
  %s3 = inlined_call_operand.vmem [shape: f32[32,384], index: 3, kind: output, shape index: {}]
  %s4 = sld [smem:[#allocation0]]
  $region22: #{self_distillation_forward.3} parent=0
    _
  %s6 = ssub.s32 1, %s4
  %s7 = scalar_select 0, %s6, %s4
  // Predicated region
  $region2: #{self_distillation_forward.3} parent=0 // pred_check
    _
  $region3: #{self_distillation_forward.3} parent=0 // pred_check_branch
    %9 = sbr.rel (0) target = $region5
  $region4: #{self_distillation_forward.3} parent=0 // pred_region
    _
  $region5: #{self_distillation_forward.3} parent=0 // pred_fallthru
    _
  // Predicated region
  $region6: #{self_distillation_forward.3} parent=0 // pred_check
    _
  $region7: #{self_distillation_forward.3} parent=0 // pred_check_branch
    %11 = sbr.rel (0) target = $region9
  $region8: #{self_distillation_forward.3} parent=0 // pred_region
    _
  $region9: #{self_distillation_forward.3} parent=0 // pred_fallthru
    _
  // Predicated region
  $region10: #{self_distillation_forward.3} parent=0 // pred_check
    _
  $region11: #{self_distillation_forward.3} parent=0 // pred_check_branch
    %13 = sbr.rel (0) target = $region13
  $region12: #{self_distillation_forward.3} parent=0 // pred_region
    _
  $region13: #{self_distillation_forward.3} parent=0 // pred_fallthru
    _
  %v15 = vld [vmem:[%s0] sm:$0xff]
  %v16 = vld [vmem:[%s0 + $0x8] sm:$0xff]
  %v17 = vld [vmem:[%s0 + $0x10] sm:$0xff]
  %v18 = vld [vmem:[%s0 + $0x18] sm:$0xff]
  %v19 = vld [vmem:[%s0 + $0x20] sm:$0xff]
  %v20 = vld [vmem:[%s0 + $0x28] sm:$0xff]
  %v21 = vld [vmem:[%s0 + $0x30] sm:$0xff]
  %v22 = vld [vmem:[%s0 + $0x38] sm:$0xff]
  %v23 = vpack.c.bf16 %v17, %v15
  %v24 = vpack.c.bf16 %v18, %v16
  %v25 = vpack.c.bf16 %v21, %v19
  %v26 = vpack.c.bf16 %v22, %v20
  %v27 = vld [vmem:[%s1] sm:$0xff]
  %v28 = vld [vmem:[%s1 + $0x8] sm:$0xf]
  %v29 = vld [vmem:[%s1 + $0xc] sm:$0xff]
  %v30 = vld [vmem:[%s1 + $0x14] sm:$0xf]
  %v31 = vld [vmem:[%s1 + $0x18] sm:$0xff]
  %v32 = vld [vmem:[%s1 + $0x20] sm:$0xf]
  %v33 = vld [vmem:[%s1 + $0x24] sm:$0xff]
  %v34 = vld [vmem:[%s1 + $0x2c] sm:$0xf]
  %v35 = vld [vmem:[%s1 + $0x30] sm:$0xff]
  %v36 = vld [vmem:[%s1 + $0x38] sm:$0xf]
  %v37 = vld [vmem:[%s1 + $0x3c] sm:$0xff]
  %v38 = vld [vmem:[%s1 + $0x44] sm:$0xf]
  %v39 = vld [vmem:[%s1 + $0x48] sm:$0xff]
  %v40 = vld [vmem:[%s1 + $0x50] sm:$0xf]
  %v41 = vld [vmem:[%s1 + $0x54] sm:$0xff]
  %v42 = vld [vmem:[%s1 + $0x5c] sm:$0xf]
  %v43 = vld [vmem:[%s1 + $0x60] sm:$0xff]
  %v44 = vld [vmem:[%s1 + $0x68] sm:$0xf]
  %v45 = vld [vmem:[%s1 + $0x6c] sm:$0xff]
  %v46 = vld [vmem:[%s1 + $0x74] sm:$0xf]
  %v47 = vld [vmem:[%s1 + $0x78] sm:$0xff]
  %v48 = vld [vmem:[%s1 + $0x80] sm:$0xf]
  %v49 = vld [vmem:[%s1 + $0x84] sm:$0xff]
  %v50 = vld [vmem:[%s1 + $0x8c] sm:$0xf]
  %v51 = vld [vmem:[%s1 + $0x90] sm:$0xff]
  %v52 = vld [vmem:[%s1 + $0x98] sm:$0xf]
  %v53 = vld [vmem:[%s1 + $0x9c] sm:$0xff]
  %v54 = vld [vmem:[%s1 + $0xa4] sm:$0xf]
  %v55 = vld [vmem:[%s1 + $0xa8] sm:$0xff]
  %v56 = vld [vmem:[%s1 + $0xb0] sm:$0xf]
  %v57 = vld [vmem:[%s1 + $0xb4] sm:$0xff]
  %v58 = vld [vmem:[%s1 + $0xbc] sm:$0xf]
  %v59 = vld [vmem:[%s1 + $0xc0] sm:$0xff]
  %v60 = vld [vmem:[%s1 + $0xc8] sm:$0xf]
  %v61 = vld [vmem:[%s1 + $0xcc] sm:$0xff]
  %v62 = vld [vmem:[%s1 + $0xd4] sm:$0xf]
  %v63 = vld [vmem:[%s1 + $0xd8] sm:$0xff]
  %v64 = vld [vmem:[%s1 + $0xe0] sm:$0xf]
  %v65 = vld [vmem:[%s1 + $0xe4] sm:$0xff]
  %v66 = vld [vmem:[%s1 + $0xec] sm:$0xf]
  %v67 = vld [vmem:[%s1 + $0xf0] sm:$0xff]
  %v68 = vld [vmem:[%s1 + $0xf8] sm:$0xf]
  %v69 = vld [vmem:[%s1 + $0xfc] sm:$0xff]
  %v70 = vld [vmem:[%s1 + $0x104] sm:$0xf]
  %v71 = vld [vmem:[%s1 + $0x108] sm:$0xff]
  %v72 = vld [vmem:[%s1 + $0x110] sm:$0xf]
  %v73 = vld [vmem:[%s1 + $0x114] sm:$0xff]
  %v74 = vld [vmem:[%s1 + $0x11c] sm:$0xf]
  %v75 = vld [vmem:[%s2] sm:$0x7]
  %v77 = vlaneseq
  %v78 = vshrl.u32 %v77, 7
  %v79 = vsub.s32 0, %v78
  %v80 = vrot.slane %v75, %v79
  %v81 = vlaneseq
  %v82 = vshrl.u32 %v81, 7
  %v83 = vsub.s32 1, %v82
  %v84 = vrot.slane %v75, %v83
  %v85 = vlaneseq
  %v86 = vshrl.u32 %v85, 7
  %v87 = vsub.s32 2, %v86
  %v88 = vrot.slane %v75, %v87
  %v140 = vunpack.c.l.b16 %v27
  %v141 = vunpack.c.h.b16 %v27
  %v142 = vunpack.c.l.b16 %v28
  %v143 = vunpack.c.l.b16 %v29
  %v144 = vunpack.c.h.b16 %v29
  %v145 = vunpack.c.l.b16 %v30
  %v146 = vunpack.c.l.b16 %v31
  %v147 = vunpack.c.h.b16 %v31
  %v148 = vunpack.c.l.b16 %v32
  %v149 = vunpack.c.l.b16 %v33
  %v150 = vunpack.c.h.b16 %v33
  %v151 = vunpack.c.l.b16 %v34
  %v152 = vunpack.c.l.b16 %v35
  %v153 = vunpack.c.h.b16 %v35
  %v154 = vunpack.c.l.b16 %v36
  %v155 = vunpack.c.l.b16 %v37
  %v156 = vunpack.c.h.b16 %v37
  %v157 = vunpack.c.l.b16 %v38
  %v158 = vunpack.c.l.b16 %v39
  %v159 = vunpack.c.h.b16 %v39
  %v160 = vunpack.c.l.b16 %v40
  %v161 = vunpack.c.l.b16 %v41
  %v162 = vunpack.c.h.b16 %v41
  %v163 = vunpack.c.l.b16 %v42
  %v164 = vunpack.c.l.b16 %v43
  %v165 = vunpack.c.h.b16 %v43
  %v166 = vunpack.c.l.b16 %v44
  %v167 = vunpack.c.l.b16 %v45
  %v168 = vunpack.c.h.b16 %v45
  %v169 = vunpack.c.l.b16 %v46
  %v170 = vunpack.c.l.b16 %v47
  %v171 = vunpack.c.h.b16 %v47
  %v172 = vunpack.c.l.b16 %v48
  %v173 = vunpack.c.l.b16 %v49
  %v174 = vunpack.c.h.b16 %v49
  %v175 = vunpack.c.l.b16 %v50
  %v176 = vunpack.c.l.b16 %v51
  %v177 = vunpack.c.h.b16 %v51
  %v178 = vunpack.c.l.b16 %v52
  %v179 = vunpack.c.l.b16 %v53
  %v180 = vunpack.c.h.b16 %v53
  %v181 = vunpack.c.l.b16 %v54
  %v182 = vunpack.c.l.b16 %v55
  %v183 = vunpack.c.h.b16 %v55
  %v184 = vunpack.c.l.b16 %v56
  %v185 = vunpack.c.l.b16 %v57
  %v186 = vunpack.c.h.b16 %v57
  %v187 = vunpack.c.l.b16 %v58
  %v188 = vunpack.c.l.b16 %v59
  %v189 = vunpack.c.h.b16 %v59
  %v190 = vunpack.c.l.b16 %v60
  %v191 = vunpack.c.l.b16 %v61
  %v192 = vunpack.c.h.b16 %v61
  %v193 = vunpack.c.l.b16 %v62
  %v194 = vunpack.c.l.b16 %v63
  %v195 = vunpack.c.h.b16 %v63
  %v196 = vunpack.c.l.b16 %v64
  %v197 = vunpack.c.l.b16 %v65
  %v198 = vunpack.c.h.b16 %v65
  %v199 = vunpack.c.l.b16 %v66
  %v200 = vunpack.c.l.b16 %v67
  %v201 = vunpack.c.h.b16 %v67
  %v202 = vunpack.c.l.b16 %v68
  %v203 = vunpack.c.l.b16 %v69
  %v204 = vunpack.c.h.b16 %v69
  %v205 = vunpack.c.l.b16 %v70
  %v206 = vunpack.c.l.b16 %v71
  %v207 = vunpack.c.h.b16 %v71
  %v208 = vunpack.c.l.b16 %v72
  %v209 = vunpack.c.l.b16 %v73
  %v210 = vunpack.c.h.b16 %v73
  %v211 = vunpack.c.l.b16 %v74
  %v212 = vpack.c.b16 %v143, %v140
  %v213 = vpack.c.b16 %v144, %v141
  %v214 = vpack.c.b16 %v145, %v142
  %v215 = vpack.c.b16 %v149, %v146
  %v216 = vpack.c.b16 %v150, %v147
  %v217 = vpack.c.b16 %v151, %v148
  %v218 = vpack.c.b16 %v155, %v152
  %v219 = vpack.c.b16 %v156, %v153
  %v220 = vpack.c.b16 %v157, %v154
  %v221 = vpack.c.b16 %v161, %v158
  %v222 = vpack.c.b16 %v162, %v159
  %v223 = vpack.c.b16 %v163, %v160
  %v224 = vpack.c.b16 %v167, %v164
  %v225 = vpack.c.b16 %v168, %v165
  %v226 = vpack.c.b16 %v169, %v166
  %v227 = vpack.c.b16 %v173, %v170
  %v228 = vpack.c.b16 %v174, %v171
  %v229 = vpack.c.b16 %v175, %v172
  %v230 = vpack.c.b16 %v179, %v176
  %v231 = vpack.c.b16 %v180, %v177
  %v232 = vpack.c.b16 %v181, %v178
  %v233 = vpack.c.b16 %v185, %v182
  %v234 = vpack.c.b16 %v186, %v183
  %v235 = vpack.c.b16 %v187, %v184
  %v236 = vpack.c.b16 %v191, %v188
  %v237 = vpack.c.b16 %v192, %v189
  %v238 = vpack.c.b16 %v193, %v190
  %v239 = vpack.c.b16 %v197, %v194
  %v240 = vpack.c.b16 %v198, %v195
  %v241 = vpack.c.b16 %v199, %v196
  %v242 = vpack.c.b16 %v203, %v200
  %v243 = vpack.c.b16 %v204, %v201
  %v244 = vpack.c.b16 %v205, %v202
  %v245 = vpack.c.b16 %v209, %v206
  %v246 = vpack.c.b16 %v210, %v207
  %v247 = vpack.c.b16 %v211, %v208
  %vm284 = vcmask 523264
  %v286 = vsel %vm284, %v24, 0
  %v289 = vsel %vm284, %v26, 0
  %291 = vmatprep.subr.bf16.mxu0 %v234
  %292 = vmatpush1.bf16.msra.mxu0 %v233
  %293 = vmatprep.subr.bf16.mxu0 %v231
  %294 = vmatpush1.bf16.msra.mxu0 %v230
  %295 = vmatprep.subr.bf16.mxu0 %v228
  %296 = vmatpush1.bf16.msra.mxu0 %v227
  %297 = vmatprep.subr.bf16.mxu0 %v225
  %298 = vmatpush1.bf16.msra.mxu0 %v224
  %299 = vmatprep.subr.bf16.mxu0 %v222
  %300 = vmatpush1.bf16.msra.mxu0 %v221
  %301 = vmatprep.subr.bf16.mxu0 %v219
  %302 = vmatpush1.bf16.msra.mxu0 %v218
  %303 = vmatprep.subr.bf16.mxu0 %v216
  %304 = vmatpush1.bf16.msra.mxu0 %v215
  %305 = vmatprep.subr.bf16.mxu0 %v213
  %306 = vmatpush1.bf16.msra.mxu0 %v212
  %307 = vmatprep.subr.bf16.mxu0 0
  %308 = vmatpush2.bf16.msra.mxu0 0
  %309 = vmatprep.subr.bf16.mxu0 0
  %310 = vmatpush2.bf16.msra.mxu0 0
  %311 = vmatprep.subr.bf16.mxu0 0
  %312 = vmatpush2.bf16.msra.mxu0 0
  %313 = vmatprep.subr.bf16.mxu0 0
  %314 = vmatpush2.bf16.msra.mxu0 0
  %315 = vmatprep.subr.bf16.mxu0 %v246
  %316 = vmatpush2.bf16.msra.mxu0 %v245
  %317 = vmatprep.subr.bf16.mxu0 %v243
  %318 = vmatpush2.bf16.msra.mxu0 %v242
  %319 = vmatprep.subr.bf16.mxu0 %v240
  %320 = vmatpush2.bf16.msra.mxu0 %v239
  %321 = vmatprep.subr.bf16.mxu0 %v237
  %322 = vmatpush2.bf16.msra.mxu0 %v236
  %323 = vmatprep.mubr.bf16.mxu0 %v286
  %324 = vmatmul.mubr.bf16.gmra.mxu0 %v23
  %v325 = vpop.f32.mrf.mxu0
  %v326 = vadd.f32 %v80, %v325
  %v327 = vpop.f32.mrf.mxu0
  %v328 = vadd.f32 %v84, %v327
  %v329 = vpop.f32.mrf.mxu0
  %v330 = vadd.f32 %v80, %v329
  %v331 = vpop.f32.mrf.mxu0
  %v332 = vadd.f32 %v84, %v331
  %333 = vmatprep.mubr.bf16.mxu0 %v289
  %334 = vmatmul.mubr.bf16.gmra.mxu0 %v25
  %v335 = vpop.f32.mrf.mxu0
  %v336 = vadd.f32 %v80, %v335
  %v337 = vpop.f32.mrf.mxu0
  %v338 = vadd.f32 %v84, %v337
  %v339 = vpop.f32.mrf.mxu0
  %v340 = vadd.f32 %v80, %v339
  %v341 = vpop.f32.mrf.mxu0
  %v342 = vadd.f32 %v84, %v341
  %343 = vdwg.mxu0
  %344 = vmatprep.subr.bf16.mxu0 0
  %345 = vmatpush1.bf16.msra.mxu0 %v235
  %346 = vmatprep.subr.bf16.mxu0 0
  %347 = vmatpush1.bf16.msra.mxu0 %v232
  %348 = vmatprep.subr.bf16.mxu0 0
  %349 = vmatpush1.bf16.msra.mxu0 %v229
  %350 = vmatprep.subr.bf16.mxu0 0
  %351 = vmatpush1.bf16.msra.mxu0 %v226
  %352 = vmatprep.subr.bf16.mxu0 0
  %353 = vmatpush1.bf16.msra.mxu0 %v223
  %354 = vmatprep.subr.bf16.mxu0 0
  %355 = vmatpush1.bf16.msra.mxu0 %v220
  %356 = vmatprep.subr.bf16.mxu0 0
  %357 = vmatpush1.bf16.msra.mxu0 %v217
  %358 = vmatprep.subr.bf16.mxu0 0
  %359 = vmatpush1.bf16.msra.mxu0 %v214
  %360 = vmatprep.subr.bf16.mxu0 0
  %361 = vmatpush2.bf16.msra.mxu0 0
  %362 = vmatprep.subr.bf16.mxu0 0
  %363 = vmatpush2.bf16.msra.mxu0 0
  %364 = vmatprep.subr.bf16.mxu0 0
  %365 = vmatpush2.bf16.msra.mxu0 0
  %366 = vmatprep.subr.bf16.mxu0 0
  %367 = vmatpush2.bf16.msra.mxu0 0
  %368 = vmatprep.subr.bf16.mxu0 0
  %369 = vmatpush2.bf16.msra.mxu0 %v247
  %370 = vmatprep.subr.bf16.mxu0 0
  %371 = vmatpush2.bf16.msra.mxu0 %v244
  %372 = vmatprep.subr.bf16.mxu0 0
  %373 = vmatpush2.bf16.msra.mxu0 %v241
  %374 = vmatprep.subr.bf16.mxu0 0
  %375 = vmatpush2.bf16.msra.mxu0 %v238
  %376 = vmatprep.mubr.bf16.mxu0 %v286
  %377 = vmatmul.mubr.bf16.gmra.mxu0 %v23
  %v378 = vpop.f32.mrf.mxu0
  %v379 = vadd.f32 %v88, %v378
  %v380 = vpop.f32.mrf.mxu0
  %v381 = vpop.f32.mrf.mxu0
  %v382 = vadd.f32 %v88, %v381
  %v383 = vpop.f32.mrf.mxu0
  %384 = vmatprep.mubr.bf16.mxu0 %v289
  %385 = vmatmul.mubr.bf16.gmra.mxu0 %v25
  %v386 = vpop.f32.mrf.mxu0
  %v387 = vadd.f32 %v88, %v386
  %v388 = vpop.f32.mrf.mxu0
  %v389 = vpop.f32.mrf.mxu0
  %v390 = vadd.f32 %v88, %v389
  %v391 = vpop.f32.mrf.mxu0
  %392 = vdwg.mxu0
  %393 = vst [vmem:[%s3] sm:$0xff] %v326
  %394 = vst [vmem:[%s3 + $0x8] sm:$0xff] %v328
  %395 = vst [vmem:[%s3 + $0x10] sm:$0xff] %v379
  %396 = vst [vmem:[%s3 + $0x18] sm:$0xff] %v330
  %397 = vst [vmem:[%s3 + $0x20] sm:$0xff] %v332
  %398 = vst [vmem:[%s3 + $0x28] sm:$0xff] %v382
  %399 = vst [vmem:[%s3 + $0x30] sm:$0xff] %v336
  %400 = vst [vmem:[%s3 + $0x38] sm:$0xff] %v338
  %401 = vst [vmem:[%s3 + $0x40] sm:$0xff] %v387
  %402 = vst [vmem:[%s3 + $0x48] sm:$0xff] %v340
  %403 = vst [vmem:[%s3 + $0x50] sm:$0xff] %v342
  %404 = vst [vmem:[%s3 + $0x58] sm:$0xff] %v390
  // Predicated region
  $region14: #{self_distillation_forward.3} parent=0 // pred_check
    _
  $region15: #{self_distillation_forward.3} parent=0 // pred_check_branch
    %406 = sbr.rel (0) target = $region17
  $region16: #{self_distillation_forward.3} parent=0 // pred_region
    _
  $region17: #{self_distillation_forward.3} parent=0 // pred_fallthru
    _
  // Predicated region
  $region18: #{self_distillation_forward.3} parent=0 // pred_check
    _
  $region19: #{self_distillation_forward.3} parent=0 // pred_check_branch
    %408 = sbr.rel (0) target = $region21
  $region20: #{self_distillation_forward.3} parent=0 // pred_region
    _
  $region21: #{self_distillation_forward.3} parent=0 // pred_fallthru
    _

// kernel: closed_call.18
$region0: #{closed_call.18}
  #allocation0 [shape = 'u32[]', space=smem, size = 0x4, offset = 0x4, fixed_abs, tag = 'smem constant byte address 0x4 - core index']
  #allocation1 [shape = 'u32[144,128]{1,0:T(1,128)}', space=vmem, size = 0x12000, scoped, tag = 'internal scratch']
  %s0 = inlined_call_operand.vmem [shape: bf16[48,384], index: 0, kind: input, shape index: {}]
  %s1 = inlined_call_operand.vmem [shape: bf16[384,384], index: 1, kind: input, shape index: {}]
  %s2 = inlined_call_operand.vmem [shape: f32[1,384], index: 2, kind: input, shape index: {}]
  %s3 = inlined_call_operand.vmem [shape: f32[48,384], index: 3, kind: input, shape index: {}]
  %s4 = inlined_call_operand.vmem [shape: f32[48,384], index: 4, kind: output, shape index: {}]
  %s5 = sld [smem:[#allocation0]]
  $region26: #{closed_call.18} parent=0
    _
  %s7 = ssub.s32 1, %s5
  %s8 = scalar_select 0, %s7, %s5
  // Predicated region
  $region2: #{closed_call.18} parent=0 // pred_check
    _
  $region3: #{closed_call.18} parent=0 // pred_check_branch
    %10 = sbr.rel (0) target = $region5
  $region4: #{closed_call.18} parent=0 // pred_region
    _
  $region5: #{closed_call.18} parent=0 // pred_fallthru
    _
  // Predicated region
  $region6: #{closed_call.18} parent=0 // pred_check
    _
  $region7: #{closed_call.18} parent=0 // pred_check_branch
    %12 = sbr.rel (0) target = $region9
  $region8: #{closed_call.18} parent=0 // pred_region
    _
  $region9: #{closed_call.18} parent=0 // pred_fallthru
    _
  // Predicated region
  $region10: #{closed_call.18} parent=0 // pred_check
    _
  $region11: #{closed_call.18} parent=0 // pred_check_branch
    %14 = sbr.rel (0) target = $region13
  $region12: #{closed_call.18} parent=0 // pred_region
    _
  $region13: #{closed_call.18} parent=0 // pred_fallthru
    _
  // Predicated region
  $region14: #{closed_call.18} parent=0 // pred_check
    _
  $region15: #{closed_call.18} parent=0 // pred_check_branch
    %16 = sbr.rel (0) target = $region17
  $region16: #{closed_call.18} parent=0 // pred_region
    _
  $region17: #{closed_call.18} parent=0 // pred_fallthru
    _
  %v18 = vld [vmem:[%s0] sm:$0xff]
  %v19 = vld [vmem:[%s0 + $0x8] sm:$0xf]
  %v20 = vld [vmem:[%s0 + $0xc] sm:$0xff]
  %v21 = vld [vmem:[%s0 + $0x14] sm:$0xf]
  %v22 = vld [vmem:[%s0 + $0x18] sm:$0xff]
  %v23 = vld [vmem:[%s0 + $0x20] sm:$0xf]
  %v24 = vld [vmem:[%s0 + $0x24] sm:$0xff]
  %v25 = vld [vmem:[%s0 + $0x2c] sm:$0xf]
  %v26 = vld [vmem:[%s0 + $0x30] sm:$0xff]
  %v27 = vld [vmem:[%s0 + $0x38] sm:$0xf]
  %v28 = vld [vmem:[%s0 + $0x3c] sm:$0xff]
  %v29 = vld [vmem:[%s0 + $0x44] sm:$0xf]
  %v30 = vld [vmem:[%s1] sm:$0xff]
  %v31 = vld [vmem:[%s1 + $0x8] sm:$0xf]
  %v32 = vld [vmem:[%s1 + $0xc] sm:$0xff]
  %v33 = vld [vmem:[%s1 + $0x14] sm:$0xf]
  %v34 = vld [vmem:[%s1 + $0x18] sm:$0xff]
  %v35 = vld [vmem:[%s1 + $0x20] sm:$0xf]
  %v36 = vld [vmem:[%s1 + $0x24] sm:$0xff]
  %v37 = vld [vmem:[%s1 + $0x2c] sm:$0xf]
  %v38 = vld [vmem:[%s1 + $0x30] sm:$0xff]
  %v39 = vld [vmem:[%s1 + $0x38] sm:$0xf]
  %v40 = vld [vmem:[%s1 + $0x3c] sm:$0xff]
  %v41 = vld [vmem:[%s1 + $0x44] sm:$0xf]
  %v42 = vld [vmem:[%s1 + $0x48] sm:$0xff]
  %v43 = vld [vmem:[%s1 + $0x50] sm:$0xf]
  %v44 = vld [vmem:[%s1 + $0x54] sm:$0xff]
  %v45 = vld [vmem:[%s1 + $0x5c] sm:$0xf]
  %v46 = vld [vmem:[%s1 + $0x60] sm:$0xff]
  %v47 = vld [vmem:[%s1 + $0x68] sm:$0xf]
  %v48 = vld [vmem:[%s1 + $0x6c] sm:$0xff]
  %v49 = vld [vmem:[%s1 + $0x74] sm:$0xf]
  %v50 = vld [vmem:[%s1 + $0x78] sm:$0xff]
  %v51 = vld [vmem:[%s1 + $0x80] sm:$0xf]
  %v52 = vld [vmem:[%s1 + $0x84] sm:$0xff]
  %v53 = vld [vmem:[%s1 + $0x8c] sm:$0xf]
  %v54 = vld [vmem:[%s1 + $0x90] sm:$0xff]
  %v55 = vld [vmem:[%s1 + $0x98] sm:$0xf]
  %v56 = vld [vmem:[%s1 + $0x9c] sm:$0xff]
  %v57 = vld [vmem:[%s1 + $0xa4] sm:$0xf]
  %v58 = vld [vmem:[%s1 + $0xa8] sm:$0xff]
  %v59 = vld [vmem:[%s1 + $0xb0] sm:$0xf]
  %v60 = vld [vmem:[%s1 + $0xb4] sm:$0xff]
  %v61 = vld [vmem:[%s1 + $0xbc] sm:$0xf]
  %v62 = vld [vmem:[%s1 + $0xc0] sm:$0xff]
  %v63 = vld [vmem:[%s1 + $0xc8] sm:$0xf]
  %v64 = vld [vmem:[%s1 + $0xcc] sm:$0xff]
  %v65 = vld [vmem:[%s1 + $0xd4] sm:$0xf]
  %v66 = vld [vmem:[%s1 + $0xd8] sm:$0xff]
  %v67 = vld [vmem:[%s1 + $0xe0] sm:$0xf]
  %v68 = vld [vmem:[%s1 + $0xe4] sm:$0xff]
  %v69 = vld [vmem:[%s1 + $0xec] sm:$0xf]
  %v70 = vld [vmem:[%s1 + $0xf0] sm:$0xff]
  %v71 = vld [vmem:[%s1 + $0xf8] sm:$0xf]
  %v72 = vld [vmem:[%s1 + $0xfc] sm:$0xff]
  %v73 = vld [vmem:[%s1 + $0x104] sm:$0xf]
  %v74 = vld [vmem:[%s1 + $0x108] sm:$0xff]
  %v75 = vld [vmem:[%s1 + $0x110] sm:$0xf]
  %v76 = vld [vmem:[%s1 + $0x114] sm:$0xff]
  %v77 = vld [vmem:[%s1 + $0x11c] sm:$0xf]
  %v78 = vld [vmem:[%s1 + $0x120] sm:$0xff]
  %v79 = vld [vmem:[%s1 + $0x128] sm:$0xf]
  %v80 = vld [vmem:[%s1 + $0x12c] sm:$0xff]
  %v81 = vld [vmem:[%s1 + $0x134] sm:$0xf]
  %v82 = vld [vmem:[%s1 + $0x138] sm:$0xff]
  %v83 = vld [vmem:[%s1 + $0x140] sm:$0xf]
  %v84 = vld [vmem:[%s1 + $0x144] sm:$0xff]
  %v85 = vld [vmem:[%s1 + $0x14c] sm:$0xf]
  %v86 = vld [vmem:[%s1 + $0x150] sm:$0xff]
  %v87 = vld [vmem:[%s1 + $0x158] sm:$0xf]
  %v88 = vld [vmem:[%s1 + $0x15c] sm:$0xff]
  %v89 = vld [vmem:[%s1 + $0x164] sm:$0xf]
  %v90 = vld [vmem:[%s1 + $0x168] sm:$0xff]
  %v91 = vld [vmem:[%s1 + $0x170] sm:$0xf]
  %v92 = vld [vmem:[%s1 + $0x174] sm:$0xff]
  %v93 = vld [vmem:[%s1 + $0x17c] sm:$0xf]
  %v94 = vld [vmem:[%s1 + $0x180] sm:$0xff]
  %v95 = vld [vmem:[%s1 + $0x188] sm:$0xf]
  %v96 = vld [vmem:[%s1 + $0x18c] sm:$0xff]
  %v97 = vld [vmem:[%s1 + $0x194] sm:$0xf]
  %v98 = vld [vmem:[%s1 + $0x198] sm:$0xff]
  %v99 = vld [vmem:[%s1 + $0x1a0] sm:$0xf]
  %v100 = vld [vmem:[%s1 + $0x1a4] sm:$0xff]
  %v101 = vld [vmem:[%s1 + $0x1ac] sm:$0xf]
  %v102 = vld [vmem:[%s1 + $0x1b0] sm:$0xff]
  %v103 = vld [vmem:[%s1 + $0x1b8] sm:$0xf]
  %v104 = vld [vmem:[%s1 + $0x1bc] sm:$0xff]
  %v105 = vld [vmem:[%s1 + $0x1c4] sm:$0xf]
  %v106 = vld [vmem:[%s1 + $0x1c8] sm:$0xff]
  %v107 = vld [vmem:[%s1 + $0x1d0] sm:$0xf]
  %v108 = vld [vmem:[%s1 + $0x1d4] sm:$0xff]
  %v109 = vld [vmem:[%s1 + $0x1dc] sm:$0xf]
  %v110 = vld [vmem:[%s1 + $0x1e0] sm:$0xff]
  %v111 = vld [vmem:[%s1 + $0x1e8] sm:$0xf]
  %v112 = vld [vmem:[%s1 + $0x1ec] sm:$0xff]
  %v113 = vld [vmem:[%s1 + $0x1f4] sm:$0xf]
  %v114 = vld [vmem:[%s1 + $0x1f8] sm:$0xff]
  %v115 = vld [vmem:[%s1 + $0x200] sm:$0xf]
  %v116 = vld [vmem:[%s1 + $0x204] sm:$0xff]
  %v117 = vld [vmem:[%s1 + $0x20c] sm:$0xf]
  %v118 = vld [vmem:[%s1 + $0x210] sm:$0xff]
  %v119 = vld [vmem:[%s1 + $0x218] sm:$0xf]
  %v120 = vld [vmem:[%s1 + $0x21c] sm:$0xff]
  %v121 = vld [vmem:[%s1 + $0x224] sm:$0xf]
  %v122 = vld [vmem:[%s1 + $0x228] sm:$0xff]
  %v123 = vld [vmem:[%s1 + $0x230] sm:$0xf]
  %v124 = vld [vmem:[%s1 + $0x234] sm:$0xff]
  %v125 = vld [vmem:[%s1 + $0x23c] sm:$0xf]
  %v126 = vld [vmem:[%s2] sm:$0x7]
  %v128 = vlaneseq
  %v129 = vshrl.u32 %v128, 7
  %v130 = vsub.s32 0, %v129
  %v131 = vrot.slane %v126, %v130
  %v132 = vlaneseq
  %v133 = vshrl.u32 %v132, 7
  %v134 = vsub.s32 1, %v133
  %v135 = vrot.slane %v126, %v134
  %v136 = vlaneseq
  %v137 = vshrl.u32 %v136, 7
  %v138 = vsub.s32 2, %v137
  %v139 = vrot.slane %v126, %v138
  %v155 = vunpack.c.l.b16 %v18
  %v156 = vunpack.c.h.b16 %v18
  %v157 = vunpack.c.l.b16 %v19
  %v158 = vunpack.c.l.b16 %v20
  %v159 = vunpack.c.h.b16 %v20
  %v160 = vunpack.c.l.b16 %v21
  %v161 = vunpack.c.l.b16 %v22
  %v162 = vunpack.c.h.b16 %v22
  %v163 = vunpack.c.l.b16 %v23
  %v164 = vunpack.c.l.b16 %v24
  %v165 = vunpack.c.h.b16 %v24
  %v166 = vunpack.c.l.b16 %v25
  %v167 = vunpack.c.l.b16 %v26
  %v168 = vunpack.c.h.b16 %v26
  %v169 = vunpack.c.l.b16 %v27
  %v170 = vunpack.c.l.b16 %v28
  %v171 = vunpack.c.h.b16 %v28
  %v172 = vunpack.c.l.b16 %v29
  %v173 = vpack.c.b16 %v158, %v155
  %v174 = vpack.c.b16 %v159, %v156
  %v175 = vpack.c.b16 %v160, %v157
  %v176 = vpack.c.b16 %v164, %v161
  %v177 = vpack.c.b16 %v165, %v162
  %v178 = vpack.c.b16 %v166, %v163
  %v179 = vpack.c.b16 %v170, %v167
  %v180 = vpack.c.b16 %v171, %v168
  %v181 = vpack.c.b16 %v172, %v169
  %v287 = vunpack.c.l.b16 %v30
  %v288 = vunpack.c.h.b16 %v30
  %v289 = vunpack.c.l.b16 %v31
  %v290 = vunpack.c.l.b16 %v32
  %v291 = vunpack.c.h.b16 %v32
  %v292 = vunpack.c.l.b16 %v33
  %v293 = vunpack.c.l.b16 %v34
  %v294 = vunpack.c.h.b16 %v34
  %v295 = vunpack.c.l.b16 %v35
  %v296 = vunpack.c.l.b16 %v36
  %v297 = vunpack.c.h.b16 %v36
  %v298 = vunpack.c.l.b16 %v37
  %v299 = vunpack.c.l.b16 %v38
  %v300 = vunpack.c.h.b16 %v38
  %v301 = vunpack.c.l.b16 %v39
  %v302 = vunpack.c.l.b16 %v40
  %v303 = vunpack.c.h.b16 %v40
  %v304 = vunpack.c.l.b16 %v41
  %v305 = vunpack.c.l.b16 %v42
  %v306 = vunpack.c.h.b16 %v42
  %v307 = vunpack.c.l.b16 %v43
  %v308 = vunpack.c.l.b16 %v44
  %v309 = vunpack.c.h.b16 %v44
  %v310 = vunpack.c.l.b16 %v45
  %v311 = vunpack.c.l.b16 %v46
  %v312 = vunpack.c.h.b16 %v46
  %v313 = vunpack.c.l.b16 %v47
  %v314 = vunpack.c.l.b16 %v48
  %v315 = vunpack.c.h.b16 %v48
  %v316 = vunpack.c.l.b16 %v49
  %v317 = vunpack.c.l.b16 %v50
  %v318 = vunpack.c.h.b16 %v50
  %v319 = vunpack.c.l.b16 %v51
  %v320 = vunpack.c.l.b16 %v52
  %v321 = vunpack.c.h.b16 %v52
  %v322 = vunpack.c.l.b16 %v53
  %v323 = vunpack.c.l.b16 %v54
  %v324 = vunpack.c.h.b16 %v54
  %v325 = vunpack.c.l.b16 %v55
  %v326 = vunpack.c.l.b16 %v56
  %v327 = vunpack.c.h.b16 %v56
  %v328 = vunpack.c.l.b16 %v57
  %v329 = vunpack.c.l.b16 %v58
  %v330 = vunpack.c.h.b16 %v58
  %v331 = vunpack.c.l.b16 %v59
  %v332 = vunpack.c.l.b16 %v60
  %v333 = vunpack.c.h.b16 %v60
  %v334 = vunpack.c.l.b16 %v61
  %v335 = vunpack.c.l.b16 %v62
  %v336 = vunpack.c.h.b16 %v62
  %v337 = vunpack.c.l.b16 %v63
  %v338 = vunpack.c.l.b16 %v64
  %v339 = vunpack.c.h.b16 %v64
  %v340 = vunpack.c.l.b16 %v65
  %v341 = vunpack.c.l.b16 %v66
  %v342 = vunpack.c.h.b16 %v66
  %v343 = vunpack.c.l.b16 %v67
  %v344 = vunpack.c.l.b16 %v68
  %v345 = vunpack.c.h.b16 %v68
  %v346 = vunpack.c.l.b16 %v69
  %v347 = vunpack.c.l.b16 %v70
  %v348 = vunpack.c.h.b16 %v70
  %v349 = vunpack.c.l.b16 %v71
  %v350 = vunpack.c.l.b16 %v72
  %v351 = vunpack.c.h.b16 %v72
  %v352 = vunpack.c.l.b16 %v73
  %v353 = vunpack.c.l.b16 %v74
  %v354 = vunpack.c.h.b16 %v74
  %v355 = vunpack.c.l.b16 %v75
  %v356 = vunpack.c.l.b16 %v76
  %v357 = vunpack.c.h.b16 %v76
  %v358 = vunpack.c.l.b16 %v77
  %v359 = vunpack.c.l.b16 %v78
  %v360 = vunpack.c.h.b16 %v78
  %v361 = vunpack.c.l.b16 %v79
  %v362 = vunpack.c.l.b16 %v80
  %v363 = vunpack.c.h.b16 %v80
  %v364 = vunpack.c.l.b16 %v81
  %v365 = vunpack.c.l.b16 %v82
  %v366 = vunpack.c.h.b16 %v82
  %v367 = vunpack.c.l.b16 %v83
  %v368 = vunpack.c.l.b16 %v84
  %v369 = vunpack.c.h.b16 %v84
  %v370 = vunpack.c.l.b16 %v85
  %v371 = vunpack.c.l.b16 %v86
  %v372 = vunpack.c.h.b16 %v86
  %v373 = vunpack.c.l.b16 %v87
  %v374 = vunpack.c.l.b16 %v88
  %v375 = vunpack.c.h.b16 %v88
  %v376 = vunpack.c.l.b16 %v89
  %v377 = vunpack.c.l.b16 %v90
  %v378 = vunpack.c.h.b16 %v90
  %v379 = vunpack.c.l.b16 %v91
  %v380 = vunpack.c.l.b16 %v92
  %v381 = vunpack.c.h.b16 %v92
  %v382 = vunpack.c.l.b16 %v93
  %v383 = vunpack.c.l.b16 %v94
  %v384 = vunpack.c.h.b16 %v94
  %v385 = vunpack.c.l.b16 %v95
  %v386 = vunpack.c.l.b16 %v96
  %v387 = vunpack.c.h.b16 %v96
  %v388 = vunpack.c.l.b16 %v97
  %v389 = vunpack.c.l.b16 %v98
  %v390 = vunpack.c.h.b16 %v98
  %v391 = vunpack.c.l.b16 %v99
  %v392 = vunpack.c.l.b16 %v100
  %v393 = vunpack.c.h.b16 %v100
  %v394 = vunpack.c.l.b16 %v101
  %v395 = vunpack.c.l.b16 %v102
  %v396 = vunpack.c.h.b16 %v102
  %v397 = vunpack.c.l.b16 %v103
  %v398 = vunpack.c.l.b16 %v104
  %v399 = vunpack.c.h.b16 %v104
  %v400 = vunpack.c.l.b16 %v105
  %v401 = vunpack.c.l.b16 %v106
  %v402 = vunpack.c.h.b16 %v106
  %v403 = vunpack.c.l.b16 %v107
  %v404 = vunpack.c.l.b16 %v108
  %v405 = vunpack.c.h.b16 %v108
  %v406 = vunpack.c.l.b16 %v109
  %v407 = vunpack.c.l.b16 %v110
  %v408 = vunpack.c.h.b16 %v110
  %v409 = vunpack.c.l.b16 %v111
  %v410 = vunpack.c.l.b16 %v112
  %v411 = vunpack.c.h.b16 %v112
  %v412 = vunpack.c.l.b16 %v113
  %v413 = vunpack.c.l.b16 %v114
  %v414 = vunpack.c.h.b16 %v114
  %v415 = vunpack.c.l.b16 %v115
  %v416 = vunpack.c.l.b16 %v116
  %v417 = vunpack.c.h.b16 %v116
  %v418 = vunpack.c.l.b16 %v117
  %v419 = vunpack.c.l.b16 %v118
  %v420 = vunpack.c.h.b16 %v118
  %v421 = vunpack.c.l.b16 %v119
  %v422 = vunpack.c.l.b16 %v120
  %v423 = vunpack.c.h.b16 %v120
  %v424 = vunpack.c.l.b16 %v121
  %v425 = vunpack.c.l.b16 %v122
  %v426 = vunpack.c.h.b16 %v122
  %v427 = vunpack.c.l.b16 %v123
  %v428 = vunpack.c.l.b16 %v124
  %v429 = vunpack.c.h.b16 %v124
  %v430 = vunpack.c.l.b16 %v125
  %v431 = vpack.c.b16 %v290, %v287
  %v432 = vpack.c.b16 %v291, %v288
  %v433 = vpack.c.b16 %v292, %v289
  %v434 = vpack.c.b16 %v296, %v293
  %v435 = vpack.c.b16 %v297, %v294
  %v436 = vpack.c.b16 %v298, %v295
  %v437 = vpack.c.b16 %v302, %v299
  %v438 = vpack.c.b16 %v303, %v300
  %v439 = vpack.c.b16 %v304, %v301
  %v440 = vpack.c.b16 %v308, %v305
  %v441 = vpack.c.b16 %v309, %v306
  %v442 = vpack.c.b16 %v310, %v307
  %v443 = vpack.c.b16 %v314, %v311
  %v444 = vpack.c.b16 %v315, %v312
  %v445 = vpack.c.b16 %v316, %v313
  %v446 = vpack.c.b16 %v320, %v317
  %v447 = vpack.c.b16 %v321, %v318
  %v448 = vpack.c.b16 %v322, %v319
  %v449 = vpack.c.b16 %v326, %v323
  %v450 = vpack.c.b16 %v327, %v324
  %v451 = vpack.c.b16 %v328, %v325
  %v452 = vpack.c.b16 %v332, %v329
  %v453 = vpack.c.b16 %v333, %v330
  %v454 = vpack.c.b16 %v334, %v331
  %v455 = vpack.c.b16 %v338, %v335
  %v456 = vpack.c.b16 %v339, %v336
  %v457 = vpack.c.b16 %v340, %v337
  %v458 = vpack.c.b16 %v344, %v341
  %v459 = vpack.c.b16 %v345, %v342
  %v460 = vpack.c.b16 %v346, %v343
  %v461 = vpack.c.b16 %v350, %v347
  %v462 = vpack.c.b16 %v351, %v348
  %v463 = vpack.c.b16 %v352, %v349
  %v464 = vpack.c.b16 %v356, %v353
  %v465 = vpack.c.b16 %v357, %v354
  %v466 = vpack.c.b16 %v358, %v355
  %v467 = vpack.c.b16 %v362, %v359
  %v468 = vpack.c.b16 %v363, %v360
  %v469 = vpack.c.b16 %v364, %v361
  %v470 = vpack.c.b16 %v368, %v365
  %v471 = vpack.c.b16 %v369, %v366
  %v472 = vpack.c.b16 %v370, %v367
  %v473 = vpack.c.b16 %v374, %v371
  %v474 = vpack.c.b16 %v375, %v372
  %v475 = vpack.c.b16 %v376, %v373
  %v476 = vpack.c.b16 %v380, %v377
  %v477 = vpack.c.b16 %v381, %v378
  %v478 = vpack.c.b16 %v382, %v379
  %v479 = vpack.c.b16 %v386, %v383
  %v480 = vpack.c.b16 %v387, %v384
  %v481 = vpack.c.b16 %v388, %v385
  %v482 = vpack.c.b16 %v392, %v389
  %v483 = vpack.c.b16 %v393, %v390
  %v484 = vpack.c.b16 %v394, %v391
  %v485 = vpack.c.b16 %v398, %v395
  %v486 = vpack.c.b16 %v399, %v396
  %v487 = vpack.c.b16 %v400, %v397
  %v488 = vpack.c.b16 %v404, %v401
  %v489 = vpack.c.b16 %v405, %v402
  %v490 = vpack.c.b16 %v406, %v403
  %v491 = vpack.c.b16 %v410, %v407
  %v492 = vpack.c.b16 %v411, %v408
  %v493 = vpack.c.b16 %v412, %v409
  %v494 = vpack.c.b16 %v416, %v413
  %v495 = vpack.c.b16 %v417, %v414
  %v496 = vpack.c.b16 %v418, %v415
  %v497 = vpack.c.b16 %v422, %v419
  %v498 = vpack.c.b16 %v423, %v420
  %v499 = vpack.c.b16 %v424, %v421
  %v500 = vpack.c.b16 %v428, %v425
  %v501 = vpack.c.b16 %v429, %v426
  %v502 = vpack.c.b16 %v430, %v427
  %575 = vmatprep.subr.bf16.mxu0 %v453
  %576 = vmatpush1.bf16.msra.mxu0 %v452
  %577 = vmatprep.subr.bf16.mxu0 %v450
  %578 = vmatpush1.bf16.msra.mxu0 %v449
  %579 = vmatprep.subr.bf16.mxu0 %v447
  %580 = vmatpush1.bf16.msra.mxu0 %v446
  %581 = vmatprep.subr.bf16.mxu0 %v444
  %582 = vmatpush1.bf16.msra.mxu0 %v443
  %583 = vmatprep.subr.bf16.mxu0 %v441
  %584 = vmatpush1.bf16.msra.mxu0 %v440
  %585 = vmatprep.subr.bf16.mxu0 %v438
  %586 = vmatpush1.bf16.msra.mxu0 %v437
  %587 = vmatprep.subr.bf16.mxu0 %v435
  %588 = vmatpush1.bf16.msra.mxu0 %v434
  %589 = vmatprep.subr.bf16.mxu0 %v432
  %590 = vmatpush1.bf16.msra.mxu0 %v431
  %591 = vmatprep.subr.bf16.mxu0 %v477
  %592 = vmatpush2.bf16.msra.mxu0 %v476
  %593 = vmatprep.subr.bf16.mxu0 %v474
  %594 = vmatpush2.bf16.msra.mxu0 %v473
  %595 = vmatprep.subr.bf16.mxu0 %v471
  %596 = vmatpush2.bf16.msra.mxu0 %v470
  %597 = vmatprep.subr.bf16.mxu0 %v468
  %598 = vmatpush2.bf16.msra.mxu0 %v467
  %599 = vmatprep.subr.bf16.mxu0 %v465
  %600 = vmatpush2.bf16.msra.mxu0 %v464
  %601 = vmatprep.subr.bf16.mxu0 %v462
  %602 = vmatpush2.bf16.msra.mxu0 %v461
  %603 = vmatprep.subr.bf16.mxu0 %v459
  %604 = vmatpush2.bf16.msra.mxu0 %v458
  %605 = vmatprep.subr.bf16.mxu0 %v456
  %606 = vmatpush2.bf16.msra.mxu0 %v455
  %607 = vmatprep.mubr.bf16.mxu0 %v174
  %608 = vmatmul.mubr.bf16.gmra.mxu0 %v173
  %v609 = vpop.f32.mrf.mxu0
  %v610 = vadd.f32 %v131, %v609
  %v611 = vpop.f32.mrf.mxu0
  %v612 = vadd.f32 %v135, %v611
  %v613 = vpop.f32.mrf.mxu0
  %v614 = vadd.f32 %v131, %v613
  %v615 = vpop.f32.mrf.mxu0
  %v616 = vadd.f32 %v135, %v615
  %617 = vmatprep.mubr.bf16.mxu0 %v177
  %618 = vmatmul.mubr.bf16.gmra.mxu0 %v176
  %v619 = vpop.f32.mrf.mxu0
  %v620 = vadd.f32 %v131, %v619
  %v621 = vpop.f32.mrf.mxu0
  %v622 = vadd.f32 %v135, %v621
  %v623 = vpop.f32.mrf.mxu0
  %v624 = vadd.f32 %v131, %v623
  %v625 = vpop.f32.mrf.mxu0
  %v626 = vadd.f32 %v135, %v625
  %627 = vmatprep.mubr.bf16.mxu0 %v180
  %628 = vmatmul.mubr.bf16.gmra.mxu0 %v179
  %v629 = vpop.f32.mrf.mxu0
  %v630 = vadd.f32 %v131, %v629
  %v631 = vpop.f32.mrf.mxu0
  %v632 = vadd.f32 %v135, %v631
  %v633 = vpop.f32.mrf.mxu0
  %v634 = vadd.f32 %v131, %v633
  %v635 = vpop.f32.mrf.mxu0
  %v636 = vadd.f32 %v135, %v635
  %637 = vdwg.mxu0
  %638 = vmatprep.subr.bf16.mxu0 %v501
  %639 = vmatpush1.bf16.msra.mxu0 %v500
  %640 = vmatprep.subr.bf16.mxu0 %v498
  %641 = vmatpush1.bf16.msra.mxu0 %v497
  %642 = vmatprep.subr.bf16.mxu0 %v495
  %643 = vmatpush1.bf16.msra.mxu0 %v494
  %644 = vmatprep.subr.bf16.mxu0 %v492
  %645 = vmatpush1.bf16.msra.mxu0 %v491
  %646 = vmatprep.subr.bf16.mxu0 %v489
  %647 = vmatpush1.bf16.msra.mxu0 %v488
  %648 = vmatprep.subr.bf16.mxu0 %v486
  %649 = vmatpush1.bf16.msra.mxu0 %v485
  %650 = vmatprep.subr.bf16.mxu0 %v483
  %651 = vmatpush1.bf16.msra.mxu0 %v482
  %652 = vmatprep.subr.bf16.mxu0 %v480
  %653 = vmatpush1.bf16.msra.mxu0 %v479
  %654 = vmatprep.subr.bf16.mxu0 0
  %655 = vmatpush2.bf16.msra.mxu0 0
  %656 = vmatprep.subr.bf16.mxu0 0
  %657 = vmatpush2.bf16.msra.mxu0 0
  %658 = vmatprep.subr.bf16.mxu0 0
  %659 = vmatpush2.bf16.msra.mxu0 0
  %660 = vmatprep.subr.bf16.mxu0 0
  %661 = vmatpush2.bf16.msra.mxu0 0
  %662 = vmatprep.subr.bf16.mxu0 0
  %663 = vmatpush2.bf16.msra.mxu0 0
  %664 = vmatprep.subr.bf16.mxu0 0
  %665 = vmatpush2.bf16.msra.mxu0 0
  %666 = vmatprep.subr.bf16.mxu0 0
  %667 = vmatpush2.bf16.msra.mxu0 0
  %668 = vmatprep.subr.bf16.mxu0 0
  %669 = vmatpush2.bf16.msra.mxu0 0
  %670 = vmatprep.mubr.bf16.mxu0 0
  %671 = vmatmul.mubr.bf16.gmra.mxu0 %v175
  %v672 = vpop.f32.mrf.mxu0
  %v673 = vadd.f32 %v610, %v672
  %v674 = vpop.f32.mrf.mxu0
  %v675 = vadd.f32 %v612, %v674
  %v676 = vpop.f32.mrf.mxu0
  %v677 = vadd.f32 %v614, %v676
  %v678 = vpop.f32.mrf.mxu0
  %v679 = vadd.f32 %v616, %v678
  %680 = vmatprep.mubr.bf16.mxu0 0
  %681 = vmatmul.mubr.bf16.gmra.mxu0 %v178
  %v682 = vpop.f32.mrf.mxu0
  %v683 = vadd.f32 %v620, %v682
  %v684 = vpop.f32.mrf.mxu0
  %v685 = vadd.f32 %v622, %v684
  %v686 = vpop.f32.mrf.mxu0
  %v687 = vadd.f32 %v624, %v686
  %v688 = vpop.f32.mrf.mxu0
  %v689 = vadd.f32 %v626, %v688
  %690 = vmatprep.mubr.bf16.mxu0 0
  %691 = vmatmul.mubr.bf16.gmra.mxu0 %v181
  %v692 = vpop.f32.mrf.mxu0
  %v693 = vadd.f32 %v630, %v692
  %v694 = vpop.f32.mrf.mxu0
  %v695 = vadd.f32 %v632, %v694
  %v696 = vpop.f32.mrf.mxu0
  %v697 = vadd.f32 %v634, %v696
  %v698 = vpop.f32.mrf.mxu0
  %v699 = vadd.f32 %v636, %v698
  %700 = vdwg.mxu0
  %701 = vmatprep.subr.bf16.mxu0 0
  %702 = vmatpush1.bf16.msra.mxu0 %v454
  %703 = vmatprep.subr.bf16.mxu0 0
  %704 = vmatpush1.bf16.msra.mxu0 %v451
  %705 = vmatprep.subr.bf16.mxu0 0
  %706 = vmatpush1.bf16.msra.mxu0 %v448
  %707 = vmatprep.subr.bf16.mxu0 0
  %708 = vmatpush1.bf16.msra.mxu0 %v445
  %709 = vmatprep.subr.bf16.mxu0 0
  %710 = vmatpush1.bf16.msra.mxu0 %v442
  %711 = vmatprep.subr.bf16.mxu0 0
  %712 = vmatpush1.bf16.msra.mxu0 %v439
  %713 = vmatprep.subr.bf16.mxu0 0
  %714 = vmatpush1.bf16.msra.mxu0 %v436
  %715 = vmatprep.subr.bf16.mxu0 0
  %716 = vmatpush1.bf16.msra.mxu0 %v433
  %717 = vmatprep.subr.bf16.mxu0 0
  %718 = vmatpush2.bf16.msra.mxu0 %v478
  %719 = vmatprep.subr.bf16.mxu0 0
  %720 = vmatpush2.bf16.msra.mxu0 %v475
  %721 = vmatprep.subr.bf16.mxu0 0
  %722 = vmatpush2.bf16.msra.mxu0 %v472
  %723 = vmatprep.subr.bf16.mxu0 0
  %724 = vmatpush2.bf16.msra.mxu0 %v469
  %725 = vmatprep.subr.bf16.mxu0 0
  %726 = vmatpush2.bf16.msra.mxu0 %v466
  %727 = vmatprep.subr.bf16.mxu0 0
  %728 = vmatpush2.bf16.msra.mxu0 %v463
  %729 = vmatprep.subr.bf16.mxu0 0
  %730 = vmatpush2.bf16.msra.mxu0 %v460
  %731 = vmatprep.subr.bf16.mxu0 0
  %732 = vmatpush2.bf16.msra.mxu0 %v457
  %733 = vmatprep.mubr.bf16.mxu0 %v174
  %734 = vmatmul.mubr.bf16.gmra.mxu0 %v173
  %v735 = vpop.f32.mrf.mxu0
  %v736 = vadd.f32 %v139, %v735
  %v737 = vpop.f32.mrf.mxu0
  %v738 = vpop.f32.mrf.mxu0
  %v739 = vadd.f32 %v139, %v738
  %v740 = vpop.f32.mrf.mxu0
  %741 = vmatprep.mubr.bf16.mxu0 %v177
  %742 = vmatmul.mubr.bf16.gmra.mxu0 %v176
  %v743 = vpop.f32.mrf.mxu0
  %v744 = vadd.f32 %v139, %v743
  %v745 = vpop.f32.mrf.mxu0
  %v746 = vpop.f32.mrf.mxu0
  %v747 = vadd.f32 %v139, %v746
  %v748 = vpop.f32.mrf.mxu0
  %749 = vmatprep.mubr.bf16.mxu0 %v180
  %750 = vmatmul.mubr.bf16.gmra.mxu0 %v179
  %v751 = vpop.f32.mrf.mxu0
  %v752 = vadd.f32 %v139, %v751
  %v753 = vpop.f32.mrf.mxu0
  %v754 = vpop.f32.mrf.mxu0
  %v755 = vadd.f32 %v139, %v754
  %v756 = vpop.f32.mrf.mxu0
  %757 = vdwg.mxu0
  %758 = vmatprep.subr.bf16.mxu0 0
  %759 = vmatpush1.bf16.msra.mxu0 %v502
  %760 = vmatprep.subr.bf16.mxu0 0
  %761 = vmatpush1.bf16.msra.mxu0 %v499
  %762 = vmatprep.subr.bf16.mxu0 0
  %763 = vmatpush1.bf16.msra.mxu0 %v496
  %764 = vmatprep.subr.bf16.mxu0 0
  %765 = vmatpush1.bf16.msra.mxu0 %v493
  %766 = vmatprep.subr.bf16.mxu0 0
  %767 = vmatpush1.bf16.msra.mxu0 %v490
  %768 = vmatprep.subr.bf16.mxu0 0
  %769 = vmatpush1.bf16.msra.mxu0 %v487
  %770 = vmatprep.subr.bf16.mxu0 0
  %771 = vmatpush1.bf16.msra.mxu0 %v484
  %772 = vmatprep.subr.bf16.mxu0 0
  %773 = vmatpush1.bf16.msra.mxu0 %v481
  %774 = vmatprep.subr.bf16.mxu0 0
  %775 = vmatpush2.bf16.msra.mxu0 0
  %776 = vmatprep.subr.bf16.mxu0 0
  %777 = vmatpush2.bf16.msra.mxu0 0
  %778 = vmatprep.subr.bf16.mxu0 0
  %779 = vmatpush2.bf16.msra.mxu0 0
  %780 = vmatprep.subr.bf16.mxu0 0
  %781 = vmatpush2.bf16.msra.mxu0 0
  %782 = vmatprep.subr.bf16.mxu0 0
  %783 = vmatpush2.bf16.msra.mxu0 0
  %784 = vmatprep.subr.bf16.mxu0 0
  %785 = vmatpush2.bf16.msra.mxu0 0
  %786 = vmatprep.subr.bf16.mxu0 0
  %787 = vmatpush2.bf16.msra.mxu0 0
  %788 = vmatprep.subr.bf16.mxu0 0
  %789 = vmatpush2.bf16.msra.mxu0 0
  %790 = vmatprep.mubr.bf16.mxu0 0
  %791 = vmatmul.mubr.bf16.gmra.mxu0 %v175
  %v792 = vpop.f32.mrf.mxu0
  %v793 = vadd.f32 %v736, %v792
  %v794 = vpop.f32.mrf.mxu0
  %v795 = vpop.f32.mrf.mxu0
  %v796 = vadd.f32 %v739, %v795
  %v797 = vpop.f32.mrf.mxu0
  %798 = vmatprep.mubr.bf16.mxu0 0
  %799 = vmatmul.mubr.bf16.gmra.mxu0 %v178
  %v800 = vpop.f32.mrf.mxu0
  %v801 = vadd.f32 %v744, %v800
  %v802 = vpop.f32.mrf.mxu0
  %v803 = vpop.f32.mrf.mxu0
  %v804 = vadd.f32 %v747, %v803
  %v805 = vpop.f32.mrf.mxu0
  %806 = vmatprep.mubr.bf16.mxu0 0
  %807 = vmatmul.mubr.bf16.gmra.mxu0 %v181
  %v808 = vpop.f32.mrf.mxu0
  %v809 = vadd.f32 %v752, %v808
  %v810 = vpop.f32.mrf.mxu0
  %v811 = vpop.f32.mrf.mxu0
  %v812 = vadd.f32 %v755, %v811
  %v813 = vpop.f32.mrf.mxu0
  %814 = vdwg.mxu0
  %v815 = vld [vmem:[%s3] sm:$0xff]
  %v816 = vld [vmem:[%s3 + $0x8] sm:$0xff]
  %v817 = vld [vmem:[%s3 + $0x10] sm:$0xff]
  %v818 = vld [vmem:[%s3 + $0x18] sm:$0xff]
  %v819 = vld [vmem:[%s3 + $0x20] sm:$0xff]
  %v820 = vld [vmem:[%s3 + $0x28] sm:$0xff]
  %v821 = vld [vmem:[%s3 + $0x30] sm:$0xff]
  %v822 = vld [vmem:[%s3 + $0x38] sm:$0xff]
  %v823 = vld [vmem:[%s3 + $0x40] sm:$0xff]
  %v824 = vld [vmem:[%s3 + $0x48] sm:$0xff]
  %v825 = vld [vmem:[%s3 + $0x50] sm:$0xff]
  %v826 = vld [vmem:[%s3 + $0x58] sm:$0xff]
  %v827 = vld [vmem:[%s3 + $0x60] sm:$0xff]
  %v828 = vld [vmem:[%s3 + $0x68] sm:$0xff]
  %v829 = vld [vmem:[%s3 + $0x70] sm:$0xff]
  %v830 = vld [vmem:[%s3 + $0x78] sm:$0xff]
  %v831 = vld [vmem:[%s3 + $0x80] sm:$0xff]
  %v832 = vld [vmem:[%s3 + $0x88] sm:$0xff]
  %v833 = vadd.f32 %v673, %v815
  %v834 = vadd.f32 %v675, %v816
  %v835 = vadd.f32 %v793, %v817
  %v836 = vadd.f32 %v677, %v818
  %v837 = vadd.f32 %v679, %v819
  %v838 = vadd.f32 %v796, %v820
  %v839 = vadd.f32 %v683, %v821
  %v840 = vadd.f32 %v685, %v822
  %v841 = vadd.f32 %v801, %v823
  %v842 = vadd.f32 %v687, %v824
  %v843 = vadd.f32 %v689, %v825
  %v844 = vadd.f32 %v804, %v826
  %v845 = vadd.f32 %v693, %v827
  %v846 = vadd.f32 %v695, %v828
  %v847 = vadd.f32 %v809, %v829
  %v848 = vadd.f32 %v697, %v830
  %v849 = vadd.f32 %v699, %v831
  %v850 = vadd.f32 %v812, %v832
  %851 = vst [vmem:[%s4] sm:$0xff] %v833
  %852 = vst [vmem:[%s4 + $0x8] sm:$0xff] %v834
  %853 = vst [vmem:[%s4 + $0x10] sm:$0xff] %v835
  %854 = vst [vmem:[%s4 + $0x18] sm:$0xff] %v836
  %855 = vst [vmem:[%s4 + $0x20] sm:$0xff] %v837
  %856 = vst [vmem:[%s4 + $0x28] sm:$0xff] %v838
  %857 = vst [vmem:[%s4 + $0x30] sm:$0xff] %v839
  %858 = vst [vmem:[%s4 + $0x38] sm:$0xff] %v840
  %859 = vst [vmem:[%s4 + $0x40] sm:$0xff] %v841
  %860 = vst [vmem:[%s4 + $0x48] sm:$0xff] %v842
  %861 = vst [vmem:[%s4 + $0x50] sm:$0xff] %v843
  %862 = vst [vmem:[%s4 + $0x58] sm:$0xff] %v844
  %863 = vst [vmem:[%s4 + $0x60] sm:$0xff] %v845
  %864 = vst [vmem:[%s4 + $0x68] sm:$0xff] %v846
  %865 = vst [vmem:[%s4 + $0x70] sm:$0xff] %v847
  %866 = vst [vmem:[%s4 + $0x78] sm:$0xff] %v848
  %867 = vst [vmem:[%s4 + $0x80] sm:$0xff] %v849
  %868 = vst [vmem:[%s4 + $0x88] sm:$0xff] %v850
  // Predicated region
  $region18: #{closed_call.18} parent=0 // pred_check
    _
  $region19: #{closed_call.18} parent=0 // pred_check_branch
    %870 = sbr.rel (0) target = $region21
  $region20: #{closed_call.18} parent=0 // pred_region
    _
  $region21: #{closed_call.18} parent=0 // pred_fallthru
    _
  // Predicated region
  $region22: #{closed_call.18} parent=0 // pred_check
    _
  $region23: #{closed_call.18} parent=0 // pred_check_branch
    %872 = sbr.rel (0) target = $region25
  $region24: #{closed_call.18} parent=0 // pred_region
    _
  $region25: #{closed_call.18} parent=0 // pred_fallthru
    _

// kernel: closed_call.16
$region0: #{closed_call.16}
  #allocation0 [shape = 'u32[]', space=smem, size = 0x4, offset = 0x4, fixed_abs, tag = 'smem constant byte address 0x4 - core index']
  #allocation1 [shape = 'u32[144,128]{1,0:T(1,128)}', space=vmem, size = 0x12000, scoped, tag = 'internal scratch']
  %s0 = inlined_call_operand.vmem [shape: f32[48,384], index: 0, kind: input, shape index: {}]
  %s1 = inlined_call_operand.vmem [shape: f32[1,384], index: 1, kind: input, shape index: {}]
  %s2 = inlined_call_operand.vmem [shape: f32[1,384], index: 2, kind: input, shape index: {}]
  %s3 = inlined_call_operand.vmem [shape: bf16[384,1152], index: 3, kind: input, shape index: {}]
  %s4 = inlined_call_operand.vmem [shape: f32[1,1152], index: 4, kind: input, shape index: {}]
  %s5 = inlined_call_operand.vmem [shape: bf16[48,1152], index: 5, kind: output, shape index: {}]
  %s6 = sld [smem:[#allocation0]]
  $region101: #{closed_call.16} parent=0
    _
  %s8 = ssub.s32 1, %s6
  %s9 = scalar_select 0, %s8, %s6
  $region1: #{closed_call.16} parent=0
    #allocation2 [shape = 'u8[589824]{0}', space=vmem, size = 0x90000, scoped, tag = 'input window, operand 3']
    #allocation3 [shape = 'u8[73728]{0}', space=vmem, size = 0x12000, scoped, tag = 'output window, operand 0']
    loop: start=0, step=1, limit=5
    $region2: #{closed_call.16} parent=1 // loop_pre_header
      _
    $region3: #{closed_call.16} parent=1 // loop_header
      %s11 = sphi 0, %s15
      %p12 = scmp.ge.s32.totalorder %s11, 5
      %s18 = sphi 0, %s30
      %s19 = sphi 0, %s26
      %s20 = sphi 0, %s18
      %s21 = sphi 0, %s19
      %s22 = sphi 0, %s20
      %s23 = sphi 0, %s21
      %s33 = sphi 0, %s35
      %s36 = sphi 0, %s33
      %s37 = sphi 0, %s36
      %s53 = sphi 0, %s37
      %s57 = sphi 0, %s57
      %s59 = sphi 0, %s57
      %s60 = sphi 0, %s59
      %s74 = sphi 0, %s60
      %s78 = sphi 0, %s78
      %s80 = sphi 0, %s78
      %s81 = sphi 0, %s80
      %s95 = sphi 0, %s81
      %s101 = sphi 0, %s103
      %s104 = sphi 0, %s101
      %s105 = sphi 0, %s104
      %s121 = sphi 0, %s105
      %s127 = sphi 0, %s129
      %s130 = sphi 0, %s127
      %s131 = sphi 0, %s130
      %s147 = sphi 0, %s131
      %s155 = sphi 0, %s157
      %s158 = sphi 0, %s155
      %s159 = sphi 0, %s158
      %s175 = sphi 0, %s159
    $region4: #{closed_call.16} parent=1 // loop_header_branch
      %14 = sbr.rel (%p12) target = $region8
    $region5: #{closed_call.16} parent=1 // loop_body
      %s16 = ssub.s32 %s11, 1
      %s17 = ssub.s32 %s11, 2
      %s24 = sadd.s32 1, %s19
      %p25 = scmp.ge.s32.totalorder %s24, 3
      %s26 = scalar_select %p25, 0, %s24
      %s27 = sadd.s32 1, %s18
      %s28 = scalar_select %p25, %s27, %s18
      %p29 = scmp.ge.s32.totalorder %s28, 1
      %s30 = scalar_select %p29, 0, %s28
      %s31 = ssub.s32 %s18, %s30
      %p32 = scmp.eq.s32.totalorder %s31, 0
      %s34 = sadd.s32 %s33, 1
      %s35 = scalar_select %p32, %s33, %s34
      %p38 = pneg %p32
      %p39 = scmp.eq.s32.totalorder %s11, 2
      %p40 = por %p38, %p39
      %p41 = scmp.ne.s32.totalorder %s33, %s36
      %p42 = scmp.eq.s32.totalorder %s11, 0
      %p43 = por %p41, %p42
      %p44 = scmp.ne.s32.totalorder %s33, %s36
      %p45 = scmp.eq.s32.totalorder %s16, 2
      %p46 = por %p44, %p45
      %p47 = scmp.ne.s32.totalorder %s36, %s37
      %p48 = scmp.eq.s32.totalorder %s16, 0
      %p49 = por %p47, %p48
      %p50 = scmp.ne.s32.totalorder %s36, %s37
      %p51 = scmp.eq.s32.totalorder %s17, 2
      %p52 = por %p50, %p51
      %p54 = scmp.ne.s32.totalorder %s37, %s53
      %p55 = scmp.eq.s32.totalorder %s17, 0
      %p56 = por %p54, %p55
      %s58 = sadd.s32 %s57, 1
      %p61 = scmp.eq.s32.totalorder %s11, 2
      %p62 = scmp.ne.s32.totalorder %s57, %s59
      %p63 = scmp.eq.s32.totalorder %s11, 0
      %p64 = por %p62, %p63
      %p65 = scmp.ne.s32.totalorder %s57, %s59
      %p66 = scmp.eq.s32.totalorder %s16, 2
      %p67 = por %p65, %p66
      %p68 = scmp.ne.s32.totalorder %s59, %s60
      %p69 = scmp.eq.s32.totalorder %s16, 0
      %p70 = por %p68, %p69
      %p71 = scmp.ne.s32.totalorder %s59, %s60
      %p72 = scmp.eq.s32.totalorder %s17, 2
      %p73 = por %p71, %p72
      %p75 = scmp.ne.s32.totalorder %s60, %s74
      %p76 = scmp.eq.s32.totalorder %s17, 0
      %p77 = por %p75, %p76
      %s79 = sadd.s32 %s78, 1
      %p82 = scmp.eq.s32.totalorder %s11, 2
      %p83 = scmp.ne.s32.totalorder %s78, %s80
      %p84 = scmp.eq.s32.totalorder %s11, 0
      %p85 = por %p83, %p84
      %p86 = scmp.ne.s32.totalorder %s78, %s80
      %p87 = scmp.eq.s32.totalorder %s16, 2
      %p88 = por %p86, %p87
      %p89 = scmp.ne.s32.totalorder %s80, %s81
      %p90 = scmp.eq.s32.totalorder %s16, 0
      %p91 = por %p89, %p90
      %p92 = scmp.ne.s32.totalorder %s80, %s81
      %p93 = scmp.eq.s32.totalorder %s17, 2
      %p94 = por %p92, %p93
      %p96 = scmp.ne.s32.totalorder %s81, %s95
      %p97 = scmp.eq.s32.totalorder %s17, 0
      %p98 = por %p96, %p97
      %s99 = ssub.s32 %s19, %s26
      %p100 = scmp.eq.s32.totalorder %s99, 0
      %s102 = sadd.s32 %s101, 1
      %s103 = scalar_select %p100, %s101, %s102
      %p106 = pneg %p100
      %p107 = scmp.eq.s32.totalorder %s11, 2
      %p108 = por %p106, %p107
      %p109 = scmp.ne.s32.totalorder %s101, %s104
      %p110 = scmp.eq.s32.totalorder %s11, 0
      %p111 = por %p109, %p110
      %p112 = scmp.ne.s32.totalorder %s101, %s104
      %p113 = scmp.eq.s32.totalorder %s16, 2
      %p114 = por %p112, %p113
      %p115 = scmp.ne.s32.totalorder %s104, %s105
      %p116 = scmp.eq.s32.totalorder %s16, 0
      %p117 = por %p115, %p116
      %p118 = scmp.ne.s32.totalorder %s104, %s105
      %p119 = scmp.eq.s32.totalorder %s17, 2
      %p120 = por %p118, %p119
      %p122 = scmp.ne.s32.totalorder %s105, %s121
      %p123 = scmp.eq.s32.totalorder %s17, 0
      %p124 = por %p122, %p123
      %s125 = ssub.s32 %s19, %s26
      %p126 = scmp.eq.s32.totalorder %s125, 0
      %s128 = sadd.s32 %s127, 1
      %s129 = scalar_select %p126, %s127, %s128
      %p132 = pneg %p126
      %p133 = scmp.eq.s32.totalorder %s11, 2
      %p134 = por %p132, %p133
      %p135 = scmp.ne.s32.totalorder %s127, %s130
      %p136 = scmp.eq.s32.totalorder %s11, 0
      %p137 = por %p135, %p136
      %p138 = scmp.ne.s32.totalorder %s127, %s130
      %p139 = scmp.eq.s32.totalorder %s16, 2
      %p140 = por %p138, %p139
      %p141 = scmp.ne.s32.totalorder %s130, %s131
      %p142 = scmp.eq.s32.totalorder %s16, 0
      %p143 = por %p141, %p142
      %p144 = scmp.ne.s32.totalorder %s130, %s131
      %p145 = scmp.eq.s32.totalorder %s17, 2
      %p146 = por %p144, %p145
      %p148 = scmp.ne.s32.totalorder %s131, %s147
      %p149 = scmp.eq.s32.totalorder %s17, 0
      %p150 = por %p148, %p149
      %s151 = ssub.s32 %s18, %s30
      %s152 = ssub.s32 %s19, %s26
      %s153 = sor.u32 %s151, %s152
      %p154 = scmp.eq.s32.totalorder %s153, 0
      %s156 = sadd.s32 %s155, 1
      %s157 = scalar_select %p154, %s155, %s156
      %p160 = pneg %p154
      %p161 = scmp.eq.s32.totalorder %s11, 2
      %p162 = por %p160, %p161
      %p163 = scmp.ne.s32.totalorder %s155, %s158
      %p164 = scmp.eq.s32.totalorder %s11, 0
      %p165 = por %p163, %p164
      %p166 = scmp.ne.s32.totalorder %s155, %s158
      %p167 = scmp.eq.s32.totalorder %s16, 2
      %p168 = por %p166, %p167
      %p169 = scmp.ne.s32.totalorder %s158, %s159
      %p170 = scmp.eq.s32.totalorder %s16, 0
      %p171 = por %p169, %p170
      %p172 = scmp.ne.s32.totalorder %s158, %s159
      %p173 = scmp.eq.s32.totalorder %s17, 2
      %p174 = por %p172, %p173
      %p176 = scmp.ne.s32.totalorder %s159, %s175
      %p177 = scmp.eq.s32.totalorder %s17, 0
      %p178 = por %p176, %p177
      %p179 = scmp.le.s32.totalorder 1, %s11
      %p180 = scmp.lt.s32.totalorder %s11, 4
      %p181 = pnand %p179, %p180
      %p182 = pneg %p181
      // Predicated region
      $region9: #{closed_call.16} parent=5 // pred_check
        _
      $region10: #{closed_call.16} parent=5 // pred_check_branch
        %184 = sbr.rel (%p181) target = $region12
      $region11: #{closed_call.16} parent=5 // pred_region
        %s185 = ssub.s32 %s11, 1
        // Predicated region
        $region13: #{closed_call.16} parent=11 // pred_check
          %p186 = pneg %p49
        $region14: #{closed_call.16} parent=11 // pred_check_branch
          %188 = sbr.rel (%p186) target = $region16
        $region15: #{closed_call.16} parent=11 // pred_region
          %s189 = smul.u32 6, %s20
          %p190 = scmp.lt.s32.totalorder %s189, 5
          %s191 = scalar_select %p190, %s189, 5
          %s192 = smul.addr %s191, 3
          %s193 = smul.addr %s192, 8
          %s194 = scalar_lea.vmem %s0, %s193
          %s195 = smul.u32 6, %s20
        $region16: #{closed_call.16} parent=11 // pred_fallthru
          _
        // Predicated region
        $region17: #{closed_call.16} parent=11 // pred_check
          %p196 = pneg %p70
        $region18: #{closed_call.16} parent=11 // pred_check_branch
          %198 = sbr.rel (%p196) target = $region20
        $region19: #{closed_call.16} parent=11 // pred_region
          _
        $region20: #{closed_call.16} parent=11 // pred_fallthru
          _
        // Predicated region
        $region21: #{closed_call.16} parent=11 // pred_check
          %p199 = pneg %p91
        $region22: #{closed_call.16} parent=11 // pred_check_branch
          %201 = sbr.rel (%p199) target = $region24
        $region23: #{closed_call.16} parent=11 // pred_region
          _
        $region24: #{closed_call.16} parent=11 // pred_fallthru
          _
      $region12: #{closed_call.16} parent=5 // pred_fallthru
        _
      %p202 = scmp.lt.s32.totalorder %s11, 3
      // Predicated region
      $region25: #{closed_call.16} parent=5 // pred_check
        %p203 = pneg %p202
      $region26: #{closed_call.16} parent=5 // pred_check_branch
        %205 = sbr.rel (%p203) target = $region28
      $region27: #{closed_call.16} parent=5 // pred_region
        // Predicated region
        $region29: #{closed_call.16} parent=27 // pred_check
          %p206 = pneg %p111
        $region30: #{closed_call.16} parent=27 // pred_check_branch
          %208 = sbr.rel (%p206) target = $region32
        $region31: #{closed_call.16} parent=27 // pred_region
          %s209 = sand.u32 %s101, 1
          %s210 = sand.u32 %s101, 1
          %s211 = smul.addr %s210, 576
          %s212 = scalar_lea.vmem [#allocation2], %s211
          %s213 = smul.u32 3, %s19
          %s214 = smul.addr %s213, 4
          %s215 = scalar_lea.vmem %s3, %s214
          // Predicated region
          $region33: #{closed_call.16} parent=31 // pred_check
            _
          $region34: #{closed_call.16} parent=31 // pred_check_branch
            %217 = sbr.rel (0) target = $region36
          $region35: #{closed_call.16} parent=31 // pred_region
            // Predicated region
            $region37: #{closed_call.16} parent=35 // pred_check
              _
            $region38: #{closed_call.16} parent=35 // pred_check_branch
              %219 = sbr.rel (0) target = $region40
            $region39: #{closed_call.16} parent=35 // pred_region
              %s220 = scalar_lea.vmem %s215, 8
              %s221 = scalar_lea.vmem %s212, 8 [#allocation2]
              loop: start=0, step=1, limit=1
              $region41: #{closed_call.16} parent=39 // loop_pre_header
                _
              $region42: #{closed_call.16} parent=39 // loop_header
                %s223 = sphi 0, %s227
                %p224 = scmp.ge.s32.totalorder %s223, 1
                %s228 = sphi %s215, %s215
                %s229 = sphi %s212, %s212
              $region43: #{closed_call.16} parent=39 // loop_header_branch
                %226 = sbr.rel (%p224) target = $region47
              $region44: #{closed_call.16} parent=39 // loop_body
                %v230 = vld [vmem:[%s228] sm:$0xff]
                %231 = vst [vmem:[%s229] sm:$0xff] %v230
                %v232 = vld [vmem:[%s228 + $0x24] sm:$0xff]
                %233 = vst [vmem:[%s229 + $0xc] sm:$0xff] %v232
                %v234 = vld [vmem:[%s228 + $0x48] sm:$0xff]
                %235 = vst [vmem:[%s229 + $0x18] sm:$0xff] %v234
                %v236 = vld [vmem:[%s228 + $0x6c] sm:$0xff]
                %237 = vst [vmem:[%s229 + $0x24] sm:$0xff] %v236
                %v238 = vld [vmem:[%s228 + $0x90] sm:$0xff]
                %239 = vst [vmem:[%s229 + $0x30] sm:$0xff] %v238
                %v240 = vld [vmem:[%s228 + $0xb4] sm:$0xff]
                %241 = vst [vmem:[%s229 + $0x3c] sm:$0xff] %v240
                %v242 = vld [vmem:[%s228 + $0xd8] sm:$0xff]
                %243 = vst [vmem:[%s229 + $0x48] sm:$0xff] %v242
                %v244 = vld [vmem:[%s228 + $0xfc] sm:$0xff]
                %245 = vst [vmem:[%s229 + $0x54] sm:$0xff] %v244
                %v246 = vld [vmem:[%s228 + $0x120] sm:$0xff]
                %247 = vst [vmem:[%s229 + $0x60] sm:$0xff] %v246
                %v248 = vld [vmem:[%s228 + $0x144] sm:$0xff]
                %249 = vst [vmem:[%s229 + $0x6c] sm:$0xff] %v248
                %v250 = vld [vmem:[%s228 + $0x168] sm:$0xff]
                %251 = vst [vmem:[%s229 + $0x78] sm:$0xff] %v250
                %v252 = vld [vmem:[%s228 + $0x18c] sm:$0xff]
                %253 = vst [vmem:[%s229 + $0x84] sm:$0xff] %v252
                %v254 = vld [vmem:[%s228 + $0x1b0] sm:$0xff]
                %255 = vst [vmem:[%s229 + $0x90] sm:$0xff] %v254
                %v256 = vld [vmem:[%s228 + $0x1d4] sm:$0xff]
                %257 = vst [vmem:[%s229 + $0x9c] sm:$0xff] %v256
                %v258 = vld [vmem:[%s228 + $0x1f8] sm:$0xff]
                %259 = vst [vmem:[%s229 + $0xa8] sm:$0xff] %v258
                %v260 = vld [vmem:[%s228 + $0x21c] sm:$0xff]
                %261 = vst [vmem:[%s229 + $0xb4] sm:$0xff] %v260
                %v262 = vld [vmem:[%s228 + $0x240] sm:$0xff]
                %263 = vst [vmem:[%s229 + $0xc0] sm:$0xff] %v262
                %v264 = vld [vmem:[%s228 + $0x264] sm:$0xff]
                %265 = vst [vmem:[%s229 + $0xcc] sm:$0xff] %v264
                %v266 = vld [vmem:[%s228 + $0x288] sm:$0xff]
                %267 = vst [vmem:[%s229 + $0xd8] sm:$0xff] %v266
                %v268 = vld [vmem:[%s228 + $0x2ac] sm:$0xff]
                %269 = vst [vmem:[%s229 + $0xe4] sm:$0xff] %v268
                %v270 = vld [vmem:[%s228 + $0x2d0] sm:$0xff]
                %271 = vst [vmem:[%s229 + $0xf0] sm:$0xff] %v270
                %v272 = vld [vmem:[%s228 + $0x2f4] sm:$0xff]
                %273 = vst [vmem:[%s229 + $0xfc] sm:$0xff] %v272
                %v274 = vld [vmem:[%s228 + $0x318] sm:$0xff]
                %275 = vst [vmem:[%s229 + $0x108] sm:$0xff] %v274
                %v276 = vld [vmem:[%s228 + $0x33c] sm:$0xff]
                %277 = vst [vmem:[%s229 + $0x114] sm:$0xff] %v276
                %v278 = vld [vmem:[%s228 + $0x360] sm:$0xff]
                %279 = vst [vmem:[%s229 + $0x120] sm:$0xff] %v278
                %v280 = vld [vmem:[%s228 + $0x384] sm:$0xff]
                %281 = vst [vmem:[%s229 + $0x12c] sm:$0xff] %v280
                %v282 = vld [vmem:[%s228 + $0x3a8] sm:$0xff]
                %283 = vst [vmem:[%s229 + $0x138] sm:$0xff] %v282
                %v284 = vld [vmem:[%s228 + $0x3cc] sm:$0xff]
                %285 = vst [vmem:[%s229 + $0x144] sm:$0xff] %v284
                %v286 = vld [vmem:[%s228 + $0x3f0] sm:$0xff]
                %287 = vst [vmem:[%s229 + $0x150] sm:$0xff] %v286
                %v288 = vld [vmem:[%s228 + $0x414] sm:$0xff]
                %289 = vst [vmem:[%s229 + $0x15c] sm:$0xff] %v288
                %v290 = vld [vmem:[%s228 + $0x438] sm:$0xff]
                %291 = vst [vmem:[%s229 + $0x168] sm:$0xff] %v290
                %v292 = vld [vmem:[%s228 + $0x45c] sm:$0xff]
                %293 = vst [vmem:[%s229 + $0x174] sm:$0xff] %v292
                %v294 = vld [vmem:[%s228 + $0x480] sm:$0xff]
                %295 = vst [vmem:[%s229 + $0x180] sm:$0xff] %v294
                %v296 = vld [vmem:[%s228 + $0x4a4] sm:$0xff]
                %297 = vst [vmem:[%s229 + $0x18c] sm:$0xff] %v296
                %v298 = vld [vmem:[%s228 + $0x4c8] sm:$0xff]
                %299 = vst [vmem:[%s229 + $0x198] sm:$0xff] %v298
                %v300 = vld [vmem:[%s228 + $0x4ec] sm:$0xff]
                %301 = vst [vmem:[%s229 + $0x1a4] sm:$0xff] %v300
                %v302 = vld [vmem:[%s228 + $0x510] sm:$0xff]
                %303 = vst [vmem:[%s229 + $0x1b0] sm:$0xff] %v302
                %v304 = vld [vmem:[%s228 + $0x534] sm:$0xff]
                %305 = vst [vmem:[%s229 + $0x1bc] sm:$0xff] %v304
                %v306 = vld [vmem:[%s228 + $0x558] sm:$0xff]
                %307 = vst [vmem:[%s229 + $0x1c8] sm:$0xff] %v306
                %v308 = vld [vmem:[%s228 + $0x57c] sm:$0xff]
                %309 = vst [vmem:[%s229 + $0x1d4] sm:$0xff] %v308
                %v310 = vld [vmem:[%s228 + $0x5a0] sm:$0xff]
                %311 = vst [vmem:[%s229 + $0x1e0] sm:$0xff] %v310
                %v312 = vld [vmem:[%s228 + $0x5c4] sm:$0xff]
                %313 = vst [vmem:[%s229 + $0x1ec] sm:$0xff] %v312
                %v314 = vld [vmem:[%s228 + $0x5e8] sm:$0xff]
                %315 = vst [vmem:[%s229 + $0x1f8] sm:$0xff] %v314
                %v316 = vld [vmem:[%s228 + $0x60c] sm:$0xff]
                %317 = vst [vmem:[%s229 + $0x204] sm:$0xff] %v316
                %v318 = vld [vmem:[%s228 + $0x630] sm:$0xff]
                %319 = vst [vmem:[%s229 + $0x210] sm:$0xff] %v318
                %v320 = vld [vmem:[%s228 + $0x654] sm:$0xff]
                %321 = vst [vmem:[%s229 + $0x21c] sm:$0xff] %v320
                %v322 = vld [vmem:[%s228 + $0x678] sm:$0xff]
                %323 = vst [vmem:[%s229 + $0x228] sm:$0xff] %v322
                %v324 = vld [vmem:[%s228 + $0x69c] sm:$0xff]
                %325 = vst [vmem:[%s229 + $0x234] sm:$0xff] %v324
              $region45: #{closed_call.16} parent=39 // loop_footer
                %s227 = sadd.s32 1, %s223
              $region46: #{closed_call.16} parent=39 // loop_footer_branch
                %222 = sbr.rel target = $region42
              $region47: #{closed_call.16} parent=39 // loop_exit
                _
              %s327 = ssub.s32 16, 1
              loop: start=0, step=1, limit=1
              $region48: #{closed_call.16} parent=39 // loop_pre_header
                _
              $region49: #{closed_call.16} parent=39 // loop_header
                %s329 = sphi 0, %s333
                %p330 = scmp.ge.s32.totalorder %s329, 1
                %s334 = sphi %s220, %s220
                %s335 = sphi %s221, %s221
              $region50: #{closed_call.16} parent=39 // loop_header_branch
                %332 = sbr.rel (%p330) target = $region54
              $region51: #{closed_call.16} parent=39 // loop_body
                %v336 = vld [vmem:[%s334] sm:%s327]
                %337 = vst [vmem:[%s335] sm:%s327] %v336
                %v338 = vld [vmem:[%s334 + $0x24] sm:%s327]
                %339 = vst [vmem:[%s335 + $0xc] sm:%s327] %v338
                %v340 = vld [vmem:[%s334 + $0x48] sm:%s327]
                %341 = vst [vmem:[%s335 + $0x18] sm:%s327] %v340
                %v342 = vld [vmem:[%s334 + $0x6c] sm:%s327]
                %343 = vst [vmem:[%s335 + $0x24] sm:%s327] %v342
                %v344 = vld [vmem:[%s334 + $0x90] sm:%s327]
                %345 = vst [vmem:[%s335 + $0x30] sm:%s327] %v344
                %v346 = vld [vmem:[%s334 + $0xb4] sm:%s327]
                %347 = vst [vmem:[%s335 + $0x3c] sm:%s327] %v346
                %v348 = vld [vmem:[%s334 + $0xd8] sm:%s327]
                %349 = vst [vmem:[%s335 + $0x48] sm:%s327] %v348
                %v350 = vld [vmem:[%s334 + $0xfc] sm:%s327]
                %351 = vst [vmem:[%s335 + $0x54] sm:%s327] %v350
                %v352 = vld [vmem:[%s334 + $0x120] sm:%s327]
                %353 = vst [vmem:[%s335 + $0x60] sm:%s327] %v352
                %v354 = vld [vmem:[%s334 + $0x144] sm:%s327]
                %355 = vst [vmem:[%s335 + $0x6c] sm:%s327] %v354
                %v356 = vld [vmem:[%s334 + $0x168] sm:%s327]
                %357 = vst [vmem:[%s335 + $0x78] sm:%s327] %v356
                %v358 = vld [vmem:[%s334 + $0x18c] sm:%s327]
                %359 = vst [vmem:[%s335 + $0x84] sm:%s327] %v358
                %v360 = vld [vmem:[%s334 + $0x1b0] sm:%s327]
                %361 = vst [vmem:[%s335 + $0x90] sm:%s327] %v360
                %v362 = vld [vmem:[%s334 + $0x1d4] sm:%s327]
                %363 = vst [vmem:[%s335 + $0x9c] sm:%s327] %v362
                %v364 = vld [vmem:[%s334 + $0x1f8] sm:%s327]
                %365 = vst [vmem:[%s335 + $0xa8] sm:%s327] %v364
                %v366 = vld [vmem:[%s334 + $0x21c] sm:%s327]
                %367 = vst [vmem:[%s335 + $0xb4] sm:%s327] %v366
                %v368 = vld [vmem:[%s334 + $0x240] sm:%s327]
                %369 = vst [vmem:[%s335 + $0xc0] sm:%s327] %v368
                %v370 = vld [vmem:[%s334 + $0x264] sm:%s327]
                %371 = vst [vmem:[%s335 + $0xcc] sm:%s327] %v370
                %v372 = vld [vmem:[%s334 + $0x288] sm:%s327]
                %373 = vst [vmem:[%s335 + $0xd8] sm:%s327] %v372
                %v374 = vld [vmem:[%s334 + $0x2ac] sm:%s327]
                %375 = vst [vmem:[%s335 + $0xe4] sm:%s327] %v374
                %v376 = vld [vmem:[%s334 + $0x2d0] sm:%s327]
                %377 = vst [vmem:[%s335 + $0xf0] sm:%s327] %v376
                %v378 = vld [vmem:[%s334 + $0x2f4] sm:%s327]
                %379 = vst [vmem:[%s335 + $0xfc] sm:%s327] %v378
                %v380 = vld [vmem:[%s334 + $0x318] sm:%s327]
                %381 = vst [vmem:[%s335 + $0x108] sm:%s327] %v380
                %v382 = vld [vmem:[%s334 + $0x33c] sm:%s327]
                %383 = vst [vmem:[%s335 + $0x114] sm:%s327] %v382
                %v384 = vld [vmem:[%s334 + $0x360] sm:%s327]
                %385 = vst [vmem:[%s335 + $0x120] sm:%s327] %v384
                %v386 = vld [vmem:[%s334 + $0x384] sm:%s327]
                %387 = vst [vmem:[%s335 + $0x12c] sm:%s327] %v386
                %v388 = vld [vmem:[%s334 + $0x3a8] sm:%s327]
                %389 = vst [vmem:[%s335 + $0x138] sm:%s327] %v388
                %v390 = vld [vmem:[%s334 + $0x3cc] sm:%s327]
                %391 = vst [vmem:[%s335 + $0x144] sm:%s327] %v390
                %v392 = vld [vmem:[%s334 + $0x3f0] sm:%s327]
                %393 = vst [vmem:[%s335 + $0x150] sm:%s327] %v392
                %v394 = vld [vmem:[%s334 + $0x414] sm:%s327]
                %395 = vst [vmem:[%s335 + $0x15c] sm:%s327] %v394
                %v396 = vld [vmem:[%s334 + $0x438] sm:%s327]
                %397 = vst [vmem:[%s335 + $0x168] sm:%s327] %v396
                %v398 = vld [vmem:[%s334 + $0x45c] sm:%s327]
                %399 = vst [vmem:[%s335 + $0x174] sm:%s327] %v398
                %v400 = vld [vmem:[%s334 + $0x480] sm:%s327]
                %401 = vst [vmem:[%s335 + $0x180] sm:%s327] %v400
                %v402 = vld [vmem:[%s334 + $0x4a4] sm:%s327]
                %403 = vst [vmem:[%s335 + $0x18c] sm:%s327] %v402
                %v404 = vld [vmem:[%s334 + $0x4c8] sm:%s327]
                %405 = vst [vmem:[%s335 + $0x198] sm:%s327] %v404
                %v406 = vld [vmem:[%s334 + $0x4ec] sm:%s327]
                %407 = vst [vmem:[%s335 + $0x1a4] sm:%s327] %v406
                %v408 = vld [vmem:[%s334 + $0x510] sm:%s327]
                %409 = vst [vmem:[%s335 + $0x1b0] sm:%s327] %v408
                %v410 = vld [vmem:[%s334 + $0x534] sm:%s327]
                %411 = vst [vmem:[%s335 + $0x1bc] sm:%s327] %v410
                %v412 = vld [vmem:[%s334 + $0x558] sm:%s327]
                %413 = vst [vmem:[%s335 + $0x1c8] sm:%s327] %v412
                %v414 = vld [vmem:[%s334 + $0x57c] sm:%s327]
                %415 = vst [vmem:[%s335 + $0x1d4] sm:%s327] %v414
                %v416 = vld [vmem:[%s334 + $0x5a0] sm:%s327]
                %417 = vst [vmem:[%s335 + $0x1e0] sm:%s327] %v416
                %v418 = vld [vmem:[%s334 + $0x5c4] sm:%s327]
                %419 = vst [vmem:[%s335 + $0x1ec] sm:%s327] %v418
                %v420 = vld [vmem:[%s334 + $0x5e8] sm:%s327]
                %421 = vst [vmem:[%s335 + $0x1f8] sm:%s327] %v420
                %v422 = vld [vmem:[%s334 + $0x60c] sm:%s327]
                %423 = vst [vmem:[%s335 + $0x204] sm:%s327] %v422
                %v424 = vld [vmem:[%s334 + $0x630] sm:%s327]
                %425 = vst [vmem:[%s335 + $0x210] sm:%s327] %v424
                %v426 = vld [vmem:[%s334 + $0x654] sm:%s327]
                %427 = vst [vmem:[%s335 + $0x21c] sm:%s327] %v426
                %v428 = vld [vmem:[%s334 + $0x678] sm:%s327]
                %429 = vst [vmem:[%s335 + $0x228] sm:%s327] %v428
                %v430 = vld [vmem:[%s334 + $0x69c] sm:%s327]
                %431 = vst [vmem:[%s335 + $0x234] sm:%s327] %v430
              $region52: #{closed_call.16} parent=39 // loop_footer
                %s333 = sadd.s32 1, %s329
              $region53: #{closed_call.16} parent=39 // loop_footer_branch
                %328 = sbr.rel target = $region49
              $region54: #{closed_call.16} parent=39 // loop_exit
                _
            $region40: #{closed_call.16} parent=35 // pred_fallthru
              _
          $region36: #{closed_call.16} parent=31 // pred_fallthru
            _
          %432 = vnop
        $region32: #{closed_call.16} parent=27 // pred_fallthru
          _
        // Predicated region
        $region55: #{closed_call.16} parent=27 // pred_check
          %p433 = pneg %p137
        $region56: #{closed_call.16} parent=27 // pred_check_branch
          %435 = sbr.rel (%p433) target = $region58
        $region57: #{closed_call.16} parent=27 // pred_region
          %s436 = smul.u32 3, %s19
          %p437 = scmp.lt.s32.totalorder %s436, 8
          %s438 = scalar_select %p437, %s436, 8
          %s439 = scalar_lea.vmem %s4, %s438
          %s440 = smul.u32 3, %s19
        $region58: #{closed_call.16} parent=27 // pred_fallthru
          _
      $region28: #{closed_call.16} parent=5 // pred_fallthru
        _
      %p441 = scmp.le.s32.totalorder 1, %s11
      %p442 = scmp.lt.s32.totalorder %s11, 4
      %p443 = pnand %p441, %p442
      %p444 = pneg %p443
      // Predicated region
      $region59: #{closed_call.16} parent=5 // pred_check
        _
      $region60: #{closed_call.16} parent=5 // pred_check_branch
        %446 = sbr.rel (%p443) target = $region62
      $region61: #{closed_call.16} parent=5 // pred_region
        %s447 = ssub.s32 %s11, 1
        %s448 = sand.u32 %s104, 1
        %s449 = sand.u32 %s104, 1
        %s450 = smul.addr %s449, 576
        %s451 = scalar_lea.vmem [#allocation2], %s450
        // Predicated region
        $region63: #{closed_call.16} parent=61 // pred_check
          %p452 = pneg %p117
        $region64: #{closed_call.16} parent=61 // pred_check_branch
          %454 = sbr.rel (%p452) target = $region66
        $region65: #{closed_call.16} parent=61 // pred_region
          _
        $region66: #{closed_call.16} parent=61 // pred_fallthru
          _
        %s455 = smul.u32 6, %s20
        %p456 = scmp.lt.s32.totalorder %s455, 5
        %s457 = scalar_select %p456, %s455, 5
        %s458 = smul.addr %s457, 3
        %s459 = smul.addr %s458, 8
        %s460 = scalar_lea.vmem %s0, %s459
        %p461 = pneg %p49
        %p462 = pneg %p46
        %p463 = pneg %p70
        %p464 = pneg %p67
        %p465 = pneg %p91
        %p466 = pneg %p88
        %s467 = sand.u32 %s104, 1
        %s468 = sand.u32 %s104, 1
        %s469 = smul.addr %s468, 576
        %s470 = scalar_lea.vmem [#allocation2], %s469
        %p471 = pneg %p117
        %p472 = pneg %p114
        %s473 = smul.u32 3, %s21
        %p474 = scmp.lt.s32.totalorder %s473, 8
        %s475 = scalar_select %p474, %s473, 8
        %s476 = scalar_lea.vmem %s4, %s475
        %p477 = pneg %p143
        %p478 = pneg %p140
        %p479 = pneg %p171
        %p480 = pneg %p168
        %s481 = sand.u32 %s158, 1
        %s482 = sand.u32 %s158, 1
        %s483 = smul.addr %s482, 72
        %s484 = scalar_lea.vmem [#allocation3], %s483
        %s485 = smul.u32 6, %s20
        %p486 = scmp.lt.s32.totalorder %s485, 5
        %s487 = scalar_select %p486, %s485, 5
        %s488 = smul.addr %s487, 3
        %s489 = smul.addr %s488, 8
        %s490 = scalar_lea.vmem %s0, %s489
        %s491 = smul.u32 6, %s20
        %s492 = smul.u32 3, %s21
        %s493 = smul.u32 3, %s21
        %p494 = scmp.lt.s32.totalorder %s493, 8
        %s495 = scalar_select %p494, %s493, 8
        %s496 = scalar_lea.vmem %s4, %s495
        %s497 = smul.u32 3, %s21
        %s498 = smul.u32 6, %s20
        %s499 = smul.u32 3, %s21
        %v501 = vld [vmem:[%s490] sm:$0xff]
        %v502 = vld [vmem:[%s490 + $0x8] sm:$0xff]
        %v503 = vld [vmem:[%s490 + $0x10] sm:$0xff]
        %v504 = vld [vmem:[%s490 + $0x18] sm:$0xff]
        %v505 = vld [vmem:[%s490 + $0x20] sm:$0xff]
        %v506 = vld [vmem:[%s490 + $0x28] sm:$0xff]
        %v507 = vld [vmem:[%s490 + $0x30] sm:$0xff]
        %v508 = vld [vmem:[%s490 + $0x38] sm:$0xff]
        %v509 = vld [vmem:[%s490 + $0x40] sm:$0xff]
        %v510 = vld [vmem:[%s490 + $0x48] sm:$0xff]
        %v511 = vld [vmem:[%s490 + $0x50] sm:$0xff]
        %v512 = vld [vmem:[%s490 + $0x58] sm:$0xff]
        %v513 = vld [vmem:[%s490 + $0x60] sm:$0xff]
        %v514 = vld [vmem:[%s490 + $0x68] sm:$0xff]
        %v515 = vld [vmem:[%s490 + $0x70] sm:$0xff]
        %v516 = vld [vmem:[%s490 + $0x78] sm:$0xff]
        %v517 = vld [vmem:[%s490 + $0x80] sm:$0xff]
        %v518 = vld [vmem:[%s490 + $0x88] sm:$0xff]
        %v519 = vadd.f32 %v501, %v502
        %v520 = vadd.f32 %v519, %v503
        %521 = vadd.xlane.f32.xlu0 %v520
        %v522 = vpop.xlane.xlu0 %521
        %v523 = vadd.f32 %v504, %v505
        %v524 = vadd.f32 %v523, %v506
        %525 = vadd.xlane.f32.xlu0 %v524
        %v526 = vpop.xlane.xlu0 %525
        %v527 = vadd.f32 %v507, %v508
        %v528 = vadd.f32 %v527, %v509
        %529 = vadd.xlane.f32.xlu0 %v528
        %v530 = vpop.xlane.xlu0 %529
        %v531 = vadd.f32 %v510, %v511
        %v532 = vadd.f32 %v531, %v512
        %533 = vadd.xlane.f32.xlu0 %v532
        %v534 = vpop.xlane.xlu0 %533
        %v535 = vadd.f32 %v513, %v514
        %v536 = vadd.f32 %v535, %v515
        %537 = vadd.xlane.f32.xlu0 %v536
        %v538 = vpop.xlane.xlu0 %537
        %v539 = vadd.f32 %v516, %v517
        %v540 = vadd.f32 %v539, %v518
        %541 = vadd.xlane.f32.xlu0 %v540
        %v542 = vpop.xlane.xlu0 %541
        %v543 = vrcp.pop 384.0
        %v544 = vmul.f32 %v522, %v543
        %v545 = vmul.f32 %v526, %v543
        %v546 = vmul.f32 %v530, %v543
        %v547 = vmul.f32 %v534, %v543
        %v548 = vmul.f32 %v538, %v543
        %v549 = vmul.f32 %v542, %v543
        %v550 = vsub.f32 %v501, %v544
        %v551 = vsub.f32 %v502, %v544
        %v552 = vsub.f32 %v503, %v544
        %v553 = vsub.f32 %v504, %v545
        %v554 = vsub.f32 %v505, %v545
        %v555 = vsub.f32 %v506, %v545
        %v556 = vsub.f32 %v507, %v546
        %v557 = vsub.f32 %v508, %v546
        %v558 = vsub.f32 %v509, %v546
        %v559 = vsub.f32 %v510, %v547
        %v560 = vsub.f32 %v511, %v547
        %v561 = vsub.f32 %v512, %v547
        %v562 = vsub.f32 %v513, %v548
        %v563 = vsub.f32 %v514, %v548
        %v564 = vsub.f32 %v515, %v548
        %v565 = vsub.f32 %v516, %v549
        %v566 = vsub.f32 %v517, %v549
        %v567 = vsub.f32 %v518, %v549
        %v568 = vmul.f32 %v550, %v550
        %v569 = vmul.f32 %v551, %v551
        %v570 = vmul.f32 %v552, %v552
        %v571 = vmul.f32 %v553, %v553
        %v572 = vmul.f32 %v554, %v554
        %v573 = vmul.f32 %v555, %v555
        %v574 = vmul.f32 %v556, %v556
        %v575 = vmul.f32 %v557, %v557
        %v576 = vmul.f32 %v558, %v558
        %v577 = vmul.f32 %v559, %v559
        %v578 = vmul.f32 %v560, %v560
        %v579 = vmul.f32 %v561, %v561
        %v580 = vmul.f32 %v562, %v562
        %v581 = vmul.f32 %v563, %v563
        %v582 = vmul.f32 %v564, %v564
        %v583 = vmul.f32 %v565, %v565
        %v584 = vmul.f32 %v566, %v566
        %v585 = vmul.f32 %v567, %v567
        %v586 = vadd.f32 %v568, %v569
        %v587 = vadd.f32 %v586, %v570
        %588 = vadd.xlane.f32.xlu0 %v587
        %v589 = vpop.xlane.xlu0 %588
        %v590 = vadd.f32 %v571, %v572
        %v591 = vadd.f32 %v590, %v573
        %592 = vadd.xlane.f32.xlu0 %v591
        %v593 = vpop.xlane.xlu0 %592
        %v594 = vadd.f32 %v574, %v575
        %v595 = vadd.f32 %v594, %v576
        %596 = vadd.xlane.f32.xlu0 %v595
        %v597 = vpop.xlane.xlu0 %596
        %v598 = vadd.f32 %v577, %v578
        %v599 = vadd.f32 %v598, %v579
        %600 = vadd.xlane.f32.xlu0 %v599
        %v601 = vpop.xlane.xlu0 %600
        %v602 = vadd.f32 %v580, %v581
        %v603 = vadd.f32 %v602, %v582
        %604 = vadd.xlane.f32.xlu0 %v603
        %v605 = vpop.xlane.xlu0 %604
        %v606 = vadd.f32 %v583, %v584
        %v607 = vadd.f32 %v606, %v585
        %608 = vadd.xlane.f32.xlu0 %v607
        %v609 = vpop.xlane.xlu0 %608
        %v610 = vmul.f32 %v589, %v543
        %v611 = vmul.f32 %v593, %v543
        %v612 = vmul.f32 %v597, %v543
        %v613 = vmul.f32 %v601, %v543
        %v614 = vmul.f32 %v605, %v543
        %v615 = vmul.f32 %v609, %v543
        %v616 = vadd.f32 %v610, 1e-06
        %v617 = vadd.f32 %v611, 1e-06
        %v618 = vadd.f32 %v612, 1e-06
        %v619 = vadd.f32 %v613, 1e-06
        %v620 = vadd.f32 %v614, 1e-06
        %v621 = vadd.f32 %v615, 1e-06
        %v622 = vrsqrt.pop %v616
        %v623 = vrsqrt.pop %v617
        %v624 = vrsqrt.pop %v618
        %v625 = vrsqrt.pop %v619
        %v626 = vrsqrt.pop %v620
        %v627 = vrsqrt.pop %v621
        %v628 = vmul.f32 %v550, %v622
        %v629 = vmul.f32 %v551, %v622
        %v630 = vmul.f32 %v552, %v622
        %v631 = vmul.f32 %v553, %v623
        %v632 = vmul.f32 %v554, %v623
        %v633 = vmul.f32 %v555, %v623
        %v634 = vmul.f32 %v556, %v624
        %v635 = vmul.f32 %v557, %v624
        %v636 = vmul.f32 %v558, %v624
        %v637 = vmul.f32 %v559, %v625
        %v638 = vmul.f32 %v560, %v625
        %v639 = vmul.f32 %v561, %v625
        %v640 = vmul.f32 %v562, %v626
        %v641 = vmul.f32 %v563, %v626
        %v642 = vmul.f32 %v564, %v626
        %v643 = vmul.f32 %v565, %v627
        %v644 = vmul.f32 %v566, %v627
        %v645 = vmul.f32 %v567, %v627
        %v646 = vld [vmem:[%s1] sm:$0x7]
        %v648 = vlaneseq
        %v649 = vshrl.u32 %v648, 7
        %v650 = vsub.s32 0, %v649
        %v651 = vrot.slane %v646, %v650
        %v652 = vlaneseq
        %v653 = vshrl.u32 %v652, 7
        %v654 = vsub.s32 1, %v653
        %v655 = vrot.slane %v646, %v654
        %v656 = vlaneseq
        %v657 = vshrl.u32 %v656, 7
        %v658 = vsub.s32 2, %v657
        %v659 = vrot.slane %v646, %v658
        %v663 = vmul.f32 %v628, %v651
        %v664 = vmul.f32 %v629, %v655
        %v665 = vmul.f32 %v630, %v659
        %v666 = vmul.f32 %v631, %v651
        %v667 = vmul.f32 %v632, %v655
        %v668 = vmul.f32 %v633, %v659
        %v669 = vmul.f32 %v634, %v651
        %v670 = vmul.f32 %v635, %v655
        %v671 = vmul.f32 %v636, %v659
        %v672 = vmul.f32 %v637, %v651
        %v673 = vmul.f32 %v638, %v655
        %v674 = vmul.f32 %v639, %v659
        %v675 = vmul.f32 %v640, %v651
        %v676 = vmul.f32 %v641, %v655
        %v677 = vmul.f32 %v642, %v659
        %v678 = vmul.f32 %v643, %v651
        %v679 = vmul.f32 %v644, %v655
        %v680 = vmul.f32 %v645, %v659
        %v681 = vld [vmem:[%s2] sm:$0x7]
        %v683 = vlaneseq
        %v684 = vshrl.u32 %v683, 7
        %v685 = vsub.s32 0, %v684
        %v686 = vrot.slane %v681, %v685
        %v687 = vlaneseq
        %v688 = vshrl.u32 %v687, 7
        %v689 = vsub.s32 1, %v688
        %v690 = vrot.slane %v681, %v689
        %v691 = vlaneseq
        %v692 = vshrl.u32 %v691, 7
        %v693 = vsub.s32 2, %v692
        %v694 = vrot.slane %v681, %v693
        %v698 = vadd.f32 %v663, %v686
        %v699 = vadd.f32 %v664, %v690
        %v700 = vadd.f32 %v665, %v694
        %v701 = vadd.f32 %v666, %v686
        %v702 = vadd.f32 %v667, %v690
        %v703 = vadd.f32 %v668, %v694
        %v704 = vadd.f32 %v669, %v686
        %v705 = vadd.f32 %v670, %v690
        %v706 = vadd.f32 %v671, %v694
        %v707 = vadd.f32 %v672, %v686
        %v708 = vadd.f32 %v673, %v690
        %v709 = vadd.f32 %v674, %v694
        %v710 = vadd.f32 %v675, %v686
        %v711 = vadd.f32 %v676, %v690
        %v712 = vadd.f32 %v677, %v694
        %v713 = vadd.f32 %v678, %v686
        %v714 = vadd.f32 %v679, %v690
        %v715 = vadd.f32 %v680, %v694
        %v716 = vpack.c.bf16 %v701, %v698
        %v717 = vpack.c.bf16 %v702, %v699
        %v718 = vpack.c.bf16 %v703, %v700
        %v719 = vpack.c.bf16 %v707, %v704
        %v720 = vpack.c.bf16 %v708, %v705
        %v721 = vpack.c.bf16 %v709, %v706
        %v722 = vpack.c.bf16 %v713, %v710
        %v723 = vpack.c.bf16 %v714, %v711
        %v724 = vpack.c.bf16 %v715, %v712
        %v725 = vld [vmem:[%s451] sm:$0xff]
        %v726 = vld [vmem:[%s451 + $0x8] sm:$0xf]
        %v727 = vld [vmem:[%s451 + $0xc] sm:$0xff]
        %v728 = vld [vmem:[%s451 + $0x14] sm:$0xf]
        %v729 = vld [vmem:[%s451 + $0x18] sm:$0xff]
        %v730 = vld [vmem:[%s451 + $0x20] sm:$0xf]
        %v731 = vld [vmem:[%s451 + $0x24] sm:$0xff]
        %v732 = vld [vmem:[%s451 + $0x2c] sm:$0xf]
        %v733 = vld [vmem:[%s451 + $0x30] sm:$0xff]
        %v734 = vld [vmem:[%s451 + $0x38] sm:$0xf]
        %v735 = vld [vmem:[%s451 + $0x3c] sm:$0xff]
        %v736 = vld [vmem:[%s451 + $0x44] sm:$0xf]
        %v737 = vld [vmem:[%s451 + $0x48] sm:$0xff]
        %v738 = vld [vmem:[%s451 + $0x50] sm:$0xf]
        %v739 = vld [vmem:[%s451 + $0x54] sm:$0xff]
        %v740 = vld [vmem:[%s451 + $0x5c] sm:$0xf]
        %v741 = vld [vmem:[%s451 + $0x60] sm:$0xff]
        %v742 = vld [vmem:[%s451 + $0x68] sm:$0xf]
        %v743 = vld [vmem:[%s451 + $0x6c] sm:$0xff]
        %v744 = vld [vmem:[%s451 + $0x74] sm:$0xf]
        %v745 = vld [vmem:[%s451 + $0x78] sm:$0xff]
        %v746 = vld [vmem:[%s451 + $0x80] sm:$0xf]
        %v747 = vld [vmem:[%s451 + $0x84] sm:$0xff]
        %v748 = vld [vmem:[%s451 + $0x8c] sm:$0xf]
        %v749 = vld [vmem:[%s451 + $0x90] sm:$0xff]
        %v750 = vld [vmem:[%s451 + $0x98] sm:$0xf]
        %v751 = vld [vmem:[%s451 + $0x9c] sm:$0xff]
        %v752 = vld [vmem:[%s451 + $0xa4] sm:$0xf]
        %v753 = vld [vmem:[%s451 + $0xa8] sm:$0xff]
        %v754 = vld [vmem:[%s451 + $0xb0] sm:$0xf]
        %v755 = vld [vmem:[%s451 + $0xb4] sm:$0xff]
        %v756 = vld [vmem:[%s451 + $0xbc] sm:$0xf]
        %v757 = vld [vmem:[%s451 + $0xc0] sm:$0xff]
        %v758 = vld [vmem:[%s451 + $0xc8] sm:$0xf]
        %v759 = vld [vmem:[%s451 + $0xcc] sm:$0xff]
        %v760 = vld [vmem:[%s451 + $0xd4] sm:$0xf]
        %v761 = vld [vmem:[%s451 + $0xd8] sm:$0xff]
        %v762 = vld [vmem:[%s451 + $0xe0] sm:$0xf]
        %v763 = vld [vmem:[%s451 + $0xe4] sm:$0xff]
        %v764 = vld [vmem:[%s451 + $0xec] sm:$0xf]
        %v765 = vld [vmem:[%s451 + $0xf0] sm:$0xff]
        %v766 = vld [vmem:[%s451 + $0xf8] sm:$0xf]
        %v767 = vld [vmem:[%s451 + $0xfc] sm:$0xff]
        %v768 = vld [vmem:[%s451 + $0x104] sm:$0xf]
        %v769 = vld [vmem:[%s451 + $0x108] sm:$0xff]
        %v770 = vld [vmem:[%s451 + $0x110] sm:$0xf]
        %v771 = vld [vmem:[%s451 + $0x114] sm:$0xff]
        %v772 = vld [vmem:[%s451 + $0x11c] sm:$0xf]
        %v773 = vld [vmem:[%s451 + $0x120] sm:$0xff]
        %v774 = vld [vmem:[%s451 + $0x128] sm:$0xf]
        %v775 = vld [vmem:[%s451 + $0x12c] sm:$0xff]
        %v776 = vld [vmem:[%s451 + $0x134] sm:$0xf]
        %v777 = vld [vmem:[%s451 + $0x138] sm:$0xff]
        %v778 = vld [vmem:[%s451 + $0x140] sm:$0xf]
        %v779 = vld [vmem:[%s451 + $0x144] sm:$0xff]
        %v780 = vld [vmem:[%s451 + $0x14c] sm:$0xf]
        %v781 = vld [vmem:[%s451 + $0x150] sm:$0xff]
        %v782 = vld [vmem:[%s451 + $0x158] sm:$0xf]
        %v783 = vld [vmem:[%s451 + $0x15c] sm:$0xff]
        %v784 = vld [vmem:[%s451 + $0x164] sm:$0xf]
        %v785 = vld [vmem:[%s451 + $0x168] sm:$0xff]
        %v786 = vld [vmem:[%s451 + $0x170] sm:$0xf]
        %v787 = vld [vmem:[%s451 + $0x174] sm:$0xff]
        %v788 = vld [vmem:[%s451 + $0x17c] sm:$0xf]
        %v789 = vld [vmem:[%s451 + $0x180] sm:$0xff]
        %v790 = vld [vmem:[%s451 + $0x188] sm:$0xf]
        %v791 = vld [vmem:[%s451 + $0x18c] sm:$0xff]
        %v792 = vld [vmem:[%s451 + $0x194] sm:$0xf]
        %v793 = vld [vmem:[%s451 + $0x198] sm:$0xff]
        %v794 = vld [vmem:[%s451 + $0x1a0] sm:$0xf]
        %v795 = vld [vmem:[%s451 + $0x1a4] sm:$0xff]
        %v796 = vld [vmem:[%s451 + $0x1ac] sm:$0xf]
        %v797 = vld [vmem:[%s451 + $0x1b0] sm:$0xff]
        %v798 = vld [vmem:[%s451 + $0x1b8] sm:$0xf]
        %v799 = vld [vmem:[%s451 + $0x1bc] sm:$0xff]
        %v800 = vld [vmem:[%s451 + $0x1c4] sm:$0xf]
        %v801 = vld [vmem:[%s451 + $0x1c8] sm:$0xff]
        %v802 = vld [vmem:[%s451 + $0x1d0] sm:$0xf]
        %v803 = vld [vmem:[%s451 + $0x1d4] sm:$0xff]
        %v804 = vld [vmem:[%s451 + $0x1dc] sm:$0xf]
        %v805 = vld [vmem:[%s451 + $0x1e0] sm:$0xff]
        %v806 = vld [vmem:[%s451 + $0x1e8] sm:$0xf]
        %v807 = vld [vmem:[%s451 + $0x1ec] sm:$0xff]
        %v808 = vld [vmem:[%s451 + $0x1f4] sm:$0xf]
        %v809 = vld [vmem:[%s451 + $0x1f8] sm:$0xff]
        %v810 = vld [vmem:[%s451 + $0x200] sm:$0xf]
        %v811 = vld [vmem:[%s451 + $0x204] sm:$0xff]
        %v812 = vld [vmem:[%s451 + $0x20c] sm:$0xf]
        %v813 = vld [vmem:[%s451 + $0x210] sm:$0xff]
        %v814 = vld [vmem:[%s451 + $0x218] sm:$0xf]
        %v815 = vld [vmem:[%s451 + $0x21c] sm:$0xff]
        %v816 = vld [vmem:[%s451 + $0x224] sm:$0xf]
        %v817 = vld [vmem:[%s451 + $0x228] sm:$0xff]
        %v818 = vld [vmem:[%s451 + $0x230] sm:$0xf]
        %v819 = vld [vmem:[%s451 + $0x234] sm:$0xff]
        %v820 = vld [vmem:[%s451 + $0x23c] sm:$0xf]
        %v821 = vld [vmem:[%s496] sm:$0x7]
        %v823 = vlaneseq
        %v824 = vshrl.u32 %v823, 7
        %v825 = vsub.s32 0, %v824
        %v826 = vrot.slane %v821, %v825
        %v827 = vlaneseq
        %v828 = vshrl.u32 %v827, 7
        %v829 = vsub.s32 1, %v828
        %v830 = vrot.slane %v821, %v829
        %v831 = vlaneseq
        %v832 = vshrl.u32 %v831, 7
        %v833 = vsub.s32 2, %v832
        %v834 = vrot.slane %v821, %v833
        %v934 = vunpack.c.l.b16 %v725
        %v935 = vunpack.c.h.b16 %v725
        %v936 = vunpack.c.l.b16 %v726
        %v937 = vunpack.c.l.b16 %v727
        %v938 = vunpack.c.h.b16 %v727
        %v939 = vunpack.c.l.b16 %v728
        %v940 = vunpack.c.l.b16 %v729
        %v941 = vunpack.c.h.b16 %v729
        %v942 = vunpack.c.l.b16 %v730
        %v943 = vunpack.c.l.b16 %v731
        %v944 = vunpack.c.h.b16 %v731
        %v945 = vunpack.c.l.b16 %v732
        %v946 = vunpack.c.l.b16 %v733
        %v947 = vunpack.c.h.b16 %v733
        %v948 = vunpack.c.l.b16 %v734
        %v949 = vunpack.c.l.b16 %v735
        %v950 = vunpack.c.h.b16 %v735
        %v951 = vunpack.c.l.b16 %v736
        %v952 = vunpack.c.l.b16 %v737
        %v953 = vunpack.c.h.b16 %v737
        %v954 = vunpack.c.l.b16 %v738
        %v955 = vunpack.c.l.b16 %v739
        %v956 = vunpack.c.h.b16 %v739
        %v957 = vunpack.c.l.b16 %v740
        %v958 = vunpack.c.l.b16 %v741
        %v959 = vunpack.c.h.b16 %v741
        %v960 = vunpack.c.l.b16 %v742
        %v961 = vunpack.c.l.b16 %v743
        %v962 = vunpack.c.h.b16 %v743
        %v963 = vunpack.c.l.b16 %v744
        %v964 = vunpack.c.l.b16 %v745
        %v965 = vunpack.c.h.b16 %v745
        %v966 = vunpack.c.l.b16 %v746
        %v967 = vunpack.c.l.b16 %v747
        %v968 = vunpack.c.h.b16 %v747
        %v969 = vunpack.c.l.b16 %v748
        %v970 = vunpack.c.l.b16 %v749
        %v971 = vunpack.c.h.b16 %v749
        %v972 = vunpack.c.l.b16 %v750
        %v973 = vunpack.c.l.b16 %v751
        %v974 = vunpack.c.h.b16 %v751
        %v975 = vunpack.c.l.b16 %v752
        %v976 = vunpack.c.l.b16 %v753
        %v977 = vunpack.c.h.b16 %v753
        %v978 = vunpack.c.l.b16 %v754
        %v979 = vunpack.c.l.b16 %v755
        %v980 = vunpack.c.h.b16 %v755
        %v981 = vunpack.c.l.b16 %v756
        %v982 = vunpack.c.l.b16 %v757
        %v983 = vunpack.c.h.b16 %v757
        %v984 = vunpack.c.l.b16 %v758
        %v985 = vunpack.c.l.b16 %v759
        %v986 = vunpack.c.h.b16 %v759
        %v987 = vunpack.c.l.b16 %v760
        %v988 = vunpack.c.l.b16 %v761
        %v989 = vunpack.c.h.b16 %v761
        %v990 = vunpack.c.l.b16 %v762
        %v991 = vunpack.c.l.b16 %v763
        %v992 = vunpack.c.h.b16 %v763
        %v993 = vunpack.c.l.b16 %v764
        %v994 = vunpack.c.l.b16 %v765
        %v995 = vunpack.c.h.b16 %v765
        %v996 = vunpack.c.l.b16 %v766
        %v997 = vunpack.c.l.b16 %v767
        %v998 = vunpack.c.h.b16 %v767
        %v999 = vunpack.c.l.b16 %v768
        %v1000 = vunpack.c.l.b16 %v769
        %v1001 = vunpack.c.h.b16 %v769
        %v1002 = vunpack.c.l.b16 %v770
        %v1003 = vunpack.c.l.b16 %v771
        %v1004 = vunpack.c.h.b16 %v771
        %v1005 = vunpack.c.l.b16 %v772
        %v1006 = vunpack.c.l.b16 %v773
        %v1007 = vunpack.c.h.b16 %v773
        %v1008 = vunpack.c.l.b16 %v774
        %v1009 = vunpack.c.l.b16 %v775
        %v1010 = vunpack.c.h.b16 %v775
        %v1011 = vunpack.c.l.b16 %v776
        %v1012 = vunpack.c.l.b16 %v777
        %v1013 = vunpack.c.h.b16 %v777
        %v1014 = vunpack.c.l.b16 %v778
        %v1015 = vunpack.c.l.b16 %v779
        %v1016 = vunpack.c.h.b16 %v779
        %v1017 = vunpack.c.l.b16 %v780
        %v1018 = vunpack.c.l.b16 %v781
        %v1019 = vunpack.c.h.b16 %v781
        %v1020 = vunpack.c.l.b16 %v782
        %v1021 = vunpack.c.l.b16 %v783
        %v1022 = vunpack.c.h.b16 %v783
        %v1023 = vunpack.c.l.b16 %v784
        %v1024 = vunpack.c.l.b16 %v785
        %v1025 = vunpack.c.h.b16 %v785
        %v1026 = vunpack.c.l.b16 %v786
        %v1027 = vunpack.c.l.b16 %v787
        %v1028 = vunpack.c.h.b16 %v787
        %v1029 = vunpack.c.l.b16 %v788
        %v1030 = vunpack.c.l.b16 %v789
        %v1031 = vunpack.c.h.b16 %v789
        %v1032 = vunpack.c.l.b16 %v790
        %v1033 = vunpack.c.l.b16 %v791
        %v1034 = vunpack.c.h.b16 %v791
        %v1035 = vunpack.c.l.b16 %v792
        %v1036 = vunpack.c.l.b16 %v793
        %v1037 = vunpack.c.h.b16 %v793
        %v1038 = vunpack.c.l.b16 %v794
        %v1039 = vunpack.c.l.b16 %v795
        %v1040 = vunpack.c.h.b16 %v795
        %v1041 = vunpack.c.l.b16 %v796
        %v1042 = vunpack.c.l.b16 %v797
        %v1043 = vunpack.c.h.b16 %v797
        %v1044 = vunpack.c.l.b16 %v798
        %v1045 = vunpack.c.l.b16 %v799
        %v1046 = vunpack.c.h.b16 %v799
        %v1047 = vunpack.c.l.b16 %v800
        %v1048 = vunpack.c.l.b16 %v801
        %v1049 = vunpack.c.h.b16 %v801
        %v1050 = vunpack.c.l.b16 %v802
        %v1051 = vunpack.c.l.b16 %v803
        %v1052 = vunpack.c.h.b16 %v803
        %v1053 = vunpack.c.l.b16 %v804
        %v1054 = vunpack.c.l.b16 %v805
        %v1055 = vunpack.c.h.b16 %v805
        %v1056 = vunpack.c.l.b16 %v806
        %v1057 = vunpack.c.l.b16 %v807
        %v1058 = vunpack.c.h.b16 %v807
        %v1059 = vunpack.c.l.b16 %v808
        %v1060 = vunpack.c.l.b16 %v809
        %v1061 = vunpack.c.h.b16 %v809
        %v1062 = vunpack.c.l.b16 %v810
        %v1063 = vunpack.c.l.b16 %v811
        %v1064 = vunpack.c.h.b16 %v811
        %v1065 = vunpack.c.l.b16 %v812
        %v1066 = vunpack.c.l.b16 %v813
        %v1067 = vunpack.c.h.b16 %v813
        %v1068 = vunpack.c.l.b16 %v814
        %v1069 = vunpack.c.l.b16 %v815
        %v1070 = vunpack.c.h.b16 %v815
        %v1071 = vunpack.c.l.b16 %v816
        %v1072 = vunpack.c.l.b16 %v817
        %v1073 = vunpack.c.h.b16 %v817
        %v1074 = vunpack.c.l.b16 %v818
        %v1075 = vunpack.c.l.b16 %v819
        %v1076 = vunpack.c.h.b16 %v819
        %v1077 = vunpack.c.l.b16 %v820
        %v1078 = vpack.c.b16 %v937, %v934
        %v1079 = vpack.c.b16 %v938, %v935
        %v1080 = vpack.c.b16 %v939, %v936
        %v1081 = vpack.c.b16 %v943, %v940
        %v1082 = vpack.c.b16 %v944, %v941
        %v1083 = vpack.c.b16 %v945, %v942
        %v1084 = vpack.c.b16 %v949, %v946
        %v1085 = vpack.c.b16 %v950, %v947
        %v1086 = vpack.c.b16 %v951, %v948
        %v1087 = vpack.c.b16 %v955, %v952
        %v1088 = vpack.c.b16 %v956, %v953
        %v1089 = vpack.c.b16 %v957, %v954
        %v1090 = vpack.c.b16 %v961, %v958
        %v1091 = vpack.c.b16 %v962, %v959
        %v1092 = vpack.c.b16 %v963, %v960
        %v1093 = vpack.c.b16 %v967, %v964
        %v1094 = vpack.c.b16 %v968, %v965
        %v1095 = vpack.c.b16 %v969, %v966
        %v1096 = vpack.c.b16 %v973, %v970
        %v1097 = vpack.c.b16 %v974, %v971
        %v1098 = vpack.c.b16 %v975, %v972
        %v1099 = vpack.c.b16 %v979, %v976
        %v1100 = vpack.c.b16 %v980, %v977
        %v1101 = vpack.c.b16 %v981, %v978
        %v1102 = vpack.c.b16 %v985, %v982
        %v1103 = vpack.c.b16 %v986, %v983
        %v1104 = vpack.c.b16 %v987, %v984
        %v1105 = vpack.c.b16 %v991, %v988
        %v1106 = vpack.c.b16 %v992, %v989
        %v1107 = vpack.c.b16 %v993, %v990
        %v1108 = vpack.c.b16 %v997, %v994
        %v1109 = vpack.c.b16 %v998, %v995
        %v1110 = vpack.c.b16 %v999, %v996
        %v1111 = vpack.c.b16 %v1003, %v1000
        %v1112 = vpack.c.b16 %v1004, %v1001
        %v1113 = vpack.c.b16 %v1005, %v1002
        %v1114 = vpack.c.b16 %v1009, %v1006
        %v1115 = vpack.c.b16 %v1010, %v1007
        %v1116 = vpack.c.b16 %v1011, %v1008
        %v1117 = vpack.c.b16 %v1015, %v1012
        %v1118 = vpack.c.b16 %v1016, %v1013
        %v1119 = vpack.c.b16 %v1017, %v1014
        %v1120 = vpack.c.b16 %v1021, %v1018
        %v1121 = vpack.c.b16 %v1022, %v1019
        %v1122 = vpack.c.b16 %v1023, %v1020
        %v1123 = vpack.c.b16 %v1027, %v1024
        %v1124 = vpack.c.b16 %v1028, %v1025
        %v1125 = vpack.c.b16 %v1029, %v1026
        %v1126 = vpack.c.b16 %v1033, %v1030
        %v1127 = vpack.c.b16 %v1034, %v1031
        %v1128 = vpack.c.b16 %v1035, %v1032
        %v1129 = vpack.c.b16 %v1039, %v1036
        %v1130 = vpack.c.b16 %v1040, %v1037
        %v1131 = vpack.c.b16 %v1041, %v1038
        %v1132 = vpack.c.b16 %v1045, %v1042
        %v1133 = vpack.c.b16 %v1046, %v1043
        %v1134 = vpack.c.b16 %v1047, %v1044
        %v1135 = vpack.c.b16 %v1051, %v1048
        %v1136 = vpack.c.b16 %v1052, %v1049
        %v1137 = vpack.c.b16 %v1053, %v1050
        %v1138 = vpack.c.b16 %v1057, %v1054
        %v1139 = vpack.c.b16 %v1058, %v1055
        %v1140 = vpack.c.b16 %v1059, %v1056
        %v1141 = vpack.c.b16 %v1063, %v1060
        %v1142 = vpack.c.b16 %v1064, %v1061
        %v1143 = vpack.c.b16 %v1065, %v1062
        %v1144 = vpack.c.b16 %v1069, %v1066
        %v1145 = vpack.c.b16 %v1070, %v1067
        %v1146 = vpack.c.b16 %v1071, %v1068
        %v1147 = vpack.c.b16 %v1075, %v1072
        %v1148 = vpack.c.b16 %v1076, %v1073
        %v1149 = vpack.c.b16 %v1077, %v1074
        %1222 = vmatprep.subr.bf16.mxu0 %v1100
        %1223 = vmatpush1.bf16.msra.mxu0 %v1099
        %1224 = vmatprep.subr.bf16.mxu0 %v1097
        %1225 = vmatpush1.bf16.msra.mxu0 %v1096
        %1226 = vmatprep.subr.bf16.mxu0 %v1094
        %1227 = vmatpush1.bf16.msra.mxu0 %v1093
        %1228 = vmatprep.subr.bf16.mxu0 %v1091
        %1229 = vmatpush1.bf16.msra.mxu0 %v1090
        %1230 = vmatprep.subr.bf16.mxu0 %v1088
        %1231 = vmatpush1.bf16.msra.mxu0 %v1087
        %1232 = vmatprep.subr.bf16.mxu0 %v1085
        %1233 = vmatpush1.bf16.msra.mxu0 %v1084
        %1234 = vmatprep.subr.bf16.mxu0 %v1082
        %1235 = vmatpush1.bf16.msra.mxu0 %v1081
        %1236 = vmatprep.subr.bf16.mxu0 %v1079
        %1237 = vmatpush1.bf16.msra.mxu0 %v1078
        %1238 = vmatprep.subr.bf16.mxu0 %v1124
        %1239 = vmatpush2.bf16.msra.mxu0 %v1123
        %1240 = vmatprep.subr.bf16.mxu0 %v1121
        %1241 = vmatpush2.bf16.msra.mxu0 %v1120
        %1242 = vmatprep.subr.bf16.mxu0 %v1118
        %1243 = vmatpush2.bf16.msra.mxu0 %v1117
        %1244 = vmatprep.subr.bf16.mxu0 %v1115
        %1245 = vmatpush2.bf16.msra.mxu0 %v1114
        %1246 = vmatprep.subr.bf16.mxu0 %v1112
        %1247 = vmatpush2.bf16.msra.mxu0 %v1111
        %1248 = vmatprep.subr.bf16.mxu0 %v1109
        %1249 = vmatpush2.bf16.msra.mxu0 %v1108
        %1250 = vmatprep.subr.bf16.mxu0 %v1106
        %1251 = vmatpush2.bf16.msra.mxu0 %v1105
        %1252 = vmatprep.subr.bf16.mxu0 %v1103
        %1253 = vmatpush2.bf16.msra.mxu0 %v1102
        %1254 = vmatprep.mubr.bf16.mxu0 %v717
        %1255 = vmatmul.mubr.bf16.gmra.mxu0 %v716
        %v1256 = vpop.f32.mrf.mxu0
        %v1257 = vadd.f32 %v826, %v1256
        %v1258 = vpop.f32.mrf.mxu0
        %v1259 = vadd.f32 %v830, %v1258
        %v1260 = vpop.f32.mrf.mxu0
        %v1261 = vadd.f32 %v826, %v1260
        %v1262 = vpop.f32.mrf.mxu0
        %v1263 = vadd.f32 %v830, %v1262
        %1264 = vmatprep.mubr.bf16.mxu0 %v720
        %1265 = vmatmul.mubr.bf16.gmra.mxu0 %v719
        %v1266 = vpop.f32.mrf.mxu0
        %v1267 = vadd.f32 %v826, %v1266
        %v1268 = vpop.f32.mrf.mxu0
        %v1269 = vadd.f32 %v830, %v1268
        %v1270 = vpop.f32.mrf.mxu0
        %v1271 = vadd.f32 %v826, %v1270
        %v1272 = vpop.f32.mrf.mxu0
        %v1273 = vadd.f32 %v830, %v1272
        %1274 = vmatprep.mubr.bf16.mxu0 %v723
        %1275 = vmatmul.mubr.bf16.gmra.mxu0 %v722
        %v1276 = vpop.f32.mrf.mxu0
        %v1277 = vadd.f32 %v826, %v1276
        %v1278 = vpop.f32.mrf.mxu0
        %v1279 = vadd.f32 %v830, %v1278
        %v1280 = vpop.f32.mrf.mxu0
        %v1281 = vadd.f32 %v826, %v1280
        %v1282 = vpop.f32.mrf.mxu0
        %v1283 = vadd.f32 %v830, %v1282
        %1284 = vdwg.mxu0
        %1285 = vmatprep.subr.bf16.mxu0 %v1148
        %1286 = vmatpush1.bf16.msra.mxu0 %v1147
        %1287 = vmatprep.subr.bf16.mxu0 %v1145
        %1288 = vmatpush1.bf16.msra.mxu0 %v1144
        %1289 = vmatprep.subr.bf16.mxu0 %v1142
        %1290 = vmatpush1.bf16.msra.mxu0 %v1141
        %1291 = vmatprep.subr.bf16.mxu0 %v1139
        %1292 = vmatpush1.bf16.msra.mxu0 %v1138
        %1293 = vmatprep.subr.bf16.mxu0 %v1136
        %1294 = vmatpush1.bf16.msra.mxu0 %v1135
        %1295 = vmatprep.subr.bf16.mxu0 %v1133
        %1296 = vmatpush1.bf16.msra.mxu0 %v1132
        %1297 = vmatprep.subr.bf16.mxu0 %v1130
        %1298 = vmatpush1.bf16.msra.mxu0 %v1129
        %1299 = vmatprep.subr.bf16.mxu0 %v1127
        %1300 = vmatpush1.bf16.msra.mxu0 %v1126
        %1301 = vmatprep.subr.bf16.mxu0 0
        %1302 = vmatpush2.bf16.msra.mxu0 0
        %1303 = vmatprep.subr.bf16.mxu0 0
        %1304 = vmatpush2.bf16.msra.mxu0 0
        %1305 = vmatprep.subr.bf16.mxu0 0
        %1306 = vmatpush2.bf16.msra.mxu0 0
        %1307 = vmatprep.subr.bf16.mxu0 0
        %1308 = vmatpush2.bf16.msra.mxu0 0
        %1309 = vmatprep.subr.bf16.mxu0 0
        %1310 = vmatpush2.bf16.msra.mxu0 0
        %1311 = vmatprep.subr.bf16.mxu0 0
        %1312 = vmatpush2.bf16.msra.mxu0 0
        %1313 = vmatprep.subr.bf16.mxu0 0
        %1314 = vmatpush2.bf16.msra.mxu0 0
        %1315 = vmatprep.subr.bf16.mxu0 0
        %1316 = vmatpush2.bf16.msra.mxu0 0
        %1317 = vmatprep.mubr.bf16.mxu0 0
        %1318 = vmatmul.mubr.bf16.gmra.mxu0 %v718
        %v1319 = vpop.f32.mrf.mxu0
        %v1320 = vadd.f32 %v1257, %v1319
        %v1321 = vpop.f32.mrf.mxu0
        %v1322 = vadd.f32 %v1259, %v1321
        %v1323 = vpop.f32.mrf.mxu0
        %v1324 = vadd.f32 %v1261, %v1323
        %v1325 = vpop.f32.mrf.mxu0
        %v1326 = vadd.f32 %v1263, %v1325
        %1327 = vmatprep.mubr.bf16.mxu0 0
        %1328 = vmatmul.mubr.bf16.gmra.mxu0 %v721
        %v1329 = vpop.f32.mrf.mxu0
        %v1330 = vadd.f32 %v1267, %v1329
        %v1331 = vpop.f32.mrf.mxu0
        %v1332 = vadd.f32 %v1269, %v1331
        %v1333 = vpop.f32.mrf.mxu0
        %v1334 = vadd.f32 %v1271, %v1333
        %v1335 = vpop.f32.mrf.mxu0
        %v1336 = vadd.f32 %v1273, %v1335
        %1337 = vmatprep.mubr.bf16.mxu0 0
        %1338 = vmatmul.mubr.bf16.gmra.mxu0 %v724
        %v1339 = vpop.f32.mrf.mxu0
        %v1340 = vadd.f32 %v1277, %v1339
        %v1341 = vpop.f32.mrf.mxu0
        %v1342 = vadd.f32 %v1279, %v1341
        %v1343 = vpop.f32.mrf.mxu0
        %v1344 = vadd.f32 %v1281, %v1343
        %v1345 = vpop.f32.mrf.mxu0
        %v1346 = vadd.f32 %v1283, %v1345
        %1347 = vdwg.mxu0
        %1348 = vmatprep.subr.bf16.mxu0 0
        %1349 = vmatpush1.bf16.msra.mxu0 %v1101
        %1350 = vmatprep.subr.bf16.mxu0 0
        %1351 = vmatpush1.bf16.msra.mxu0 %v1098
        %1352 = vmatprep.subr.bf16.mxu0 0
        %1353 = vmatpush1.bf16.msra.mxu0 %v1095
        %1354 = vmatprep.subr.bf16.mxu0 0
        %1355 = vmatpush1.bf16.msra.mxu0 %v1092
        %1356 = vmatprep.subr.bf16.mxu0 0
        %1357 = vmatpush1.bf16.msra.mxu0 %v1089
        %1358 = vmatprep.subr.bf16.mxu0 0
        %1359 = vmatpush1.bf16.msra.mxu0 %v1086
        %1360 = vmatprep.subr.bf16.mxu0 0
        %1361 = vmatpush1.bf16.msra.mxu0 %v1083
        %1362 = vmatprep.subr.bf16.mxu0 0
        %1363 = vmatpush1.bf16.msra.mxu0 %v1080
        %1364 = vmatprep.subr.bf16.mxu0 0
        %1365 = vmatpush2.bf16.msra.mxu0 %v1125
        %1366 = vmatprep.subr.bf16.mxu0 0
        %1367 = vmatpush2.bf16.msra.mxu0 %v1122
        %1368 = vmatprep.subr.bf16.mxu0 0
        %1369 = vmatpush2.bf16.msra.mxu0 %v1119
        %1370 = vmatprep.subr.bf16.mxu0 0
        %1371 = vmatpush2.bf16.msra.mxu0 %v1116
        %1372 = vmatprep.subr.bf16.mxu0 0
        %1373 = vmatpush2.bf16.msra.mxu0 %v1113
        %1374 = vmatprep.subr.bf16.mxu0 0
        %1375 = vmatpush2.bf16.msra.mxu0 %v1110
        %1376 = vmatprep.subr.bf16.mxu0 0
        %1377 = vmatpush2.bf16.msra.mxu0 %v1107
        %1378 = vmatprep.subr.bf16.mxu0 0
        %1379 = vmatpush2.bf16.msra.mxu0 %v1104
        %1380 = vmatprep.mubr.bf16.mxu0 %v717
        %1381 = vmatmul.mubr.bf16.gmra.mxu0 %v716
        %v1382 = vpop.f32.mrf.mxu0
        %v1383 = vadd.f32 %v834, %v1382
        %v1384 = vpop.f32.mrf.mxu0
        %v1385 = vpop.f32.mrf.mxu0
        %v1386 = vadd.f32 %v834, %v1385
        %v1387 = vpop.f32.mrf.mxu0
        %1388 = vmatprep.mubr.bf16.mxu0 %v720
        %1389 = vmatmul.mubr.bf16.gmra.mxu0 %v719
        %v1390 = vpop.f32.mrf.mxu0
        %v1391 = vadd.f32 %v834, %v1390
        %v1392 = vpop.f32.mrf.mxu0
        %v1393 = vpop.f32.mrf.mxu0
        %v1394 = vadd.f32 %v834, %v1393
        %v1395 = vpop.f32.mrf.mxu0
        %1396 = vmatprep.mubr.bf16.mxu0 %v723
        %1397 = vmatmul.mubr.bf16.gmra.mxu0 %v722
        %v1398 = vpop.f32.mrf.mxu0
        %v1399 = vadd.f32 %v834, %v1398
        %v1400 = vpop.f32.mrf.mxu0
        %v1401 = vpop.f32.mrf.mxu0
        %v1402 = vadd.f32 %v834, %v1401
        %v1403 = vpop.f32.mrf.mxu0
        %1404 = vdwg.mxu0
        %1405 = vmatprep.subr.bf16.mxu0 0
        %1406 = vmatpush1.bf16.msra.mxu0 %v1149
        %1407 = vmatprep.subr.bf16.mxu0 0
        %1408 = vmatpush1.bf16.msra.mxu0 %v1146
        %1409 = vmatprep.subr.bf16.mxu0 0
        %1410 = vmatpush1.bf16.msra.mxu0 %v1143
        %1411 = vmatprep.subr.bf16.mxu0 0
        %1412 = vmatpush1.bf16.msra.mxu0 %v1140
        %1413 = vmatprep.subr.bf16.mxu0 0
        %1414 = vmatpush1.bf16.msra.mxu0 %v1137
        %1415 = vmatprep.subr.bf16.mxu0 0
        %1416 = vmatpush1.bf16.msra.mxu0 %v1134
        %1417 = vmatprep.subr.bf16.mxu0 0
        %1418 = vmatpush1.bf16.msra.mxu0 %v1131
        %1419 = vmatprep.subr.bf16.mxu0 0
        %1420 = vmatpush1.bf16.msra.mxu0 %v1128
        %1421 = vmatprep.subr.bf16.mxu0 0
        %1422 = vmatpush2.bf16.msra.mxu0 0
        %1423 = vmatprep.subr.bf16.mxu0 0
        %1424 = vmatpush2.bf16.msra.mxu0 0
        %1425 = vmatprep.subr.bf16.mxu0 0
        %1426 = vmatpush2.bf16.msra.mxu0 0
        %1427 = vmatprep.subr.bf16.mxu0 0
        %1428 = vmatpush2.bf16.msra.mxu0 0
        %1429 = vmatprep.subr.bf16.mxu0 0
        %1430 = vmatpush2.bf16.msra.mxu0 0
        %1431 = vmatprep.subr.bf16.mxu0 0
        %1432 = vmatpush2.bf16.msra.mxu0 0
        %1433 = vmatprep.subr.bf16.mxu0 0
        %1434 = vmatpush2.bf16.msra.mxu0 0
        %1435 = vmatprep.subr.bf16.mxu0 0
        %1436 = vmatpush2.bf16.msra.mxu0 0
        %1437 = vmatprep.mubr.bf16.mxu0 0
        %1438 = vmatmul.mubr.bf16.gmra.mxu0 %v718
        %v1439 = vpop.f32.mrf.mxu0
        %v1440 = vadd.f32 %v1383, %v1439
        %v1441 = vpop.f32.mrf.mxu0
        %v1442 = vpop.f32.mrf.mxu0
        %v1443 = vadd.f32 %v1386, %v1442
        %v1444 = vpop.f32.mrf.mxu0
        %1445 = vmatprep.mubr.bf16.mxu0 0
        %1446 = vmatmul.mubr.bf16.gmra.mxu0 %v721
        %v1447 = vpop.f32.mrf.mxu0
        %v1448 = vadd.f32 %v1391, %v1447
        %v1449 = vpop.f32.mrf.mxu0
        %v1450 = vpop.f32.mrf.mxu0
        %v1451 = vadd.f32 %v1394, %v1450
        %v1452 = vpop.f32.mrf.mxu0
        %1453 = vmatprep.mubr.bf16.mxu0 0
        %1454 = vmatmul.mubr.bf16.gmra.mxu0 %v724
        %v1455 = vpop.f32.mrf.mxu0
        %v1456 = vadd.f32 %v1399, %v1455
        %v1457 = vpop.f32.mrf.mxu0
        %v1458 = vpop.f32.mrf.mxu0
        %v1459 = vadd.f32 %v1402, %v1458
        %v1460 = vpop.f32.mrf.mxu0
        %1461 = vdwg.mxu0
        %v1462 = vpack.c.bf16 %v1324, %v1320
        %v1463 = vpack.c.bf16 %v1326, %v1322
        %v1464 = vpack.c.bf16 %v1443, %v1440
        %v1465 = vpack.c.bf16 %v1334, %v1330
        %v1466 = vpack.c.bf16 %v1336, %v1332
        %v1467 = vpack.c.bf16 %v1451, %v1448
        %v1468 = vpack.c.bf16 %v1344, %v1340
        %v1469 = vpack.c.bf16 %v1346, %v1342
        %v1470 = vpack.c.bf16 %v1459, %v1456
        %v1480 = vunpack.c.l.b16 %v1462
        %v1481 = vunpack.c.l.b16 %v1463
        %v1482 = vunpack.c.l.b16 %v1464
        %v1483 = vunpack.c.h.b16 %v1462
        %v1484 = vunpack.c.h.b16 %v1463
        %v1485 = vunpack.c.h.b16 %v1464
        %v1486 = vunpack.c.l.b16 %v1465
        %v1487 = vunpack.c.l.b16 %v1466
        %v1488 = vunpack.c.l.b16 %v1467
        %v1489 = vunpack.c.h.b16 %v1465
        %v1490 = vunpack.c.h.b16 %v1466
        %v1491 = vunpack.c.h.b16 %v1467
        %v1492 = vunpack.c.l.b16 %v1468
        %v1493 = vunpack.c.l.b16 %v1469
        %v1494 = vunpack.c.l.b16 %v1470
        %v1495 = vunpack.c.h.b16 %v1468
        %v1496 = vunpack.c.h.b16 %v1469
        %v1497 = vunpack.c.h.b16 %v1470
        %v1498 = vpack.c.b16 %v1481, %v1480
        %v1499 = vpack.c.b16 %v1482, %v1482
        %v1500 = vpack.c.b16 %v1484, %v1483
        %v1501 = vpack.c.b16 %v1485, %v1485
        %v1502 = vpack.c.b16 %v1487, %v1486
        %v1503 = vpack.c.b16 %v1488, %v1488
        %v1504 = vpack.c.b16 %v1490, %v1489
        %v1505 = vpack.c.b16 %v1491, %v1491
        %v1506 = vpack.c.b16 %v1493, %v1492
        %v1507 = vpack.c.b16 %v1494, %v1494
        %v1508 = vpack.c.b16 %v1496, %v1495
        %v1509 = vpack.c.b16 %v1497, %v1497
        %1522 = vst [vmem:[%s484] sm:$0xff] %v1498
        %1523 = vst [vmem:[%s484 + $0x8] sm:$0xf] %v1499
        %1524 = vst [vmem:[%s484 + $0xc] sm:$0xff] %v1500
        %1525 = vst [vmem:[%s484 + $0x14] sm:$0xf] %v1501
        %1526 = vst [vmem:[%s484 + $0x18] sm:$0xff] %v1502
        %1527 = vst [vmem:[%s484 + $0x20] sm:$0xf] %v1503
        %1528 = vst [vmem:[%s484 + $0x24] sm:$0xff] %v1504
        %1529 = vst [vmem:[%s484 + $0x2c] sm:$0xf] %v1505
        %1530 = vst [vmem:[%s484 + $0x30] sm:$0xff] %v1506
        %1531 = vst [vmem:[%s484 + $0x38] sm:$0xf] %v1507
        %1532 = vst [vmem:[%s484 + $0x3c] sm:$0xff] %v1508
        %1533 = vst [vmem:[%s484 + $0x44] sm:$0xf] %v1509
        %s1534 = sand.u32 %s158, 1
        %s1535 = sand.u32 %s158, 1
        %s1536 = smul.addr %s1535, 72
        %s1537 = scalar_lea.vmem [#allocation3], %s1536
        // Predicated region
        $region67: #{closed_call.16} parent=61 // pred_check
          %p1538 = pneg %p168
        $region68: #{closed_call.16} parent=61 // pred_check_branch
          %1540 = sbr.rel (%p1538) target = $region70
        $region69: #{closed_call.16} parent=61 // pred_region
          %s1541 = smul.u32 6, %s20
          %s1542 = smul.u32 3, %s21
          %s1543 = smul.addr %s1541, 9
          %s1544 = sadd.s32 %s1542, %s1543
          %s1545 = smul.addr %s1544, 4
          %s1546 = scalar_lea.vmem %s5, %s1545
          // Predicated region
          $region71: #{closed_call.16} parent=69 // pred_check
            _
          $region72: #{closed_call.16} parent=69 // pred_check_branch
            %1548 = sbr.rel (0) target = $region74
          $region73: #{closed_call.16} parent=69 // pred_region
            // Predicated region
            $region75: #{closed_call.16} parent=73 // pred_check
              _
            $region76: #{closed_call.16} parent=73 // pred_check_branch
              %1550 = sbr.rel (0) target = $region78
            $region77: #{closed_call.16} parent=73 // pred_region
              %s1551 = scalar_lea.vmem %s1537, 8 [#allocation3]
              %s1552 = scalar_lea.vmem %s1546, 8
              loop: start=0, step=1, limit=1
              $region79: #{closed_call.16} parent=77 // loop_pre_header
                _
              $region80: #{closed_call.16} parent=77 // loop_header
                %s1554 = sphi 0, %s1558
                %p1555 = scmp.ge.s32.totalorder %s1554, 1
                %s1559 = sphi %s1537, %s1537
                %s1560 = sphi %s1546, %s1546
              $region81: #{closed_call.16} parent=77 // loop_header_branch
                %1557 = sbr.rel (%p1555) target = $region85
              $region82: #{closed_call.16} parent=77 // loop_body
                %v1561 = vld [vmem:[%s1559] sm:$0xff]
                %1562 = vst [vmem:[%s1560] sm:$0xff] %v1561
                %v1563 = vld [vmem:[%s1559 + $0xc] sm:$0xff]
                %1564 = vst [vmem:[%s1560 + $0x24] sm:$0xff] %v1563
                %v1565 = vld [vmem:[%s1559 + $0x18] sm:$0xff]
                %1566 = vst [vmem:[%s1560 + $0x48] sm:$0xff] %v1565
                %v1567 = vld [vmem:[%s1559 + $0x24] sm:$0xff]
                %1568 = vst [vmem:[%s1560 + $0x6c] sm:$0xff] %v1567
                %v1569 = vld [vmem:[%s1559 + $0x30] sm:$0xff]
                %1570 = vst [vmem:[%s1560 + $0x90] sm:$0xff] %v1569
                %v1571 = vld [vmem:[%s1559 + $0x3c] sm:$0xff]
                %1572 = vst [vmem:[%s1560 + $0xb4] sm:$0xff] %v1571
              $region83: #{closed_call.16} parent=77 // loop_footer
                %s1558 = sadd.s32 1, %s1554
              $region84: #{closed_call.16} parent=77 // loop_footer_branch
                %1553 = sbr.rel target = $region80
              $region85: #{closed_call.16} parent=77 // loop_exit
                _
              %s1574 = ssub.s32 16, 1
              loop: start=0, step=1, limit=1
              $region86: #{closed_call.16} parent=77 // loop_pre_header
                _
              $region87: #{closed_call.16} parent=77 // loop_header
                %s1576 = sphi 0, %s1580
                %p1577 = scmp.ge.s32.totalorder %s1576, 1
                %s1581 = sphi %s1551, %s1551
                %s1582 = sphi %s1552, %s1552
              $region88: #{closed_call.16} parent=77 // loop_header_branch
                %1579 = sbr.rel (%p1577) target = $region92
              $region89: #{closed_call.16} parent=77 // loop_body
                %v1583 = vld [vmem:[%s1581] sm:%s1574]
                %1584 = vst [vmem:[%s1582] sm:%s1574] %v1583
                %v1585 = vld [vmem:[%s1581 + $0xc] sm:%s1574]
                %1586 = vst [vmem:[%s1582 + $0x24] sm:%s1574] %v1585
                %v1587 = vld [vmem:[%s1581 + $0x18] sm:%s1574]
                %1588 = vst [vmem:[%s1582 + $0x48] sm:%s1574] %v1587
                %v1589 = vld [vmem:[%s1581 + $0x24] sm:%s1574]
                %1590 = vst [vmem:[%s1582 + $0x6c] sm:%s1574] %v1589
                %v1591 = vld [vmem:[%s1581 + $0x30] sm:%s1574]
                %1592 = vst [vmem:[%s1582 + $0x90] sm:%s1574] %v1591
                %v1593 = vld [vmem:[%s1581 + $0x3c] sm:%s1574]
                %1594 = vst [vmem:[%s1582 + $0xb4] sm:%s1574] %v1593
              $region90: #{closed_call.16} parent=77 // loop_footer
                %s1580 = sadd.s32 1, %s1576
              $region91: #{closed_call.16} parent=77 // loop_footer_branch
                %1575 = sbr.rel target = $region87
              $region92: #{closed_call.16} parent=77 // loop_exit
                _
            $region78: #{closed_call.16} parent=73 // pred_fallthru
              _
          $region74: #{closed_call.16} parent=69 // pred_fallthru
            _
          %1595 = vnop
        $region70: #{closed_call.16} parent=61 // pred_fallthru
          _
      $region62: #{closed_call.16} parent=5 // pred_fallthru
        _
      %p1596 = scmp.le.s32.totalorder 2, %s11
      // Predicated region
      $region93: #{closed_call.16} parent=5 // pred_check
        %p1597 = pneg %p1596
      $region94: #{closed_call.16} parent=5 // pred_check_branch
        %1599 = sbr.rel (%p1597) target = $region96
      $region95: #{closed_call.16} parent=5 // pred_region
        %s1600 = ssub.s32 %s11, 2
        // Predicated region
        $region97: #{closed_call.16} parent=95 // pred_check
          %p1601 = pneg %p174
        $region98: #{closed_call.16} parent=95 // pred_check_branch
          %1603 = sbr.rel (%p1601) target = $region100
        $region99: #{closed_call.16} parent=95 // pred_region
          %s1604 = sand.u32 %s159, 1
          %s1605 = sand.u32 %s159, 1
          %s1606 = smul.addr %s1605, 72
          %s1607 = scalar_lea.vmem [#allocation3], %s1606
        $region100: #{closed_call.16} parent=95 // pred_fallthru
          _
      $region96: #{closed_call.16} parent=5 // pred_fallthru
        _
    $region6: #{closed_call.16} parent=1 // loop_footer
      %s15 = sadd.s32 1, %s11
    $region7: #{closed_call.16} parent=1 // loop_footer_branch
      %10 = sbr.rel target = $region3
    $region8: #{closed_call.16} parent=1 // loop_exit
      _

// kernel: closed_call.17
$region0: #{closed_call.17}
  #allocation0 [shape = 'u32[]', space=smem, size = 0x4, offset = 0x4, fixed_abs, tag = 'smem constant byte address 0x4 - core index']
  #allocation1 [shape = 'u32[144,128]{1,0:T(1,128)}', space=vmem, size = 0x12000, scoped, tag = 'internal scratch']
  %s0 = inlined_call_operand.vmem [shape: bf16[2,24,1152], index: 0, kind: input, shape index: {}]
  %s1 = inlined_call_operand.vmem [shape: bf16[2,24,384], index: 1, kind: output, shape index: {}]
  %s2 = sld [smem:[#allocation0]]
  $region37: #{closed_call.17} parent=0
    _
  %s4 = ssub.s32 1, %s2
  %s5 = scalar_select 0, %s4, %s2
  loop: start=0, step=1, limit=4
  $region2: #{closed_call.17} parent=0 // loop_pre_header
    _
  $region3: #{closed_call.17} parent=0 // loop_header
    %s7 = sphi 0, %s11
    %p8 = scmp.ge.s32.totalorder %s7, 4
    %s17 = sphi 0, %s19
    %s20 = sphi 0, %s17
    %s21 = sphi 0, %s20
    %s37 = sphi 0, %s21
    %s43 = sphi 0, %s45
    %s46 = sphi 0, %s43
    %s47 = sphi 0, %s46
    %s63 = sphi 0, %s47
  $region4: #{closed_call.17} parent=0 // loop_header_branch
    %10 = sbr.rel (%p8) target = $region8
  $region5: #{closed_call.17} parent=0 // loop_body
    %s12 = ssub.s32 %s7, 1
    %s13 = ssub.s32 %s7, 2
    %s14 = sadd.s32 %s7, 1
    %s15 = ssub.s32 %s7, %s14
    %p16 = scmp.eq.s32.totalorder %s15, 0
    %s18 = sadd.s32 %s17, 1
    %s19 = scalar_select %p16, %s17, %s18
    %p22 = pneg %p16
    %p23 = scmp.eq.s32.totalorder %s7, 1
    %p24 = por %p22, %p23
    %p25 = scmp.ne.s32.totalorder %s17, %s20
    %p26 = scmp.eq.s32.totalorder %s7, 0
    %p27 = por %p25, %p26
    %p28 = scmp.ne.s32.totalorder %s17, %s20
    %p29 = scmp.eq.s32.totalorder %s12, 1
    %p30 = por %p28, %p29
    %p31 = scmp.ne.s32.totalorder %s20, %s21
    %p32 = scmp.eq.s32.totalorder %s12, 0
    %p33 = por %p31, %p32
    %p34 = scmp.ne.s32.totalorder %s20, %s21
    %p35 = scmp.eq.s32.totalorder %s13, 1
    %p36 = por %p34, %p35
    %p38 = scmp.ne.s32.totalorder %s21, %s37
    %p39 = scmp.eq.s32.totalorder %s13, 0
    %p40 = por %p38, %p39
    %s41 = ssub.s32 %s7, %s14
    %p42 = scmp.eq.s32.totalorder %s41, 0
    %s44 = sadd.s32 %s43, 1
    %s45 = scalar_select %p42, %s43, %s44
    %p48 = pneg %p42
    %p49 = scmp.eq.s32.totalorder %s7, 1
    %p50 = por %p48, %p49
    %p51 = scmp.ne.s32.totalorder %s43, %s46
    %p52 = scmp.eq.s32.totalorder %s7, 0
    %p53 = por %p51, %p52
    %p54 = scmp.ne.s32.totalorder %s43, %s46
    %p55 = scmp.eq.s32.totalorder %s12, 1
    %p56 = por %p54, %p55
    %p57 = scmp.ne.s32.totalorder %s46, %s47
    %p58 = scmp.eq.s32.totalorder %s12, 0
    %p59 = por %p57, %p58
    %p60 = scmp.ne.s32.totalorder %s46, %s47
    %p61 = scmp.eq.s32.totalorder %s13, 1
    %p62 = por %p60, %p61
    %p64 = scmp.ne.s32.totalorder %s47, %s63
    %p65 = scmp.eq.s32.totalorder %s13, 0
    %p66 = por %p64, %p65
    %p67 = scmp.le.s32.totalorder 1, %s7
    %p68 = scmp.lt.s32.totalorder %s7, 3
    %p69 = pnand %p67, %p68
    %p70 = pneg %p69
    // Predicated region
    $region9: #{closed_call.17} parent=5 // pred_check
      _
    $region10: #{closed_call.17} parent=5 // pred_check_branch
      %72 = sbr.rel (%p69) target = $region12
    $region11: #{closed_call.17} parent=5 // pred_region
      %s73 = ssub.s32 %s7, 1
    $region12: #{closed_call.17} parent=5 // pred_fallthru
      _
    %p74 = scmp.lt.s32.totalorder %s7, 2
    // Predicated region
    $region13: #{closed_call.17} parent=5 // pred_check
      %p75 = pneg %p74
    $region14: #{closed_call.17} parent=5 // pred_check_branch
      %77 = sbr.rel (%p75) target = $region16
    $region15: #{closed_call.17} parent=5 // pred_region
      // Predicated region
      $region17: #{closed_call.17} parent=15 // pred_check
        %p78 = pneg %p27
      $region18: #{closed_call.17} parent=15 // pred_check_branch
        %80 = sbr.rel (%p78) target = $region20
      $region19: #{closed_call.17} parent=15 // pred_region
        %p81 = scmp.lt.s32.totalorder %s7, 1
        %s82 = scalar_select %p81, %s7, 1
        %s83 = smul.addr %s82, 27
        %s84 = smul.addr %s83, 4
        %s85 = scalar_lea.vmem %s0, %s84
      $region20: #{closed_call.17} parent=15 // pred_fallthru
        _
    $region16: #{closed_call.17} parent=5 // pred_fallthru
      _
    %p86 = scmp.le.s32.totalorder 1, %s7
    %p87 = scmp.lt.s32.totalorder %s7, 3
    %p88 = pnand %p86, %p87
    %p89 = pneg %p88
    // Predicated region
    $region21: #{closed_call.17} parent=5 // pred_check
      _
    $region22: #{closed_call.17} parent=5 // pred_check_branch
      %91 = sbr.rel (%p88) target = $region24
    $region23: #{closed_call.17} parent=5 // pred_region
      %s92 = ssub.s32 %s7, 1
      %p93 = scmp.lt.s32.totalorder %s12, 1
      %s94 = scalar_select %p93, %s12, 1
      %s95 = smul.addr %s94, 27
      %s96 = smul.addr %s95, 4
      %s97 = scalar_lea.vmem %s0, %s96
      %p98 = pneg %p33
      %p99 = pneg %p30
      %p100 = pneg %p59
      %p101 = pneg %p56
      %p102 = scmp.lt.s32.totalorder %s12, 1
      %s103 = scalar_select %p102, %s12, 1
      %s104 = smul.addr %s103, 9
      %s105 = smul.addr %s104, 4
      %s106 = scalar_lea.vmem %s1, %s105
      %p107 = scmp.lt.s32.totalorder %s12, 1
      %s108 = scalar_select %p107, %s12, 1
      %s109 = smul.addr %s108, 27
      %s110 = smul.addr %s109, 4
      %s111 = scalar_lea.vmem %s0, %s110
      %p112 = scmp.lt.s32.totalorder %s12, 1
      %s113 = scalar_select %p112, %s12, 1
      %s114 = smul.addr %s113, 9
      %s115 = smul.addr %s114, 4
      %s116 = scalar_lea.vmem %s1, %s115
      %v118 = vld [vmem:[%s111] sm:$0xff]
      %v119 = vld [vmem:[%s111 + $0x8] sm:$0xf]
      %v120 = vld [vmem:[%s111 + $0x24] sm:$0xff]
      %v121 = vld [vmem:[%s111 + $0x2c] sm:$0xf]
      %v122 = vld [vmem:[%s111 + $0x48] sm:$0xff]
      %v123 = vld [vmem:[%s111 + $0x50] sm:$0xf]
      %v124 = vld [vmem:[%s111 + $0xc] sm:$0xff]
      %v125 = vld [vmem:[%s111 + $0x14] sm:$0xf]
      %v126 = vld [vmem:[%s111 + $0x30] sm:$0xff]
      %v127 = vld [vmem:[%s111 + $0x38] sm:$0xf]
      %v128 = vld [vmem:[%s111 + $0x54] sm:$0xff]
      %v129 = vld [vmem:[%s111 + $0x5c] sm:$0xf]
      %v130 = vld [vmem:[%s111 + $0x18] sm:$0xff]
      %v131 = vld [vmem:[%s111 + $0x20] sm:$0xf]
      %v132 = vld [vmem:[%s111 + $0x3c] sm:$0xff]
      %v133 = vld [vmem:[%s111 + $0x44] sm:$0xf]
      %v134 = vld [vmem:[%s111 + $0x60] sm:$0xff]
      %v135 = vld [vmem:[%s111 + $0x68] sm:$0xf]
      %v136 = vlaneseq
      %v137 = vand.u32 %v136, 127
      %vm138 = vcmp.lt.s32.totalorder %v137, 17
      %v142 = vunpack.c.l.b16 %v118
      %v143 = vunpack.c.l.b16 %v120
      %v144 = vunpack.c.l.b16 %v122
      %v145 = vpack.c.b16 %v143, %v142
      %v146 = vpack.c.b16 %v144, %v144
      %v150 = vunpack.c.l.b16 %v124
      %v151 = vunpack.c.l.b16 %v126
      %v152 = vunpack.c.l.b16 %v128
      %v153 = vpack.c.b16 %v151, %v150
      %v154 = vpack.c.b16 %v152, %v152
      %vm155 = vcmask 523264
      %v157 = vsel %vm155, %v145, 0
      %v160 = vsel %vm155, %v146, 0
      %v163 = vsel %vm155, %v153, 0
      %v166 = vsel %vm155, %v154, 0
      %168 = vmatprep.subr.bf16.mxu0 0
      %169 = vmatpush1.bf16.xpose.msra.mxu0 0
      %170 = vmatprep.subr.bf16.mxu0 0
      %171 = vmatpush1.bf16.xpose.msra.mxu0 0
      %172 = vmatprep.subr.bf16.mxu0 0
      %173 = vmatpush1.bf16.xpose.msra.mxu0 0
      %174 = vmatprep.subr.bf16.mxu0 0
      %175 = vmatpush1.bf16.xpose.msra.mxu0 0
      %176 = vmatprep.subr.bf16.mxu0 0
      %177 = vmatpush1.bf16.xpose.msra.mxu0 0
      %178 = vmatprep.subr.bf16.mxu0 0
      %179 = vmatpush1.bf16.xpose.msra.mxu0 0
      %180 = vmatprep.subr.bf16.mxu0 0
      %181 = vmatpush1.bf16.xpose.msra.mxu0 %v166
      %182 = vmatprep.subr.bf16.mxu0 0
      %183 = vmatpush1.bf16.xpose.msra.mxu0 %v163
      %184 = vmatprep.subr.bf16.mxu0 0
      %185 = vmatpush2.bf16.xpose.msra.mxu0 0
      %186 = vmatprep.subr.bf16.mxu0 0
      %187 = vmatpush2.bf16.xpose.msra.mxu0 0
      %188 = vmatprep.subr.bf16.mxu0 0
      %189 = vmatpush2.bf16.xpose.msra.mxu0 0
      %190 = vmatprep.subr.bf16.mxu0 0
      %191 = vmatpush2.bf16.xpose.msra.mxu0 0
      %192 = vmatprep.subr.bf16.mxu0 0
      %193 = vmatpush2.bf16.xpose.msra.mxu0 0
      %194 = vmatprep.subr.bf16.mxu0 0
      %195 = vmatpush2.bf16.xpose.msra.mxu0 0
      %196 = vmatprep.subr.bf16.mxu0 0
      %197 = vmatpush2.bf16.xpose.msra.mxu0 0
      %198 = vmatprep.subr.bf16.mxu0 0
      %199 = vmatpush2.bf16.xpose.msra.mxu0 0
      %200 = vmatprep.mubr.bf16.mxu0 0
      %201 = vmatmul.mubr.bf16.gmra.mxu0 %v157
      %v202 = vpop.f32.mrf.mxu0
      %v203 = vadd.f32 0.0, %v202
      %v204 = vpop.f32.mrf.mxu0
      %v205 = vpop.f32.mrf.mxu0
      %v206 = vadd.f32 0.0, %v205
      %v207 = vpop.f32.mrf.mxu0
      %208 = vmatprep.mubr.bf16.mxu0 0
      %209 = vmatmul.mubr.bf16.gmra.mxu0 %v160
      %v210 = vpop.f32.mrf.mxu0
      %v211 = vadd.f32 0.0, %v210
      %v212 = vpop.f32.mrf.mxu0
      %v213 = vpop.f32.mrf.mxu0
      %v214 = vpop.f32.mrf.mxu0
      %215 = vdwg.mxu0
      %v216 = vmul.f32 %v203, 0.125
      %v217 = vmul.f32 %v206, 0.125
      %v218 = vmul.f32 %v211, 0.125
      %v219 = vsel %vm138, 1, 0
      %vm220 = vcmp.eq.s32.totalorder %v219, 1
      %v221 = vsel %vm220, %v216, -1e+30
      %v222 = vsel %vm220, %v217, -1e+30
      %v223 = vsel %vm220, %v218, -1e+30
      %vm224 = vcmask 195584
      %v225 = vsel %vm224, %v221, -inf
      %226 = vmax.xlane.f32.xlu0 %v225
      %v227 = vpop.xlane.xlu0 %226
      %v228 = vsel %vm224, %v222, -inf
      %229 = vmax.xlane.f32.xlu0 %v228
      %v230 = vpop.xlane.xlu0 %229
      %v231 = vsel %vm224, %v223, -inf
      %232 = vmax.xlane.f32.xlu0 %v231
      %v233 = vpop.xlane.xlu0 %232
      %v234 = vsub.f32 %v221, %v227
      %v235 = vsub.f32 %v222, %v230
      %v236 = vsub.f32 %v223, %v233
      %v237 = vmul.f32 %v234, 1.442695
      %v238 = vpow.pop %v237
      %v239 = vmul.f32 %v235, 1.442695
      %v240 = vpow.pop %v239
      %v241 = vmul.f32 %v236, 1.442695
      %v242 = vpow.pop %v241
      %v243 = vsel %vm224, %v238, 0.0
      %244 = vadd.xlane.f32.xlu0 %v243
      %v245 = vpop.xlane.xlu0 %244
      %v246 = vsel %vm224, %v240, 0.0
      %247 = vadd.xlane.f32.xlu0 %v246
      %v248 = vpop.xlane.xlu0 %247
      %v249 = vsel %vm224, %v242, 0.0
      %250 = vadd.xlane.f32.xlu0 %v249
      %v251 = vpop.xlane.xlu0 %250
      %v252 = vrcp.pop %v245
      %v253 = vrcp.pop %v248
      %v254 = vrcp.pop %v251
      %v255 = vmul.f32 %v238, %v252
      %v256 = vmul.f32 %v240, %v253
      %v257 = vmul.f32 %v242, %v254
      %v258 = vpack.c.bf16 %v256, %v255
      %v259 = vpack.c.bf16 %v257, %v257
      %v263 = vunpack.c.l.b16 %v130
      %v264 = vunpack.c.l.b16 %v132
      %v265 = vunpack.c.l.b16 %v134
      %v266 = vpack.c.b16 %v264, %v263
      %v267 = vpack.c.b16 %v265, %v265
      %v270 = vsel %vm224, %v258, 0
      %v273 = vsel %vm224, %v259, 0
      %vm275 = vcmask 1043456
      %v277 = vsel %vm275, %v267, 0
      %279 = vmatprep.subr.bf16.mxu0 0
      %280 = vmatpush1.bf16.msra.mxu0 0
      %281 = vmatprep.subr.bf16.mxu0 0
      %282 = vmatpush1.bf16.msra.mxu0 0
      %283 = vmatprep.subr.bf16.mxu0 0
      %284 = vmatpush1.bf16.msra.mxu0 0
      %285 = vmatprep.subr.bf16.mxu0 0
      %286 = vmatpush1.bf16.msra.mxu0 0
      %287 = vmatprep.subr.bf16.mxu0 0
      %288 = vmatpush1.bf16.msra.mxu0 0
      %289 = vmatprep.subr.bf16.mxu0 0
      %290 = vmatpush1.bf16.msra.mxu0 0
      %291 = vmatprep.subr.bf16.mxu0 0
      %292 = vmatpush1.bf16.msra.mxu0 %v277
      %293 = vmatprep.subr.bf16.mxu0 0
      %294 = vmatpush1.bf16.msra.mxu0 %v266
      %295 = vmatprep.subr.bf16.mxu0 0
      %296 = vmatpush2.bf16.msra.mxu0 0
      %297 = vmatprep.subr.bf16.mxu0 0
      %298 = vmatpush2.bf16.msra.mxu0 0
      %299 = vmatprep.subr.bf16.mxu0 0
      %300 = vmatpush2.bf16.msra.mxu0 0
      %301 = vmatprep.subr.bf16.mxu0 0
      %302 = vmatpush2.bf16.msra.mxu0 0
      %303 = vmatprep.subr.bf16.mxu0 0
      %304 = vmatpush2.bf16.msra.mxu0 0
      %305 = vmatprep.subr.bf16.mxu0 0
      %306 = vmatpush2.bf16.msra.mxu0 0
      %307 = vmatprep.subr.bf16.mxu0 0
      %308 = vmatpush2.bf16.msra.mxu0 0
      %309 = vmatprep.subr.bf16.mxu0 0
      %310 = vmatpush2.bf16.msra.mxu0 0
      %311 = vmatprep.mubr.bf16.mxu0 0
      %312 = vmatmul.mubr.bf16.gmra.mxu0 %v270
      %v313 = vpop.f32.mrf.mxu0
      %v314 = vadd.f32 0.0, %v313
      %v315 = vpop.f32.mrf.mxu0
      %v316 = vpop.f32.mrf.mxu0
      %v317 = vadd.f32 0.0, %v316
      %v318 = vpop.f32.mrf.mxu0
      %319 = vmatprep.mubr.bf16.mxu0 0
      %320 = vmatmul.mubr.bf16.gmra.mxu0 %v273
      %v321 = vpop.f32.mrf.mxu0
      %v322 = vadd.f32 0.0, %v321
      %v323 = vpop.f32.mrf.mxu0
      %v324 = vpop.f32.mrf.mxu0
      %v325 = vpop.f32.mrf.mxu0
      %326 = vdwg.mxu0
      %327 = vrot.lane.b32.xlu0 %v145, 64
      %v328 = vpop.permute.xlu0 %327
      %329 = vrot.lane.b32.xlu0 %v146, 64
      %v330 = vpop.permute.xlu0 %329
      %331 = vrot.lane.b32.xlu0 %v153, 64
      %v332 = vpop.permute.xlu0 %331
      %333 = vrot.lane.b32.xlu0 %v154, 64
      %v334 = vpop.permute.xlu0 %333
      %v336 = vsel %vm155, %v328, 0
      %v339 = vsel %vm155, %v330, 0
      %v342 = vsel %vm155, %v332, 0
      %v345 = vsel %vm155, %v334, 0
      %347 = vmatprep.subr.bf16.mxu0 0
      %348 = vmatpush1.bf16.xpose.msra.mxu0 0
      %349 = vmatprep.subr.bf16.mxu0 0
      %350 = vmatpush1.bf16.xpose.msra.mxu0 0
      %351 = vmatprep.subr.bf16.mxu0 0
      %352 = vmatpush1.bf16.xpose.msra.mxu0 0
      %353 = vmatprep.subr.bf16.mxu0 0
      %354 = vmatpush1.bf16.xpose.msra.mxu0 0
      %355 = vmatprep.subr.bf16.mxu0 0
      %356 = vmatpush1.bf16.xpose.msra.mxu0 0
      %357 = vmatprep.subr.bf16.mxu0 0
      %358 = vmatpush1.bf16.xpose.msra.mxu0 0
      %359 = vmatprep.subr.bf16.mxu0 0
      %360 = vmatpush1.bf16.xpose.msra.mxu0 %v345
      %361 = vmatprep.subr.bf16.mxu0 0
      %362 = vmatpush1.bf16.xpose.msra.mxu0 %v342
      %363 = vmatprep.subr.bf16.mxu0 0
      %364 = vmatpush2.bf16.xpose.msra.mxu0 0
      %365 = vmatprep.subr.bf16.mxu0 0
      %366 = vmatpush2.bf16.xpose.msra.mxu0 0
      %367 = vmatprep.subr.bf16.mxu0 0
      %368 = vmatpush2.bf16.xpose.msra.mxu0 0
      %369 = vmatprep.subr.bf16.mxu0 0
      %370 = vmatpush2.bf16.xpose.msra.mxu0 0
      %371 = vmatprep.subr.bf16.mxu0 0
      %372 = vmatpush2.bf16.xpose.msra.mxu0 0
      %373 = vmatprep.subr.bf16.mxu0 0
      %374 = vmatpush2.bf16.xpose.msra.mxu0 0
      %375 = vmatprep.subr.bf16.mxu0 0
      %376 = vmatpush2.bf16.xpose.msra.mxu0 0
      %377 = vmatprep.subr.bf16.mxu0 0
      %378 = vmatpush2.bf16.xpose.msra.mxu0 0
      %379 = vmatprep.mubr.bf16.mxu0 0
      %380 = vmatmul.mubr.bf16.gmra.mxu0 %v336
      %v381 = vpop.f32.mrf.mxu0
      %v382 = vadd.f32 0.0, %v381
      %v383 = vpop.f32.mrf.mxu0
      %v384 = vpop.f32.mrf.mxu0
      %v385 = vadd.f32 0.0, %v384
      %v386 = vpop.f32.mrf.mxu0
      %387 = vmatprep.mubr.bf16.mxu0 0
      %388 = vmatmul.mubr.bf16.gmra.mxu0 %v339
      %v389 = vpop.f32.mrf.mxu0
      %v390 = vadd.f32 0.0, %v389
      %v391 = vpop.f32.mrf.mxu0
      %v392 = vpop.f32.mrf.mxu0
      %v393 = vpop.f32.mrf.mxu0
      %394 = vdwg.mxu0
      %v395 = vmul.f32 %v382, 0.125
      %v396 = vmul.f32 %v385, 0.125
      %v397 = vmul.f32 %v390, 0.125
      %v398 = vsel %vm220, %v395, -1e+30
      %v399 = vsel %vm220, %v396, -1e+30
      %v400 = vsel %vm220, %v397, -1e+30
      %v401 = vsel %vm224, %v398, -inf
      %402 = vmax.xlane.f32.xlu0 %v401
      %v403 = vpop.xlane.xlu0 %402
      %v404 = vsel %vm224, %v399, -inf
      %405 = vmax.xlane.f32.xlu0 %v404
      %v406 = vpop.xlane.xlu0 %405
      %v407 = vsel %vm224, %v400, -inf
      %408 = vmax.xlane.f32.xlu0 %v407
      %v409 = vpop.xlane.xlu0 %408
      %v410 = vsub.f32 %v398, %v403
      %v411 = vsub.f32 %v399, %v406
      %v412 = vsub.f32 %v400, %v409
      %v413 = vmul.f32 %v410, 1.442695
      %v414 = vpow.pop %v413
      %v415 = vmul.f32 %v411, 1.442695
      %v416 = vpow.pop %v415
      %v417 = vmul.f32 %v412, 1.442695
      %v418 = vpow.pop %v417
      %v419 = vsel %vm224, %v414, 0.0
      %420 = vadd.xlane.f32.xlu0 %v419
      %v421 = vpop.xlane.xlu0 %420
      %v422 = vsel %vm224, %v416, 0.0
      %423 = vadd.xlane.f32.xlu0 %v422
      %v424 = vpop.xlane.xlu0 %423
      %v425 = vsel %vm224, %v418, 0.0
      %426 = vadd.xlane.f32.xlu0 %v425
      %v427 = vpop.xlane.xlu0 %426
      %v428 = vrcp.pop %v421
      %v429 = vrcp.pop %v424
      %v430 = vrcp.pop %v427
      %v431 = vmul.f32 %v414, %v428
      %v432 = vmul.f32 %v416, %v429
      %v433 = vmul.f32 %v418, %v430
      %v434 = vpack.c.bf16 %v432, %v431
      %v435 = vpack.c.bf16 %v433, %v433
      %436 = vrot.lane.b32.xlu0 %v266, 64
      %v437 = vpop.permute.xlu0 %436
      %438 = vrot.lane.b32.xlu0 %v267, 64
      %v439 = vpop.permute.xlu0 %438
      %v442 = vsel %vm224, %v434, 0
      %v445 = vsel %vm224, %v435, 0
      %v448 = vsel %vm275, %v439, 0
      %450 = vmatprep.subr.bf16.mxu0 0
      %451 = vmatpush1.bf16.msra.mxu0 0
      %452 = vmatprep.subr.bf16.mxu0 0
      %453 = vmatpush1.bf16.msra.mxu0 0
      %454 = vmatprep.subr.bf16.mxu0 0
      %455 = vmatpush1.bf16.msra.mxu0 0
      %456 = vmatprep.subr.bf16.mxu0 0
      %457 = vmatpush1.bf16.msra.mxu0 0
      %458 = vmatprep.subr.bf16.mxu0 0
      %459 = vmatpush1.bf16.msra.mxu0 0
      %460 = vmatprep.subr.bf16.mxu0 0
      %461 = vmatpush1.bf16.msra.mxu0 0
      %462 = vmatprep.subr.bf16.mxu0 0
      %463 = vmatpush1.bf16.msra.mxu0 %v448
      %464 = vmatprep.subr.bf16.mxu0 0
      %465 = vmatpush1.bf16.msra.mxu0 %v437
      %466 = vmatprep.subr.bf16.mxu0 0
      %467 = vmatpush2.bf16.msra.mxu0 0
      %468 = vmatprep.subr.bf16.mxu0 0
      %469 = vmatpush2.bf16.msra.mxu0 0
      %470 = vmatprep.subr.bf16.mxu0 0
      %471 = vmatpush2.bf16.msra.mxu0 0
      %472 = vmatprep.subr.bf16.mxu0 0
      %473 = vmatpush2.bf16.msra.mxu0 0
      %474 = vmatprep.subr.bf16.mxu0 0
      %475 = vmatpush2.bf16.msra.mxu0 0
      %476 = vmatprep.subr.bf16.mxu0 0
      %477 = vmatpush2.bf16.msra.mxu0 0
      %478 = vmatprep.subr.bf16.mxu0 0
      %479 = vmatpush2.bf16.msra.mxu0 0
      %480 = vmatprep.subr.bf16.mxu0 0
      %481 = vmatpush2.bf16.msra.mxu0 0
      %482 = vmatprep.mubr.bf16.mxu0 0
      %483 = vmatmul.mubr.bf16.gmra.mxu0 %v442
      %v484 = vpop.f32.mrf.mxu0
      %v485 = vadd.f32 0.0, %v484
      %v486 = vpop.f32.mrf.mxu0
      %v487 = vpop.f32.mrf.mxu0
      %v488 = vadd.f32 0.0, %v487
      %v489 = vpop.f32.mrf.mxu0
      %490 = vmatprep.mubr.bf16.mxu0 0
      %491 = vmatmul.mubr.bf16.gmra.mxu0 %v445
      %v492 = vpop.f32.mrf.mxu0
      %v493 = vadd.f32 0.0, %v492
      %v494 = vpop.f32.mrf.mxu0
      %v495 = vpop.f32.mrf.mxu0
      %v496 = vpop.f32.mrf.mxu0
      %497 = vdwg.mxu0
      %v498 = vunpack.c.h.b16 %v118
      %v499 = vunpack.c.h.b16 %v120
      %v500 = vunpack.c.h.b16 %v122
      %v501 = vpack.c.b16 %v499, %v498
      %v502 = vpack.c.b16 %v500, %v500
      %v503 = vunpack.c.h.b16 %v124
      %v504 = vunpack.c.h.b16 %v126
      %v505 = vunpack.c.h.b16 %v128
      %v506 = vpack.c.b16 %v504, %v503
      %v507 = vpack.c.b16 %v505, %v505
      %v509 = vsel %vm155, %v501, 0
      %v512 = vsel %vm155, %v502, 0
      %v515 = vsel %vm155, %v506, 0
      %v518 = vsel %vm155, %v507, 0
      %520 = vmatprep.subr.bf16.mxu0 0
      %521 = vmatpush1.bf16.xpose.msra.mxu0 0
      %522 = vmatprep.subr.bf16.mxu0 0
      %523 = vmatpush1.bf16.xpose.msra.mxu0 0
      %524 = vmatprep.subr.bf16.mxu0 0
      %525 = vmatpush1.bf16.xpose.msra.mxu0 0
      %526 = vmatprep.subr.bf16.mxu0 0
      %527 = vmatpush1.bf16.xpose.msra.mxu0 0
      %528 = vmatprep.subr.bf16.mxu0 0
      %529 = vmatpush1.bf16.xpose.msra.mxu0 0
      %530 = vmatprep.subr.bf16.mxu0 0
      %531 = vmatpush1.bf16.xpose.msra.mxu0 0
      %532 = vmatprep.subr.bf16.mxu0 0
      %533 = vmatpush1.bf16.xpose.msra.mxu0 %v518
      %534 = vmatprep.subr.bf16.mxu0 0
      %535 = vmatpush1.bf16.xpose.msra.mxu0 %v515
      %536 = vmatprep.subr.bf16.mxu0 0
      %537 = vmatpush2.bf16.xpose.msra.mxu0 0
      %538 = vmatprep.subr.bf16.mxu0 0
      %539 = vmatpush2.bf16.xpose.msra.mxu0 0
      %540 = vmatprep.subr.bf16.mxu0 0
      %541 = vmatpush2.bf16.xpose.msra.mxu0 0
      %542 = vmatprep.subr.bf16.mxu0 0
      %543 = vmatpush2.bf16.xpose.msra.mxu0 0
      %544 = vmatprep.subr.bf16.mxu0 0
      %545 = vmatpush2.bf16.xpose.msra.mxu0 0
      %546 = vmatprep.subr.bf16.mxu0 0
      %547 = vmatpush2.bf16.xpose.msra.mxu0 0
      %548 = vmatprep.subr.bf16.mxu0 0
      %549 = vmatpush2.bf16.xpose.msra.mxu0 0
      %550 = vmatprep.subr.bf16.mxu0 0
      %551 = vmatpush2.bf16.xpose.msra.mxu0 0
      %552 = vmatprep.mubr.bf16.mxu0 0
      %553 = vmatmul.mubr.bf16.gmra.mxu0 %v509
      %v554 = vpop.f32.mrf.mxu0
      %v555 = vadd.f32 0.0, %v554
      %v556 = vpop.f32.mrf.mxu0
      %v557 = vpop.f32.mrf.mxu0
      %v558 = vadd.f32 0.0, %v557
      %v559 = vpop.f32.mrf.mxu0
      %560 = vmatprep.mubr.bf16.mxu0 0
      %561 = vmatmul.mubr.bf16.gmra.mxu0 %v512
      %v562 = vpop.f32.mrf.mxu0
      %v563 = vadd.f32 0.0, %v562
      %v564 = vpop.f32.mrf.mxu0
      %v565 = vpop.f32.mrf.mxu0
      %v566 = vpop.f32.mrf.mxu0
      %567 = vdwg.mxu0
      %v568 = vmul.f32 %v555, 0.125
      %v569 = vmul.f32 %v558, 0.125
      %v570 = vmul.f32 %v563, 0.125
      %v571 = vsel %vm220, %v568, -1e+30
      %v572 = vsel %vm220, %v569, -1e+30
      %v573 = vsel %vm220, %v570, -1e+30
      %v574 = vsel %vm224, %v571, -inf
      %575 = vmax.xlane.f32.xlu0 %v574
      %v576 = vpop.xlane.xlu0 %575
      %v577 = vsel %vm224, %v572, -inf
      %578 = vmax.xlane.f32.xlu0 %v577
      %v579 = vpop.xlane.xlu0 %578
      %v580 = vsel %vm224, %v573, -inf
      %581 = vmax.xlane.f32.xlu0 %v580
      %v582 = vpop.xlane.xlu0 %581
      %v583 = vsub.f32 %v571, %v576
      %v584 = vsub.f32 %v572, %v579
      %v585 = vsub.f32 %v573, %v582
      %v586 = vmul.f32 %v583, 1.442695
      %v587 = vpow.pop %v586
      %v588 = vmul.f32 %v584, 1.442695
      %v589 = vpow.pop %v588
      %v590 = vmul.f32 %v585, 1.442695
      %v591 = vpow.pop %v590
      %v592 = vsel %vm224, %v587, 0.0
      %593 = vadd.xlane.f32.xlu0 %v592
      %v594 = vpop.xlane.xlu0 %593
      %v595 = vsel %vm224, %v589, 0.0
      %596 = vadd.xlane.f32.xlu0 %v595
      %v597 = vpop.xlane.xlu0 %596
      %v598 = vsel %vm224, %v591, 0.0
      %599 = vadd.xlane.f32.xlu0 %v598
      %v600 = vpop.xlane.xlu0 %599
      %v601 = vrcp.pop %v594
      %v602 = vrcp.pop %v597
      %v603 = vrcp.pop %v600
      %v604 = vmul.f32 %v587, %v601
      %v605 = vmul.f32 %v589, %v602
      %v606 = vmul.f32 %v591, %v603
      %v607 = vpack.c.bf16 %v605, %v604
      %v608 = vpack.c.bf16 %v606, %v606
      %v609 = vunpack.c.h.b16 %v130
      %v610 = vunpack.c.h.b16 %v132
      %v611 = vunpack.c.h.b16 %v134
      %v612 = vpack.c.b16 %v610, %v609
      %v613 = vpack.c.b16 %v611, %v611
      %v616 = vsel %vm224, %v607, 0
      %v619 = vsel %vm224, %v608, 0
      %v622 = vsel %vm275, %v613, 0
      %624 = vmatprep.subr.bf16.mxu0 0
      %625 = vmatpush1.bf16.msra.mxu0 0
      %626 = vmatprep.subr.bf16.mxu0 0
      %627 = vmatpush1.bf16.msra.mxu0 0
      %628 = vmatprep.subr.bf16.mxu0 0
      %629 = vmatpush1.bf16.msra.mxu0 0
      %630 = vmatprep.subr.bf16.mxu0 0
      %631 = vmatpush1.bf16.msra.mxu0 0
      %632 = vmatprep.subr.bf16.mxu0 0
      %633 = vmatpush1.bf16.msra.mxu0 0
      %634 = vmatprep.subr.bf16.mxu0 0
      %635 = vmatpush1.bf16.msra.mxu0 0
      %636 = vmatprep.subr.bf16.mxu0 0
      %637 = vmatpush1.bf16.msra.mxu0 %v622
      %638 = vmatprep.subr.bf16.mxu0 0
      %639 = vmatpush1.bf16.msra.mxu0 %v612
      %640 = vmatprep.subr.bf16.mxu0 0
      %641 = vmatpush2.bf16.msra.mxu0 0
      %642 = vmatprep.subr.bf16.mxu0 0
      %643 = vmatpush2.bf16.msra.mxu0 0
      %644 = vmatprep.subr.bf16.mxu0 0
      %645 = vmatpush2.bf16.msra.mxu0 0
      %646 = vmatprep.subr.bf16.mxu0 0
      %647 = vmatpush2.bf16.msra.mxu0 0
      %648 = vmatprep.subr.bf16.mxu0 0
      %649 = vmatpush2.bf16.msra.mxu0 0
      %650 = vmatprep.subr.bf16.mxu0 0
      %651 = vmatpush2.bf16.msra.mxu0 0
      %652 = vmatprep.subr.bf16.mxu0 0
      %653 = vmatpush2.bf16.msra.mxu0 0
      %654 = vmatprep.subr.bf16.mxu0 0
      %655 = vmatpush2.bf16.msra.mxu0 0
      %656 = vmatprep.mubr.bf16.mxu0 0
      %657 = vmatmul.mubr.bf16.gmra.mxu0 %v616
      %v658 = vpop.f32.mrf.mxu0
      %v659 = vadd.f32 0.0, %v658
      %v660 = vpop.f32.mrf.mxu0
      %v661 = vpop.f32.mrf.mxu0
      %v662 = vadd.f32 0.0, %v661
      %v663 = vpop.f32.mrf.mxu0
      %664 = vmatprep.mubr.bf16.mxu0 0
      %665 = vmatmul.mubr.bf16.gmra.mxu0 %v619
      %v666 = vpop.f32.mrf.mxu0
      %v667 = vadd.f32 0.0, %v666
      %v668 = vpop.f32.mrf.mxu0
      %v669 = vpop.f32.mrf.mxu0
      %v670 = vpop.f32.mrf.mxu0
      %671 = vdwg.mxu0
      %672 = vrot.lane.b32.xlu0 %v501, 64
      %v673 = vpop.permute.xlu0 %672
      %674 = vrot.lane.b32.xlu0 %v502, 64
      %v675 = vpop.permute.xlu0 %674
      %676 = vrot.lane.b32.xlu0 %v506, 64
      %v677 = vpop.permute.xlu0 %676
      %678 = vrot.lane.b32.xlu0 %v507, 64
      %v679 = vpop.permute.xlu0 %678
      %v681 = vsel %vm155, %v673, 0
      %v684 = vsel %vm155, %v675, 0
      %v687 = vsel %vm155, %v677, 0
      %v690 = vsel %vm155, %v679, 0
      %692 = vmatprep.subr.bf16.mxu0 0
      %693 = vmatpush1.bf16.xpose.msra.mxu0 0
      %694 = vmatprep.subr.bf16.mxu0 0
      %695 = vmatpush1.bf16.xpose.msra.mxu0 0
      %696 = vmatprep.subr.bf16.mxu0 0
      %697 = vmatpush1.bf16.xpose.msra.mxu0 0
      %698 = vmatprep.subr.bf16.mxu0 0
      %699 = vmatpush1.bf16.xpose.msra.mxu0 0
      %700 = vmatprep.subr.bf16.mxu0 0
      %701 = vmatpush1.bf16.xpose.msra.mxu0 0
      %702 = vmatprep.subr.bf16.mxu0 0
      %703 = vmatpush1.bf16.xpose.msra.mxu0 0
      %704 = vmatprep.subr.bf16.mxu0 0
      %705 = vmatpush1.bf16.xpose.msra.mxu0 %v690
      %706 = vmatprep.subr.bf16.mxu0 0
      %707 = vmatpush1.bf16.xpose.msra.mxu0 %v687
      %708 = vmatprep.subr.bf16.mxu0 0
      %709 = vmatpush2.bf16.xpose.msra.mxu0 0
      %710 = vmatprep.subr.bf16.mxu0 0
      %711 = vmatpush2.bf16.xpose.msra.mxu0 0
      %712 = vmatprep.subr.bf16.mxu0 0
      %713 = vmatpush2.bf16.xpose.msra.mxu0 0
      %714 = vmatprep.subr.bf16.mxu0 0
      %715 = vmatpush2.bf16.xpose.msra.mxu0 0
      %716 = vmatprep.subr.bf16.mxu0 0
      %717 = vmatpush2.bf16.xpose.msra.mxu0 0
      %718 = vmatprep.subr.bf16.mxu0 0
      %719 = vmatpush2.bf16.xpose.msra.mxu0 0
      %720 = vmatprep.subr.bf16.mxu0 0
      %721 = vmatpush2.bf16.xpose.msra.mxu0 0
      %722 = vmatprep.subr.bf16.mxu0 0
      %723 = vmatpush2.bf16.xpose.msra.mxu0 0
      %724 = vmatprep.mubr.bf16.mxu0 0
      %725 = vmatmul.mubr.bf16.gmra.mxu0 %v681
      %v726 = vpop.f32.mrf.mxu0
      %v727 = vadd.f32 0.0, %v726
      %v728 = vpop.f32.mrf.mxu0
      %v729 = vpop.f32.mrf.mxu0
      %v730 = vadd.f32 0.0, %v729
      %v731 = vpop.f32.mrf.mxu0
      %732 = vmatprep.mubr.bf16.mxu0 0
      %733 = vmatmul.mubr.bf16.gmra.mxu0 %v684
      %v734 = vpop.f32.mrf.mxu0
      %v735 = vadd.f32 0.0, %v734
      %v736 = vpop.f32.mrf.mxu0
      %v737 = vpop.f32.mrf.mxu0
      %v738 = vpop.f32.mrf.mxu0
      %739 = vdwg.mxu0
      %v740 = vmul.f32 %v727, 0.125
      %v741 = vmul.f32 %v730, 0.125
      %v742 = vmul.f32 %v735, 0.125
      %v743 = vsel %vm220, %v740, -1e+30
      %v744 = vsel %vm220, %v741, -1e+30
      %v745 = vsel %vm220, %v742, -1e+30
      %v746 = vsel %vm224, %v743, -inf
      %747 = vmax.xlane.f32.xlu0 %v746
      %v748 = vpop.xlane.xlu0 %747
      %v749 = vsel %vm224, %v744, -inf
      %750 = vmax.xlane.f32.xlu0 %v749
      %v751 = vpop.xlane.xlu0 %750
      %v752 = vsel %vm224, %v745, -inf
      %753 = vmax.xlane.f32.xlu0 %v752
      %v754 = vpop.xlane.xlu0 %753
      %v755 = vsub.f32 %v743, %v748
      %v756 = vsub.f32 %v744, %v751
      %v757 = vsub.f32 %v745, %v754
      %v758 = vmul.f32 %v755, 1.442695
      %v759 = vpow.pop %v758
      %v760 = vmul.f32 %v756, 1.442695
      %v761 = vpow.pop %v760
      %v762 = vmul.f32 %v757, 1.442695
      %v763 = vpow.pop %v762
      %v764 = vsel %vm224, %v759, 0.0
      %765 = vadd.xlane.f32.xlu0 %v764
      %v766 = vpop.xlane.xlu0 %765
      %v767 = vsel %vm224, %v761, 0.0
      %768 = vadd.xlane.f32.xlu0 %v767
      %v769 = vpop.xlane.xlu0 %768
      %v770 = vsel %vm224, %v763, 0.0
      %771 = vadd.xlane.f32.xlu0 %v770
      %v772 = vpop.xlane.xlu0 %771
      %v773 = vrcp.pop %v766
      %v774 = vrcp.pop %v769
      %v775 = vrcp.pop %v772
      %v776 = vmul.f32 %v759, %v773
      %v777 = vmul.f32 %v761, %v774
      %v778 = vmul.f32 %v763, %v775
      %v779 = vpack.c.bf16 %v777, %v776
      %v780 = vpack.c.bf16 %v778, %v778
      %781 = vrot.lane.b32.xlu0 %v612, 64
      %v782 = vpop.permute.xlu0 %781
      %783 = vrot.lane.b32.xlu0 %v613, 64
      %v784 = vpop.permute.xlu0 %783
      %v787 = vsel %vm224, %v779, 0
      %v790 = vsel %vm224, %v780, 0
      %v793 = vsel %vm275, %v784, 0
      %795 = vmatprep.subr.bf16.mxu0 0
      %796 = vmatpush1.bf16.msra.mxu0 0
      %797 = vmatprep.subr.bf16.mxu0 0
      %798 = vmatpush1.bf16.msra.mxu0 0
      %799 = vmatprep.subr.bf16.mxu0 0
      %800 = vmatpush1.bf16.msra.mxu0 0
      %801 = vmatprep.subr.bf16.mxu0 0
      %802 = vmatpush1.bf16.msra.mxu0 0
      %803 = vmatprep.subr.bf16.mxu0 0
      %804 = vmatpush1.bf16.msra.mxu0 0
      %805 = vmatprep.subr.bf16.mxu0 0
      %806 = vmatpush1.bf16.msra.mxu0 0
      %807 = vmatprep.subr.bf16.mxu0 0
      %808 = vmatpush1.bf16.msra.mxu0 %v793
      %809 = vmatprep.subr.bf16.mxu0 0
      %810 = vmatpush1.bf16.msra.mxu0 %v782
      %811 = vmatprep.subr.bf16.mxu0 0
      %812 = vmatpush2.bf16.msra.mxu0 0
      %813 = vmatprep.subr.bf16.mxu0 0
      %814 = vmatpush2.bf16.msra.mxu0 0
      %815 = vmatprep.subr.bf16.mxu0 0
      %816 = vmatpush2.bf16.msra.mxu0 0
      %817 = vmatprep.subr.bf16.mxu0 0
      %818 = vmatpush2.bf16.msra.mxu0 0
      %819 = vmatprep.subr.bf16.mxu0 0
      %820 = vmatpush2.bf16.msra.mxu0 0
      %821 = vmatprep.subr.bf16.mxu0 0
      %822 = vmatpush2.bf16.msra.mxu0 0
      %823 = vmatprep.subr.bf16.mxu0 0
      %824 = vmatpush2.bf16.msra.mxu0 0
      %825 = vmatprep.subr.bf16.mxu0 0
      %826 = vmatpush2.bf16.msra.mxu0 0
      %827 = vmatprep.mubr.bf16.mxu0 0
      %828 = vmatmul.mubr.bf16.gmra.mxu0 %v787
      %v829 = vpop.f32.mrf.mxu0
      %v830 = vadd.f32 0.0, %v829
      %v831 = vpop.f32.mrf.mxu0
      %v832 = vpop.f32.mrf.mxu0
      %v833 = vadd.f32 0.0, %v832
      %v834 = vpop.f32.mrf.mxu0
      %835 = vmatprep.mubr.bf16.mxu0 0
      %836 = vmatmul.mubr.bf16.gmra.mxu0 %v790
      %v837 = vpop.f32.mrf.mxu0
      %v838 = vadd.f32 0.0, %v837
      %v839 = vpop.f32.mrf.mxu0
      %v840 = vpop.f32.mrf.mxu0
      %v841 = vpop.f32.mrf.mxu0
      %842 = vdwg.mxu0
      %v846 = vunpack.c.l.b16 %v119
      %v847 = vunpack.c.l.b16 %v121
      %v848 = vunpack.c.l.b16 %v123
      %v849 = vpack.c.b16 %v847, %v846
      %v850 = vpack.c.b16 %v848, %v848
      %v854 = vunpack.c.l.b16 %v125
      %v855 = vunpack.c.l.b16 %v127
      %v856 = vunpack.c.l.b16 %v129
      %v857 = vpack.c.b16 %v855, %v854
      %v858 = vpack.c.b16 %v856, %v856
      %v860 = vsel %vm155, %v849, 0
      %v863 = vsel %vm155, %v850, 0
      %v866 = vsel %vm155, %v857, 0
      %v869 = vsel %vm155, %v858, 0
      %871 = vmatprep.subr.bf16.mxu0 0
      %872 = vmatpush1.bf16.xpose.msra.mxu0 0
      %873 = vmatprep.subr.bf16.mxu0 0
      %874 = vmatpush1.bf16.xpose.msra.mxu0 0
      %875 = vmatprep.subr.bf16.mxu0 0
      %876 = vmatpush1.bf16.xpose.msra.mxu0 0
      %877 = vmatprep.subr.bf16.mxu0 0
      %878 = vmatpush1.bf16.xpose.msra.mxu0 0
      %879 = vmatprep.subr.bf16.mxu0 0
      %880 = vmatpush1.bf16.xpose.msra.mxu0 0
      %881 = vmatprep.subr.bf16.mxu0 0
      %882 = vmatpush1.bf16.xpose.msra.mxu0 0
      %883 = vmatprep.subr.bf16.mxu0 0
      %884 = vmatpush1.bf16.xpose.msra.mxu0 %v869
      %885 = vmatprep.subr.bf16.mxu0 0
      %886 = vmatpush1.bf16.xpose.msra.mxu0 %v866
      %887 = vmatprep.subr.bf16.mxu0 0
      %888 = vmatpush2.bf16.xpose.msra.mxu0 0
      %889 = vmatprep.subr.bf16.mxu0 0
      %890 = vmatpush2.bf16.xpose.msra.mxu0 0
      %891 = vmatprep.subr.bf16.mxu0 0
      %892 = vmatpush2.bf16.xpose.msra.mxu0 0
      %893 = vmatprep.subr.bf16.mxu0 0
      %894 = vmatpush2.bf16.xpose.msra.mxu0 0
      %895 = vmatprep.subr.bf16.mxu0 0
      %896 = vmatpush2.bf16.xpose.msra.mxu0 0
      %897 = vmatprep.subr.bf16.mxu0 0
      %898 = vmatpush2.bf16.xpose.msra.mxu0 0
      %899 = vmatprep.subr.bf16.mxu0 0
      %900 = vmatpush2.bf16.xpose.msra.mxu0 0
      %901 = vmatprep.subr.bf16.mxu0 0
      %902 = vmatpush2.bf16.xpose.msra.mxu0 0
      %903 = vmatprep.mubr.bf16.mxu0 0
      %904 = vmatmul.mubr.bf16.gmra.mxu0 %v860
      %v905 = vpop.f32.mrf.mxu0
      %v906 = vadd.f32 0.0, %v905
      %v907 = vpop.f32.mrf.mxu0
      %v908 = vpop.f32.mrf.mxu0
      %v909 = vadd.f32 0.0, %v908
      %v910 = vpop.f32.mrf.mxu0
      %911 = vmatprep.mubr.bf16.mxu0 0
      %912 = vmatmul.mubr.bf16.gmra.mxu0 %v863
      %v913 = vpop.f32.mrf.mxu0
      %v914 = vadd.f32 0.0, %v913
      %v915 = vpop.f32.mrf.mxu0
      %v916 = vpop.f32.mrf.mxu0
      %v917 = vpop.f32.mrf.mxu0
      %918 = vdwg.mxu0
      %v919 = vmul.f32 %v906, 0.125
      %v920 = vmul.f32 %v909, 0.125
      %v921 = vmul.f32 %v914, 0.125
      %v922 = vsel %vm220, %v919, -1e+30
      %v923 = vsel %vm220, %v920, -1e+30
      %v924 = vsel %vm220, %v921, -1e+30
      %v925 = vsel %vm224, %v922, -inf
      %926 = vmax.xlane.f32.xlu0 %v925
      %v927 = vpop.xlane.xlu0 %926
      %v928 = vsel %vm224, %v923, -inf
      %929 = vmax.xlane.f32.xlu0 %v928
      %v930 = vpop.xlane.xlu0 %929
      %v931 = vsel %vm224, %v924, -inf
      %932 = vmax.xlane.f32.xlu0 %v931
      %v933 = vpop.xlane.xlu0 %932
      %v934 = vsub.f32 %v922, %v927
      %v935 = vsub.f32 %v923, %v930
      %v936 = vsub.f32 %v924, %v933
      %v937 = vmul.f32 %v934, 1.442695
      %v938 = vpow.pop %v937
      %v939 = vmul.f32 %v935, 1.442695
      %v940 = vpow.pop %v939
      %v941 = vmul.f32 %v936, 1.442695
      %v942 = vpow.pop %v941
      %v943 = vsel %vm224, %v938, 0.0
      %944 = vadd.xlane.f32.xlu0 %v943
      %v945 = vpop.xlane.xlu0 %944
      %v946 = vsel %vm224, %v940, 0.0
      %947 = vadd.xlane.f32.xlu0 %v946
      %v948 = vpop.xlane.xlu0 %947
      %v949 = vsel %vm224, %v942, 0.0
      %950 = vadd.xlane.f32.xlu0 %v949
      %v951 = vpop.xlane.xlu0 %950
      %v952 = vrcp.pop %v945
      %v953 = vrcp.pop %v948
      %v954 = vrcp.pop %v951
      %v955 = vmul.f32 %v938, %v952
      %v956 = vmul.f32 %v940, %v953
      %v957 = vmul.f32 %v942, %v954
      %v958 = vpack.c.bf16 %v956, %v955
      %v959 = vpack.c.bf16 %v957, %v957
      %v963 = vunpack.c.l.b16 %v131
      %v964 = vunpack.c.l.b16 %v133
      %v965 = vunpack.c.l.b16 %v135
      %v966 = vpack.c.b16 %v964, %v963
      %v967 = vpack.c.b16 %v965, %v965
      %v970 = vsel %vm224, %v958, 0
      %v973 = vsel %vm224, %v959, 0
      %v976 = vsel %vm275, %v967, 0
      %978 = vmatprep.subr.bf16.mxu0 0
      %979 = vmatpush1.bf16.msra.mxu0 0
      %980 = vmatprep.subr.bf16.mxu0 0
      %981 = vmatpush1.bf16.msra.mxu0 0
      %982 = vmatprep.subr.bf16.mxu0 0
      %983 = vmatpush1.bf16.msra.mxu0 0
      %984 = vmatprep.subr.bf16.mxu0 0
      %985 = vmatpush1.bf16.msra.mxu0 0
      %986 = vmatprep.subr.bf16.mxu0 0
      %987 = vmatpush1.bf16.msra.mxu0 0
      %988 = vmatprep.subr.bf16.mxu0 0
      %989 = vmatpush1.bf16.msra.mxu0 0
      %990 = vmatprep.subr.bf16.mxu0 0
      %991 = vmatpush1.bf16.msra.mxu0 %v976
      %992 = vmatprep.subr.bf16.mxu0 0
      %993 = vmatpush1.bf16.msra.mxu0 %v966
      %994 = vmatprep.subr.bf16.mxu0 0
      %995 = vmatpush2.bf16.msra.mxu0 0
      %996 = vmatprep.subr.bf16.mxu0 0
      %997 = vmatpush2.bf16.msra.mxu0 0
      %998 = vmatprep.subr.bf16.mxu0 0
      %999 = vmatpush2.bf16.msra.mxu0 0
      %1000 = vmatprep.subr.bf16.mxu0 0
      %1001 = vmatpush2.bf16.msra.mxu0 0
      %1002 = vmatprep.subr.bf16.mxu0 0
      %1003 = vmatpush2.bf16.msra.mxu0 0
      %1004 = vmatprep.subr.bf16.mxu0 0
      %1005 = vmatpush2.bf16.msra.mxu0 0
      %1006 = vmatprep.subr.bf16.mxu0 0
      %1007 = vmatpush2.bf16.msra.mxu0 0
      %1008 = vmatprep.subr.bf16.mxu0 0
      %1009 = vmatpush2.bf16.msra.mxu0 0
      %1010 = vmatprep.mubr.bf16.mxu0 0
      %1011 = vmatmul.mubr.bf16.gmra.mxu0 %v970
      %v1012 = vpop.f32.mrf.mxu0
      %v1013 = vadd.f32 0.0, %v1012
      %v1014 = vpop.f32.mrf.mxu0
      %v1015 = vpop.f32.mrf.mxu0
      %v1016 = vadd.f32 0.0, %v1015
      %v1017 = vpop.f32.mrf.mxu0
      %1018 = vmatprep.mubr.bf16.mxu0 0
      %1019 = vmatmul.mubr.bf16.gmra.mxu0 %v973
      %v1020 = vpop.f32.mrf.mxu0
      %v1021 = vadd.f32 0.0, %v1020
      %v1022 = vpop.f32.mrf.mxu0
      %v1023 = vpop.f32.mrf.mxu0
      %v1024 = vpop.f32.mrf.mxu0
      %1025 = vdwg.mxu0
      %1026 = vrot.lane.b32.xlu0 %v849, 64
      %v1027 = vpop.permute.xlu0 %1026
      %1028 = vrot.lane.b32.xlu0 %v850, 64
      %v1029 = vpop.permute.xlu0 %1028
      %1030 = vrot.lane.b32.xlu0 %v857, 64
      %v1031 = vpop.permute.xlu0 %1030
      %1032 = vrot.lane.b32.xlu0 %v858, 64
      %v1033 = vpop.permute.xlu0 %1032
      %v1035 = vsel %vm155, %v1027, 0
      %v1038 = vsel %vm155, %v1029, 0
      %v1041 = vsel %vm155, %v1031, 0
      %v1044 = vsel %vm155, %v1033, 0
      %1046 = vmatprep.subr.bf16.mxu0 0
      %1047 = vmatpush1.bf16.xpose.msra.mxu0 0
      %1048 = vmatprep.subr.bf16.mxu0 0
      %1049 = vmatpush1.bf16.xpose.msra.mxu0 0
      %1050 = vmatprep.subr.bf16.mxu0 0
      %1051 = vmatpush1.bf16.xpose.msra.mxu0 0
      %1052 = vmatprep.subr.bf16.mxu0 0
      %1053 = vmatpush1.bf16.xpose.msra.mxu0 0
      %1054 = vmatprep.subr.bf16.mxu0 0
      %1055 = vmatpush1.bf16.xpose.msra.mxu0 0
      %1056 = vmatprep.subr.bf16.mxu0 0
      %1057 = vmatpush1.bf16.xpose.msra.mxu0 0
      %1058 = vmatprep.subr.bf16.mxu0 0
      %1059 = vmatpush1.bf16.xpose.msra.mxu0 %v1044
      %1060 = vmatprep.subr.bf16.mxu0 0
      %1061 = vmatpush1.bf16.xpose.msra.mxu0 %v1041
      %1062 = vmatprep.subr.bf16.mxu0 0
      %1063 = vmatpush2.bf16.xpose.msra.mxu0 0
      %1064 = vmatprep.subr.bf16.mxu0 0
      %1065 = vmatpush2.bf16.xpose.msra.mxu0 0
      %1066 = vmatprep.subr.bf16.mxu0 0
      %1067 = vmatpush2.bf16.xpose.msra.mxu0 0
      %1068 = vmatprep.subr.bf16.mxu0 0
      %1069 = vmatpush2.bf16.xpose.msra.mxu0 0
      %1070 = vmatprep.subr.bf16.mxu0 0
      %1071 = vmatpush2.bf16.xpose.msra.mxu0 0
      %1072 = vmatprep.subr.bf16.mxu0 0
      %1073 = vmatpush2.bf16.xpose.msra.mxu0 0
      %1074 = vmatprep.subr.bf16.mxu0 0
      %1075 = vmatpush2.bf16.xpose.msra.mxu0 0
      %1076 = vmatprep.subr.bf16.mxu0 0
      %1077 = vmatpush2.bf16.xpose.msra.mxu0 0
      %1078 = vmatprep.mubr.bf16.mxu0 0
      %1079 = vmatmul.mubr.bf16.gmra.mxu0 %v1035
      %v1080 = vpop.f32.mrf.mxu0
      %v1081 = vadd.f32 0.0, %v1080
      %v1082 = vpop.f32.mrf.mxu0
      %v1083 = vpop.f32.mrf.mxu0
      %v1084 = vadd.f32 0.0, %v1083
      %v1085 = vpop.f32.mrf.mxu0
      %1086 = vmatprep.mubr.bf16.mxu0 0
      %1087 = vmatmul.mubr.bf16.gmra.mxu0 %v1038
      %v1088 = vpop.f32.mrf.mxu0
      %v1089 = vadd.f32 0.0, %v1088
      %v1090 = vpop.f32.mrf.mxu0
      %v1091 = vpop.f32.mrf.mxu0
      %v1092 = vpop.f32.mrf.mxu0
      %1093 = vdwg.mxu0
      %v1094 = vmul.f32 %v1081, 0.125
      %v1095 = vmul.f32 %v1084, 0.125
      %v1096 = vmul.f32 %v1089, 0.125
      %v1097 = vsel %vm220, %v1094, -1e+30
      %v1098 = vsel %vm220, %v1095, -1e+30
      %v1099 = vsel %vm220, %v1096, -1e+30
      %v1100 = vsel %vm224, %v1097, -inf
      %1101 = vmax.xlane.f32.xlu0 %v1100
      %v1102 = vpop.xlane.xlu0 %1101
      %v1103 = vsel %vm224, %v1098, -inf
      %1104 = vmax.xlane.f32.xlu0 %v1103
      %v1105 = vpop.xlane.xlu0 %1104
      %v1106 = vsel %vm224, %v1099, -inf
      %1107 = vmax.xlane.f32.xlu0 %v1106
      %v1108 = vpop.xlane.xlu0 %1107
      %v1109 = vsub.f32 %v1097, %v1102
      %v1110 = vsub.f32 %v1098, %v1105
      %v1111 = vsub.f32 %v1099, %v1108
      %v1112 = vmul.f32 %v1109, 1.442695
      %v1113 = vpow.pop %v1112
      %v1114 = vmul.f32 %v1110, 1.442695
      %v1115 = vpow.pop %v1114
      %v1116 = vmul.f32 %v1111, 1.442695
      %v1117 = vpow.pop %v1116
      %v1118 = vsel %vm224, %v1113, 0.0
      %1119 = vadd.xlane.f32.xlu0 %v1118
      %v1120 = vpop.xlane.xlu0 %1119
      %v1121 = vsel %vm224, %v1115, 0.0
      %1122 = vadd.xlane.f32.xlu0 %v1121
      %v1123 = vpop.xlane.xlu0 %1122
      %v1124 = vsel %vm224, %v1117, 0.0
      %1125 = vadd.xlane.f32.xlu0 %v1124
      %v1126 = vpop.xlane.xlu0 %1125
      %v1127 = vrcp.pop %v1120
      %v1128 = vrcp.pop %v1123
      %v1129 = vrcp.pop %v1126
      %v1130 = vmul.f32 %v1113, %v1127
      %v1131 = vmul.f32 %v1115, %v1128
      %v1132 = vmul.f32 %v1117, %v1129
      %v1133 = vpack.c.bf16 %v1131, %v1130
      %v1134 = vpack.c.bf16 %v1132, %v1132
      %1135 = vrot.lane.b32.xlu0 %v966, 64
      %v1136 = vpop.permute.xlu0 %1135
      %1137 = vrot.lane.b32.xlu0 %v967, 64
      %v1138 = vpop.permute.xlu0 %1137
      %v1141 = vsel %vm224, %v1133, 0
      %v1144 = vsel %vm224, %v1134, 0
      %v1147 = vsel %vm275, %v1138, 0
      %1149 = vmatprep.subr.bf16.mxu0 0
      %1150 = vmatpush1.bf16.msra.mxu0 0
      %1151 = vmatprep.subr.bf16.mxu0 0
      %1152 = vmatpush1.bf16.msra.mxu0 0
      %1153 = vmatprep.subr.bf16.mxu0 0
      %1154 = vmatpush1.bf16.msra.mxu0 0
      %1155 = vmatprep.subr.bf16.mxu0 0
      %1156 = vmatpush1.bf16.msra.mxu0 0
      %1157 = vmatprep.subr.bf16.mxu0 0
      %1158 = vmatpush1.bf16.msra.mxu0 0
      %1159 = vmatprep.subr.bf16.mxu0 0
      %1160 = vmatpush1.bf16.msra.mxu0 0
      %1161 = vmatprep.subr.bf16.mxu0 0
      %1162 = vmatpush1.bf16.msra.mxu0 %v1147
      %1163 = vmatprep.subr.bf16.mxu0 0
      %1164 = vmatpush1.bf16.msra.mxu0 %v1136
      %1165 = vmatprep.subr.bf16.mxu0 0
      %1166 = vmatpush2.bf16.msra.mxu0 0
      %1167 = vmatprep.subr.bf16.mxu0 0
      %1168 = vmatpush2.bf16.msra.mxu0 0
      %1169 = vmatprep.subr.bf16.mxu0 0
      %1170 = vmatpush2.bf16.msra.mxu0 0
      %1171 = vmatprep.subr.bf16.mxu0 0
      %1172 = vmatpush2.bf16.msra.mxu0 0
      %1173 = vmatprep.subr.bf16.mxu0 0
      %1174 = vmatpush2.bf16.msra.mxu0 0
      %1175 = vmatprep.subr.bf16.mxu0 0
      %1176 = vmatpush2.bf16.msra.mxu0 0
      %1177 = vmatprep.subr.bf16.mxu0 0
      %1178 = vmatpush2.bf16.msra.mxu0 0
      %1179 = vmatprep.subr.bf16.mxu0 0
      %1180 = vmatpush2.bf16.msra.mxu0 0
      %1181 = vmatprep.mubr.bf16.mxu0 0
      %1182 = vmatmul.mubr.bf16.gmra.mxu0 %v1141
      %v1183 = vpop.f32.mrf.mxu0
      %v1184 = vadd.f32 0.0, %v1183
      %v1185 = vpop.f32.mrf.mxu0
      %v1186 = vpop.f32.mrf.mxu0
      %v1187 = vadd.f32 0.0, %v1186
      %v1188 = vpop.f32.mrf.mxu0
      %1189 = vmatprep.mubr.bf16.mxu0 0
      %1190 = vmatmul.mubr.bf16.gmra.mxu0 %v1144
      %v1191 = vpop.f32.mrf.mxu0
      %v1192 = vadd.f32 0.0, %v1191
      %v1193 = vpop.f32.mrf.mxu0
      %v1194 = vpop.f32.mrf.mxu0
      %v1195 = vpop.f32.mrf.mxu0
      %1196 = vdwg.mxu0
      %1200 = vrot.lane.b32.xlu0 %v485, 64
      %v1201 = vpop.permute.xlu0 %1200
      %1202 = vrot.lane.b32.xlu0 %v488, 64
      %v1203 = vpop.permute.xlu0 %1202
      %1204 = vrot.lane.b32.xlu0 %v493, 64
      %v1205 = vpop.permute.xlu0 %1204
      %1212 = vrot.lane.b32.xlu0 %v830, 64
      %v1213 = vpop.permute.xlu0 %1212
      %1214 = vrot.lane.b32.xlu0 %v833, 64
      %v1215 = vpop.permute.xlu0 %1214
      %1216 = vrot.lane.b32.xlu0 %v838, 64
      %v1217 = vpop.permute.xlu0 %1216
      %1224 = vrot.lane.b32.xlu0 %v1184, 64
      %v1225 = vpop.permute.xlu0 %1224
      %1226 = vrot.lane.b32.xlu0 %v1187, 64
      %v1227 = vpop.permute.xlu0 %1226
      %1228 = vrot.lane.b32.xlu0 %v1192, 64
      %v1229 = vpop.permute.xlu0 %1228
      %v1233 = vsel %vm155, %v314, %v1201
      %v1234 = vsel %vm155, %v317, %v1203
      %v1235 = vsel %vm155, %v322, %v1205
      %v1236 = vsel %vm155, %v659, %v1213
      %v1237 = vsel %vm155, %v662, %v1215
      %v1238 = vsel %vm155, %v667, %v1217
      %v1239 = vsel %vm155, %v1013, %v1225
      %v1240 = vsel %vm155, %v1016, %v1227
      %v1241 = vsel %vm155, %v1021, %v1229
      %v1242 = vpack.c.bf16 %v1234, %v1233
      %v1243 = vpack.c.bf16 %v1237, %v1236
      %v1244 = vpack.c.bf16 %v1240, %v1239
      %v1245 = vpack.c.bf16 %v1235, %v1235
      %v1246 = vpack.c.bf16 %v1238, %v1238
      %v1247 = vpack.c.bf16 %v1241, %v1241
      %v1254 = vunpack.c.l.b16 %v1242
      %v1255 = vunpack.c.l.b16 %v1243
      %v1256 = vunpack.c.l.b16 %v1244
      %v1257 = vunpack.c.h.b16 %v1242
      %v1258 = vunpack.c.h.b16 %v1243
      %v1259 = vunpack.c.h.b16 %v1244
      %v1260 = vunpack.c.l.b16 %v1245
      %v1261 = vunpack.c.l.b16 %v1246
      %v1262 = vunpack.c.l.b16 %v1247
      %v1263 = vpack.c.b16 %v1255, %v1254
      %v1264 = vpack.c.b16 %v1256, %v1256
      %v1265 = vpack.c.b16 %v1258, %v1257
      %v1266 = vpack.c.b16 %v1259, %v1259
      %v1267 = vpack.c.b16 %v1261, %v1260
      %v1268 = vpack.c.b16 %v1262, %v1262
      %1275 = vst [vmem:[%s116] sm:$0xff] %v1263
      %1276 = vst [vmem:[%s116 + $0x8] sm:$0xf] %v1264
      %1277 = vst [vmem:[%s116 + $0xc] sm:$0xff] %v1265
      %1278 = vst [vmem:[%s116 + $0x14] sm:$0xf] %v1266
      %1279 = vst [vmem:[%s116 + $0x18] sm:$0xff] %v1267
      %1280 = vst [vmem:[%s116 + $0x20] sm:$0xf] %v1268
      %p1281 = scmp.lt.s32.totalorder %s12, 1
      %s1282 = scalar_select %p1281, %s12, 1
      %s1283 = smul.addr %s1282, 9
      %s1284 = smul.addr %s1283, 4
      %s1285 = scalar_lea.vmem %s1, %s1284
      // Predicated region
      $region25: #{closed_call.17} parent=23 // pred_check
        %p1286 = pneg %p56
      $region26: #{closed_call.17} parent=23 // pred_check_branch
        %1288 = sbr.rel (%p1286) target = $region28
      $region27: #{closed_call.17} parent=23 // pred_region
        _
      $region28: #{closed_call.17} parent=23 // pred_fallthru
        _
    $region24: #{closed_call.17} parent=5 // pred_fallthru
      _
    %p1289 = scmp.le.s32.totalorder 2, %s7
    // Predicated region
    $region29: #{closed_call.17} parent=5 // pred_check
      %p1290 = pneg %p1289
    $region30: #{closed_call.17} parent=5 // pred_check_branch
      %1292 = sbr.rel (%p1290) target = $region32
    $region31: #{closed_call.17} parent=5 // pred_region
      %s1293 = ssub.s32 %s7, 2
      // Predicated region
      $region33: #{closed_call.17} parent=31 // pred_check
        %p1294 = pneg %p62
      $region34: #{closed_call.17} parent=31 // pred_check_branch
        %1296 = sbr.rel (%p1294) target = $region36
      $region35: #{closed_call.17} parent=31 // pred_region
        %p1297 = scmp.lt.s32.totalorder %s13, 1
        %s1298 = scalar_select %p1297, %s13, 1
        %s1299 = smul.addr %s1298, 9
        %s1300 = smul.addr %s1299, 4
        %s1301 = scalar_lea.vmem %s1, %s1300
      $region36: #{closed_call.17} parent=31 // pred_fallthru
        _
    $region32: #{closed_call.17} parent=5 // pred_fallthru
      _
  $region6: #{closed_call.17} parent=0 // loop_footer
    %s11 = sadd.s32 1, %s7
  $region7: #{closed_call.17} parent=0 // loop_footer_branch
    %6 = sbr.rel target = $region3
  $region8: #{closed_call.17} parent=0 // loop_exit
    _

// kernel: closed_call.19
$region0: #{closed_call.19}
  #allocation0 [shape = 'u32[]', space=smem, size = 0x4, offset = 0x4, fixed_abs, tag = 'smem constant byte address 0x4 - core index']
  #allocation1 [shape = 'u32[144,128]{1,0:T(1,128)}', space=vmem, size = 0x12000, scoped, tag = 'internal scratch']
  %s0 = inlined_call_operand.vmem [shape: f32[48,384], index: 0, kind: input, shape index: {}]
  %s1 = inlined_call_operand.vmem [shape: f32[1,384], index: 1, kind: input, shape index: {}]
  %s2 = inlined_call_operand.vmem [shape: f32[1,384], index: 2, kind: input, shape index: {}]
  %s3 = inlined_call_operand.vmem [shape: bf16[384,1536], index: 3, kind: input, shape index: {}]
  %s4 = inlined_call_operand.vmem [shape: f32[1,1536], index: 4, kind: input, shape index: {}]
  %s5 = inlined_call_operand.vmem [shape: bf16[48,1536], index: 5, kind: output, shape index: {}]
  %s6 = sld [smem:[#allocation0]]
  $region95: #{closed_call.19} parent=0
    _
  %s8 = ssub.s32 1, %s6
  %s9 = scalar_select 0, %s8, %s6
  $region1: #{closed_call.19} parent=0
    #allocation2 [shape = 'u8[786432]{0}', space=vmem, size = 0xc0000, scoped, tag = 'input window, operand 3']
    #allocation3 [shape = 'u8[98304]{0}', space=vmem, size = 0x18000, scoped, tag = 'output window, operand 0']
    loop: start=0, step=1, limit=5
    $region2: #{closed_call.19} parent=1 // loop_pre_header
      _
    $region3: #{closed_call.19} parent=1 // loop_header
      %s11 = sphi 0, %s15
      %p12 = scmp.ge.s32.totalorder %s11, 5
      %s18 = sphi 0, %s30
      %s19 = sphi 0, %s26
      %s20 = sphi 0, %s18
      %s21 = sphi 0, %s19
      %s22 = sphi 0, %s20
      %s23 = sphi 0, %s21
      %s33 = sphi 0, %s35
      %s36 = sphi 0, %s33
      %s37 = sphi 0, %s36
      %s53 = sphi 0, %s37
      %s57 = sphi 0, %s57
      %s59 = sphi 0, %s57
      %s60 = sphi 0, %s59
      %s74 = sphi 0, %s60
      %s78 = sphi 0, %s78
      %s80 = sphi 0, %s78
      %s81 = sphi 0, %s80
      %s95 = sphi 0, %s81
      %s101 = sphi 0, %s103
      %s104 = sphi 0, %s101
      %s105 = sphi 0, %s104
      %s121 = sphi 0, %s105
      %s127 = sphi 0, %s129
      %s130 = sphi 0, %s127
      %s131 = sphi 0, %s130
      %s147 = sphi 0, %s131
      %s155 = sphi 0, %s157
      %s158 = sphi 0, %s155
      %s159 = sphi 0, %s158
      %s175 = sphi 0, %s159
    $region4: #{closed_call.19} parent=1 // loop_header_branch
      %14 = sbr.rel (%p12) target = $region8
    $region5: #{closed_call.19} parent=1 // loop_body
      %s16 = ssub.s32 %s11, 1
      %s17 = ssub.s32 %s11, 2
      %s24 = sadd.s32 1, %s19
      %p25 = scmp.ge.s32.totalorder %s24, 3
      %s26 = scalar_select %p25, 0, %s24
      %s27 = sadd.s32 1, %s18
      %s28 = scalar_select %p25, %s27, %s18
      %p29 = scmp.ge.s32.totalorder %s28, 1
      %s30 = scalar_select %p29, 0, %s28
      %s31 = ssub.s32 %s18, %s30
      %p32 = scmp.eq.s32.totalorder %s31, 0
      %s34 = sadd.s32 %s33, 1
      %s35 = scalar_select %p32, %s33, %s34
      %p38 = pneg %p32
      %p39 = scmp.eq.s32.totalorder %s11, 2
      %p40 = por %p38, %p39
      %p41 = scmp.ne.s32.totalorder %s33, %s36
      %p42 = scmp.eq.s32.totalorder %s11, 0
      %p43 = por %p41, %p42
      %p44 = scmp.ne.s32.totalorder %s33, %s36
      %p45 = scmp.eq.s32.totalorder %s16, 2
      %p46 = por %p44, %p45
      %p47 = scmp.ne.s32.totalorder %s36, %s37
      %p48 = scmp.eq.s32.totalorder %s16, 0
      %p49 = por %p47, %p48
      %p50 = scmp.ne.s32.totalorder %s36, %s37
      %p51 = scmp.eq.s32.totalorder %s17, 2
      %p52 = por %p50, %p51
      %p54 = scmp.ne.s32.totalorder %s37, %s53
      %p55 = scmp.eq.s32.totalorder %s17, 0
      %p56 = por %p54, %p55
      %s58 = sadd.s32 %s57, 1
      %p61 = scmp.eq.s32.totalorder %s11, 2
      %p62 = scmp.ne.s32.totalorder %s57, %s59
      %p63 = scmp.eq.s32.totalorder %s11, 0
      %p64 = por %p62, %p63
      %p65 = scmp.ne.s32.totalorder %s57, %s59
      %p66 = scmp.eq.s32.totalorder %s16, 2
      %p67 = por %p65, %p66
      %p68 = scmp.ne.s32.totalorder %s59, %s60
      %p69 = scmp.eq.s32.totalorder %s16, 0
      %p70 = por %p68, %p69
      %p71 = scmp.ne.s32.totalorder %s59, %s60
      %p72 = scmp.eq.s32.totalorder %s17, 2
      %p73 = por %p71, %p72
      %p75 = scmp.ne.s32.totalorder %s60, %s74
      %p76 = scmp.eq.s32.totalorder %s17, 0
      %p77 = por %p75, %p76
      %s79 = sadd.s32 %s78, 1
      %p82 = scmp.eq.s32.totalorder %s11, 2
      %p83 = scmp.ne.s32.totalorder %s78, %s80
      %p84 = scmp.eq.s32.totalorder %s11, 0
      %p85 = por %p83, %p84
      %p86 = scmp.ne.s32.totalorder %s78, %s80
      %p87 = scmp.eq.s32.totalorder %s16, 2
      %p88 = por %p86, %p87
      %p89 = scmp.ne.s32.totalorder %s80, %s81
      %p90 = scmp.eq.s32.totalorder %s16, 0
      %p91 = por %p89, %p90
      %p92 = scmp.ne.s32.totalorder %s80, %s81
      %p93 = scmp.eq.s32.totalorder %s17, 2
      %p94 = por %p92, %p93
      %p96 = scmp.ne.s32.totalorder %s81, %s95
      %p97 = scmp.eq.s32.totalorder %s17, 0
      %p98 = por %p96, %p97
      %s99 = ssub.s32 %s19, %s26
      %p100 = scmp.eq.s32.totalorder %s99, 0
      %s102 = sadd.s32 %s101, 1
      %s103 = scalar_select %p100, %s101, %s102
      %p106 = pneg %p100
      %p107 = scmp.eq.s32.totalorder %s11, 2
      %p108 = por %p106, %p107
      %p109 = scmp.ne.s32.totalorder %s101, %s104
      %p110 = scmp.eq.s32.totalorder %s11, 0
      %p111 = por %p109, %p110
      %p112 = scmp.ne.s32.totalorder %s101, %s104
      %p113 = scmp.eq.s32.totalorder %s16, 2
      %p114 = por %p112, %p113
      %p115 = scmp.ne.s32.totalorder %s104, %s105
      %p116 = scmp.eq.s32.totalorder %s16, 0
      %p117 = por %p115, %p116
      %p118 = scmp.ne.s32.totalorder %s104, %s105
      %p119 = scmp.eq.s32.totalorder %s17, 2
      %p120 = por %p118, %p119
      %p122 = scmp.ne.s32.totalorder %s105, %s121
      %p123 = scmp.eq.s32.totalorder %s17, 0
      %p124 = por %p122, %p123
      %s125 = ssub.s32 %s19, %s26
      %p126 = scmp.eq.s32.totalorder %s125, 0
      %s128 = sadd.s32 %s127, 1
      %s129 = scalar_select %p126, %s127, %s128
      %p132 = pneg %p126
      %p133 = scmp.eq.s32.totalorder %s11, 2
      %p134 = por %p132, %p133
      %p135 = scmp.ne.s32.totalorder %s127, %s130
      %p136 = scmp.eq.s32.totalorder %s11, 0
      %p137 = por %p135, %p136
      %p138 = scmp.ne.s32.totalorder %s127, %s130
      %p139 = scmp.eq.s32.totalorder %s16, 2
      %p140 = por %p138, %p139
      %p141 = scmp.ne.s32.totalorder %s130, %s131
      %p142 = scmp.eq.s32.totalorder %s16, 0
      %p143 = por %p141, %p142
      %p144 = scmp.ne.s32.totalorder %s130, %s131
      %p145 = scmp.eq.s32.totalorder %s17, 2
      %p146 = por %p144, %p145
      %p148 = scmp.ne.s32.totalorder %s131, %s147
      %p149 = scmp.eq.s32.totalorder %s17, 0
      %p150 = por %p148, %p149
      %s151 = ssub.s32 %s18, %s30
      %s152 = ssub.s32 %s19, %s26
      %s153 = sor.u32 %s151, %s152
      %p154 = scmp.eq.s32.totalorder %s153, 0
      %s156 = sadd.s32 %s155, 1
      %s157 = scalar_select %p154, %s155, %s156
      %p160 = pneg %p154
      %p161 = scmp.eq.s32.totalorder %s11, 2
      %p162 = por %p160, %p161
      %p163 = scmp.ne.s32.totalorder %s155, %s158
      %p164 = scmp.eq.s32.totalorder %s11, 0
      %p165 = por %p163, %p164
      %p166 = scmp.ne.s32.totalorder %s155, %s158
      %p167 = scmp.eq.s32.totalorder %s16, 2
      %p168 = por %p166, %p167
      %p169 = scmp.ne.s32.totalorder %s158, %s159
      %p170 = scmp.eq.s32.totalorder %s16, 0
      %p171 = por %p169, %p170
      %p172 = scmp.ne.s32.totalorder %s158, %s159
      %p173 = scmp.eq.s32.totalorder %s17, 2
      %p174 = por %p172, %p173
      %p176 = scmp.ne.s32.totalorder %s159, %s175
      %p177 = scmp.eq.s32.totalorder %s17, 0
      %p178 = por %p176, %p177
      %p179 = scmp.le.s32.totalorder 1, %s11
      %p180 = scmp.lt.s32.totalorder %s11, 4
      %p181 = pnand %p179, %p180
      %p182 = pneg %p181
      // Predicated region
      $region9: #{closed_call.19} parent=5 // pred_check
        _
      $region10: #{closed_call.19} parent=5 // pred_check_branch
        %184 = sbr.rel (%p181) target = $region12
      $region11: #{closed_call.19} parent=5 // pred_region
        %s185 = ssub.s32 %s11, 1
        // Predicated region
        $region13: #{closed_call.19} parent=11 // pred_check
          %p186 = pneg %p49
        $region14: #{closed_call.19} parent=11 // pred_check_branch
          %188 = sbr.rel (%p186) target = $region16
        $region15: #{closed_call.19} parent=11 // pred_region
          %s189 = smul.u32 6, %s20
          %p190 = scmp.lt.s32.totalorder %s189, 5
          %s191 = scalar_select %p190, %s189, 5
          %s192 = smul.addr %s191, 3
          %s193 = smul.addr %s192, 8
          %s194 = scalar_lea.vmem %s0, %s193
          %s195 = smul.u32 6, %s20
        $region16: #{closed_call.19} parent=11 // pred_fallthru
          _
        // Predicated region
        $region17: #{closed_call.19} parent=11 // pred_check
          %p196 = pneg %p70
        $region18: #{closed_call.19} parent=11 // pred_check_branch
          %198 = sbr.rel (%p196) target = $region20
        $region19: #{closed_call.19} parent=11 // pred_region
          _
        $region20: #{closed_call.19} parent=11 // pred_fallthru
          _
        // Predicated region
        $region21: #{closed_call.19} parent=11 // pred_check
          %p199 = pneg %p91
        $region22: #{closed_call.19} parent=11 // pred_check_branch
          %201 = sbr.rel (%p199) target = $region24
        $region23: #{closed_call.19} parent=11 // pred_region
          _
        $region24: #{closed_call.19} parent=11 // pred_fallthru
          _
      $region12: #{closed_call.19} parent=5 // pred_fallthru
        _
      %p202 = scmp.lt.s32.totalorder %s11, 3
      // Predicated region
      $region25: #{closed_call.19} parent=5 // pred_check
        %p203 = pneg %p202
      $region26: #{closed_call.19} parent=5 // pred_check_branch
        %205 = sbr.rel (%p203) target = $region28
      $region27: #{closed_call.19} parent=5 // pred_region
        // Predicated region
        $region29: #{closed_call.19} parent=27 // pred_check
          %p206 = pneg %p111
        $region30: #{closed_call.19} parent=27 // pred_check_branch
          %208 = sbr.rel (%p206) target = $region32
        $region31: #{closed_call.19} parent=27 // pred_region
          %s209 = sand.u32 %s101, 1
          %s210 = sand.u32 %s101, 1
          %s211 = smul.addr %s210, 768
          %s212 = scalar_lea.vmem [#allocation2], %s211
          %s213 = smul.u32 4, %s19
          %s214 = smul.addr %s213, 4
          %s215 = scalar_lea.vmem %s3, %s214
          // Predicated region
          $region33: #{closed_call.19} parent=31 // pred_check
            _
          $region34: #{closed_call.19} parent=31 // pred_check_branch
            %217 = sbr.rel (0) target = $region36
          $region35: #{closed_call.19} parent=31 // pred_region
            // Predicated region
            $region37: #{closed_call.19} parent=35 // pred_check
              _
            $region38: #{closed_call.19} parent=35 // pred_check_branch
              %219 = sbr.rel (0) target = $region40
            $region39: #{closed_call.19} parent=35 // pred_region
              loop: start=0, step=1, limit=1
              $region41: #{closed_call.19} parent=39 // loop_pre_header
                _
              $region42: #{closed_call.19} parent=39 // loop_header
                %s221 = sphi 0, %s225
                %p222 = scmp.ge.s32.totalorder %s221, 1
                %s226 = sphi %s215, %s215
                %s227 = sphi %s212, %s212
              $region43: #{closed_call.19} parent=39 // loop_header_branch
                %224 = sbr.rel (%p222) target = $region47
              $region44: #{closed_call.19} parent=39 // loop_body
                %v228 = vld [vmem:[%s226] sm:$0xff]
                %229 = vst [vmem:[%s227] sm:$0xff] %v228
                %v230 = vld [vmem:[%s226 + $0x8] sm:$0xff]
                %231 = vst [vmem:[%s227 + $0x8] sm:$0xff] %v230
                %v232 = vld [vmem:[%s226 + $0x30] sm:$0xff]
                %233 = vst [vmem:[%s227 + $0x10] sm:$0xff] %v232
                %v234 = vld [vmem:[%s226 + $0x38] sm:$0xff]
                %235 = vst [vmem:[%s227 + $0x18] sm:$0xff] %v234
                %v236 = vld [vmem:[%s226 + $0x60] sm:$0xff]
                %237 = vst [vmem:[%s227 + $0x20] sm:$0xff] %v236
                %v238 = vld [vmem:[%s226 + $0x68] sm:$0xff]
                %239 = vst [vmem:[%s227 + $0x28] sm:$0xff] %v238
                %v240 = vld [vmem:[%s226 + $0x90] sm:$0xff]
                %241 = vst [vmem:[%s227 + $0x30] sm:$0xff] %v240
                %v242 = vld [vmem:[%s226 + $0x98] sm:$0xff]
                %243 = vst [vmem:[%s227 + $0x38] sm:$0xff] %v242
                %v244 = vld [vmem:[%s226 + $0xc0] sm:$0xff]
                %245 = vst [vmem:[%s227 + $0x40] sm:$0xff] %v244
                %v246 = vld [vmem:[%s226 + $0xc8] sm:$0xff]
                %247 = vst [vmem:[%s227 + $0x48] sm:$0xff] %v246
                %v248 = vld [vmem:[%s226 + $0xf0] sm:$0xff]
                %249 = vst [vmem:[%s227 + $0x50] sm:$0xff] %v248
                %v250 = vld [vmem:[%s226 + $0xf8] sm:$0xff]
                %251 = vst [vmem:[%s227 + $0x58] sm:$0xff] %v250
                %v252 = vld [vmem:[%s226 + $0x120] sm:$0xff]
                %253 = vst [vmem:[%s227 + $0x60] sm:$0xff] %v252
                %v254 = vld [vmem:[%s226 + $0x128] sm:$0xff]
                %255 = vst [vmem:[%s227 + $0x68] sm:$0xff] %v254
                %v256 = vld [vmem:[%s226 + $0x150] sm:$0xff]
                %257 = vst [vmem:[%s227 + $0x70] sm:$0xff] %v256
                %v258 = vld [vmem:[%s226 + $0x158] sm:$0xff]
                %259 = vst [vmem:[%s227 + $0x78] sm:$0xff] %v258
                %v260 = vld [vmem:[%s226 + $0x180] sm:$0xff]
                %261 = vst [vmem:[%s227 + $0x80] sm:$0xff] %v260
                %v262 = vld [vmem:[%s226 + $0x188] sm:$0xff]
                %263 = vst [vmem:[%s227 + $0x88] sm:$0xff] %v262
                %v264 = vld [vmem:[%s226 + $0x1b0] sm:$0xff]
                %265 = vst [vmem:[%s227 + $0x90] sm:$0xff] %v264
                %v266 = vld [vmem:[%s226 + $0x1b8] sm:$0xff]
                %267 = vst [vmem:[%s227 + $0x98] sm:$0xff] %v266
                %v268 = vld [vmem:[%s226 + $0x1e0] sm:$0xff]
                %269 = vst [vmem:[%s227 + $0xa0] sm:$0xff] %v268
                %v270 = vld [vmem:[%s226 + $0x1e8] sm:$0xff]
                %271 = vst [vmem:[%s227 + $0xa8] sm:$0xff] %v270
                %v272 = vld [vmem:[%s226 + $0x210] sm:$0xff]
                %273 = vst [vmem:[%s227 + $0xb0] sm:$0xff] %v272
                %v274 = vld [vmem:[%s226 + $0x218] sm:$0xff]
                %275 = vst [vmem:[%s227 + $0xb8] sm:$0xff] %v274
                %v276 = vld [vmem:[%s226 + $0x240] sm:$0xff]
                %277 = vst [vmem:[%s227 + $0xc0] sm:$0xff] %v276
                %v278 = vld [vmem:[%s226 + $0x248] sm:$0xff]
                %279 = vst [vmem:[%s227 + $0xc8] sm:$0xff] %v278
                %v280 = vld [vmem:[%s226 + $0x270] sm:$0xff]
                %281 = vst [vmem:[%s227 + $0xd0] sm:$0xff] %v280
                %v282 = vld [vmem:[%s226 + $0x278] sm:$0xff]
                %283 = vst [vmem:[%s227 + $0xd8] sm:$0xff] %v282
                %v284 = vld [vmem:[%s226 + $0x2a0] sm:$0xff]
                %285 = vst [vmem:[%s227 + $0xe0] sm:$0xff] %v284
                %v286 = vld [vmem:[%s226 + $0x2a8] sm:$0xff]
                %287 = vst [vmem:[%s227 + $0xe8] sm:$0xff] %v286
                %v288 = vld [vmem:[%s226 + $0x2d0] sm:$0xff]
                %289 = vst [vmem:[%s227 + $0xf0] sm:$0xff] %v288
                %v290 = vld [vmem:[%s226 + $0x2d8] sm:$0xff]
                %291 = vst [vmem:[%s227 + $0xf8] sm:$0xff] %v290
                %v292 = vld [vmem:[%s226 + $0x300] sm:$0xff]
                %293 = vst [vmem:[%s227 + $0x100] sm:$0xff] %v292
                %v294 = vld [vmem:[%s226 + $0x308] sm:$0xff]
                %295 = vst [vmem:[%s227 + $0x108] sm:$0xff] %v294
                %v296 = vld [vmem:[%s226 + $0x330] sm:$0xff]
                %297 = vst [vmem:[%s227 + $0x110] sm:$0xff] %v296
                %v298 = vld [vmem:[%s226 + $0x338] sm:$0xff]
                %299 = vst [vmem:[%s227 + $0x118] sm:$0xff] %v298
                %v300 = vld [vmem:[%s226 + $0x360] sm:$0xff]
                %301 = vst [vmem:[%s227 + $0x120] sm:$0xff] %v300
                %v302 = vld [vmem:[%s226 + $0x368] sm:$0xff]
                %303 = vst [vmem:[%s227 + $0x128] sm:$0xff] %v302
                %v304 = vld [vmem:[%s226 + $0x390] sm:$0xff]
                %305 = vst [vmem:[%s227 + $0x130] sm:$0xff] %v304
                %v306 = vld [vmem:[%s226 + $0x398] sm:$0xff]
                %307 = vst [vmem:[%s227 + $0x138] sm:$0xff] %v306
                %v308 = vld [vmem:[%s226 + $0x3c0] sm:$0xff]
                %309 = vst [vmem:[%s227 + $0x140] sm:$0xff] %v308
                %v310 = vld [vmem:[%s226 + $0x3c8] sm:$0xff]
                %311 = vst [vmem:[%s227 + $0x148] sm:$0xff] %v310
                %v312 = vld [vmem:[%s226 + $0x3f0] sm:$0xff]
                %313 = vst [vmem:[%s227 + $0x150] sm:$0xff] %v312
                %v314 = vld [vmem:[%s226 + $0x3f8] sm:$0xff]
                %315 = vst [vmem:[%s227 + $0x158] sm:$0xff] %v314
                %v316 = vld [vmem:[%s226 + $0x420] sm:$0xff]
                %317 = vst [vmem:[%s227 + $0x160] sm:$0xff] %v316
                %v318 = vld [vmem:[%s226 + $0x428] sm:$0xff]
                %319 = vst [vmem:[%s227 + $0x168] sm:$0xff] %v318
                %v320 = vld [vmem:[%s226 + $0x450] sm:$0xff]
                %321 = vst [vmem:[%s227 + $0x170] sm:$0xff] %v320
                %v322 = vld [vmem:[%s226 + $0x458] sm:$0xff]
                %323 = vst [vmem:[%s227 + $0x178] sm:$0xff] %v322
                %v324 = vld [vmem:[%s226 + $0x480] sm:$0xff]
                %325 = vst [vmem:[%s227 + $0x180] sm:$0xff] %v324
                %v326 = vld [vmem:[%s226 + $0x488] sm:$0xff]
                %327 = vst [vmem:[%s227 + $0x188] sm:$0xff] %v326
                %v328 = vld [vmem:[%s226 + $0x4b0] sm:$0xff]
                %329 = vst [vmem:[%s227 + $0x190] sm:$0xff] %v328
                %v330 = vld [vmem:[%s226 + $0x4b8] sm:$0xff]
                %331 = vst [vmem:[%s227 + $0x198] sm:$0xff] %v330
                %v332 = vld [vmem:[%s226 + $0x4e0] sm:$0xff]
                %333 = vst [vmem:[%s227 + $0x1a0] sm:$0xff] %v332
                %v334 = vld [vmem:[%s226 + $0x4e8] sm:$0xff]
                %335 = vst [vmem:[%s227 + $0x1a8] sm:$0xff] %v334
                %v336 = vld [vmem:[%s226 + $0x510] sm:$0xff]
                %337 = vst [vmem:[%s227 + $0x1b0] sm:$0xff] %v336
                %v338 = vld [vmem:[%s226 + $0x518] sm:$0xff]
                %339 = vst [vmem:[%s227 + $0x1b8] sm:$0xff] %v338
                %v340 = vld [vmem:[%s226 + $0x540] sm:$0xff]
                %341 = vst [vmem:[%s227 + $0x1c0] sm:$0xff] %v340
                %v342 = vld [vmem:[%s226 + $0x548] sm:$0xff]
                %343 = vst [vmem:[%s227 + $0x1c8] sm:$0xff] %v342
                %v344 = vld [vmem:[%s226 + $0x570] sm:$0xff]
                %345 = vst [vmem:[%s227 + $0x1d0] sm:$0xff] %v344
                %v346 = vld [vmem:[%s226 + $0x578] sm:$0xff]
                %347 = vst [vmem:[%s227 + $0x1d8] sm:$0xff] %v346
                %v348 = vld [vmem:[%s226 + $0x5a0] sm:$0xff]
                %349 = vst [vmem:[%s227 + $0x1e0] sm:$0xff] %v348
                %v350 = vld [vmem:[%s226 + $0x5a8] sm:$0xff]
                %351 = vst [vmem:[%s227 + $0x1e8] sm:$0xff] %v350
                %v352 = vld [vmem:[%s226 + $0x5d0] sm:$0xff]
                %353 = vst [vmem:[%s227 + $0x1f0] sm:$0xff] %v352
                %v354 = vld [vmem:[%s226 + $0x5d8] sm:$0xff]
                %355 = vst [vmem:[%s227 + $0x1f8] sm:$0xff] %v354
                %v356 = vld [vmem:[%s226 + $0x600] sm:$0xff]
                %357 = vst [vmem:[%s227 + $0x200] sm:$0xff] %v356
                %v358 = vld [vmem:[%s226 + $0x608] sm:$0xff]
                %359 = vst [vmem:[%s227 + $0x208] sm:$0xff] %v358
                %v360 = vld [vmem:[%s226 + $0x630] sm:$0xff]
                %361 = vst [vmem:[%s227 + $0x210] sm:$0xff] %v360
                %v362 = vld [vmem:[%s226 + $0x638] sm:$0xff]
                %363 = vst [vmem:[%s227 + $0x218] sm:$0xff] %v362
                %v364 = vld [vmem:[%s226 + $0x660] sm:$0xff]
                %365 = vst [vmem:[%s227 + $0x220] sm:$0xff] %v364
                %v366 = vld [vmem:[%s226 + $0x668] sm:$0xff]
                %367 = vst [vmem:[%s227 + $0x228] sm:$0xff] %v366
                %v368 = vld [vmem:[%s226 + $0x690] sm:$0xff]
                %369 = vst [vmem:[%s227 + $0x230] sm:$0xff] %v368
                %v370 = vld [vmem:[%s226 + $0x698] sm:$0xff]
                %371 = vst [vmem:[%s227 + $0x238] sm:$0xff] %v370
                %v372 = vld [vmem:[%s226 + $0x6c0] sm:$0xff]
                %373 = vst [vmem:[%s227 + $0x240] sm:$0xff] %v372
                %v374 = vld [vmem:[%s226 + $0x6c8] sm:$0xff]
                %375 = vst [vmem:[%s227 + $0x248] sm:$0xff] %v374
                %v376 = vld [vmem:[%s226 + $0x6f0] sm:$0xff]
                %377 = vst [vmem:[%s227 + $0x250] sm:$0xff] %v376
                %v378 = vld [vmem:[%s226 + $0x6f8] sm:$0xff]
                %379 = vst [vmem:[%s227 + $0x258] sm:$0xff] %v378
                %v380 = vld [vmem:[%s226 + $0x720] sm:$0xff]
                %381 = vst [vmem:[%s227 + $0x260] sm:$0xff] %v380
                %v382 = vld [vmem:[%s226 + $0x728] sm:$0xff]
                %383 = vst [vmem:[%s227 + $0x268] sm:$0xff] %v382
                %v384 = vld [vmem:[%s226 + $0x750] sm:$0xff]
                %385 = vst [vmem:[%s227 + $0x270] sm:$0xff] %v384
                %v386 = vld [vmem:[%s226 + $0x758] sm:$0xff]
                %387 = vst [vmem:[%s227 + $0x278] sm:$0xff] %v386
                %v388 = vld [vmem:[%s226 + $0x780] sm:$0xff]
                %389 = vst [vmem:[%s227 + $0x280] sm:$0xff] %v388
                %v390 = vld [vmem:[%s226 + $0x788] sm:$0xff]
                %391 = vst [vmem:[%s227 + $0x288] sm:$0xff] %v390
                %v392 = vld [vmem:[%s226 + $0x7b0] sm:$0xff]
                %393 = vst [vmem:[%s227 + $0x290] sm:$0xff] %v392
                %v394 = vld [vmem:[%s226 + $0x7b8] sm:$0xff]
                %395 = vst [vmem:[%s227 + $0x298] sm:$0xff] %v394
                %v396 = vld [vmem:[%s226 + $0x7e0] sm:$0xff]
                %397 = vst [vmem:[%s227 + $0x2a0] sm:$0xff] %v396
                %v398 = vld [vmem:[%s226 + $0x7e8] sm:$0xff]
                %399 = vst [vmem:[%s227 + $0x2a8] sm:$0xff] %v398
                %v400 = vld [vmem:[%s226 + $0x810] sm:$0xff]
                %401 = vst [vmem:[%s227 + $0x2b0] sm:$0xff] %v400
                %v402 = vld [vmem:[%s226 + $0x818] sm:$0xff]
                %403 = vst [vmem:[%s227 + $0x2b8] sm:$0xff] %v402
                %v404 = vld [vmem:[%s226 + $0x840] sm:$0xff]
                %405 = vst [vmem:[%s227 + $0x2c0] sm:$0xff] %v404
                %v406 = vld [vmem:[%s226 + $0x848] sm:$0xff]
                %407 = vst [vmem:[%s227 + $0x2c8] sm:$0xff] %v406
                %v408 = vld [vmem:[%s226 + $0x870] sm:$0xff]
                %409 = vst [vmem:[%s227 + $0x2d0] sm:$0xff] %v408
                %v410 = vld [vmem:[%s226 + $0x878] sm:$0xff]
                %411 = vst [vmem:[%s227 + $0x2d8] sm:$0xff] %v410
                %v412 = vld [vmem:[%s226 + $0x8a0] sm:$0xff]
                %413 = vst [vmem:[%s227 + $0x2e0] sm:$0xff] %v412
                %v414 = vld [vmem:[%s226 + $0x8a8] sm:$0xff]
                %415 = vst [vmem:[%s227 + $0x2e8] sm:$0xff] %v414
                %v416 = vld [vmem:[%s226 + $0x8d0] sm:$0xff]
                %417 = vst [vmem:[%s227 + $0x2f0] sm:$0xff] %v416
                %v418 = vld [vmem:[%s226 + $0x8d8] sm:$0xff]
                %419 = vst [vmem:[%s227 + $0x2f8] sm:$0xff] %v418
              $region45: #{closed_call.19} parent=39 // loop_footer
                %s225 = sadd.s32 1, %s221
              $region46: #{closed_call.19} parent=39 // loop_footer_branch
                %220 = sbr.rel target = $region42
              $region47: #{closed_call.19} parent=39 // loop_exit
                _
            $region40: #{closed_call.19} parent=35 // pred_fallthru
              _
            // Predicated region
            $region48: #{closed_call.19} parent=35 // pred_check
              _
            $region49: #{closed_call.19} parent=35 // pred_check_branch
              %421 = sbr.rel target = $region51
            $region50: #{closed_call.19} parent=35 // pred_region
              _
            $region51: #{closed_call.19} parent=35 // pred_fallthru
              _
          $region36: #{closed_call.19} parent=31 // pred_fallthru
            _
          %422 = vnop
        $region32: #{closed_call.19} parent=27 // pred_fallthru
          _
        // Predicated region
        $region52: #{closed_call.19} parent=27 // pred_check
          %p423 = pneg %p137
        $region53: #{closed_call.19} parent=27 // pred_check_branch
          %425 = sbr.rel (%p423) target = $region55
        $region54: #{closed_call.19} parent=27 // pred_region
          %s426 = smul.u32 4, %s19
          %p427 = scmp.lt.s32.totalorder %s426, 11
          %s428 = scalar_select %p427, %s426, 11
          %s429 = scalar_lea.vmem %s4, %s428
          %s430 = smul.u32 4, %s19
        $region55: #{closed_call.19} parent=27 // pred_fallthru
          _
      $region28: #{closed_call.19} parent=5 // pred_fallthru
        _
      %p431 = scmp.le.s32.totalorder 1, %s11
      %p432 = scmp.lt.s32.totalorder %s11, 4
      %p433 = pnand %p431, %p432
      %p434 = pneg %p433
      // Predicated region
      $region56: #{closed_call.19} parent=5 // pred_check
        _
      $region57: #{closed_call.19} parent=5 // pred_check_branch
        %436 = sbr.rel (%p433) target = $region59
      $region58: #{closed_call.19} parent=5 // pred_region
        %s437 = ssub.s32 %s11, 1
        %s438 = sand.u32 %s104, 1
        %s439 = sand.u32 %s104, 1
        %s440 = smul.addr %s439, 768
        %s441 = scalar_lea.vmem [#allocation2], %s440
        // Predicated region
        $region60: #{closed_call.19} parent=58 // pred_check
          %p442 = pneg %p117
        $region61: #{closed_call.19} parent=58 // pred_check_branch
          %444 = sbr.rel (%p442) target = $region63
        $region62: #{closed_call.19} parent=58 // pred_region
          _
        $region63: #{closed_call.19} parent=58 // pred_fallthru
          _
        %s445 = smul.u32 6, %s20
        %p446 = scmp.lt.s32.totalorder %s445, 5
        %s447 = scalar_select %p446, %s445, 5
        %s448 = smul.addr %s447, 3
        %s449 = smul.addr %s448, 8
        %s450 = scalar_lea.vmem %s0, %s449
        %p451 = pneg %p49
        %p452 = pneg %p46
        %p453 = pneg %p70
        %p454 = pneg %p67
        %p455 = pneg %p91
        %p456 = pneg %p88
        %s457 = sand.u32 %s104, 1
        %s458 = sand.u32 %s104, 1
        %s459 = smul.addr %s458, 768
        %s460 = scalar_lea.vmem [#allocation2], %s459
        %p461 = pneg %p117
        %p462 = pneg %p114
        %s463 = smul.u32 4, %s21
        %p464 = scmp.lt.s32.totalorder %s463, 11
        %s465 = scalar_select %p464, %s463, 11
        %s466 = scalar_lea.vmem %s4, %s465
        %p467 = pneg %p143
        %p468 = pneg %p140
        %p469 = pneg %p171
        %p470 = pneg %p168
        %s471 = sand.u32 %s158, 1
        %s472 = sand.u32 %s158, 1
        %s473 = smul.addr %s472, 96
        %s474 = scalar_lea.vmem [#allocation3], %s473
        %s475 = smul.u32 6, %s20
        %p476 = scmp.lt.s32.totalorder %s475, 5
        %s477 = scalar_select %p476, %s475, 5
        %s478 = smul.addr %s477, 3
        %s479 = smul.addr %s478, 8
        %s480 = scalar_lea.vmem %s0, %s479
        %s481 = smul.u32 6, %s20
        %s482 = smul.u32 4, %s21
        %s483 = smul.u32 4, %s21
        %p484 = scmp.lt.s32.totalorder %s483, 11
        %s485 = scalar_select %p484, %s483, 11
        %s486 = scalar_lea.vmem %s4, %s485
        %s487 = smul.u32 4, %s21
        %s488 = smul.u32 6, %s20
        %s489 = smul.u32 4, %s21
        %v491 = vld [vmem:[%s480] sm:$0xff]
        %v492 = vld [vmem:[%s480 + $0x8] sm:$0xff]
        %v493 = vld [vmem:[%s480 + $0x10] sm:$0xff]
        %v494 = vld [vmem:[%s480 + $0x18] sm:$0xff]
        %v495 = vld [vmem:[%s480 + $0x20] sm:$0xff]
        %v496 = vld [vmem:[%s480 + $0x28] sm:$0xff]
        %v497 = vld [vmem:[%s480 + $0x30] sm:$0xff]
        %v498 = vld [vmem:[%s480 + $0x38] sm:$0xff]
        %v499 = vld [vmem:[%s480 + $0x40] sm:$0xff]
        %v500 = vld [vmem:[%s480 + $0x48] sm:$0xff]
        %v501 = vld [vmem:[%s480 + $0x50] sm:$0xff]
        %v502 = vld [vmem:[%s480 + $0x58] sm:$0xff]
        %v503 = vld [vmem:[%s480 + $0x60] sm:$0xff]
        %v504 = vld [vmem:[%s480 + $0x68] sm:$0xff]
        %v505 = vld [vmem:[%s480 + $0x70] sm:$0xff]
        %v506 = vld [vmem:[%s480 + $0x78] sm:$0xff]
        %v507 = vld [vmem:[%s480 + $0x80] sm:$0xff]
        %v508 = vld [vmem:[%s480 + $0x88] sm:$0xff]
        %v509 = vadd.f32 %v491, %v492
        %v510 = vadd.f32 %v509, %v493
        %511 = vadd.xlane.f32.xlu0 %v510
        %v512 = vpop.xlane.xlu0 %511
        %v513 = vadd.f32 %v494, %v495
        %v514 = vadd.f32 %v513, %v496
        %515 = vadd.xlane.f32.xlu0 %v514
        %v516 = vpop.xlane.xlu0 %515
        %v517 = vadd.f32 %v497, %v498
        %v518 = vadd.f32 %v517, %v499
        %519 = vadd.xlane.f32.xlu0 %v518
        %v520 = vpop.xlane.xlu0 %519
        %v521 = vadd.f32 %v500, %v501
        %v522 = vadd.f32 %v521, %v502
        %523 = vadd.xlane.f32.xlu0 %v522
        %v524 = vpop.xlane.xlu0 %523
        %v525 = vadd.f32 %v503, %v504
        %v526 = vadd.f32 %v525, %v505
        %527 = vadd.xlane.f32.xlu0 %v526
        %v528 = vpop.xlane.xlu0 %527
        %v529 = vadd.f32 %v506, %v507
        %v530 = vadd.f32 %v529, %v508
        %531 = vadd.xlane.f32.xlu0 %v530
        %v532 = vpop.xlane.xlu0 %531
        %v533 = vrcp.pop 384.0
        %v534 = vmul.f32 %v512, %v533
        %v535 = vmul.f32 %v516, %v533
        %v536 = vmul.f32 %v520, %v533
        %v537 = vmul.f32 %v524, %v533
        %v538 = vmul.f32 %v528, %v533
        %v539 = vmul.f32 %v532, %v533
        %v540 = vsub.f32 %v491, %v534
        %v541 = vsub.f32 %v492, %v534
        %v542 = vsub.f32 %v493, %v534
        %v543 = vsub.f32 %v494, %v535
        %v544 = vsub.f32 %v495, %v535
        %v545 = vsub.f32 %v496, %v535
        %v546 = vsub.f32 %v497, %v536
        %v547 = vsub.f32 %v498, %v536
        %v548 = vsub.f32 %v499, %v536
        %v549 = vsub.f32 %v500, %v537
        %v550 = vsub.f32 %v501, %v537
        %v551 = vsub.f32 %v502, %v537
        %v552 = vsub.f32 %v503, %v538
        %v553 = vsub.f32 %v504, %v538
        %v554 = vsub.f32 %v505, %v538
        %v555 = vsub.f32 %v506, %v539
        %v556 = vsub.f32 %v507, %v539
        %v557 = vsub.f32 %v508, %v539
        %v558 = vmul.f32 %v540, %v540
        %v559 = vmul.f32 %v541, %v541
        %v560 = vmul.f32 %v542, %v542
        %v561 = vmul.f32 %v543, %v543
        %v562 = vmul.f32 %v544, %v544
        %v563 = vmul.f32 %v545, %v545
        %v564 = vmul.f32 %v546, %v546
        %v565 = vmul.f32 %v547, %v547
        %v566 = vmul.f32 %v548, %v548
        %v567 = vmul.f32 %v549, %v549
        %v568 = vmul.f32 %v550, %v550
        %v569 = vmul.f32 %v551, %v551
        %v570 = vmul.f32 %v552, %v552
        %v571 = vmul.f32 %v553, %v553
        %v572 = vmul.f32 %v554, %v554
        %v573 = vmul.f32 %v555, %v555
        %v574 = vmul.f32 %v556, %v556
        %v575 = vmul.f32 %v557, %v557
        %v576 = vadd.f32 %v558, %v559
        %v577 = vadd.f32 %v576, %v560
        %578 = vadd.xlane.f32.xlu0 %v577
        %v579 = vpop.xlane.xlu0 %578
        %v580 = vadd.f32 %v561, %v562
        %v581 = vadd.f32 %v580, %v563
        %582 = vadd.xlane.f32.xlu0 %v581
        %v583 = vpop.xlane.xlu0 %582
        %v584 = vadd.f32 %v564, %v565
        %v585 = vadd.f32 %v584, %v566
        %586 = vadd.xlane.f32.xlu0 %v585
        %v587 = vpop.xlane.xlu0 %586
        %v588 = vadd.f32 %v567, %v568
        %v589 = vadd.f32 %v588, %v569
        %590 = vadd.xlane.f32.xlu0 %v589
        %v591 = vpop.xlane.xlu0 %590
        %v592 = vadd.f32 %v570, %v571
        %v593 = vadd.f32 %v592, %v572
        %594 = vadd.xlane.f32.xlu0 %v593
        %v595 = vpop.xlane.xlu0 %594
        %v596 = vadd.f32 %v573, %v574
        %v597 = vadd.f32 %v596, %v575
        %598 = vadd.xlane.f32.xlu0 %v597
        %v599 = vpop.xlane.xlu0 %598
        %v600 = vmul.f32 %v579, %v533
        %v601 = vmul.f32 %v583, %v533
        %v602 = vmul.f32 %v587, %v533
        %v603 = vmul.f32 %v591, %v533
        %v604 = vmul.f32 %v595, %v533
        %v605 = vmul.f32 %v599, %v533
        %v606 = vadd.f32 %v600, 1e-06
        %v607 = vadd.f32 %v601, 1e-06
        %v608 = vadd.f32 %v602, 1e-06
        %v609 = vadd.f32 %v603, 1e-06
        %v610 = vadd.f32 %v604, 1e-06
        %v611 = vadd.f32 %v605, 1e-06
        %v612 = vrsqrt.pop %v606
        %v613 = vrsqrt.pop %v607
        %v614 = vrsqrt.pop %v608
        %v615 = vrsqrt.pop %v609
        %v616 = vrsqrt.pop %v610
        %v617 = vrsqrt.pop %v611
        %v618 = vmul.f32 %v540, %v612
        %v619 = vmul.f32 %v541, %v612
        %v620 = vmul.f32 %v542, %v612
        %v621 = vmul.f32 %v543, %v613
        %v622 = vmul.f32 %v544, %v613
        %v623 = vmul.f32 %v545, %v613
        %v624 = vmul.f32 %v546, %v614
        %v625 = vmul.f32 %v547, %v614
        %v626 = vmul.f32 %v548, %v614
        %v627 = vmul.f32 %v549, %v615
        %v628 = vmul.f32 %v550, %v615
        %v629 = vmul.f32 %v551, %v615
        %v630 = vmul.f32 %v552, %v616
        %v631 = vmul.f32 %v553, %v616
        %v632 = vmul.f32 %v554, %v616
        %v633 = vmul.f32 %v555, %v617
        %v634 = vmul.f32 %v556, %v617
        %v635 = vmul.f32 %v557, %v617
        %v636 = vld [vmem:[%s1] sm:$0x7]
        %v638 = vlaneseq
        %v639 = vshrl.u32 %v638, 7
        %v640 = vsub.s32 0, %v639
        %v641 = vrot.slane %v636, %v640
        %v642 = vlaneseq
        %v643 = vshrl.u32 %v642, 7
        %v644 = vsub.s32 1, %v643
        %v645 = vrot.slane %v636, %v644
        %v646 = vlaneseq
        %v647 = vshrl.u32 %v646, 7
        %v648 = vsub.s32 2, %v647
        %v649 = vrot.slane %v636, %v648
        %v653 = vmul.f32 %v618, %v641
        %v654 = vmul.f32 %v619, %v645
        %v655 = vmul.f32 %v620, %v649
        %v656 = vmul.f32 %v621, %v641
        %v657 = vmul.f32 %v622, %v645
        %v658 = vmul.f32 %v623, %v649
        %v659 = vmul.f32 %v624, %v641
        %v660 = vmul.f32 %v625, %v645
        %v661 = vmul.f32 %v626, %v649
        %v662 = vmul.f32 %v627, %v641
        %v663 = vmul.f32 %v628, %v645
        %v664 = vmul.f32 %v629, %v649
        %v665 = vmul.f32 %v630, %v641
        %v666 = vmul.f32 %v631, %v645
        %v667 = vmul.f32 %v632, %v649
        %v668 = vmul.f32 %v633, %v641
        %v669 = vmul.f32 %v634, %v645
        %v670 = vmul.f32 %v635, %v649
        %v671 = vld [vmem:[%s2] sm:$0x7]
        %v673 = vlaneseq
        %v674 = vshrl.u32 %v673, 7
        %v675 = vsub.s32 0, %v674
        %v676 = vrot.slane %v671, %v675
        %v677 = vlaneseq
        %v678 = vshrl.u32 %v677, 7
        %v679 = vsub.s32 1, %v678
        %v680 = vrot.slane %v671, %v679
        %v681 = vlaneseq
        %v682 = vshrl.u32 %v681, 7
        %v683 = vsub.s32 2, %v682
        %v684 = vrot.slane %v671, %v683
        %v688 = vadd.f32 %v653, %v676
        %v689 = vadd.f32 %v654, %v680
        %v690 = vadd.f32 %v655, %v684
        %v691 = vadd.f32 %v656, %v676
        %v692 = vadd.f32 %v657, %v680
        %v693 = vadd.f32 %v658, %v684
        %v694 = vadd.f32 %v659, %v676
        %v695 = vadd.f32 %v660, %v680
        %v696 = vadd.f32 %v661, %v684
        %v697 = vadd.f32 %v662, %v676
        %v698 = vadd.f32 %v663, %v680
        %v699 = vadd.f32 %v664, %v684
        %v700 = vadd.f32 %v665, %v676
        %v701 = vadd.f32 %v666, %v680
        %v702 = vadd.f32 %v667, %v684
        %v703 = vadd.f32 %v668, %v676
        %v704 = vadd.f32 %v669, %v680
        %v705 = vadd.f32 %v670, %v684
        %v706 = vpack.c.bf16 %v691, %v688
        %v707 = vpack.c.bf16 %v692, %v689
        %v708 = vpack.c.bf16 %v693, %v690
        %v709 = vpack.c.bf16 %v697, %v694
        %v710 = vpack.c.bf16 %v698, %v695
        %v711 = vpack.c.bf16 %v699, %v696
        %v712 = vpack.c.bf16 %v703, %v700
        %v713 = vpack.c.bf16 %v704, %v701
        %v714 = vpack.c.bf16 %v705, %v702
        %v715 = vld [vmem:[%s441] sm:$0xff]
        %v716 = vld [vmem:[%s441 + $0x8] sm:$0xff]
        %v717 = vld [vmem:[%s441 + $0x10] sm:$0xff]
        %v718 = vld [vmem:[%s441 + $0x18] sm:$0xff]
        %v719 = vld [vmem:[%s441 + $0x20] sm:$0xff]
        %v720 = vld [vmem:[%s441 + $0x28] sm:$0xff]
        %v721 = vld [vmem:[%s441 + $0x30] sm:$0xff]
        %v722 = vld [vmem:[%s441 + $0x38] sm:$0xff]
        %v723 = vld [vmem:[%s441 + $0x40] sm:$0xff]
        %v724 = vld [vmem:[%s441 + $0x48] sm:$0xff]
        %v725 = vld [vmem:[%s441 + $0x50] sm:$0xff]
        %v726 = vld [vmem:[%s441 + $0x58] sm:$0xff]
        %v727 = vld [vmem:[%s441 + $0x60] sm:$0xff]
        %v728 = vld [vmem:[%s441 + $0x68] sm:$0xff]
        %v729 = vld [vmem:[%s441 + $0x70] sm:$0xff]
        %v730 = vld [vmem:[%s441 + $0x78] sm:$0xff]
        %v731 = vld [vmem:[%s441 + $0x80] sm:$0xff]
        %v732 = vld [vmem:[%s441 + $0x88] sm:$0xff]
        %v733 = vld [vmem:[%s441 + $0x90] sm:$0xff]
        %v734 = vld [vmem:[%s441 + $0x98] sm:$0xff]
        %v735 = vld [vmem:[%s441 + $0xa0] sm:$0xff]
        %v736 = vld [vmem:[%s441 + $0xa8] sm:$0xff]
        %v737 = vld [vmem:[%s441 + $0xb0] sm:$0xff]
        %v738 = vld [vmem:[%s441 + $0xb8] sm:$0xff]
        %v739 = vld [vmem:[%s441 + $0xc0] sm:$0xff]
        %v740 = vld [vmem:[%s441 + $0xc8] sm:$0xff]
        %v741 = vld [vmem:[%s441 + $0xd0] sm:$0xff]
        %v742 = vld [vmem:[%s441 + $0xd8] sm:$0xff]
        %v743 = vld [vmem:[%s441 + $0xe0] sm:$0xff]
        %v744 = vld [vmem:[%s441 + $0xe8] sm:$0xff]
        %v745 = vld [vmem:[%s441 + $0xf0] sm:$0xff]
        %v746 = vld [vmem:[%s441 + $0xf8] sm:$0xff]
        %v747 = vld [vmem:[%s441 + $0x100] sm:$0xff]
        %v748 = vld [vmem:[%s441 + $0x108] sm:$0xff]
        %v749 = vld [vmem:[%s441 + $0x110] sm:$0xff]
        %v750 = vld [vmem:[%s441 + $0x118] sm:$0xff]
        %v751 = vld [vmem:[%s441 + $0x120] sm:$0xff]
        %v752 = vld [vmem:[%s441 + $0x128] sm:$0xff]
        %v753 = vld [vmem:[%s441 + $0x130] sm:$0xff]
        %v754 = vld [vmem:[%s441 + $0x138] sm:$0xff]
        %v755 = vld [vmem:[%s441 + $0x140] sm:$0xff]
        %v756 = vld [vmem:[%s441 + $0x148] sm:$0xff]
        %v757 = vld [vmem:[%s441 + $0x150] sm:$0xff]
        %v758 = vld [vmem:[%s441 + $0x158] sm:$0xff]
        %v759 = vld [vmem:[%s441 + $0x160] sm:$0xff]
        %v760 = vld [vmem:[%s441 + $0x168] sm:$0xff]
        %v761 = vld [vmem:[%s441 + $0x170] sm:$0xff]
        %v762 = vld [vmem:[%s441 + $0x178] sm:$0xff]
        %v763 = vld [vmem:[%s441 + $0x180] sm:$0xff]
        %v764 = vld [vmem:[%s441 + $0x188] sm:$0xff]
        %v765 = vld [vmem:[%s441 + $0x190] sm:$0xff]
        %v766 = vld [vmem:[%s441 + $0x198] sm:$0xff]
        %v767 = vld [vmem:[%s441 + $0x1a0] sm:$0xff]
        %v768 = vld [vmem:[%s441 + $0x1a8] sm:$0xff]
        %v769 = vld [vmem:[%s441 + $0x1b0] sm:$0xff]
        %v770 = vld [vmem:[%s441 + $0x1b8] sm:$0xff]
        %v771 = vld [vmem:[%s441 + $0x1c0] sm:$0xff]
        %v772 = vld [vmem:[%s441 + $0x1c8] sm:$0xff]
        %v773 = vld [vmem:[%s441 + $0x1d0] sm:$0xff]
        %v774 = vld [vmem:[%s441 + $0x1d8] sm:$0xff]
        %v775 = vld [vmem:[%s441 + $0x1e0] sm:$0xff]
        %v776 = vld [vmem:[%s441 + $0x1e8] sm:$0xff]
        %v777 = vld [vmem:[%s441 + $0x1f0] sm:$0xff]
        %v778 = vld [vmem:[%s441 + $0x1f8] sm:$0xff]
        %v779 = vld [vmem:[%s441 + $0x200] sm:$0xff]
        %v780 = vld [vmem:[%s441 + $0x208] sm:$0xff]
        %v781 = vld [vmem:[%s441 + $0x210] sm:$0xff]
        %v782 = vld [vmem:[%s441 + $0x218] sm:$0xff]
        %v783 = vld [vmem:[%s441 + $0x220] sm:$0xff]
        %v784 = vld [vmem:[%s441 + $0x228] sm:$0xff]
        %v785 = vld [vmem:[%s441 + $0x230] sm:$0xff]
        %v786 = vld [vmem:[%s441 + $0x238] sm:$0xff]
        %v787 = vld [vmem:[%s441 + $0x240] sm:$0xff]
        %v788 = vld [vmem:[%s441 + $0x248] sm:$0xff]
        %v789 = vld [vmem:[%s441 + $0x250] sm:$0xff]
        %v790 = vld [vmem:[%s441 + $0x258] sm:$0xff]
        %v791 = vld [vmem:[%s441 + $0x260] sm:$0xff]
        %v792 = vld [vmem:[%s441 + $0x268] sm:$0xff]
        %v793 = vld [vmem:[%s441 + $0x270] sm:$0xff]
        %v794 = vld [vmem:[%s441 + $0x278] sm:$0xff]
        %v795 = vld [vmem:[%s441 + $0x280] sm:$0xff]
        %v796 = vld [vmem:[%s441 + $0x288] sm:$0xff]
        %v797 = vld [vmem:[%s441 + $0x290] sm:$0xff]
        %v798 = vld [vmem:[%s441 + $0x298] sm:$0xff]
        %v799 = vld [vmem:[%s441 + $0x2a0] sm:$0xff]
        %v800 = vld [vmem:[%s441 + $0x2a8] sm:$0xff]
        %v801 = vld [vmem:[%s441 + $0x2b0] sm:$0xff]
        %v802 = vld [vmem:[%s441 + $0x2b8] sm:$0xff]
        %v803 = vld [vmem:[%s441 + $0x2c0] sm:$0xff]
        %v804 = vld [vmem:[%s441 + $0x2c8] sm:$0xff]
        %v805 = vld [vmem:[%s441 + $0x2d0] sm:$0xff]
        %v806 = vld [vmem:[%s441 + $0x2d8] sm:$0xff]
        %v807 = vld [vmem:[%s441 + $0x2e0] sm:$0xff]
        %v808 = vld [vmem:[%s441 + $0x2e8] sm:$0xff]
        %v809 = vld [vmem:[%s441 + $0x2f0] sm:$0xff]
        %v810 = vld [vmem:[%s441 + $0x2f8] sm:$0xff]
        %v811 = vld [vmem:[%s486] sm:$0xf]
        %v813 = vlaneseq
        %v814 = vshrl.u32 %v813, 7
        %v815 = vsub.s32 0, %v814
        %v816 = vrot.slane %v811, %v815
        %v817 = vlaneseq
        %v818 = vshrl.u32 %v817, 7
        %v819 = vsub.s32 1, %v818
        %v820 = vrot.slane %v811, %v819
        %v821 = vlaneseq
        %v822 = vshrl.u32 %v821, 7
        %v823 = vsub.s32 2, %v822
        %v824 = vrot.slane %v811, %v823
        %v825 = vlaneseq
        %v826 = vshrl.u32 %v825, 7
        %v827 = vsub.s32 3, %v826
        %v828 = vrot.slane %v811, %v827
        %v929 = vunpack.c.l.b16 %v715
        %v930 = vunpack.c.h.b16 %v715
        %v931 = vunpack.c.l.b16 %v716
        %v932 = vunpack.c.h.b16 %v716
        %v933 = vunpack.c.l.b16 %v717
        %v934 = vunpack.c.h.b16 %v717
        %v935 = vunpack.c.l.b16 %v718
        %v936 = vunpack.c.h.b16 %v718
        %v937 = vunpack.c.l.b16 %v719
        %v938 = vunpack.c.h.b16 %v719
        %v939 = vunpack.c.l.b16 %v720
        %v940 = vunpack.c.h.b16 %v720
        %v941 = vunpack.c.l.b16 %v721
        %v942 = vunpack.c.h.b16 %v721
        %v943 = vunpack.c.l.b16 %v722
        %v944 = vunpack.c.h.b16 %v722
        %v945 = vunpack.c.l.b16 %v723
        %v946 = vunpack.c.h.b16 %v723
        %v947 = vunpack.c.l.b16 %v724
        %v948 = vunpack.c.h.b16 %v724
        %v949 = vunpack.c.l.b16 %v725
        %v950 = vunpack.c.h.b16 %v725
        %v951 = vunpack.c.l.b16 %v726
        %v952 = vunpack.c.h.b16 %v726
        %v953 = vunpack.c.l.b16 %v727
        %v954 = vunpack.c.h.b16 %v727
        %v955 = vunpack.c.l.b16 %v728
        %v956 = vunpack.c.h.b16 %v728
        %v957 = vunpack.c.l.b16 %v729
        %v958 = vunpack.c.h.b16 %v729
        %v959 = vunpack.c.l.b16 %v730
        %v960 = vunpack.c.h.b16 %v730
        %v961 = vunpack.c.l.b16 %v731
        %v962 = vunpack.c.h.b16 %v731
        %v963 = vunpack.c.l.b16 %v732
        %v964 = vunpack.c.h.b16 %v732
        %v965 = vunpack.c.l.b16 %v733
        %v966 = vunpack.c.h.b16 %v733
        %v967 = vunpack.c.l.b16 %v734
        %v968 = vunpack.c.h.b16 %v734
        %v969 = vunpack.c.l.b16 %v735
        %v970 = vunpack.c.h.b16 %v735
        %v971 = vunpack.c.l.b16 %v736
        %v972 = vunpack.c.h.b16 %v736
        %v973 = vunpack.c.l.b16 %v737
        %v974 = vunpack.c.h.b16 %v737
        %v975 = vunpack.c.l.b16 %v738
        %v976 = vunpack.c.h.b16 %v738
        %v977 = vunpack.c.l.b16 %v739
        %v978 = vunpack.c.h.b16 %v739
        %v979 = vunpack.c.l.b16 %v740
        %v980 = vunpack.c.h.b16 %v740
        %v981 = vunpack.c.l.b16 %v741
        %v982 = vunpack.c.h.b16 %v741
        %v983 = vunpack.c.l.b16 %v742
        %v984 = vunpack.c.h.b16 %v742
        %v985 = vunpack.c.l.b16 %v743
        %v986 = vunpack.c.h.b16 %v743
        %v987 = vunpack.c.l.b16 %v744
        %v988 = vunpack.c.h.b16 %v744
        %v989 = vunpack.c.l.b16 %v745
        %v990 = vunpack.c.h.b16 %v745
        %v991 = vunpack.c.l.b16 %v746
        %v992 = vunpack.c.h.b16 %v746
        %v993 = vunpack.c.l.b16 %v747
        %v994 = vunpack.c.h.b16 %v747
        %v995 = vunpack.c.l.b16 %v748
        %v996 = vunpack.c.h.b16 %v748
        %v997 = vunpack.c.l.b16 %v749
        %v998 = vunpack.c.h.b16 %v749
        %v999 = vunpack.c.l.b16 %v750
        %v1000 = vunpack.c.h.b16 %v750
        %v1001 = vunpack.c.l.b16 %v751
        %v1002 = vunpack.c.h.b16 %v751
        %v1003 = vunpack.c.l.b16 %v752
        %v1004 = vunpack.c.h.b16 %v752
        %v1005 = vunpack.c.l.b16 %v753
        %v1006 = vunpack.c.h.b16 %v753
        %v1007 = vunpack.c.l.b16 %v754
        %v1008 = vunpack.c.h.b16 %v754
        %v1009 = vunpack.c.l.b16 %v755
        %v1010 = vunpack.c.h.b16 %v755
        %v1011 = vunpack.c.l.b16 %v756
        %v1012 = vunpack.c.h.b16 %v756
        %v1013 = vunpack.c.l.b16 %v757
        %v1014 = vunpack.c.h.b16 %v757
        %v1015 = vunpack.c.l.b16 %v758
        %v1016 = vunpack.c.h.b16 %v758
        %v1017 = vunpack.c.l.b16 %v759
        %v1018 = vunpack.c.h.b16 %v759
        %v1019 = vunpack.c.l.b16 %v760
        %v1020 = vunpack.c.h.b16 %v760
        %v1021 = vunpack.c.l.b16 %v761
        %v1022 = vunpack.c.h.b16 %v761
        %v1023 = vunpack.c.l.b16 %v762
        %v1024 = vunpack.c.h.b16 %v762
        %v1025 = vunpack.c.l.b16 %v763
        %v1026 = vunpack.c.h.b16 %v763
        %v1027 = vunpack.c.l.b16 %v764
        %v1028 = vunpack.c.h.b16 %v764
        %v1029 = vunpack.c.l.b16 %v765
        %v1030 = vunpack.c.h.b16 %v765
        %v1031 = vunpack.c.l.b16 %v766
        %v1032 = vunpack.c.h.b16 %v766
        %v1033 = vunpack.c.l.b16 %v767
        %v1034 = vunpack.c.h.b16 %v767
        %v1035 = vunpack.c.l.b16 %v768
        %v1036 = vunpack.c.h.b16 %v768
        %v1037 = vunpack.c.l.b16 %v769
        %v1038 = vunpack.c.h.b16 %v769
        %v1039 = vunpack.c.l.b16 %v770
        %v1040 = vunpack.c.h.b16 %v770
        %v1041 = vunpack.c.l.b16 %v771
        %v1042 = vunpack.c.h.b16 %v771
        %v1043 = vunpack.c.l.b16 %v772
        %v1044 = vunpack.c.h.b16 %v772
        %v1045 = vunpack.c.l.b16 %v773
        %v1046 = vunpack.c.h.b16 %v773
        %v1047 = vunpack.c.l.b16 %v774
        %v1048 = vunpack.c.h.b16 %v774
        %v1049 = vunpack.c.l.b16 %v775
        %v1050 = vunpack.c.h.b16 %v775
        %v1051 = vunpack.c.l.b16 %v776
        %v1052 = vunpack.c.h.b16 %v776
        %v1053 = vunpack.c.l.b16 %v777
        %v1054 = vunpack.c.h.b16 %v777
        %v1055 = vunpack.c.l.b16 %v778
        %v1056 = vunpack.c.h.b16 %v778
        %v1057 = vunpack.c.l.b16 %v779
        %v1058 = vunpack.c.h.b16 %v779
        %v1059 = vunpack.c.l.b16 %v780
        %v1060 = vunpack.c.h.b16 %v780
        %v1061 = vunpack.c.l.b16 %v781
        %v1062 = vunpack.c.h.b16 %v781
        %v1063 = vunpack.c.l.b16 %v782
        %v1064 = vunpack.c.h.b16 %v782
        %v1065 = vunpack.c.l.b16 %v783
        %v1066 = vunpack.c.h.b16 %v783
        %v1067 = vunpack.c.l.b16 %v784
        %v1068 = vunpack.c.h.b16 %v784
        %v1069 = vunpack.c.l.b16 %v785
        %v1070 = vunpack.c.h.b16 %v785
        %v1071 = vunpack.c.l.b16 %v786
        %v1072 = vunpack.c.h.b16 %v786
        %v1073 = vunpack.c.l.b16 %v787
        %v1074 = vunpack.c.h.b16 %v787
        %v1075 = vunpack.c.l.b16 %v788
        %v1076 = vunpack.c.h.b16 %v788
        %v1077 = vunpack.c.l.b16 %v789
        %v1078 = vunpack.c.h.b16 %v789
        %v1079 = vunpack.c.l.b16 %v790
        %v1080 = vunpack.c.h.b16 %v790
        %v1081 = vunpack.c.l.b16 %v791
        %v1082 = vunpack.c.h.b16 %v791
        %v1083 = vunpack.c.l.b16 %v792
        %v1084 = vunpack.c.h.b16 %v792
        %v1085 = vunpack.c.l.b16 %v793
        %v1086 = vunpack.c.h.b16 %v793
        %v1087 = vunpack.c.l.b16 %v794
        %v1088 = vunpack.c.h.b16 %v794
        %v1089 = vunpack.c.l.b16 %v795
        %v1090 = vunpack.c.h.b16 %v795
        %v1091 = vunpack.c.l.b16 %v796
        %v1092 = vunpack.c.h.b16 %v796
        %v1093 = vunpack.c.l.b16 %v797
        %v1094 = vunpack.c.h.b16 %v797
        %v1095 = vunpack.c.l.b16 %v798
        %v1096 = vunpack.c.h.b16 %v798
        %v1097 = vunpack.c.l.b16 %v799
        %v1098 = vunpack.c.h.b16 %v799
        %v1099 = vunpack.c.l.b16 %v800
        %v1100 = vunpack.c.h.b16 %v800
        %v1101 = vunpack.c.l.b16 %v801
        %v1102 = vunpack.c.h.b16 %v801
        %v1103 = vunpack.c.l.b16 %v802
        %v1104 = vunpack.c.h.b16 %v802
        %v1105 = vunpack.c.l.b16 %v803
        %v1106 = vunpack.c.h.b16 %v803
        %v1107 = vunpack.c.l.b16 %v804
        %v1108 = vunpack.c.h.b16 %v804
        %v1109 = vunpack.c.l.b16 %v805
        %v1110 = vunpack.c.h.b16 %v805
        %v1111 = vunpack.c.l.b16 %v806
        %v1112 = vunpack.c.h.b16 %v806
        %v1113 = vunpack.c.l.b16 %v807
        %v1114 = vunpack.c.h.b16 %v807
        %v1115 = vunpack.c.l.b16 %v808
        %v1116 = vunpack.c.h.b16 %v808
        %v1117 = vunpack.c.l.b16 %v809
        %v1118 = vunpack.c.h.b16 %v809
        %v1119 = vunpack.c.l.b16 %v810
        %v1120 = vunpack.c.h.b16 %v810
        %v1121 = vpack.c.b16 %v933, %v929
        %v1122 = vpack.c.b16 %v934, %v930
        %v1123 = vpack.c.b16 %v935, %v931
        %v1124 = vpack.c.b16 %v936, %v932
        %v1125 = vpack.c.b16 %v941, %v937
        %v1126 = vpack.c.b16 %v942, %v938
        %v1127 = vpack.c.b16 %v943, %v939
        %v1128 = vpack.c.b16 %v944, %v940
        %v1129 = vpack.c.b16 %v949, %v945
        %v1130 = vpack.c.b16 %v950, %v946
        %v1131 = vpack.c.b16 %v951, %v947
        %v1132 = vpack.c.b16 %v952, %v948
        %v1133 = vpack.c.b16 %v957, %v953
        %v1134 = vpack.c.b16 %v958, %v954
        %v1135 = vpack.c.b16 %v959, %v955
        %v1136 = vpack.c.b16 %v960, %v956
        %v1137 = vpack.c.b16 %v965, %v961
        %v1138 = vpack.c.b16 %v966, %v962
        %v1139 = vpack.c.b16 %v967, %v963
        %v1140 = vpack.c.b16 %v968, %v964
        %v1141 = vpack.c.b16 %v973, %v969
        %v1142 = vpack.c.b16 %v974, %v970
        %v1143 = vpack.c.b16 %v975, %v971
        %v1144 = vpack.c.b16 %v976, %v972
        %v1145 = vpack.c.b16 %v981, %v977
        %v1146 = vpack.c.b16 %v982, %v978
        %v1147 = vpack.c.b16 %v983, %v979
        %v1148 = vpack.c.b16 %v984, %v980
        %v1149 = vpack.c.b16 %v989, %v985
        %v1150 = vpack.c.b16 %v990, %v986
        %v1151 = vpack.c.b16 %v991, %v987
        %v1152 = vpack.c.b16 %v992, %v988
        %v1153 = vpack.c.b16 %v997, %v993
        %v1154 = vpack.c.b16 %v998, %v994
        %v1155 = vpack.c.b16 %v999, %v995
        %v1156 = vpack.c.b16 %v1000, %v996
        %v1157 = vpack.c.b16 %v1005, %v1001
        %v1158 = vpack.c.b16 %v1006, %v1002
        %v1159 = vpack.c.b16 %v1007, %v1003
        %v1160 = vpack.c.b16 %v1008, %v1004
        %v1161 = vpack.c.b16 %v1013, %v1009
        %v1162 = vpack.c.b16 %v1014, %v1010
        %v1163 = vpack.c.b16 %v1015, %v1011
        %v1164 = vpack.c.b16 %v1016, %v1012
        %v1165 = vpack.c.b16 %v1021, %v1017
        %v1166 = vpack.c.b16 %v1022, %v1018
        %v1167 = vpack.c.b16 %v1023, %v1019
        %v1168 = vpack.c.b16 %v1024, %v1020
        %v1169 = vpack.c.b16 %v1029, %v1025
        %v1170 = vpack.c.b16 %v1030, %v1026
        %v1171 = vpack.c.b16 %v1031, %v1027
        %v1172 = vpack.c.b16 %v1032, %v1028
        %v1173 = vpack.c.b16 %v1037, %v1033
        %v1174 = vpack.c.b16 %v1038, %v1034
        %v1175 = vpack.c.b16 %v1039, %v1035
        %v1176 = vpack.c.b16 %v1040, %v1036
        %v1177 = vpack.c.b16 %v1045, %v1041
        %v1178 = vpack.c.b16 %v1046, %v1042
        %v1179 = vpack.c.b16 %v1047, %v1043
        %v1180 = vpack.c.b16 %v1048, %v1044
        %v1181 = vpack.c.b16 %v1053, %v1049
        %v1182 = vpack.c.b16 %v1054, %v1050
        %v1183 = vpack.c.b16 %v1055, %v1051
        %v1184 = vpack.c.b16 %v1056, %v1052
        %v1185 = vpack.c.b16 %v1061, %v1057
        %v1186 = vpack.c.b16 %v1062, %v1058
        %v1187 = vpack.c.b16 %v1063, %v1059
        %v1188 = vpack.c.b16 %v1064, %v1060
        %v1189 = vpack.c.b16 %v1069, %v1065
        %v1190 = vpack.c.b16 %v1070, %v1066
        %v1191 = vpack.c.b16 %v1071, %v1067
        %v1192 = vpack.c.b16 %v1072, %v1068
        %v1193 = vpack.c.b16 %v1077, %v1073
        %v1194 = vpack.c.b16 %v1078, %v1074
        %v1195 = vpack.c.b16 %v1079, %v1075
        %v1196 = vpack.c.b16 %v1080, %v1076
        %v1197 = vpack.c.b16 %v1085, %v1081
        %v1198 = vpack.c.b16 %v1086, %v1082
        %v1199 = vpack.c.b16 %v1087, %v1083
        %v1200 = vpack.c.b16 %v1088, %v1084
        %v1201 = vpack.c.b16 %v1093, %v1089
        %v1202 = vpack.c.b16 %v1094, %v1090
        %v1203 = vpack.c.b16 %v1095, %v1091
        %v1204 = vpack.c.b16 %v1096, %v1092
        %v1205 = vpack.c.b16 %v1101, %v1097
        %v1206 = vpack.c.b16 %v1102, %v1098
        %v1207 = vpack.c.b16 %v1103, %v1099
        %v1208 = vpack.c.b16 %v1104, %v1100
        %v1209 = vpack.c.b16 %v1109, %v1105
        %v1210 = vpack.c.b16 %v1110, %v1106
        %v1211 = vpack.c.b16 %v1111, %v1107
        %v1212 = vpack.c.b16 %v1112, %v1108
        %v1213 = vpack.c.b16 %v1117, %v1113
        %v1214 = vpack.c.b16 %v1118, %v1114
        %v1215 = vpack.c.b16 %v1119, %v1115
        %v1216 = vpack.c.b16 %v1120, %v1116
        %1313 = vmatprep.subr.bf16.mxu0 %v1150
        %1314 = vmatpush1.bf16.msra.mxu0 %v1149
        %1315 = vmatprep.subr.bf16.mxu0 %v1146
        %1316 = vmatpush1.bf16.msra.mxu0 %v1145
        %1317 = vmatprep.subr.bf16.mxu0 %v1142
        %1318 = vmatpush1.bf16.msra.mxu0 %v1141
        %1319 = vmatprep.subr.bf16.mxu0 %v1138
        %1320 = vmatpush1.bf16.msra.mxu0 %v1137
        %1321 = vmatprep.subr.bf16.mxu0 %v1134
        %1322 = vmatpush1.bf16.msra.mxu0 %v1133
        %1323 = vmatprep.subr.bf16.mxu0 %v1130
        %1324 = vmatpush1.bf16.msra.mxu0 %v1129
        %1325 = vmatprep.subr.bf16.mxu0 %v1126
        %1326 = vmatpush1.bf16.msra.mxu0 %v1125
        %1327 = vmatprep.subr.bf16.mxu0 %v1122
        %1328 = vmatpush1.bf16.msra.mxu0 %v1121
        %1329 = vmatprep.subr.bf16.mxu0 %v1182
        %1330 = vmatpush2.bf16.msra.mxu0 %v1181
        %1331 = vmatprep.subr.bf16.mxu0 %v1178
        %1332 = vmatpush2.bf16.msra.mxu0 %v1177
        %1333 = vmatprep.subr.bf16.mxu0 %v1174
        %1334 = vmatpush2.bf16.msra.mxu0 %v1173
        %1335 = vmatprep.subr.bf16.mxu0 %v1170
        %1336 = vmatpush2.bf16.msra.mxu0 %v1169
        %1337 = vmatprep.subr.bf16.mxu0 %v1166
        %1338 = vmatpush2.bf16.msra.mxu0 %v1165
        %1339 = vmatprep.subr.bf16.mxu0 %v1162
        %1340 = vmatpush2.bf16.msra.mxu0 %v1161
        %1341 = vmatprep.subr.bf16.mxu0 %v1158
        %1342 = vmatpush2.bf16.msra.mxu0 %v1157
        %1343 = vmatprep.subr.bf16.mxu0 %v1154
        %1344 = vmatpush2.bf16.msra.mxu0 %v1153
        %1345 = vmatprep.mubr.bf16.mxu0 %v707
        %1346 = vmatmul.mubr.bf16.gmra.mxu0 %v706
        %v1347 = vpop.f32.mrf.mxu0
        %v1348 = vadd.f32 %v816, %v1347
        %v1349 = vpop.f32.mrf.mxu0
        %v1350 = vadd.f32 %v820, %v1349
        %v1351 = vpop.f32.mrf.mxu0
        %v1352 = vadd.f32 %v816, %v1351
        %v1353 = vpop.f32.mrf.mxu0
        %v1354 = vadd.f32 %v820, %v1353
        %1355 = vmatprep.mubr.bf16.mxu0 %v710
        %1356 = vmatmul.mubr.bf16.gmra.mxu0 %v709
        %v1357 = vpop.f32.mrf.mxu0
        %v1358 = vadd.f32 %v816, %v1357
        %v1359 = vpop.f32.mrf.mxu0
        %v1360 = vadd.f32 %v820, %v1359
        %v1361 = vpop.f32.mrf.mxu0
        %v1362 = vadd.f32 %v816, %v1361
        %v1363 = vpop.f32.mrf.mxu0
        %v1364 = vadd.f32 %v820, %v1363
        %1365 = vmatprep.mubr.bf16.mxu0 %v713
        %1366 = vmatmul.mubr.bf16.gmra.mxu0 %v712
        %v1367 = vpop.f32.mrf.mxu0
        %v1368 = vadd.f32 %v816, %v1367
        %v1369 = vpop.f32.mrf.mxu0
        %v1370 = vadd.f32 %v820, %v1369
        %v1371 = vpop.f32.mrf.mxu0
        %v1372 = vadd.f32 %v816, %v1371
        %v1373 = vpop.f32.mrf.mxu0
        %v1374 = vadd.f32 %v820, %v1373
        %1375 = vdwg.mxu0
        %1376 = vmatprep.subr.bf16.mxu0 %v1214
        %1377 = vmatpush1.bf16.msra.mxu0 %v1213
        %1378 = vmatprep.subr.bf16.mxu0 %v1210
        %1379 = vmatpush1.bf16.msra.mxu0 %v1209
        %1380 = vmatprep.subr.bf16.mxu0 %v1206
        %1381 = vmatpush1.bf16.msra.mxu0 %v1205
        %1382 = vmatprep.subr.bf16.mxu0 %v1202
        %1383 = vmatpush1.bf16.msra.mxu0 %v1201
        %1384 = vmatprep.subr.bf16.mxu0 %v1198
        %1385 = vmatpush1.bf16.msra.mxu0 %v1197
        %1386 = vmatprep.subr.bf16.mxu0 %v1194
        %1387 = vmatpush1.bf16.msra.mxu0 %v1193
        %1388 = vmatprep.subr.bf16.mxu0 %v1190
        %1389 = vmatpush1.bf16.msra.mxu0 %v1189
        %1390 = vmatprep.subr.bf16.mxu0 %v1186
        %1391 = vmatpush1.bf16.msra.mxu0 %v1185
        %1392 = vmatprep.subr.bf16.mxu0 0
        %1393 = vmatpush2.bf16.msra.mxu0 0
        %1394 = vmatprep.subr.bf16.mxu0 0
        %1395 = vmatpush2.bf16.msra.mxu0 0
        %1396 = vmatprep.subr.bf16.mxu0 0
        %1397 = vmatpush2.bf16.msra.mxu0 0
        %1398 = vmatprep.subr.bf16.mxu0 0
        %1399 = vmatpush2.bf16.msra.mxu0 0
        %1400 = vmatprep.subr.bf16.mxu0 0
        %1401 = vmatpush2.bf16.msra.mxu0 0
        %1402 = vmatprep.subr.bf16.mxu0 0
        %1403 = vmatpush2.bf16.msra.mxu0 0
        %1404 = vmatprep.subr.bf16.mxu0 0
        %1405 = vmatpush2.bf16.msra.mxu0 0
        %1406 = vmatprep.subr.bf16.mxu0 0
        %1407 = vmatpush2.bf16.msra.mxu0 0
        %1408 = vmatprep.mubr.bf16.mxu0 0
        %1409 = vmatmul.mubr.bf16.gmra.mxu0 %v708
        %v1410 = vpop.f32.mrf.mxu0
        %v1411 = vadd.f32 %v1348, %v1410
        %v1412 = vpop.f32.mrf.mxu0
        %v1413 = vadd.f32 %v1350, %v1412
        %v1414 = vpop.f32.mrf.mxu0
        %v1415 = vadd.f32 %v1352, %v1414
        %v1416 = vpop.f32.mrf.mxu0
        %v1417 = vadd.f32 %v1354, %v1416
        %1418 = vmatprep.mubr.bf16.mxu0 0
        %1419 = vmatmul.mubr.bf16.gmra.mxu0 %v711
        %v1420 = vpop.f32.mrf.mxu0
        %v1421 = vadd.f32 %v1358, %v1420
        %v1422 = vpop.f32.mrf.mxu0
        %v1423 = vadd.f32 %v1360, %v1422
        %v1424 = vpop.f32.mrf.mxu0
        %v1425 = vadd.f32 %v1362, %v1424
        %v1426 = vpop.f32.mrf.mxu0
        %v1427 = vadd.f32 %v1364, %v1426
        %1428 = vmatprep.mubr.bf16.mxu0 0
        %1429 = vmatmul.mubr.bf16.gmra.mxu0 %v714
        %v1430 = vpop.f32.mrf.mxu0
        %v1431 = vadd.f32 %v1368, %v1430
        %v1432 = vpop.f32.mrf.mxu0
        %v1433 = vadd.f32 %v1370, %v1432
        %v1434 = vpop.f32.mrf.mxu0
        %v1435 = vadd.f32 %v1372, %v1434
        %v1436 = vpop.f32.mrf.mxu0
        %v1437 = vadd.f32 %v1374, %v1436
        %1438 = vdwg.mxu0
        %1439 = vmatprep.subr.bf16.mxu0 %v1152
        %1440 = vmatpush1.bf16.msra.mxu0 %v1151
        %1441 = vmatprep.subr.bf16.mxu0 %v1148
        %1442 = vmatpush1.bf16.msra.mxu0 %v1147
        %1443 = vmatprep.subr.bf16.mxu0 %v1144
        %1444 = vmatpush1.bf16.msra.mxu0 %v1143
        %1445 = vmatprep.subr.bf16.mxu0 %v1140
        %1446 = vmatpush1.bf16.msra.mxu0 %v1139
        %1447 = vmatprep.subr.bf16.mxu0 %v1136
        %1448 = vmatpush1.bf16.msra.mxu0 %v1135
        %1449 = vmatprep.subr.bf16.mxu0 %v1132
        %1450 = vmatpush1.bf16.msra.mxu0 %v1131
        %1451 = vmatprep.subr.bf16.mxu0 %v1128
        %1452 = vmatpush1.bf16.msra.mxu0 %v1127
        %1453 = vmatprep.subr.bf16.mxu0 %v1124
        %1454 = vmatpush1.bf16.msra.mxu0 %v1123
        %1455 = vmatprep.subr.bf16.mxu0 %v1184
        %1456 = vmatpush2.bf16.msra.mxu0 %v1183
        %1457 = vmatprep.subr.bf16.mxu0 %v1180
        %1458 = vmatpush2.bf16.msra.mxu0 %v1179
        %1459 = vmatprep.subr.bf16.mxu0 %v1176
        %1460 = vmatpush2.bf16.msra.mxu0 %v1175
        %1461 = vmatprep.subr.bf16.mxu0 %v1172
        %1462 = vmatpush2.bf16.msra.mxu0 %v1171
        %1463 = vmatprep.subr.bf16.mxu0 %v1168
        %1464 = vmatpush2.bf16.msra.mxu0 %v1167
        %1465 = vmatprep.subr.bf16.mxu0 %v1164
        %1466 = vmatpush2.bf16.msra.mxu0 %v1163
        %1467 = vmatprep.subr.bf16.mxu0 %v1160
        %1468 = vmatpush2.bf16.msra.mxu0 %v1159
        %1469 = vmatprep.subr.bf16.mxu0 %v1156
        %1470 = vmatpush2.bf16.msra.mxu0 %v1155
        %1471 = vmatprep.mubr.bf16.mxu0 %v707
        %1472 = vmatmul.mubr.bf16.gmra.mxu0 %v706
        %v1473 = vpop.f32.mrf.mxu0
        %v1474 = vadd.f32 %v824, %v1473
        %v1475 = vpop.f32.mrf.mxu0
        %v1476 = vadd.f32 %v828, %v1475
        %v1477 = vpop.f32.mrf.mxu0
        %v1478 = vadd.f32 %v824, %v1477
        %v1479 = vpop.f32.mrf.mxu0
        %v1480 = vadd.f32 %v828, %v1479
        %1481 = vmatprep.mubr.bf16.mxu0 %v710
        %1482 = vmatmul.mubr.bf16.gmra.mxu0 %v709
        %v1483 = vpop.f32.mrf.mxu0
        %v1484 = vadd.f32 %v824, %v1483
        %v1485 = vpop.f32.mrf.mxu0
        %v1486 = vadd.f32 %v828, %v1485
        %v1487 = vpop.f32.mrf.mxu0
        %v1488 = vadd.f32 %v824, %v1487
        %v1489 = vpop.f32.mrf.mxu0
        %v1490 = vadd.f32 %v828, %v1489
        %1491 = vmatprep.mubr.bf16.mxu0 %v713
        %1492 = vmatmul.mubr.bf16.gmra.mxu0 %v712
        %v1493 = vpop.f32.mrf.mxu0
        %v1494 = vadd.f32 %v824, %v1493
        %v1495 = vpop.f32.mrf.mxu0
        %v1496 = vadd.f32 %v828, %v1495
        %v1497 = vpop.f32.mrf.mxu0
        %v1498 = vadd.f32 %v824, %v1497
        %v1499 = vpop.f32.mrf.mxu0
        %v1500 = vadd.f32 %v828, %v1499
        %1501 = vdwg.mxu0
        %1502 = vmatprep.subr.bf16.mxu0 %v1216
        %1503 = vmatpush1.bf16.msra.mxu0 %v1215
        %1504 = vmatprep.subr.bf16.mxu0 %v1212
        %1505 = vmatpush1.bf16.msra.mxu0 %v1211
        %1506 = vmatprep.subr.bf16.mxu0 %v1208
        %1507 = vmatpush1.bf16.msra.mxu0 %v1207
        %1508 = vmatprep.subr.bf16.mxu0 %v1204
        %1509 = vmatpush1.bf16.msra.mxu0 %v1203
        %1510 = vmatprep.subr.bf16.mxu0 %v1200
        %1511 = vmatpush1.bf16.msra.mxu0 %v1199
        %1512 = vmatprep.subr.bf16.mxu0 %v1196
        %1513 = vmatpush1.bf16.msra.mxu0 %v1195
        %1514 = vmatprep.subr.bf16.mxu0 %v1192
        %1515 = vmatpush1.bf16.msra.mxu0 %v1191
        %1516 = vmatprep.subr.bf16.mxu0 %v1188
        %1517 = vmatpush1.bf16.msra.mxu0 %v1187
        %1518 = vmatprep.subr.bf16.mxu0 0
        %1519 = vmatpush2.bf16.msra.mxu0 0
        %1520 = vmatprep.subr.bf16.mxu0 0
        %1521 = vmatpush2.bf16.msra.mxu0 0
        %1522 = vmatprep.subr.bf16.mxu0 0
        %1523 = vmatpush2.bf16.msra.mxu0 0
        %1524 = vmatprep.subr.bf16.mxu0 0
        %1525 = vmatpush2.bf16.msra.mxu0 0
        %1526 = vmatprep.subr.bf16.mxu0 0
        %1527 = vmatpush2.bf16.msra.mxu0 0
        %1528 = vmatprep.subr.bf16.mxu0 0
        %1529 = vmatpush2.bf16.msra.mxu0 0
        %1530 = vmatprep.subr.bf16.mxu0 0
        %1531 = vmatpush2.bf16.msra.mxu0 0
        %1532 = vmatprep.subr.bf16.mxu0 0
        %1533 = vmatpush2.bf16.msra.mxu0 0
        %1534 = vmatprep.mubr.bf16.mxu0 0
        %1535 = vmatmul.mubr.bf16.gmra.mxu0 %v708
        %v1536 = vpop.f32.mrf.mxu0
        %v1537 = vadd.f32 %v1474, %v1536
        %v1538 = vpop.f32.mrf.mxu0
        %v1539 = vadd.f32 %v1476, %v1538
        %v1540 = vpop.f32.mrf.mxu0
        %v1541 = vadd.f32 %v1478, %v1540
        %v1542 = vpop.f32.mrf.mxu0
        %v1543 = vadd.f32 %v1480, %v1542
        %1544 = vmatprep.mubr.bf16.mxu0 0
        %1545 = vmatmul.mubr.bf16.gmra.mxu0 %v711
        %v1546 = vpop.f32.mrf.mxu0
        %v1547 = vadd.f32 %v1484, %v1546
        %v1548 = vpop.f32.mrf.mxu0
        %v1549 = vadd.f32 %v1486, %v1548
        %v1550 = vpop.f32.mrf.mxu0
        %v1551 = vadd.f32 %v1488, %v1550
        %v1552 = vpop.f32.mrf.mxu0
        %v1553 = vadd.f32 %v1490, %v1552
        %1554 = vmatprep.mubr.bf16.mxu0 0
        %1555 = vmatmul.mubr.bf16.gmra.mxu0 %v714
        %v1556 = vpop.f32.mrf.mxu0
        %v1557 = vadd.f32 %v1494, %v1556
        %v1558 = vpop.f32.mrf.mxu0
        %v1559 = vadd.f32 %v1496, %v1558
        %v1560 = vpop.f32.mrf.mxu0
        %v1561 = vadd.f32 %v1498, %v1560
        %v1562 = vpop.f32.mrf.mxu0
        %v1563 = vadd.f32 %v1500, %v1562
        %1564 = vdwg.mxu0
        %v1565 = vmul.f32 %v1411, 0.5
        %v1566 = vmul.f32 %v1413, 0.5
        %v1567 = vmul.f32 %v1537, 0.5
        %v1568 = vmul.f32 %v1539, 0.5
        %v1569 = vmul.f32 %v1415, 0.5
        %v1570 = vmul.f32 %v1417, 0.5
        %v1571 = vmul.f32 %v1541, 0.5
        %v1572 = vmul.f32 %v1543, 0.5
        %v1573 = vmul.f32 %v1421, 0.5
        %v1574 = vmul.f32 %v1423, 0.5
        %v1575 = vmul.f32 %v1547, 0.5
        %v1576 = vmul.f32 %v1549, 0.5
        %v1577 = vmul.f32 %v1425, 0.5
        %v1578 = vmul.f32 %v1427, 0.5
        %v1579 = vmul.f32 %v1551, 0.5
        %v1580 = vmul.f32 %v1553, 0.5
        %v1581 = vmul.f32 %v1431, 0.5
        %v1582 = vmul.f32 %v1433, 0.5
        %v1583 = vmul.f32 %v1557, 0.5
        %v1584 = vmul.f32 %v1559, 0.5
        %v1585 = vmul.f32 %v1435, 0.5
        %v1586 = vmul.f32 %v1437, 0.5
        %v1587 = vmul.f32 %v1561, 0.5
        %v1588 = vmul.f32 %v1563, 0.5
        %v1589 = vmul.f32 %v1411, 0.70710677
        %v1590 = vmul.f32 %v1413, 0.70710677
        %v1591 = vmul.f32 %v1537, 0.70710677
        %v1592 = vmul.f32 %v1539, 0.70710677
        %v1593 = vmul.f32 %v1415, 0.70710677
        %v1594 = vmul.f32 %v1417, 0.70710677
        %v1595 = vmul.f32 %v1541, 0.70710677
        %v1596 = vmul.f32 %v1543, 0.70710677
        %v1597 = vmul.f32 %v1421, 0.70710677
        %v1598 = vmul.f32 %v1423, 0.70710677
        %v1599 = vmul.f32 %v1547, 0.70710677
        %v1600 = vmul.f32 %v1549, 0.70710677
        %v1601 = vmul.f32 %v1425, 0.70710677
        %v1602 = vmul.f32 %v1427, 0.70710677
        %v1603 = vmul.f32 %v1551, 0.70710677
        %v1604 = vmul.f32 %v1553, 0.70710677
        %v1605 = vmul.f32 %v1431, 0.70710677
        %v1606 = vmul.f32 %v1433, 0.70710677
        %v1607 = vmul.f32 %v1557, 0.70710677
        %v1608 = vmul.f32 %v1559, 0.70710677
        %v1609 = vmul.f32 %v1435, 0.70710677
        %v1610 = vmul.f32 %v1437, 0.70710677
        %v1611 = vmul.f32 %v1561, 0.70710677
        %v1612 = vmul.f32 %v1563, 0.70710677
        %v1613 = verf.f32.pop %v1589
        %v1614 = verf.f32.pop %v1590
        %v1615 = verf.f32.pop %v1591
        %v1616 = verf.f32.pop %v1592
        %v1617 = verf.f32.pop %v1593
        %v1618 = verf.f32.pop %v1594
        %v1619 = verf.f32.pop %v1595
        %v1620 = verf.f32.pop %v1596
        %v1621 = verf.f32.pop %v1597
        %v1622 = verf.f32.pop %v1598
        %v1623 = verf.f32.pop %v1599
        %v1624 = verf.f32.pop %v1600
        %v1625 = verf.f32.pop %v1601
        %v1626 = verf.f32.pop %v1602
        %v1627 = verf.f32.pop %v1603
        %v1628 = verf.f32.pop %v1604
        %v1629 = verf.f32.pop %v1605
        %v1630 = verf.f32.pop %v1606
        %v1631 = verf.f32.pop %v1607
        %v1632 = verf.f32.pop %v1608
        %v1633 = verf.f32.pop %v1609
        %v1634 = verf.f32.pop %v1610
        %v1635 = verf.f32.pop %v1611
        %v1636 = verf.f32.pop %v1612
        %v1637 = vadd.f32 %v1613, 1.0
        %v1638 = vadd.f32 %v1614, 1.0
        %v1639 = vadd.f32 %v1615, 1.0
        %v1640 = vadd.f32 %v1616, 1.0
        %v1641 = vadd.f32 %v1617, 1.0
        %v1642 = vadd.f32 %v1618, 1.0
        %v1643 = vadd.f32 %v1619, 1.0
        %v1644 = vadd.f32 %v1620, 1.0
        %v1645 = vadd.f32 %v1621, 1.0
        %v1646 = vadd.f32 %v1622, 1.0
        %v1647 = vadd.f32 %v1623, 1.0
        %v1648 = vadd.f32 %v1624, 1.0
        %v1649 = vadd.f32 %v1625, 1.0
        %v1650 = vadd.f32 %v1626, 1.0
        %v1651 = vadd.f32 %v1627, 1.0
        %v1652 = vadd.f32 %v1628, 1.0
        %v1653 = vadd.f32 %v1629, 1.0
        %v1654 = vadd.f32 %v1630, 1.0
        %v1655 = vadd.f32 %v1631, 1.0
        %v1656 = vadd.f32 %v1632, 1.0
        %v1657 = vadd.f32 %v1633, 1.0
        %v1658 = vadd.f32 %v1634, 1.0
        %v1659 = vadd.f32 %v1635, 1.0
        %v1660 = vadd.f32 %v1636, 1.0
        %v1661 = vmul.f32 %v1565, %v1637
        %v1662 = vmul.f32 %v1566, %v1638
        %v1663 = vmul.f32 %v1567, %v1639
        %v1664 = vmul.f32 %v1568, %v1640
        %v1665 = vmul.f32 %v1569, %v1641
        %v1666 = vmul.f32 %v1570, %v1642
        %v1667 = vmul.f32 %v1571, %v1643
        %v1668 = vmul.f32 %v1572, %v1644
        %v1669 = vmul.f32 %v1573, %v1645
        %v1670 = vmul.f32 %v1574, %v1646
        %v1671 = vmul.f32 %v1575, %v1647
        %v1672 = vmul.f32 %v1576, %v1648
        %v1673 = vmul.f32 %v1577, %v1649
        %v1674 = vmul.f32 %v1578, %v1650
        %v1675 = vmul.f32 %v1579, %v1651
        %v1676 = vmul.f32 %v1580, %v1652
        %v1677 = vmul.f32 %v1581, %v1653
        %v1678 = vmul.f32 %v1582, %v1654
        %v1679 = vmul.f32 %v1583, %v1655
        %v1680 = vmul.f32 %v1584, %v1656
        %v1681 = vmul.f32 %v1585, %v1657
        %v1682 = vmul.f32 %v1586, %v1658
        %v1683 = vmul.f32 %v1587, %v1659
        %v1684 = vmul.f32 %v1588, %v1660
        %v1685 = vpack.c.bf16 %v1665, %v1661
        %v1686 = vpack.c.bf16 %v1666, %v1662
        %v1687 = vpack.c.bf16 %v1667, %v1663
        %v1688 = vpack.c.bf16 %v1668, %v1664
        %v1689 = vpack.c.bf16 %v1673, %v1669
        %v1690 = vpack.c.bf16 %v1674, %v1670
        %v1691 = vpack.c.bf16 %v1675, %v1671
        %v1692 = vpack.c.bf16 %v1676, %v1672
        %v1693 = vpack.c.bf16 %v1681, %v1677
        %v1694 = vpack.c.bf16 %v1682, %v1678
        %v1695 = vpack.c.bf16 %v1683, %v1679
        %v1696 = vpack.c.bf16 %v1684, %v1680
        %v1709 = vunpack.c.l.b16 %v1685
        %v1710 = vunpack.c.l.b16 %v1686
        %v1711 = vunpack.c.l.b16 %v1687
        %v1712 = vunpack.c.l.b16 %v1688
        %v1713 = vunpack.c.h.b16 %v1685
        %v1714 = vunpack.c.h.b16 %v1686
        %v1715 = vunpack.c.h.b16 %v1687
        %v1716 = vunpack.c.h.b16 %v1688
        %v1717 = vunpack.c.l.b16 %v1689
        %v1718 = vunpack.c.l.b16 %v1690
        %v1719 = vunpack.c.l.b16 %v1691
        %v1720 = vunpack.c.l.b16 %v1692
        %v1721 = vunpack.c.h.b16 %v1689
        %v1722 = vunpack.c.h.b16 %v1690
        %v1723 = vunpack.c.h.b16 %v1691
        %v1724 = vunpack.c.h.b16 %v1692
        %v1725 = vunpack.c.l.b16 %v1693
        %v1726 = vunpack.c.l.b16 %v1694
        %v1727 = vunpack.c.l.b16 %v1695
        %v1728 = vunpack.c.l.b16 %v1696
        %v1729 = vunpack.c.h.b16 %v1693
        %v1730 = vunpack.c.h.b16 %v1694
        %v1731 = vunpack.c.h.b16 %v1695
        %v1732 = vunpack.c.h.b16 %v1696
        %v1733 = vpack.c.b16 %v1710, %v1709
        %v1734 = vpack.c.b16 %v1712, %v1711
        %v1735 = vpack.c.b16 %v1714, %v1713
        %v1736 = vpack.c.b16 %v1716, %v1715
        %v1737 = vpack.c.b16 %v1718, %v1717
        %v1738 = vpack.c.b16 %v1720, %v1719
        %v1739 = vpack.c.b16 %v1722, %v1721
        %v1740 = vpack.c.b16 %v1724, %v1723
        %v1741 = vpack.c.b16 %v1726, %v1725
        %v1742 = vpack.c.b16 %v1728, %v1727
        %v1743 = vpack.c.b16 %v1730, %v1729
        %v1744 = vpack.c.b16 %v1732, %v1731
        %1757 = vst [vmem:[%s474] sm:$0xff] %v1733
        %1758 = vst [vmem:[%s474 + $0x8] sm:$0xff] %v1734
        %1759 = vst [vmem:[%s474 + $0x10] sm:$0xff] %v1735
        %1760 = vst [vmem:[%s474 + $0x18] sm:$0xff] %v1736
        %1761 = vst [vmem:[%s474 + $0x20] sm:$0xff] %v1737
        %1762 = vst [vmem:[%s474 + $0x28] sm:$0xff] %v1738
        %1763 = vst [vmem:[%s474 + $0x30] sm:$0xff] %v1739
        %1764 = vst [vmem:[%s474 + $0x38] sm:$0xff] %v1740
        %1765 = vst [vmem:[%s474 + $0x40] sm:$0xff] %v1741
        %1766 = vst [vmem:[%s474 + $0x48] sm:$0xff] %v1742
        %1767 = vst [vmem:[%s474 + $0x50] sm:$0xff] %v1743
        %1768 = vst [vmem:[%s474 + $0x58] sm:$0xff] %v1744
        %s1769 = sand.u32 %s158, 1
        %s1770 = sand.u32 %s158, 1
        %s1771 = smul.addr %s1770, 96
        %s1772 = scalar_lea.vmem [#allocation3], %s1771
        // Predicated region
        $region64: #{closed_call.19} parent=58 // pred_check
          %p1773 = pneg %p168
        $region65: #{closed_call.19} parent=58 // pred_check_branch
          %1775 = sbr.rel (%p1773) target = $region67
        $region66: #{closed_call.19} parent=58 // pred_region
          %s1776 = smul.u32 6, %s20
          %s1777 = smul.u32 4, %s21
          %s1778 = smul.addr %s1776, 12
          %s1779 = sadd.s32 %s1777, %s1778
          %s1780 = smul.addr %s1779, 4
          %s1781 = scalar_lea.vmem %s5, %s1780
          // Predicated region
          $region68: #{closed_call.19} parent=66 // pred_check
            _
          $region69: #{closed_call.19} parent=66 // pred_check_branch
            %1783 = sbr.rel (0) target = $region71
          $region70: #{closed_call.19} parent=66 // pred_region
            // Predicated region
            $region72: #{closed_call.19} parent=70 // pred_check
              _
            $region73: #{closed_call.19} parent=70 // pred_check_branch
              %1785 = sbr.rel (0) target = $region75
            $region74: #{closed_call.19} parent=70 // pred_region
              loop: start=0, step=1, limit=1
              $region76: #{closed_call.19} parent=74 // loop_pre_header
                _
              $region77: #{closed_call.19} parent=74 // loop_header
                %s1787 = sphi 0, %s1791
                %p1788 = scmp.ge.s32.totalorder %s1787, 1
                %s1792 = sphi %s1772, %s1772
                %s1793 = sphi %s1781, %s1781
              $region78: #{closed_call.19} parent=74 // loop_header_branch
                %1790 = sbr.rel (%p1788) target = $region82
              $region79: #{closed_call.19} parent=74 // loop_body
                %v1794 = vld [vmem:[%s1792] sm:$0xff]
                %1795 = vst [vmem:[%s1793] sm:$0xff] %v1794
                %v1796 = vld [vmem:[%s1792 + $0x8] sm:$0xff]
                %1797 = vst [vmem:[%s1793 + $0x8] sm:$0xff] %v1796
                %v1798 = vld [vmem:[%s1792 + $0x10] sm:$0xff]
                %1799 = vst [vmem:[%s1793 + $0x30] sm:$0xff] %v1798
                %v1800 = vld [vmem:[%s1792 + $0x18] sm:$0xff]
                %1801 = vst [vmem:[%s1793 + $0x38] sm:$0xff] %v1800
                %v1802 = vld [vmem:[%s1792 + $0x20] sm:$0xff]
                %1803 = vst [vmem:[%s1793 + $0x60] sm:$0xff] %v1802
                %v1804 = vld [vmem:[%s1792 + $0x28] sm:$0xff]
                %1805 = vst [vmem:[%s1793 + $0x68] sm:$0xff] %v1804
                %v1806 = vld [vmem:[%s1792 + $0x30] sm:$0xff]
                %1807 = vst [vmem:[%s1793 + $0x90] sm:$0xff] %v1806
                %v1808 = vld [vmem:[%s1792 + $0x38] sm:$0xff]
                %1809 = vst [vmem:[%s1793 + $0x98] sm:$0xff] %v1808
                %v1810 = vld [vmem:[%s1792 + $0x40] sm:$0xff]
                %1811 = vst [vmem:[%s1793 + $0xc0] sm:$0xff] %v1810
                %v1812 = vld [vmem:[%s1792 + $0x48] sm:$0xff]
                %1813 = vst [vmem:[%s1793 + $0xc8] sm:$0xff] %v1812
                %v1814 = vld [vmem:[%s1792 + $0x50] sm:$0xff]
                %1815 = vst [vmem:[%s1793 + $0xf0] sm:$0xff] %v1814
                %v1816 = vld [vmem:[%s1792 + $0x58] sm:$0xff]
                %1817 = vst [vmem:[%s1793 + $0xf8] sm:$0xff] %v1816
              $region80: #{closed_call.19} parent=74 // loop_footer
                %s1791 = sadd.s32 1, %s1787
              $region81: #{closed_call.19} parent=74 // loop_footer_branch
                %1786 = sbr.rel target = $region77
              $region82: #{closed_call.19} parent=74 // loop_exit
                _
            $region75: #{closed_call.19} parent=70 // pred_fallthru
              _
            // Predicated region
            $region83: #{closed_call.19} parent=70 // pred_check
              _
            $region84: #{closed_call.19} parent=70 // pred_check_branch
              %1819 = sbr.rel target = $region86
            $region85: #{closed_call.19} parent=70 // pred_region
              _
            $region86: #{closed_call.19} parent=70 // pred_fallthru
              _
          $region71: #{closed_call.19} parent=66 // pred_fallthru
            _
          %1820 = vnop
        $region67: #{closed_call.19} parent=58 // pred_fallthru
          _
      $region59: #{closed_call.19} parent=5 // pred_fallthru
        _
      %p1821 = scmp.le.s32.totalorder 2, %s11
      // Predicated region
      $region87: #{closed_call.19} parent=5 // pred_check
        %p1822 = pneg %p1821
      $region88: #{closed_call.19} parent=5 // pred_check_branch
        %1824 = sbr.rel (%p1822) target = $region90
      $region89: #{closed_call.19} parent=5 // pred_region
        %s1825 = ssub.s32 %s11, 2
        // Predicated region
        $region91: #{closed_call.19} parent=89 // pred_check
          %p1826 = pneg %p174
        $region92: #{closed_call.19} parent=89 // pred_check_branch
          %1828 = sbr.rel (%p1826) target = $region94
        $region93: #{closed_call.19} parent=89 // pred_region
          %s1829 = sand.u32 %s159, 1
          %s1830 = sand.u32 %s159, 1
          %s1831 = smul.addr %s1830, 96
          %s1832 = scalar_lea.vmem [#allocation3], %s1831
        $region94: #{closed_call.19} parent=89 // pred_fallthru
          _
      $region90: #{closed_call.19} parent=5 // pred_fallthru
        _
    $region6: #{closed_call.19} parent=1 // loop_footer
      %s15 = sadd.s32 1, %s11
    $region7: #{closed_call.19} parent=1 // loop_footer_branch
      %10 = sbr.rel target = $region3
    $region8: #{closed_call.19} parent=1 // loop_exit
      _

// kernel: self_distillation_forward.5
$region0: #{self_distillation_forward.5}
  #allocation0 [shape = 'u32[]', space=smem, size = 0x4, offset = 0x4, fixed_abs, tag = 'smem constant byte address 0x4 - core index']
  #allocation1 [shape = 'u32[144,128]{1,0:T(1,128)}', space=vmem, size = 0x12000, scoped, tag = 'internal scratch']
  %s0 = inlined_call_operand.vmem [shape: bf16[2,24,1152], index: 0, kind: input, shape index: {}]
  %s1 = inlined_call_operand.vmem [shape: f32[2,6,24], index: 1, kind: output, shape index: {}]
  %s2 = sld [smem:[#allocation0]]
  $region37: #{self_distillation_forward.5} parent=0
    _
  %s4 = ssub.s32 1, %s2
  %s5 = scalar_select 0, %s4, %s2
  loop: start=0, step=1, limit=4
  $region2: #{self_distillation_forward.5} parent=0 // loop_pre_header
    _
  $region3: #{self_distillation_forward.5} parent=0 // loop_header
    %s7 = sphi 0, %s11
    %p8 = scmp.ge.s32.totalorder %s7, 4
    %s17 = sphi 0, %s19
    %s20 = sphi 0, %s17
    %s21 = sphi 0, %s20
    %s37 = sphi 0, %s21
    %s43 = sphi 0, %s45
    %s46 = sphi 0, %s43
    %s47 = sphi 0, %s46
    %s63 = sphi 0, %s47
  $region4: #{self_distillation_forward.5} parent=0 // loop_header_branch
    %10 = sbr.rel (%p8) target = $region8
  $region5: #{self_distillation_forward.5} parent=0 // loop_body
    %s12 = ssub.s32 %s7, 1
    %s13 = ssub.s32 %s7, 2
    %s14 = sadd.s32 %s7, 1
    %s15 = ssub.s32 %s7, %s14
    %p16 = scmp.eq.s32.totalorder %s15, 0
    %s18 = sadd.s32 %s17, 1
    %s19 = scalar_select %p16, %s17, %s18
    %p22 = pneg %p16
    %p23 = scmp.eq.s32.totalorder %s7, 1
    %p24 = por %p22, %p23
    %p25 = scmp.ne.s32.totalorder %s17, %s20
    %p26 = scmp.eq.s32.totalorder %s7, 0
    %p27 = por %p25, %p26
    %p28 = scmp.ne.s32.totalorder %s17, %s20
    %p29 = scmp.eq.s32.totalorder %s12, 1
    %p30 = por %p28, %p29
    %p31 = scmp.ne.s32.totalorder %s20, %s21
    %p32 = scmp.eq.s32.totalorder %s12, 0
    %p33 = por %p31, %p32
    %p34 = scmp.ne.s32.totalorder %s20, %s21
    %p35 = scmp.eq.s32.totalorder %s13, 1
    %p36 = por %p34, %p35
    %p38 = scmp.ne.s32.totalorder %s21, %s37
    %p39 = scmp.eq.s32.totalorder %s13, 0
    %p40 = por %p38, %p39
    %s41 = ssub.s32 %s7, %s14
    %p42 = scmp.eq.s32.totalorder %s41, 0
    %s44 = sadd.s32 %s43, 1
    %s45 = scalar_select %p42, %s43, %s44
    %p48 = pneg %p42
    %p49 = scmp.eq.s32.totalorder %s7, 1
    %p50 = por %p48, %p49
    %p51 = scmp.ne.s32.totalorder %s43, %s46
    %p52 = scmp.eq.s32.totalorder %s7, 0
    %p53 = por %p51, %p52
    %p54 = scmp.ne.s32.totalorder %s43, %s46
    %p55 = scmp.eq.s32.totalorder %s12, 1
    %p56 = por %p54, %p55
    %p57 = scmp.ne.s32.totalorder %s46, %s47
    %p58 = scmp.eq.s32.totalorder %s12, 0
    %p59 = por %p57, %p58
    %p60 = scmp.ne.s32.totalorder %s46, %s47
    %p61 = scmp.eq.s32.totalorder %s13, 1
    %p62 = por %p60, %p61
    %p64 = scmp.ne.s32.totalorder %s47, %s63
    %p65 = scmp.eq.s32.totalorder %s13, 0
    %p66 = por %p64, %p65
    %p67 = scmp.le.s32.totalorder 1, %s7
    %p68 = scmp.lt.s32.totalorder %s7, 3
    %p69 = pnand %p67, %p68
    %p70 = pneg %p69
    // Predicated region
    $region9: #{self_distillation_forward.5} parent=5 // pred_check
      _
    $region10: #{self_distillation_forward.5} parent=5 // pred_check_branch
      %72 = sbr.rel (%p69) target = $region12
    $region11: #{self_distillation_forward.5} parent=5 // pred_region
      %s73 = ssub.s32 %s7, 1
    $region12: #{self_distillation_forward.5} parent=5 // pred_fallthru
      _
    %p74 = scmp.lt.s32.totalorder %s7, 2
    // Predicated region
    $region13: #{self_distillation_forward.5} parent=5 // pred_check
      %p75 = pneg %p74
    $region14: #{self_distillation_forward.5} parent=5 // pred_check_branch
      %77 = sbr.rel (%p75) target = $region16
    $region15: #{self_distillation_forward.5} parent=5 // pred_region
      // Predicated region
      $region17: #{self_distillation_forward.5} parent=15 // pred_check
        %p78 = pneg %p27
      $region18: #{self_distillation_forward.5} parent=15 // pred_check_branch
        %80 = sbr.rel (%p78) target = $region20
      $region19: #{self_distillation_forward.5} parent=15 // pred_region
        %p81 = scmp.lt.s32.totalorder %s7, 1
        %s82 = scalar_select %p81, %s7, 1
        %s83 = smul.addr %s82, 27
        %s84 = smul.addr %s83, 4
        %s85 = scalar_lea.vmem %s0, %s84
      $region20: #{self_distillation_forward.5} parent=15 // pred_fallthru
        _
    $region16: #{self_distillation_forward.5} parent=5 // pred_fallthru
      _
    %p86 = scmp.le.s32.totalorder 1, %s7
    %p87 = scmp.lt.s32.totalorder %s7, 3
    %p88 = pnand %p86, %p87
    %p89 = pneg %p88
    // Predicated region
    $region21: #{self_distillation_forward.5} parent=5 // pred_check
      _
    $region22: #{self_distillation_forward.5} parent=5 // pred_check_branch
      %91 = sbr.rel (%p88) target = $region24
    $region23: #{self_distillation_forward.5} parent=5 // pred_region
      %s92 = ssub.s32 %s7, 1
      %p93 = scmp.lt.s32.totalorder %s12, 1
      %s94 = scalar_select %p93, %s12, 1
      %s95 = smul.addr %s94, 27
      %s96 = smul.addr %s95, 4
      %s97 = scalar_lea.vmem %s0, %s96
      %p98 = pneg %p33
      %p99 = pneg %p30
      %p100 = pneg %p59
      %p101 = pneg %p56
      %p102 = scmp.lt.s32.totalorder %s12, 1
      %s103 = scalar_select %p102, %s12, 1
      %s104 = smul.addr %s103, 8
      %s105 = scalar_lea.vmem %s1, %s104
      %p106 = scmp.lt.s32.totalorder %s12, 1
      %s107 = scalar_select %p106, %s12, 1
      %s108 = smul.addr %s107, 27
      %s109 = smul.addr %s108, 4
      %s110 = scalar_lea.vmem %s0, %s109
      %p111 = scmp.lt.s32.totalorder %s12, 1
      %s112 = scalar_select %p111, %s12, 1
      %s113 = smul.addr %s112, 8
      %s114 = scalar_lea.vmem %s1, %s113
      %v116 = vld [vmem:[%s110] sm:$0x11]
      %v117 = vld [vmem:[%s110 + $0x8] sm:$0x1]
      %v118 = vld [vmem:[%s110 + $0xc] sm:$0xff]
      %v119 = vld [vmem:[%s110 + $0x14] sm:$0xf]
      %v120 = vld [vmem:[%s110 + $0x30] sm:$0xff]
      %v121 = vld [vmem:[%s110 + $0x38] sm:$0xf]
      %v122 = vld [vmem:[%s110 + $0x54] sm:$0xff]
      %v123 = vld [vmem:[%s110 + $0x5c] sm:$0xf]
      %v124 = vlaneseq
      %v125 = vand.u32 %v124, 127
      %vm126 = vcmp.lt.s32.totalorder %v125, 17
      %v130 = vunpack.c.l.b16 %v118
      %v131 = vunpack.c.l.b16 %v120
      %v132 = vunpack.c.l.b16 %v122
      %v133 = vpack.c.b16 %v131, %v130
      %v134 = vpack.c.b16 %v132, %v132
      %vm135 = vcmask 523264
      %v137 = vsel %vm135, %v116, 0
      %v140 = vsel %vm135, %v133, 0
      %v143 = vsel %vm135, %v134, 0
      %145 = vmatprep.subr.bf16.mxu0 0
      %146 = vmatpush1.bf16.xpose.msra.mxu0 0
      %147 = vmatprep.subr.bf16.mxu0 0
      %148 = vmatpush1.bf16.xpose.msra.mxu0 0
      %149 = vmatprep.subr.bf16.mxu0 0
      %150 = vmatpush1.bf16.xpose.msra.mxu0 0
      %151 = vmatprep.subr.bf16.mxu0 0
      %152 = vmatpush1.bf16.xpose.msra.mxu0 0
      %153 = vmatprep.subr.bf16.mxu0 0
      %154 = vmatpush1.bf16.xpose.msra.mxu0 0
      %155 = vmatprep.subr.bf16.mxu0 0
      %156 = vmatpush1.bf16.xpose.msra.mxu0 0
      %157 = vmatprep.subr.bf16.mxu0 0
      %158 = vmatpush1.bf16.xpose.msra.mxu0 %v143
      %159 = vmatprep.subr.bf16.mxu0 0
      %160 = vmatpush1.bf16.xpose.msra.mxu0 %v140
      %161 = vmatprep.subr.bf16.mxu0 0
      %162 = vmatpush2.bf16.xpose.msra.mxu0 0
      %163 = vmatprep.subr.bf16.mxu0 0
      %164 = vmatpush2.bf16.xpose.msra.mxu0 0
      %165 = vmatprep.subr.bf16.mxu0 0
      %166 = vmatpush2.bf16.xpose.msra.mxu0 0
      %167 = vmatprep.subr.bf16.mxu0 0
      %168 = vmatpush2.bf16.xpose.msra.mxu0 0
      %169 = vmatprep.subr.bf16.mxu0 0
      %170 = vmatpush2.bf16.xpose.msra.mxu0 0
      %171 = vmatprep.subr.bf16.mxu0 0
      %172 = vmatpush2.bf16.xpose.msra.mxu0 0
      %173 = vmatprep.subr.bf16.mxu0 0
      %174 = vmatpush2.bf16.xpose.msra.mxu0 0
      %175 = vmatprep.subr.bf16.mxu0 0
      %176 = vmatpush2.bf16.xpose.msra.mxu0 0
      %177 = vmatprep.mubr.bf16.mxu0 0
      %178 = vmatmul.mubr.bf16.gmra.mxu0 %v137
      %v179 = vpop.f32.mrf.mxu0
      %v180 = vadd.f32 0.0, %v179
      %v181 = vpop.f32.mrf.mxu0
      %v182 = vpop.f32.mrf.mxu0
      %v183 = vpop.f32.mrf.mxu0
      %184 = vdwg.mxu0
      %v185 = vmul.f32 %v180, 0.125
      %v186 = vsel %vm126, %v185, -1e+30
      %vm187 = vcmask 188416
      %v188 = vsel %vm187, %v186, -inf
      %189 = vmax.xlane.f32.xlu0 %v188
      %v190 = vpop.xlane.xlu0 %189
      %v191 = vsub.f32 %v186, %v190
      %v192 = vmul.f32 %v191, 1.442695
      %v193 = vpow.pop %v192
      %v194 = vsel %vm187, %v193, 0.0
      %195 = vadd.xlane.f32.xlu0 %v194
      %v196 = vpop.xlane.xlu0 %195
      %v197 = vrcp.pop %v196
      %v198 = vmul.f32 %v193, %v197
      %v200 = vunpack.c.l.b16 %v116
      %v201 = vpack.c.b16 %v200, %v200
      %202 = vrot.lane.b32.xlu0 %v201, 64
      %v203 = vpop.permute.xlu0 %202
      %204 = vrot.lane.b32.xlu0 %v133, 64
      %v205 = vpop.permute.xlu0 %204
      %206 = vrot.lane.b32.xlu0 %v134, 64
      %v207 = vpop.permute.xlu0 %206
      %v209 = vsel %vm135, %v203, 0
      %v212 = vsel %vm135, %v205, 0
      %v215 = vsel %vm135, %v207, 0
      %217 = vmatprep.subr.bf16.mxu0 0
      %218 = vmatpush1.bf16.xpose.msra.mxu0 0
      %219 = vmatprep.subr.bf16.mxu0 0
      %220 = vmatpush1.bf16.xpose.msra.mxu0 0
      %221 = vmatprep.subr.bf16.mxu0 0
      %222 = vmatpush1.bf16.xpose.msra.mxu0 0
      %223 = vmatprep.subr.bf16.mxu0 0
      %224 = vmatpush1.bf16.xpose.msra.mxu0 0
      %225 = vmatprep.subr.bf16.mxu0 0
      %226 = vmatpush1.bf16.xpose.msra.mxu0 0
      %227 = vmatprep.subr.bf16.mxu0 0
      %228 = vmatpush1.bf16.xpose.msra.mxu0 0
      %229 = vmatprep.subr.bf16.mxu0 0
      %230 = vmatpush1.bf16.xpose.msra.mxu0 %v215
      %231 = vmatprep.subr.bf16.mxu0 0
      %232 = vmatpush1.bf16.xpose.msra.mxu0 %v212
      %233 = vmatprep.subr.bf16.mxu0 0
      %234 = vmatpush2.bf16.xpose.msra.mxu0 0
      %235 = vmatprep.subr.bf16.mxu0 0
      %236 = vmatpush2.bf16.xpose.msra.mxu0 0
      %237 = vmatprep.subr.bf16.mxu0 0
      %238 = vmatpush2.bf16.xpose.msra.mxu0 0
      %239 = vmatprep.subr.bf16.mxu0 0
      %240 = vmatpush2.bf16.xpose.msra.mxu0 0
      %241 = vmatprep.subr.bf16.mxu0 0
      %242 = vmatpush2.bf16.xpose.msra.mxu0 0
      %243 = vmatprep.subr.bf16.mxu0 0
      %244 = vmatpush2.bf16.xpose.msra.mxu0 0
      %245 = vmatprep.subr.bf16.mxu0 0
      %246 = vmatpush2.bf16.xpose.msra.mxu0 0
      %247 = vmatprep.subr.bf16.mxu0 0
      %248 = vmatpush2.bf16.xpose.msra.mxu0 0
      %249 = vmatprep.mubr.bf16.mxu0 0
      %250 = vmatmul.mubr.bf16.gmra.mxu0 %v209
      %v251 = vpop.f32.mrf.mxu0
      %v252 = vadd.f32 0.0, %v251
      %v253 = vpop.f32.mrf.mxu0
      %v254 = vpop.f32.mrf.mxu0
      %v255 = vpop.f32.mrf.mxu0
      %256 = vdwg.mxu0
      %v257 = vmul.f32 %v252, 0.125
      %v258 = vsel %vm126, %v257, -1e+30
      %v259 = vsel %vm187, %v258, -inf
      %260 = vmax.xlane.f32.xlu0 %v259
      %v261 = vpop.xlane.xlu0 %260
      %v262 = vsub.f32 %v258, %v261
      %v263 = vmul.f32 %v262, 1.442695
      %v264 = vpow.pop %v263
      %v265 = vsel %vm187, %v264, 0.0
      %266 = vadd.xlane.f32.xlu0 %v265
      %v267 = vpop.xlane.xlu0 %266
      %v268 = vrcp.pop %v267
      %v269 = vmul.f32 %v264, %v268
      %v270 = vunpack.c.h.b16 %v116
      %v271 = vpack.c.b16 %v270, %v270
      %v272 = vunpack.c.h.b16 %v118
      %v273 = vunpack.c.h.b16 %v120
      %v274 = vunpack.c.h.b16 %v122
      %v275 = vpack.c.b16 %v273, %v272
      %v276 = vpack.c.b16 %v274, %v274
      %v278 = vsel %vm135, %v271, 0
      %v281 = vsel %vm135, %v275, 0
      %v284 = vsel %vm135, %v276, 0
      %286 = vmatprep.subr.bf16.mxu0 0
      %287 = vmatpush1.bf16.xpose.msra.mxu0 0
      %288 = vmatprep.subr.bf16.mxu0 0
      %289 = vmatpush1.bf16.xpose.msra.mxu0 0
      %290 = vmatprep.subr.bf16.mxu0 0
      %291 = vmatpush1.bf16.xpose.msra.mxu0 0
      %292 = vmatprep.subr.bf16.mxu0 0
      %293 = vmatpush1.bf16.xpose.msra.mxu0 0
      %294 = vmatprep.subr.bf16.mxu0 0
      %295 = vmatpush1.bf16.xpose.msra.mxu0 0
      %296 = vmatprep.subr.bf16.mxu0 0
      %297 = vmatpush1.bf16.xpose.msra.mxu0 0
      %298 = vmatprep.subr.bf16.mxu0 0
      %299 = vmatpush1.bf16.xpose.msra.mxu0 %v284
      %300 = vmatprep.subr.bf16.mxu0 0
      %301 = vmatpush1.bf16.xpose.msra.mxu0 %v281
      %302 = vmatprep.subr.bf16.mxu0 0
      %303 = vmatpush2.bf16.xpose.msra.mxu0 0
      %304 = vmatprep.subr.bf16.mxu0 0
      %305 = vmatpush2.bf16.xpose.msra.mxu0 0
      %306 = vmatprep.subr.bf16.mxu0 0
      %307 = vmatpush2.bf16.xpose.msra.mxu0 0
      %308 = vmatprep.subr.bf16.mxu0 0
      %309 = vmatpush2.bf16.xpose.msra.mxu0 0
      %310 = vmatprep.subr.bf16.mxu0 0
      %311 = vmatpush2.bf16.xpose.msra.mxu0 0
      %312 = vmatprep.subr.bf16.mxu0 0
      %313 = vmatpush2.bf16.xpose.msra.mxu0 0
      %314 = vmatprep.subr.bf16.mxu0 0
      %315 = vmatpush2.bf16.xpose.msra.mxu0 0
      %316 = vmatprep.subr.bf16.mxu0 0
      %317 = vmatpush2.bf16.xpose.msra.mxu0 0
      %318 = vmatprep.mubr.bf16.mxu0 0
      %319 = vmatmul.mubr.bf16.gmra.mxu0 %v278
      %v320 = vpop.f32.mrf.mxu0
      %v321 = vadd.f32 0.0, %v320
      %v322 = vpop.f32.mrf.mxu0
      %v323 = vpop.f32.mrf.mxu0
      %v324 = vpop.f32.mrf.mxu0
      %325 = vdwg.mxu0
      %v326 = vmul.f32 %v321, 0.125
      %v327 = vsel %vm126, %v326, -1e+30
      %v328 = vsel %vm187, %v327, -inf
      %329 = vmax.xlane.f32.xlu0 %v328
      %v330 = vpop.xlane.xlu0 %329
      %v331 = vsub.f32 %v327, %v330
      %v332 = vmul.f32 %v331, 1.442695
      %v333 = vpow.pop %v332
      %v334 = vsel %vm187, %v333, 0.0
      %335 = vadd.xlane.f32.xlu0 %v334
      %v336 = vpop.xlane.xlu0 %335
      %v337 = vrcp.pop %v336
      %v338 = vmul.f32 %v333, %v337
      %339 = vrot.lane.b32.xlu0 %v271, 64
      %v340 = vpop.permute.xlu0 %339
      %341 = vrot.lane.b32.xlu0 %v275, 64
      %v342 = vpop.permute.xlu0 %341
      %343 = vrot.lane.b32.xlu0 %v276, 64
      %v344 = vpop.permute.xlu0 %343
      %v346 = vsel %vm135, %v340, 0
      %v349 = vsel %vm135, %v342, 0
      %v352 = vsel %vm135, %v344, 0
      %354 = vmatprep.subr.bf16.mxu0 0
      %355 = vmatpush1.bf16.xpose.msra.mxu0 0
      %356 = vmatprep.subr.bf16.mxu0 0
      %357 = vmatpush1.bf16.xpose.msra.mxu0 0
      %358 = vmatprep.subr.bf16.mxu0 0
      %359 = vmatpush1.bf16.xpose.msra.mxu0 0
      %360 = vmatprep.subr.bf16.mxu0 0
      %361 = vmatpush1.bf16.xpose.msra.mxu0 0
      %362 = vmatprep.subr.bf16.mxu0 0
      %363 = vmatpush1.bf16.xpose.msra.mxu0 0
      %364 = vmatprep.subr.bf16.mxu0 0
      %365 = vmatpush1.bf16.xpose.msra.mxu0 0
      %366 = vmatprep.subr.bf16.mxu0 0
      %367 = vmatpush1.bf16.xpose.msra.mxu0 %v352
      %368 = vmatprep.subr.bf16.mxu0 0
      %369 = vmatpush1.bf16.xpose.msra.mxu0 %v349
      %370 = vmatprep.subr.bf16.mxu0 0
      %371 = vmatpush2.bf16.xpose.msra.mxu0 0
      %372 = vmatprep.subr.bf16.mxu0 0
      %373 = vmatpush2.bf16.xpose.msra.mxu0 0
      %374 = vmatprep.subr.bf16.mxu0 0
      %375 = vmatpush2.bf16.xpose.msra.mxu0 0
      %376 = vmatprep.subr.bf16.mxu0 0
      %377 = vmatpush2.bf16.xpose.msra.mxu0 0
      %378 = vmatprep.subr.bf16.mxu0 0
      %379 = vmatpush2.bf16.xpose.msra.mxu0 0
      %380 = vmatprep.subr.bf16.mxu0 0
      %381 = vmatpush2.bf16.xpose.msra.mxu0 0
      %382 = vmatprep.subr.bf16.mxu0 0
      %383 = vmatpush2.bf16.xpose.msra.mxu0 0
      %384 = vmatprep.subr.bf16.mxu0 0
      %385 = vmatpush2.bf16.xpose.msra.mxu0 0
      %386 = vmatprep.mubr.bf16.mxu0 0
      %387 = vmatmul.mubr.bf16.gmra.mxu0 %v346
      %v388 = vpop.f32.mrf.mxu0
      %v389 = vadd.f32 0.0, %v388
      %v390 = vpop.f32.mrf.mxu0
      %v391 = vpop.f32.mrf.mxu0
      %v392 = vpop.f32.mrf.mxu0
      %393 = vdwg.mxu0
      %v394 = vmul.f32 %v389, 0.125
      %v395 = vsel %vm126, %v394, -1e+30
      %v396 = vsel %vm187, %v395, -inf
      %397 = vmax.xlane.f32.xlu0 %v396
      %v398 = vpop.xlane.xlu0 %397
      %v399 = vsub.f32 %v395, %v398
      %v400 = vmul.f32 %v399, 1.442695
      %v401 = vpow.pop %v400
      %v402 = vsel %vm187, %v401, 0.0
      %403 = vadd.xlane.f32.xlu0 %v402
      %v404 = vpop.xlane.xlu0 %403
      %v405 = vrcp.pop %v404
      %v406 = vmul.f32 %v401, %v405
      %v410 = vunpack.c.l.b16 %v119
      %v411 = vunpack.c.l.b16 %v121
      %v412 = vunpack.c.l.b16 %v123
      %v413 = vpack.c.b16 %v411, %v410
      %v414 = vpack.c.b16 %v412, %v412
      %v416 = vsel %vm135, %v117, 0
      %v419 = vsel %vm135, %v413, 0
      %v422 = vsel %vm135, %v414, 0
      %424 = vmatprep.subr.bf16.mxu0 0
      %425 = vmatpush1.bf16.xpose.msra.mxu0 0
      %426 = vmatprep.subr.bf16.mxu0 0
      %427 = vmatpush1.bf16.xpose.msra.mxu0 0
      %428 = vmatprep.subr.bf16.mxu0 0
      %429 = vmatpush1.bf16.xpose.msra.mxu0 0
      %430 = vmatprep.subr.bf16.mxu0 0
      %431 = vmatpush1.bf16.xpose.msra.mxu0 0
      %432 = vmatprep.subr.bf16.mxu0 0
      %433 = vmatpush1.bf16.xpose.msra.mxu0 0
      %434 = vmatprep.subr.bf16.mxu0 0
      %435 = vmatpush1.bf16.xpose.msra.mxu0 0
      %436 = vmatprep.subr.bf16.mxu0 0
      %437 = vmatpush1.bf16.xpose.msra.mxu0 %v422
      %438 = vmatprep.subr.bf16.mxu0 0
      %439 = vmatpush1.bf16.xpose.msra.mxu0 %v419
      %440 = vmatprep.subr.bf16.mxu0 0
      %441 = vmatpush2.bf16.xpose.msra.mxu0 0
      %442 = vmatprep.subr.bf16.mxu0 0
      %443 = vmatpush2.bf16.xpose.msra.mxu0 0
      %444 = vmatprep.subr.bf16.mxu0 0
      %445 = vmatpush2.bf16.xpose.msra.mxu0 0
      %446 = vmatprep.subr.bf16.mxu0 0
      %447 = vmatpush2.bf16.xpose.msra.mxu0 0
      %448 = vmatprep.subr.bf16.mxu0 0
      %449 = vmatpush2.bf16.xpose.msra.mxu0 0
      %450 = vmatprep.subr.bf16.mxu0 0
      %451 = vmatpush2.bf16.xpose.msra.mxu0 0
      %452 = vmatprep.subr.bf16.mxu0 0
      %453 = vmatpush2.bf16.xpose.msra.mxu0 0
      %454 = vmatprep.subr.bf16.mxu0 0
      %455 = vmatpush2.bf16.xpose.msra.mxu0 0
      %456 = vmatprep.mubr.bf16.mxu0 0
      %457 = vmatmul.mubr.bf16.gmra.mxu0 %v416
      %v458 = vpop.f32.mrf.mxu0
      %v459 = vadd.f32 0.0, %v458
      %v460 = vpop.f32.mrf.mxu0
      %v461 = vpop.f32.mrf.mxu0
      %v462 = vpop.f32.mrf.mxu0
      %463 = vdwg.mxu0
      %v464 = vmul.f32 %v459, 0.125
      %v465 = vsel %vm126, %v464, -1e+30
      %v466 = vsel %vm187, %v465, -inf
      %467 = vmax.xlane.f32.xlu0 %v466
      %v468 = vpop.xlane.xlu0 %467
      %v469 = vsub.f32 %v465, %v468
      %v470 = vmul.f32 %v469, 1.442695
      %v471 = vpow.pop %v470
      %v472 = vsel %vm187, %v471, 0.0
      %473 = vadd.xlane.f32.xlu0 %v472
      %v474 = vpop.xlane.xlu0 %473
      %v475 = vrcp.pop %v474
      %v476 = vmul.f32 %v471, %v475
      %v478 = vunpack.c.l.b16 %v117
      %v479 = vpack.c.b16 %v478, %v478
      %480 = vrot.lane.b32.xlu0 %v479, 64
      %v481 = vpop.permute.xlu0 %480
      %482 = vrot.lane.b32.xlu0 %v413, 64
      %v483 = vpop.permute.xlu0 %482
      %484 = vrot.lane.b32.xlu0 %v414, 64
      %v485 = vpop.permute.xlu0 %484
      %v487 = vsel %vm135, %v481, 0
      %v490 = vsel %vm135, %v483, 0
      %v493 = vsel %vm135, %v485, 0
      %495 = vmatprep.subr.bf16.mxu0 0
      %496 = vmatpush1.bf16.xpose.msra.mxu0 0
      %497 = vmatprep.subr.bf16.mxu0 0
      %498 = vmatpush1.bf16.xpose.msra.mxu0 0
      %499 = vmatprep.subr.bf16.mxu0 0
      %500 = vmatpush1.bf16.xpose.msra.mxu0 0
      %501 = vmatprep.subr.bf16.mxu0 0
      %502 = vmatpush1.bf16.xpose.msra.mxu0 0
      %503 = vmatprep.subr.bf16.mxu0 0
      %504 = vmatpush1.bf16.xpose.msra.mxu0 0
      %505 = vmatprep.subr.bf16.mxu0 0
      %506 = vmatpush1.bf16.xpose.msra.mxu0 0
      %507 = vmatprep.subr.bf16.mxu0 0
      %508 = vmatpush1.bf16.xpose.msra.mxu0 %v493
      %509 = vmatprep.subr.bf16.mxu0 0
      %510 = vmatpush1.bf16.xpose.msra.mxu0 %v490
      %511 = vmatprep.subr.bf16.mxu0 0
      %512 = vmatpush2.bf16.xpose.msra.mxu0 0
      %513 = vmatprep.subr.bf16.mxu0 0
      %514 = vmatpush2.bf16.xpose.msra.mxu0 0
      %515 = vmatprep.subr.bf16.mxu0 0
      %516 = vmatpush2.bf16.xpose.msra.mxu0 0
      %517 = vmatprep.subr.bf16.mxu0 0
      %518 = vmatpush2.bf16.xpose.msra.mxu0 0
      %519 = vmatprep.subr.bf16.mxu0 0
      %520 = vmatpush2.bf16.xpose.msra.mxu0 0
      %521 = vmatprep.subr.bf16.mxu0 0
      %522 = vmatpush2.bf16.xpose.msra.mxu0 0
      %523 = vmatprep.subr.bf16.mxu0 0
      %524 = vmatpush2.bf16.xpose.msra.mxu0 0
      %525 = vmatprep.subr.bf16.mxu0 0
      %526 = vmatpush2.bf16.xpose.msra.mxu0 0
      %527 = vmatprep.mubr.bf16.mxu0 0
      %528 = vmatmul.mubr.bf16.gmra.mxu0 %v487
      %v529 = vpop.f32.mrf.mxu0
      %v530 = vadd.f32 0.0, %v529
      %v531 = vpop.f32.mrf.mxu0
      %v532 = vpop.f32.mrf.mxu0
      %v533 = vpop.f32.mrf.mxu0
      %534 = vdwg.mxu0
      %v535 = vmul.f32 %v530, 0.125
      %v536 = vsel %vm126, %v535, -1e+30
      %v537 = vsel %vm187, %v536, -inf
      %538 = vmax.xlane.f32.xlu0 %v537
      %v539 = vpop.xlane.xlu0 %538
      %v540 = vsub.f32 %v536, %v539
      %v541 = vmul.f32 %v540, 1.442695
      %v542 = vpow.pop %v541
      %v543 = vsel %vm187, %v542, 0.0
      %544 = vadd.xlane.f32.xlu0 %v543
      %v545 = vpop.xlane.xlu0 %544
      %v546 = vrcp.pop %v545
      %v547 = vmul.f32 %v542, %v546
      %v549 = vrot.slane %v269, 7
      %v552 = vrot.slane %v338, 6
      %v555 = vrot.slane %v406, 5
      %v558 = vrot.slane %v476, 4
      %v561 = vrot.slane %v547, 3
      %vm563 = vcmask 1040384
      %v564 = vsel %vm563, %v198, %v549
      %vm565 = vcmask 1041408
      %v566 = vsel %vm565, %v564, %v552
      %vm567 = vcmask 1042432
      %v568 = vsel %vm567, %v566, %v555
      %vm569 = vcmask 1043456
      %v570 = vsel %vm569, %v568, %v558
      %vm571 = vcmask 1044480
      %v572 = vsel %vm571, %v570, %v561
      %vm573 = vcmask 193536
      %574 = vst.msk [vmem:[%s114] sm:$0x3f] %vm573, %v572
      %p575 = scmp.lt.s32.totalorder %s12, 1
      %s576 = scalar_select %p575, %s12, 1
      %s577 = smul.addr %s576, 8
      %s578 = scalar_lea.vmem %s1, %s577
      // Predicated region
      $region25: #{self_distillation_forward.5} parent=23 // pred_check
        %p579 = pneg %p56
      $region26: #{self_distillation_forward.5} parent=23 // pred_check_branch
        %581 = sbr.rel (%p579) target = $region28
      $region27: #{self_distillation_forward.5} parent=23 // pred_region
        _
      $region28: #{self_distillation_forward.5} parent=23 // pred_fallthru
        _
    $region24: #{self_distillation_forward.5} parent=5 // pred_fallthru
      _
    %p582 = scmp.le.s32.totalorder 2, %s7
    // Predicated region
    $region29: #{self_distillation_forward.5} parent=5 // pred_check
      %p583 = pneg %p582
    $region30: #{self_distillation_forward.5} parent=5 // pred_check_branch
      %585 = sbr.rel (%p583) target = $region32
    $region31: #{self_distillation_forward.5} parent=5 // pred_region
      %s586 = ssub.s32 %s7, 2
      // Predicated region
      $region33: #{self_distillation_forward.5} parent=31 // pred_check
        %p587 = pneg %p62
      $region34: #{self_distillation_forward.5} parent=31 // pred_check_branch
        %589 = sbr.rel (%p587) target = $region36
      $region35: #{self_distillation_forward.5} parent=31 // pred_region
        %p590 = scmp.lt.s32.totalorder %s13, 1
        %s591 = scalar_select %p590, %s13, 1
        %s592 = smul.addr %s591, 8
        %s593 = scalar_lea.vmem %s1, %s592
      $region36: #{self_distillation_forward.5} parent=31 // pred_fallthru
        _
    $region32: #{self_distillation_forward.5} parent=5 // pred_fallthru
      _
  $region6: #{self_distillation_forward.5} parent=0 // loop_footer
    %s11 = sadd.s32 1, %s7
  $region7: #{self_distillation_forward.5} parent=0 // loop_footer_branch
    %6 = sbr.rel target = $region3
  $region8: #{self_distillation_forward.5} parent=0 // loop_exit
    _

// kernel: closed_call.20
$region0: #{closed_call.20}
  #allocation0 [shape = 'u32[]', space=smem, size = 0x4, offset = 0x4, fixed_abs, tag = 'smem constant byte address 0x4 - core index']
  #allocation1 [shape = 'u32[144,128]{1,0:T(1,128)}', space=vmem, size = 0x12000, scoped, tag = 'internal scratch']
  %s0 = inlined_call_operand.vmem [shape: bf16[48,1536], index: 0, kind: input, shape index: {}]
  %s1 = inlined_call_operand.vmem [shape: bf16[1536,384], index: 1, kind: input, shape index: {}]
  %s2 = inlined_call_operand.vmem [shape: f32[1,384], index: 2, kind: input, shape index: {}]
  %s3 = inlined_call_operand.vmem [shape: f32[48,384], index: 3, kind: input, shape index: {}]
  %s4 = inlined_call_operand.vmem [shape: f32[48,384], index: 4, kind: output, shape index: {}]
  %s5 = sld [smem:[#allocation0]]
  $region26: #{closed_call.20} parent=0
    _
  %s7 = ssub.s32 1, %s5
  %s8 = scalar_select 0, %s7, %s5
  // Predicated region
  $region2: #{closed_call.20} parent=0 // pred_check
    _
  $region3: #{closed_call.20} parent=0 // pred_check_branch
    %10 = sbr.rel (0) target = $region5
  $region4: #{closed_call.20} parent=0 // pred_region
    _
  $region5: #{closed_call.20} parent=0 // pred_fallthru
    _
  // Predicated region
  $region6: #{closed_call.20} parent=0 // pred_check
    _
  $region7: #{closed_call.20} parent=0 // pred_check_branch
    %12 = sbr.rel (0) target = $region9
  $region8: #{closed_call.20} parent=0 // pred_region
    _
  $region9: #{closed_call.20} parent=0 // pred_fallthru
    _
  // Predicated region
  $region10: #{closed_call.20} parent=0 // pred_check
    _
  $region11: #{closed_call.20} parent=0 // pred_check_branch
    %14 = sbr.rel (0) target = $region13
  $region12: #{closed_call.20} parent=0 // pred_region
    _
  $region13: #{closed_call.20} parent=0 // pred_fallthru
    _
  // Predicated region
  $region14: #{closed_call.20} parent=0 // pred_check
    _
  $region15: #{closed_call.20} parent=0 // pred_check_branch
    %16 = sbr.rel (0) target = $region17
  $region16: #{closed_call.20} parent=0 // pred_region
    _
  $region17: #{closed_call.20} parent=0 // pred_fallthru
    _
  %v18 = vld [vmem:[%s0] sm:$0xff]
  %v19 = vld [vmem:[%s0 + $0x8] sm:$0xff]
  %v20 = vld [vmem:[%s0 + $0x10] sm:$0xff]
  %v21 = vld [vmem:[%s0 + $0x18] sm:$0xff]
  %v22 = vld [vmem:[%s0 + $0x20] sm:$0xff]
  %v23 = vld [vmem:[%s0 + $0x28] sm:$0xff]
  %v24 = vld [vmem:[%s0 + $0x30] sm:$0xff]
  %v25 = vld [vmem:[%s0 + $0x38] sm:$0xff]
  %v26 = vld [vmem:[%s0 + $0x40] sm:$0xff]
  %v27 = vld [vmem:[%s0 + $0x48] sm:$0xff]
  %v28 = vld [vmem:[%s0 + $0x50] sm:$0xff]
  %v29 = vld [vmem:[%s0 + $0x58] sm:$0xff]
  %v30 = vld [vmem:[%s0 + $0x60] sm:$0xff]
  %v31 = vld [vmem:[%s0 + $0x68] sm:$0xff]
  %v32 = vld [vmem:[%s0 + $0x70] sm:$0xff]
  %v33 = vld [vmem:[%s0 + $0x78] sm:$0xff]
  %v34 = vld [vmem:[%s0 + $0x80] sm:$0xff]
  %v35 = vld [vmem:[%s0 + $0x88] sm:$0xff]
  %v36 = vld [vmem:[%s0 + $0x90] sm:$0xff]
  %v37 = vld [vmem:[%s0 + $0x98] sm:$0xff]
  %v38 = vld [vmem:[%s0 + $0xa0] sm:$0xff]
  %v39 = vld [vmem:[%s0 + $0xa8] sm:$0xff]
  %v40 = vld [vmem:[%s0 + $0xb0] sm:$0xff]
  %v41 = vld [vmem:[%s0 + $0xb8] sm:$0xff]
  %v42 = vld [vmem:[%s0 + $0xc0] sm:$0xff]
  %v43 = vld [vmem:[%s0 + $0xc8] sm:$0xff]
  %v44 = vld [vmem:[%s0 + $0xd0] sm:$0xff]
  %v45 = vld [vmem:[%s0 + $0xd8] sm:$0xff]
  %v46 = vld [vmem:[%s0 + $0xe0] sm:$0xff]
  %v47 = vld [vmem:[%s0 + $0xe8] sm:$0xff]
  %v48 = vld [vmem:[%s0 + $0xf0] sm:$0xff]
  %v49 = vld [vmem:[%s0 + $0xf8] sm:$0xff]
  %v50 = vld [vmem:[%s0 + $0x100] sm:$0xff]
  %v51 = vld [vmem:[%s0 + $0x108] sm:$0xff]
  %v52 = vld [vmem:[%s0 + $0x110] sm:$0xff]
  %v53 = vld [vmem:[%s0 + $0x118] sm:$0xff]
  %v54 = vld [vmem:[%s1] sm:$0xff]
  %v55 = vld [vmem:[%s1 + $0x8] sm:$0xf]
  %v56 = vld [vmem:[%s1 + $0xc] sm:$0xff]
  %v57 = vld [vmem:[%s1 + $0x14] sm:$0xf]
  %v58 = vld [vmem:[%s1 + $0x18] sm:$0xff]
  %v59 = vld [vmem:[%s1 + $0x20] sm:$0xf]
  %v60 = vld [vmem:[%s1 + $0x24] sm:$0xff]
  %v61 = vld [vmem:[%s1 + $0x2c] sm:$0xf]
  %v62 = vld [vmem:[%s1 + $0x30] sm:$0xff]
  %v63 = vld [vmem:[%s1 + $0x38] sm:$0xf]
  %v64 = vld [vmem:[%s1 + $0x3c] sm:$0xff]
  %v65 = vld [vmem:[%s1 + $0x44] sm:$0xf]
  %v66 = vld [vmem:[%s1 + $0x48] sm:$0xff]
  %v67 = vld [vmem:[%s1 + $0x50] sm:$0xf]
  %v68 = vld [vmem:[%s1 + $0x54] sm:$0xff]
  %v69 = vld [vmem:[%s1 + $0x5c] sm:$0xf]
  %v70 = vld [vmem:[%s1 + $0x60] sm:$0xff]
  %v71 = vld [vmem:[%s1 + $0x68] sm:$0xf]
  %v72 = vld [vmem:[%s1 + $0x6c] sm:$0xff]
  %v73 = vld [vmem:[%s1 + $0x74] sm:$0xf]
  %v74 = vld [vmem:[%s1 + $0x78] sm:$0xff]
  %v75 = vld [vmem:[%s1 + $0x80] sm:$0xf]
  %v76 = vld [vmem:[%s1 + $0x84] sm:$0xff]
  %v77 = vld [vmem:[%s1 + $0x8c] sm:$0xf]
  %v78 = vld [vmem:[%s1 + $0x90] sm:$0xff]
  %v79 = vld [vmem:[%s1 + $0x98] sm:$0xf]
  %v80 = vld [vmem:[%s1 + $0x9c] sm:$0xff]
  %v81 = vld [vmem:[%s1 + $0xa4] sm:$0xf]
  %v82 = vld [vmem:[%s1 + $0xa8] sm:$0xff]
  %v83 = vld [vmem:[%s1 + $0xb0] sm:$0xf]
  %v84 = vld [vmem:[%s1 + $0xb4] sm:$0xff]
  %v85 = vld [vmem:[%s1 + $0xbc] sm:$0xf]
  %v86 = vld [vmem:[%s1 + $0xc0] sm:$0xff]
  %v87 = vld [vmem:[%s1 + $0xc8] sm:$0xf]
  %v88 = vld [vmem:[%s1 + $0xcc] sm:$0xff]
  %v89 = vld [vmem:[%s1 + $0xd4] sm:$0xf]
  %v90 = vld [vmem:[%s1 + $0xd8] sm:$0xff]
  %v91 = vld [vmem:[%s1 + $0xe0] sm:$0xf]
  %v92 = vld [vmem:[%s1 + $0xe4] sm:$0xff]
  %v93 = vld [vmem:[%s1 + $0xec] sm:$0xf]
  %v94 = vld [vmem:[%s1 + $0xf0] sm:$0xff]
  %v95 = vld [vmem:[%s1 + $0xf8] sm:$0xf]
  %v96 = vld [vmem:[%s1 + $0xfc] sm:$0xff]
  %v97 = vld [vmem:[%s1 + $0x104] sm:$0xf]
  %v98 = vld [vmem:[%s1 + $0x108] sm:$0xff]
  %v99 = vld [vmem:[%s1 + $0x110] sm:$0xf]
  %v100 = vld [vmem:[%s1 + $0x114] sm:$0xff]
  %v101 = vld [vmem:[%s1 + $0x11c] sm:$0xf]
  %v102 = vld [vmem:[%s1 + $0x120] sm:$0xff]
  %v103 = vld [vmem:[%s1 + $0x128] sm:$0xf]
  %v104 = vld [vmem:[%s1 + $0x12c] sm:$0xff]
  %v105 = vld [vmem:[%s1 + $0x134] sm:$0xf]
  %v106 = vld [vmem:[%s1 + $0x138] sm:$0xff]
  %v107 = vld [vmem:[%s1 + $0x140] sm:$0xf]
  %v108 = vld [vmem:[%s1 + $0x144] sm:$0xff]
  %v109 = vld [vmem:[%s1 + $0x14c] sm:$0xf]
  %v110 = vld [vmem:[%s1 + $0x150] sm:$0xff]
  %v111 = vld [vmem:[%s1 + $0x158] sm:$0xf]
  %v112 = vld [vmem:[%s1 + $0x15c] sm:$0xff]
  %v113 = vld [vmem:[%s1 + $0x164] sm:$0xf]
  %v114 = vld [vmem:[%s1 + $0x168] sm:$0xff]
  %v115 = vld [vmem:[%s1 + $0x170] sm:$0xf]
  %v116 = vld [vmem:[%s1 + $0x174] sm:$0xff]
  %v117 = vld [vmem:[%s1 + $0x17c] sm:$0xf]
  %v118 = vld [vmem:[%s1 + $0x180] sm:$0xff]
  %v119 = vld [vmem:[%s1 + $0x188] sm:$0xf]
  %v120 = vld [vmem:[%s1 + $0x18c] sm:$0xff]
  %v121 = vld [vmem:[%s1 + $0x194] sm:$0xf]
  %v122 = vld [vmem:[%s1 + $0x198] sm:$0xff]
  %v123 = vld [vmem:[%s1 + $0x1a0] sm:$0xf]
  %v124 = vld [vmem:[%s1 + $0x1a4] sm:$0xff]
  %v125 = vld [vmem:[%s1 + $0x1ac] sm:$0xf]
  %v126 = vld [vmem:[%s1 + $0x1b0] sm:$0xff]
  %v127 = vld [vmem:[%s1 + $0x1b8] sm:$0xf]
  %v128 = vld [vmem:[%s1 + $0x1bc] sm:$0xff]
  %v129 = vld [vmem:[%s1 + $0x1c4] sm:$0xf]
  %v130 = vld [vmem:[%s1 + $0x1c8] sm:$0xff]
  %v131 = vld [vmem:[%s1 + $0x1d0] sm:$0xf]
  %v132 = vld [vmem:[%s1 + $0x1d4] sm:$0xff]
  %v133 = vld [vmem:[%s1 + $0x1dc] sm:$0xf]
  %v134 = vld [vmem:[%s1 + $0x1e0] sm:$0xff]
  %v135 = vld [vmem:[%s1 + $0x1e8] sm:$0xf]
  %v136 = vld [vmem:[%s1 + $0x1ec] sm:$0xff]
  %v137 = vld [vmem:[%s1 + $0x1f4] sm:$0xf]
  %v138 = vld [vmem:[%s1 + $0x1f8] sm:$0xff]
  %v139 = vld [vmem:[%s1 + $0x200] sm:$0xf]
  %v140 = vld [vmem:[%s1 + $0x204] sm:$0xff]
  %v141 = vld [vmem:[%s1 + $0x20c] sm:$0xf]
  %v142 = vld [vmem:[%s1 + $0x210] sm:$0xff]
  %v143 = vld [vmem:[%s1 + $0x218] sm:$0xf]
  %v144 = vld [vmem:[%s1 + $0x21c] sm:$0xff]
  %v145 = vld [vmem:[%s1 + $0x224] sm:$0xf]
  %v146 = vld [vmem:[%s1 + $0x228] sm:$0xff]
  %v147 = vld [vmem:[%s1 + $0x230] sm:$0xf]
  %v148 = vld [vmem:[%s1 + $0x234] sm:$0xff]
  %v149 = vld [vmem:[%s1 + $0x23c] sm:$0xf]
  %v150 = vld [vmem:[%s1 + $0x240] sm:$0xff]
  %v151 = vld [vmem:[%s1 + $0x248] sm:$0xf]
  %v152 = vld [vmem:[%s1 + $0x24c] sm:$0xff]
  %v153 = vld [vmem:[%s1 + $0x254] sm:$0xf]
  %v154 = vld [vmem:[%s1 + $0x258] sm:$0xff]
  %v155 = vld [vmem:[%s1 + $0x260] sm:$0xf]
  %v156 = vld [vmem:[%s1 + $0x264] sm:$0xff]
  %v157 = vld [vmem:[%s1 + $0x26c] sm:$0xf]
  %v158 = vld [vmem:[%s1 + $0x270] sm:$0xff]
  %v159 = vld [vmem:[%s1 + $0x278] sm:$0xf]
  %v160 = vld [vmem:[%s1 + $0x27c] sm:$0xff]
  %v161 = vld [vmem:[%s1 + $0x284] sm:$0xf]
  %v162 = vld [vmem:[%s1 + $0x288] sm:$0xff]
  %v163 = vld [vmem:[%s1 + $0x290] sm:$0xf]
  %v164 = vld [vmem:[%s1 + $0x294] sm:$0xff]
  %v165 = vld [vmem:[%s1 + $0x29c] sm:$0xf]
  %v166 = vld [vmem:[%s1 + $0x2a0] sm:$0xff]
  %v167 = vld [vmem:[%s1 + $0x2a8] sm:$0xf]
  %v168 = vld [vmem:[%s1 + $0x2ac] sm:$0xff]
  %v169 = vld [vmem:[%s1 + $0x2b4] sm:$0xf]
  %v170 = vld [vmem:[%s1 + $0x2b8] sm:$0xff]
  %v171 = vld [vmem:[%s1 + $0x2c0] sm:$0xf]
  %v172 = vld [vmem:[%s1 + $0x2c4] sm:$0xff]
  %v173 = vld [vmem:[%s1 + $0x2cc] sm:$0xf]
  %v174 = vld [vmem:[%s1 + $0x2d0] sm:$0xff]
  %v175 = vld [vmem:[%s1 + $0x2d8] sm:$0xf]
  %v176 = vld [vmem:[%s1 + $0x2dc] sm:$0xff]
  %v177 = vld [vmem:[%s1 + $0x2e4] sm:$0xf]
  %v178 = vld [vmem:[%s1 + $0x2e8] sm:$0xff]
  %v179 = vld [vmem:[%s1 + $0x2f0] sm:$0xf]
  %v180 = vld [vmem:[%s1 + $0x2f4] sm:$0xff]
  %v181 = vld [vmem:[%s1 + $0x2fc] sm:$0xf]
  %v182 = vld [vmem:[%s1 + $0x300] sm:$0xff]
  %v183 = vld [vmem:[%s1 + $0x308] sm:$0xf]
  %v184 = vld [vmem:[%s1 + $0x30c] sm:$0xff]
  %v185 = vld [vmem:[%s1 + $0x314] sm:$0xf]
  %v186 = vld [vmem:[%s1 + $0x318] sm:$0xff]
  %v187 = vld [vmem:[%s1 + $0x320] sm:$0xf]
  %v188 = vld [vmem:[%s1 + $0x324] sm:$0xff]
  %v189 = vld [vmem:[%s1 + $0x32c] sm:$0xf]
  %v190 = vld [vmem:[%s1 + $0x330] sm:$0xff]
  %v191 = vld [vmem:[%s1 + $0x338] sm:$0xf]
  %v192 = vld [vmem:[%s1 + $0x33c] sm:$0xff]
  %v193 = vld [vmem:[%s1 + $0x344] sm:$0xf]
  %v194 = vld [vmem:[%s1 + $0x348] sm:$0xff]
  %v195 = vld [vmem:[%s1 + $0x350] sm:$0xf]
  %v196 = vld [vmem:[%s1 + $0x354] sm:$0xff]
  %v197 = vld [vmem:[%s1 + $0x35c] sm:$0xf]
  %v198 = vld [vmem:[%s1 + $0x360] sm:$0xff]
  %v199 = vld [vmem:[%s1 + $0x368] sm:$0xf]
  %v200 = vld [vmem:[%s1 + $0x36c] sm:$0xff]
  %v201 = vld [vmem:[%s1 + $0x374] sm:$0xf]
  %v202 = vld [vmem:[%s1 + $0x378] sm:$0xff]
  %v203 = vld [vmem:[%s1 + $0x380] sm:$0xf]
  %v204 = vld [vmem:[%s1 + $0x384] sm:$0xff]
  %v205 = vld [vmem:[%s1 + $0x38c] sm:$0xf]
  %v206 = vld [vmem:[%s1 + $0x390] sm:$0xff]
  %v207 = vld [vmem:[%s1 + $0x398] sm:$0xf]
  %v208 = vld [vmem:[%s1 + $0x39c] sm:$0xff]
  %v209 = vld [vmem:[%s1 + $0x3a4] sm:$0xf]
  %v210 = vld [vmem:[%s1 + $0x3a8] sm:$0xff]
  %v211 = vld [vmem:[%s1 + $0x3b0] sm:$0xf]
  %v212 = vld [vmem:[%s1 + $0x3b4] sm:$0xff]
  %v213 = vld [vmem:[%s1 + $0x3bc] sm:$0xf]
  %v214 = vld [vmem:[%s1 + $0x3c0] sm:$0xff]
  %v215 = vld [vmem:[%s1 + $0x3c8] sm:$0xf]
  %v216 = vld [vmem:[%s1 + $0x3cc] sm:$0xff]
  %v217 = vld [vmem:[%s1 + $0x3d4] sm:$0xf]
  %v218 = vld [vmem:[%s1 + $0x3d8] sm:$0xff]
  %v219 = vld [vmem:[%s1 + $0x3e0] sm:$0xf]
  %v220 = vld [vmem:[%s1 + $0x3e4] sm:$0xff]
  %v221 = vld [vmem:[%s1 + $0x3ec] sm:$0xf]
  %v222 = vld [vmem:[%s1 + $0x3f0] sm:$0xff]
  %v223 = vld [vmem:[%s1 + $0x3f8] sm:$0xf]
  %v224 = vld [vmem:[%s1 + $0x3fc] sm:$0xff]
  %v225 = vld [vmem:[%s1 + $0x404] sm:$0xf]
  %v226 = vld [vmem:[%s1 + $0x408] sm:$0xff]
  %v227 = vld [vmem:[%s1 + $0x410] sm:$0xf]
  %v228 = vld [vmem:[%s1 + $0x414] sm:$0xff]
  %v229 = vld [vmem:[%s1 + $0x41c] sm:$0xf]
  %v230 = vld [vmem:[%s1 + $0x420] sm:$0xff]
  %v231 = vld [vmem:[%s1 + $0x428] sm:$0xf]
  %v232 = vld [vmem:[%s1 + $0x42c] sm:$0xff]
  %v233 = vld [vmem:[%s1 + $0x434] sm:$0xf]
  %v234 = vld [vmem:[%s1 + $0x438] sm:$0xff]
  %v235 = vld [vmem:[%s1 + $0x440] sm:$0xf]
  %v236 = vld [vmem:[%s1 + $0x444] sm:$0xff]
  %v237 = vld [vmem:[%s1 + $0x44c] sm:$0xf]
  %v238 = vld [vmem:[%s1 + $0x450] sm:$0xff]
  %v239 = vld [vmem:[%s1 + $0x458] sm:$0xf]
  %v240 = vld [vmem:[%s1 + $0x45c] sm:$0xff]
  %v241 = vld [vmem:[%s1 + $0x464] sm:$0xf]
  %v242 = vld [vmem:[%s1 + $0x468] sm:$0xff]
  %v243 = vld [vmem:[%s1 + $0x470] sm:$0xf]
  %v244 = vld [vmem:[%s1 + $0x474] sm:$0xff]
  %v245 = vld [vmem:[%s1 + $0x47c] sm:$0xf]
  %v246 = vld [vmem:[%s1 + $0x480] sm:$0xff]
  %v247 = vld [vmem:[%s1 + $0x488] sm:$0xf]
  %v248 = vld [vmem:[%s1 + $0x48c] sm:$0xff]
  %v249 = vld [vmem:[%s1 + $0x494] sm:$0xf]
  %v250 = vld [vmem:[%s1 + $0x498] sm:$0xff]
  %v251 = vld [vmem:[%s1 + $0x4a0] sm:$0xf]
  %v252 = vld [vmem:[%s1 + $0x4a4] sm:$0xff]
  %v253 = vld [vmem:[%s1 + $0x4ac] sm:$0xf]
  %v254 = vld [vmem:[%s1 + $0x4b0] sm:$0xff]
  %v255 = vld [vmem:[%s1 + $0x4b8] sm:$0xf]
  %v256 = vld [vmem:[%s1 + $0x4bc] sm:$0xff]
  %v257 = vld [vmem:[%s1 + $0x4c4] sm:$0xf]
  %v258 = vld [vmem:[%s1 + $0x4c8] sm:$0xff]
  %v259 = vld [vmem:[%s1 + $0x4d0] sm:$0xf]
  %v260 = vld [vmem:[%s1 + $0x4d4] sm:$0xff]
  %v261 = vld [vmem:[%s1 + $0x4dc] sm:$0xf]
  %v262 = vld [vmem:[%s1 + $0x4e0] sm:$0xff]
  %v263 = vld [vmem:[%s1 + $0x4e8] sm:$0xf]
  %v264 = vld [vmem:[%s1 + $0x4ec] sm:$0xff]
  %v265 = vld [vmem:[%s1 + $0x4f4] sm:$0xf]
  %v266 = vld [vmem:[%s1 + $0x4f8] sm:$0xff]
  %v267 = vld [vmem:[%s1 + $0x500] sm:$0xf]
  %v268 = vld [vmem:[%s1 + $0x504] sm:$0xff]
  %v269 = vld [vmem:[%s1 + $0x50c] sm:$0xf]
  %v270 = vld [vmem:[%s1 + $0x510] sm:$0xff]
  %v271 = vld [vmem:[%s1 + $0x518] sm:$0xf]
  %v272 = vld [vmem:[%s1 + $0x51c] sm:$0xff]
  %v273 = vld [vmem:[%s1 + $0x524] sm:$0xf]
  %v274 = vld [vmem:[%s1 + $0x528] sm:$0xff]
  %v275 = vld [vmem:[%s1 + $0x530] sm:$0xf]
  %v276 = vld [vmem:[%s1 + $0x534] sm:$0xff]
  %v277 = vld [vmem:[%s1 + $0x53c] sm:$0xf]
  %v278 = vld [vmem:[%s1 + $0x540] sm:$0xff]
  %v279 = vld [vmem:[%s1 + $0x548] sm:$0xf]
  %v280 = vld [vmem:[%s1 + $0x54c] sm:$0xff]
  %v281 = vld [vmem:[%s1 + $0x554] sm:$0xf]
  %v282 = vld [vmem:[%s1 + $0x558] sm:$0xff]
  %v283 = vld [vmem:[%s1 + $0x560] sm:$0xf]
  %v284 = vld [vmem:[%s1 + $0x564] sm:$0xff]
  %v285 = vld [vmem:[%s1 + $0x56c] sm:$0xf]
  %v286 = vld [vmem:[%s1 + $0x570] sm:$0xff]
  %v287 = vld [vmem:[%s1 + $0x578] sm:$0xf]
  %v288 = vld [vmem:[%s1 + $0x57c] sm:$0xff]
  %v289 = vld [vmem:[%s1 + $0x584] sm:$0xf]
  %v290 = vld [vmem:[%s1 + $0x588] sm:$0xff]
  %v291 = vld [vmem:[%s1 + $0x590] sm:$0xf]
  %v292 = vld [vmem:[%s1 + $0x594] sm:$0xff]
  %v293 = vld [vmem:[%s1 + $0x59c] sm:$0xf]
  %v294 = vld [vmem:[%s1 + $0x5a0] sm:$0xff]
  %v295 = vld [vmem:[%s1 + $0x5a8] sm:$0xf]
  %v296 = vld [vmem:[%s1 + $0x5ac] sm:$0xff]
  %v297 = vld [vmem:[%s1 + $0x5b4] sm:$0xf]
  %v298 = vld [vmem:[%s1 + $0x5b8] sm:$0xff]
  %v299 = vld [vmem:[%s1 + $0x5c0] sm:$0xf]
  %v300 = vld [vmem:[%s1 + $0x5c4] sm:$0xff]
  %v301 = vld [vmem:[%s1 + $0x5cc] sm:$0xf]
  %v302 = vld [vmem:[%s1 + $0x5d0] sm:$0xff]
  %v303 = vld [vmem:[%s1 + $0x5d8] sm:$0xf]
  %v304 = vld [vmem:[%s1 + $0x5dc] sm:$0xff]
  %v305 = vld [vmem:[%s1 + $0x5e4] sm:$0xf]
  %v306 = vld [vmem:[%s1 + $0x5e8] sm:$0xff]
  %v307 = vld [vmem:[%s1 + $0x5f0] sm:$0xf]
  %v308 = vld [vmem:[%s1 + $0x5f4] sm:$0xff]
  %v309 = vld [vmem:[%s1 + $0x5fc] sm:$0xf]
  %v310 = vld [vmem:[%s1 + $0x600] sm:$0xff]
  %v311 = vld [vmem:[%s1 + $0x608] sm:$0xf]
  %v312 = vld [vmem:[%s1 + $0x60c] sm:$0xff]
  %v313 = vld [vmem:[%s1 + $0x614] sm:$0xf]
  %v314 = vld [vmem:[%s1 + $0x618] sm:$0xff]
  %v315 = vld [vmem:[%s1 + $0x620] sm:$0xf]
  %v316 = vld [vmem:[%s1 + $0x624] sm:$0xff]
  %v317 = vld [vmem:[%s1 + $0x62c] sm:$0xf]
  %v318 = vld [vmem:[%s1 + $0x630] sm:$0xff]
  %v319 = vld [vmem:[%s1 + $0x638] sm:$0xf]
  %v320 = vld [vmem:[%s1 + $0x63c] sm:$0xff]
  %v321 = vld [vmem:[%s1 + $0x644] sm:$0xf]
  %v322 = vld [vmem:[%s1 + $0x648] sm:$0xff]
  %v323 = vld [vmem:[%s1 + $0x650] sm:$0xf]
  %v324 = vld [vmem:[%s1 + $0x654] sm:$0xff]
  %v325 = vld [vmem:[%s1 + $0x65c] sm:$0xf]
  %v326 = vld [vmem:[%s1 + $0x660] sm:$0xff]
  %v327 = vld [vmem:[%s1 + $0x668] sm:$0xf]
  %v328 = vld [vmem:[%s1 + $0x66c] sm:$0xff]
  %v329 = vld [vmem:[%s1 + $0x674] sm:$0xf]
  %v330 = vld [vmem:[%s1 + $0x678] sm:$0xff]
  %v331 = vld [vmem:[%s1 + $0x680] sm:$0xf]
  %v332 = vld [vmem:[%s1 + $0x684] sm:$0xff]
  %v333 = vld [vmem:[%s1 + $0x68c] sm:$0xf]
  %v334 = vld [vmem:[%s1 + $0x690] sm:$0xff]
  %v335 = vld [vmem:[%s1 + $0x698] sm:$0xf]
  %v336 = vld [vmem:[%s1 + $0x69c] sm:$0xff]
  %v337 = vld [vmem:[%s1 + $0x6a4] sm:$0xf]
  %v338 = vld [vmem:[%s1 + $0x6a8] sm:$0xff]
  %v339 = vld [vmem:[%s1 + $0x6b0] sm:$0xf]
  %v340 = vld [vmem:[%s1 + $0x6b4] sm:$0xff]
  %v341 = vld [vmem:[%s1 + $0x6bc] sm:$0xf]
  %v342 = vld [vmem:[%s1 + $0x6c0] sm:$0xff]
  %v343 = vld [vmem:[%s1 + $0x6c8] sm:$0xf]
  %v344 = vld [vmem:[%s1 + $0x6cc] sm:$0xff]
  %v345 = vld [vmem:[%s1 + $0x6d4] sm:$0xf]
  %v346 = vld [vmem:[%s1 + $0x6d8] sm:$0xff]
  %v347 = vld [vmem:[%s1 + $0x6e0] sm:$0xf]
  %v348 = vld [vmem:[%s1 + $0x6e4] sm:$0xff]
  %v349 = vld [vmem:[%s1 + $0x6ec] sm:$0xf]
  %v350 = vld [vmem:[%s1 + $0x6f0] sm:$0xff]
  %v351 = vld [vmem:[%s1 + $0x6f8] sm:$0xf]
  %v352 = vld [vmem:[%s1 + $0x6fc] sm:$0xff]
  %v353 = vld [vmem:[%s1 + $0x704] sm:$0xf]
  %v354 = vld [vmem:[%s1 + $0x708] sm:$0xff]
  %v355 = vld [vmem:[%s1 + $0x710] sm:$0xf]
  %v356 = vld [vmem:[%s1 + $0x714] sm:$0xff]
  %v357 = vld [vmem:[%s1 + $0x71c] sm:$0xf]
  %v358 = vld [vmem:[%s1 + $0x720] sm:$0xff]
  %v359 = vld [vmem:[%s1 + $0x728] sm:$0xf]
  %v360 = vld [vmem:[%s1 + $0x72c] sm:$0xff]
  %v361 = vld [vmem:[%s1 + $0x734] sm:$0xf]
  %v362 = vld [vmem:[%s1 + $0x738] sm:$0xff]
  %v363 = vld [vmem:[%s1 + $0x740] sm:$0xf]
  %v364 = vld [vmem:[%s1 + $0x744] sm:$0xff]
  %v365 = vld [vmem:[%s1 + $0x74c] sm:$0xf]
  %v366 = vld [vmem:[%s1 + $0x750] sm:$0xff]
  %v367 = vld [vmem:[%s1 + $0x758] sm:$0xf]
  %v368 = vld [vmem:[%s1 + $0x75c] sm:$0xff]
  %v369 = vld [vmem:[%s1 + $0x764] sm:$0xf]
  %v370 = vld [vmem:[%s1 + $0x768] sm:$0xff]
  %v371 = vld [vmem:[%s1 + $0x770] sm:$0xf]
  %v372 = vld [vmem:[%s1 + $0x774] sm:$0xff]
  %v373 = vld [vmem:[%s1 + $0x77c] sm:$0xf]
  %v374 = vld [vmem:[%s1 + $0x780] sm:$0xff]
  %v375 = vld [vmem:[%s1 + $0x788] sm:$0xf]
  %v376 = vld [vmem:[%s1 + $0x78c] sm:$0xff]
  %v377 = vld [vmem:[%s1 + $0x794] sm:$0xf]
  %v378 = vld [vmem:[%s1 + $0x798] sm:$0xff]
  %v379 = vld [vmem:[%s1 + $0x7a0] sm:$0xf]
  %v380 = vld [vmem:[%s1 + $0x7a4] sm:$0xff]
  %v381 = vld [vmem:[%s1 + $0x7ac] sm:$0xf]
  %v382 = vld [vmem:[%s1 + $0x7b0] sm:$0xff]
  %v383 = vld [vmem:[%s1 + $0x7b8] sm:$0xf]
  %v384 = vld [vmem:[%s1 + $0x7bc] sm:$0xff]
  %v385 = vld [vmem:[%s1 + $0x7c4] sm:$0xf]
  %v386 = vld [vmem:[%s1 + $0x7c8] sm:$0xff]
  %v387 = vld [vmem:[%s1 + $0x7d0] sm:$0xf]
  %v388 = vld [vmem:[%s1 + $0x7d4] sm:$0xff]
  %v389 = vld [vmem:[%s1 + $0x7dc] sm:$0xf]
  %v390 = vld [vmem:[%s1 + $0x7e0] sm:$0xff]
  %v391 = vld [vmem:[%s1 + $0x7e8] sm:$0xf]
  %v392 = vld [vmem:[%s1 + $0x7ec] sm:$0xff]
  %v393 = vld [vmem:[%s1 + $0x7f4] sm:$0xf]
  %v394 = vld [vmem:[%s1 + $0x7f8] sm:$0xff]
  %v395 = vld [vmem:[%s1 + $0x800] sm:$0xf]
  %v396 = vld [vmem:[%s1 + $0x804] sm:$0xff]
  %v397 = vld [vmem:[%s1 + $0x80c] sm:$0xf]
  %v398 = vld [vmem:[%s1 + $0x810] sm:$0xff]
  %v399 = vld [vmem:[%s1 + $0x818] sm:$0xf]
  %v400 = vld [vmem:[%s1 + $0x81c] sm:$0xff]
  %v401 = vld [vmem:[%s1 + $0x824] sm:$0xf]
  %v402 = vld [vmem:[%s1 + $0x828] sm:$0xff]
  %v403 = vld [vmem:[%s1 + $0x830] sm:$0xf]
  %v404 = vld [vmem:[%s1 + $0x834] sm:$0xff]
  %v405 = vld [vmem:[%s1 + $0x83c] sm:$0xf]
  %v406 = vld [vmem:[%s1 + $0x840] sm:$0xff]
  %v407 = vld [vmem:[%s1 + $0x848] sm:$0xf]
  %v408 = vld [vmem:[%s1 + $0x84c] sm:$0xff]
  %v409 = vld [vmem:[%s1 + $0x854] sm:$0xf]
  %v410 = vld [vmem:[%s1 + $0x858] sm:$0xff]
  %v411 = vld [vmem:[%s1 + $0x860] sm:$0xf]
  %v412 = vld [vmem:[%s1 + $0x864] sm:$0xff]
  %v413 = vld [vmem:[%s1 + $0x86c] sm:$0xf]
  %v414 = vld [vmem:[%s1 + $0x870] sm:$0xff]
  %v415 = vld [vmem:[%s1 + $0x878] sm:$0xf]
  %v416 = vld [vmem:[%s1 + $0x87c] sm:$0xff]
  %v417 = vld [vmem:[%s1 + $0x884] sm:$0xf]
  %v418 = vld [vmem:[%s1 + $0x888] sm:$0xff]
  %v419 = vld [vmem:[%s1 + $0x890] sm:$0xf]
  %v420 = vld [vmem:[%s1 + $0x894] sm:$0xff]
  %v421 = vld [vmem:[%s1 + $0x89c] sm:$0xf]
  %v422 = vld [vmem:[%s1 + $0x8a0] sm:$0xff]
  %v423 = vld [vmem:[%s1 + $0x8a8] sm:$0xf]
  %v424 = vld [vmem:[%s1 + $0x8ac] sm:$0xff]
  %v425 = vld [vmem:[%s1 + $0x8b4] sm:$0xf]
  %v426 = vld [vmem:[%s1 + $0x8b8] sm:$0xff]
  %v427 = vld [vmem:[%s1 + $0x8c0] sm:$0xf]
  %v428 = vld [vmem:[%s1 + $0x8c4] sm:$0xff]
  %v429 = vld [vmem:[%s1 + $0x8cc] sm:$0xf]
  %v430 = vld [vmem:[%s1 + $0x8d0] sm:$0xff]
  %v431 = vld [vmem:[%s1 + $0x8d8] sm:$0xf]
  %v432 = vld [vmem:[%s1 + $0x8dc] sm:$0xff]
  %v433 = vld [vmem:[%s1 + $0x8e4] sm:$0xf]
  %v434 = vld [vmem:[%s1 + $0x8e8] sm:$0xff]
  %v435 = vld [vmem:[%s1 + $0x8f0] sm:$0xf]
  %v436 = vld [vmem:[%s1 + $0x8f4] sm:$0xff]
  %v437 = vld [vmem:[%s1 + $0x8fc] sm:$0xf]
  %v438 = vld [vmem:[%s2] sm:$0x7]
  %v440 = vlaneseq
  %v441 = vshrl.u32 %v440, 7
  %v442 = vsub.s32 0, %v441
  %v443 = vrot.slane %v438, %v442
  %v444 = vlaneseq
  %v445 = vshrl.u32 %v444, 7
  %v446 = vsub.s32 1, %v445
  %v447 = vrot.slane %v438, %v446
  %v448 = vlaneseq
  %v449 = vshrl.u32 %v448, 7
  %v450 = vsub.s32 2, %v449
  %v451 = vrot.slane %v438, %v450
  %v491 = vunpack.c.l.b16 %v18
  %v492 = vunpack.c.h.b16 %v18
  %v493 = vunpack.c.l.b16 %v19
  %v494 = vunpack.c.h.b16 %v19
  %v495 = vunpack.c.l.b16 %v20
  %v496 = vunpack.c.h.b16 %v20
  %v497 = vunpack.c.l.b16 %v21
  %v498 = vunpack.c.h.b16 %v21
  %v499 = vunpack.c.l.b16 %v22
  %v500 = vunpack.c.h.b16 %v22
  %v501 = vunpack.c.l.b16 %v23
  %v502 = vunpack.c.h.b16 %v23
  %v503 = vunpack.c.l.b16 %v24
  %v504 = vunpack.c.h.b16 %v24
  %v505 = vunpack.c.l.b16 %v25
  %v506 = vunpack.c.h.b16 %v25
  %v507 = vunpack.c.l.b16 %v26
  %v508 = vunpack.c.h.b16 %v26
  %v509 = vunpack.c.l.b16 %v27
  %v510 = vunpack.c.h.b16 %v27
  %v511 = vunpack.c.l.b16 %v28
  %v512 = vunpack.c.h.b16 %v28
  %v513 = vunpack.c.l.b16 %v29
  %v514 = vunpack.c.h.b16 %v29
  %v515 = vunpack.c.l.b16 %v30
  %v516 = vunpack.c.h.b16 %v30
  %v517 = vunpack.c.l.b16 %v31
  %v518 = vunpack.c.h.b16 %v31
  %v519 = vunpack.c.l.b16 %v32
  %v520 = vunpack.c.h.b16 %v32
  %v521 = vunpack.c.l.b16 %v33
  %v522 = vunpack.c.h.b16 %v33
  %v523 = vunpack.c.l.b16 %v34
  %v524 = vunpack.c.h.b16 %v34
  %v525 = vunpack.c.l.b16 %v35
  %v526 = vunpack.c.h.b16 %v35
  %v527 = vunpack.c.l.b16 %v36
  %v528 = vunpack.c.h.b16 %v36
  %v529 = vunpack.c.l.b16 %v37
  %v530 = vunpack.c.h.b16 %v37
  %v531 = vunpack.c.l.b16 %v38
  %v532 = vunpack.c.h.b16 %v38
  %v533 = vunpack.c.l.b16 %v39
  %v534 = vunpack.c.h.b16 %v39
  %v535 = vunpack.c.l.b16 %v40
  %v536 = vunpack.c.h.b16 %v40
  %v537 = vunpack.c.l.b16 %v41
  %v538 = vunpack.c.h.b16 %v41
  %v539 = vunpack.c.l.b16 %v42
  %v540 = vunpack.c.h.b16 %v42
  %v541 = vunpack.c.l.b16 %v43
  %v542 = vunpack.c.h.b16 %v43
  %v543 = vunpack.c.l.b16 %v44
  %v544 = vunpack.c.h.b16 %v44
  %v545 = vunpack.c.l.b16 %v45
  %v546 = vunpack.c.h.b16 %v45
  %v547 = vunpack.c.l.b16 %v46
  %v548 = vunpack.c.h.b16 %v46
  %v549 = vunpack.c.l.b16 %v47
  %v550 = vunpack.c.h.b16 %v47
  %v551 = vunpack.c.l.b16 %v48
  %v552 = vunpack.c.h.b16 %v48
  %v553 = vunpack.c.l.b16 %v49
  %v554 = vunpack.c.h.b16 %v49
  %v555 = vunpack.c.l.b16 %v50
  %v556 = vunpack.c.h.b16 %v50
  %v557 = vunpack.c.l.b16 %v51
  %v558 = vunpack.c.h.b16 %v51
  %v559 = vunpack.c.l.b16 %v52
  %v560 = vunpack.c.h.b16 %v52
  %v561 = vunpack.c.l.b16 %v53
  %v562 = vunpack.c.h.b16 %v53
  %v563 = vpack.c.b16 %v503, %v491
  %v564 = vpack.c.b16 %v504, %v492
  %v565 = vpack.c.b16 %v505, %v493
  %v566 = vpack.c.b16 %v506, %v494
  %v567 = vpack.c.b16 %v507, %v495
  %v568 = vpack.c.b16 %v508, %v496
  %v569 = vpack.c.b16 %v509, %v497
  %v570 = vpack.c.b16 %v510, %v498
  %v571 = vpack.c.b16 %v511, %v499
  %v572 = vpack.c.b16 %v512, %v500
  %v573 = vpack.c.b16 %v513, %v501
  %v574 = vpack.c.b16 %v514, %v502
  %v575 = vpack.c.b16 %v527, %v515
  %v576 = vpack.c.b16 %v528, %v516
  %v577 = vpack.c.b16 %v529, %v517
  %v578 = vpack.c.b16 %v530, %v518
  %v579 = vpack.c.b16 %v531, %v519
  %v580 = vpack.c.b16 %v532, %v520
  %v581 = vpack.c.b16 %v533, %v521
  %v582 = vpack.c.b16 %v534, %v522
  %v583 = vpack.c.b16 %v535, %v523
  %v584 = vpack.c.b16 %v536, %v524
  %v585 = vpack.c.b16 %v537, %v525
  %v586 = vpack.c.b16 %v538, %v526
  %v587 = vpack.c.b16 %v551, %v539
  %v588 = vpack.c.b16 %v552, %v540
  %v589 = vpack.c.b16 %v553, %v541
  %v590 = vpack.c.b16 %v554, %v542
  %v591 = vpack.c.b16 %v555, %v543
  %v592 = vpack.c.b16 %v556, %v544
  %v593 = vpack.c.b16 %v557, %v545
  %v594 = vpack.c.b16 %v558, %v546
  %v595 = vpack.c.b16 %v559, %v547
  %v596 = vpack.c.b16 %v560, %v548
  %v597 = vpack.c.b16 %v561, %v549
  %v598 = vpack.c.b16 %v562, %v550
  %v1019 = vunpack.c.l.b16 %v54
  %v1020 = vunpack.c.h.b16 %v54
  %v1021 = vunpack.c.l.b16 %v55
  %v1022 = vunpack.c.l.b16 %v56
  %v1023 = vunpack.c.h.b16 %v56
  %v1024 = vunpack.c.l.b16 %v57
  %v1025 = vunpack.c.l.b16 %v58
  %v1026 = vunpack.c.h.b16 %v58
  %v1027 = vunpack.c.l.b16 %v59
  %v1028 = vunpack.c.l.b16 %v60
  %v1029 = vunpack.c.h.b16 %v60
  %v1030 = vunpack.c.l.b16 %v61
  %v1031 = vunpack.c.l.b16 %v62
  %v1032 = vunpack.c.h.b16 %v62
  %v1033 = vunpack.c.l.b16 %v63
  %v1034 = vunpack.c.l.b16 %v64
  %v1035 = vunpack.c.h.b16 %v64
  %v1036 = vunpack.c.l.b16 %v65
  %v1037 = vunpack.c.l.b16 %v66
  %v1038 = vunpack.c.h.b16 %v66
  %v1039 = vunpack.c.l.b16 %v67
  %v1040 = vunpack.c.l.b16 %v68
  %v1041 = vunpack.c.h.b16 %v68
  %v1042 = vunpack.c.l.b16 %v69
  %v1043 = vunpack.c.l.b16 %v70
  %v1044 = vunpack.c.h.b16 %v70
  %v1045 = vunpack.c.l.b16 %v71
  %v1046 = vunpack.c.l.b16 %v72
  %v1047 = vunpack.c.h.b16 %v72
  %v1048 = vunpack.c.l.b16 %v73
  %v1049 = vunpack.c.l.b16 %v74
  %v1050 = vunpack.c.h.b16 %v74
  %v1051 = vunpack.c.l.b16 %v75
  %v1052 = vunpack.c.l.b16 %v76
  %v1053 = vunpack.c.h.b16 %v76
  %v1054 = vunpack.c.l.b16 %v77
  %v1055 = vunpack.c.l.b16 %v78
  %v1056 = vunpack.c.h.b16 %v78
  %v1057 = vunpack.c.l.b16 %v79
  %v1058 = vunpack.c.l.b16 %v80
  %v1059 = vunpack.c.h.b16 %v80
  %v1060 = vunpack.c.l.b16 %v81
  %v1061 = vunpack.c.l.b16 %v82
  %v1062 = vunpack.c.h.b16 %v82
  %v1063 = vunpack.c.l.b16 %v83
  %v1064 = vunpack.c.l.b16 %v84
  %v1065 = vunpack.c.h.b16 %v84
  %v1066 = vunpack.c.l.b16 %v85
  %v1067 = vunpack.c.l.b16 %v86
  %v1068 = vunpack.c.h.b16 %v86
  %v1069 = vunpack.c.l.b16 %v87
  %v1070 = vunpack.c.l.b16 %v88
  %v1071 = vunpack.c.h.b16 %v88
  %v1072 = vunpack.c.l.b16 %v89
  %v1073 = vunpack.c.l.b16 %v90
  %v1074 = vunpack.c.h.b16 %v90
  %v1075 = vunpack.c.l.b16 %v91
  %v1076 = vunpack.c.l.b16 %v92
  %v1077 = vunpack.c.h.b16 %v92
  %v1078 = vunpack.c.l.b16 %v93
  %v1079 = vunpack.c.l.b16 %v94
  %v1080 = vunpack.c.h.b16 %v94
  %v1081 = vunpack.c.l.b16 %v95
  %v1082 = vunpack.c.l.b16 %v96
  %v1083 = vunpack.c.h.b16 %v96
  %v1084 = vunpack.c.l.b16 %v97
  %v1085 = vunpack.c.l.b16 %v98
  %v1086 = vunpack.c.h.b16 %v98
  %v1087 = vunpack.c.l.b16 %v99
  %v1088 = vunpack.c.l.b16 %v100
  %v1089 = vunpack.c.h.b16 %v100
  %v1090 = vunpack.c.l.b16 %v101
  %v1091 = vunpack.c.l.b16 %v102
  %v1092 = vunpack.c.h.b16 %v102
  %v1093 = vunpack.c.l.b16 %v103
  %v1094 = vunpack.c.l.b16 %v104
  %v1095 = vunpack.c.h.b16 %v104
  %v1096 = vunpack.c.l.b16 %v105
  %v1097 = vunpack.c.l.b16 %v106
  %v1098 = vunpack.c.h.b16 %v106
  %v1099 = vunpack.c.l.b16 %v107
  %v1100 = vunpack.c.l.b16 %v108
  %v1101 = vunpack.c.h.b16 %v108
  %v1102 = vunpack.c.l.b16 %v109
  %v1103 = vunpack.c.l.b16 %v110
  %v1104 = vunpack.c.h.b16 %v110
  %v1105 = vunpack.c.l.b16 %v111
  %v1106 = vunpack.c.l.b16 %v112
  %v1107 = vunpack.c.h.b16 %v112
  %v1108 = vunpack.c.l.b16 %v113
  %v1109 = vunpack.c.l.b16 %v114
  %v1110 = vunpack.c.h.b16 %v114
  %v1111 = vunpack.c.l.b16 %v115
  %v1112 = vunpack.c.l.b16 %v116
  %v1113 = vunpack.c.h.b16 %v116
  %v1114 = vunpack.c.l.b16 %v117
  %v1115 = vunpack.c.l.b16 %v118
  %v1116 = vunpack.c.h.b16 %v118
  %v1117 = vunpack.c.l.b16 %v119
  %v1118 = vunpack.c.l.b16 %v120
  %v1119 = vunpack.c.h.b16 %v120
  %v1120 = vunpack.c.l.b16 %v121
  %v1121 = vunpack.c.l.b16 %v122
  %v1122 = vunpack.c.h.b16 %v122
  %v1123 = vunpack.c.l.b16 %v123
  %v1124 = vunpack.c.l.b16 %v124
  %v1125 = vunpack.c.h.b16 %v124
  %v1126 = vunpack.c.l.b16 %v125
  %v1127 = vunpack.c.l.b16 %v126
  %v1128 = vunpack.c.h.b16 %v126
  %v1129 = vunpack.c.l.b16 %v127
  %v1130 = vunpack.c.l.b16 %v128
  %v1131 = vunpack.c.h.b16 %v128
  %v1132 = vunpack.c.l.b16 %v129
  %v1133 = vunpack.c.l.b16 %v130
  %v1134 = vunpack.c.h.b16 %v130
  %v1135 = vunpack.c.l.b16 %v131
  %v1136 = vunpack.c.l.b16 %v132
  %v1137 = vunpack.c.h.b16 %v132
  %v1138 = vunpack.c.l.b16 %v133
  %v1139 = vunpack.c.l.b16 %v134
  %v1140 = vunpack.c.h.b16 %v134
  %v1141 = vunpack.c.l.b16 %v135
  %v1142 = vunpack.c.l.b16 %v136
  %v1143 = vunpack.c.h.b16 %v136
  %v1144 = vunpack.c.l.b16 %v137
  %v1145 = vunpack.c.l.b16 %v138
  %v1146 = vunpack.c.h.b16 %v138
  %v1147 = vunpack.c.l.b16 %v139
  %v1148 = vunpack.c.l.b16 %v140
  %v1149 = vunpack.c.h.b16 %v140
  %v1150 = vunpack.c.l.b16 %v141
  %v1151 = vunpack.c.l.b16 %v142
  %v1152 = vunpack.c.h.b16 %v142
  %v1153 = vunpack.c.l.b16 %v143
  %v1154 = vunpack.c.l.b16 %v144
  %v1155 = vunpack.c.h.b16 %v144
  %v1156 = vunpack.c.l.b16 %v145
  %v1157 = vunpack.c.l.b16 %v146
  %v1158 = vunpack.c.h.b16 %v146
  %v1159 = vunpack.c.l.b16 %v147
  %v1160 = vunpack.c.l.b16 %v148
  %v1161 = vunpack.c.h.b16 %v148
  %v1162 = vunpack.c.l.b16 %v149
  %v1163 = vunpack.c.l.b16 %v150
  %v1164 = vunpack.c.h.b16 %v150
  %v1165 = vunpack.c.l.b16 %v151
  %v1166 = vunpack.c.l.b16 %v152
  %v1167 = vunpack.c.h.b16 %v152
  %v1168 = vunpack.c.l.b16 %v153
  %v1169 = vunpack.c.l.b16 %v154
  %v1170 = vunpack.c.h.b16 %v154
  %v1171 = vunpack.c.l.b16 %v155
  %v1172 = vunpack.c.l.b16 %v156
  %v1173 = vunpack.c.h.b16 %v156
  %v1174 = vunpack.c.l.b16 %v157
  %v1175 = vunpack.c.l.b16 %v158
  %v1176 = vunpack.c.h.b16 %v158
  %v1177 = vunpack.c.l.b16 %v159
  %v1178 = vunpack.c.l.b16 %v160
  %v1179 = vunpack.c.h.b16 %v160
  %v1180 = vunpack.c.l.b16 %v161
  %v1181 = vunpack.c.l.b16 %v162
  %v1182 = vunpack.c.h.b16 %v162
  %v1183 = vunpack.c.l.b16 %v163
  %v1184 = vunpack.c.l.b16 %v164
  %v1185 = vunpack.c.h.b16 %v164
  %v1186 = vunpack.c.l.b16 %v165
  %v1187 = vunpack.c.l.b16 %v166
  %v1188 = vunpack.c.h.b16 %v166
  %v1189 = vunpack.c.l.b16 %v167
  %v1190 = vunpack.c.l.b16 %v168
  %v1191 = vunpack.c.h.b16 %v168
  %v1192 = vunpack.c.l.b16 %v169
  %v1193 = vunpack.c.l.b16 %v170
  %v1194 = vunpack.c.h.b16 %v170
  %v1195 = vunpack.c.l.b16 %v171
  %v1196 = vunpack.c.l.b16 %v172
  %v1197 = vunpack.c.h.b16 %v172
  %v1198 = vunpack.c.l.b16 %v173
  %v1199 = vunpack.c.l.b16 %v174
  %v1200 = vunpack.c.h.b16 %v174
  %v1201 = vunpack.c.l.b16 %v175
  %v1202 = vunpack.c.l.b16 %v176
  %v1203 = vunpack.c.h.b16 %v176
  %v1204 = vunpack.c.l.b16 %v177
  %v1205 = vunpack.c.l.b16 %v178
  %v1206 = vunpack.c.h.b16 %v178
  %v1207 = vunpack.c.l.b16 %v179
  %v1208 = vunpack.c.l.b16 %v180
  %v1209 = vunpack.c.h.b16 %v180
  %v1210 = vunpack.c.l.b16 %v181
  %v1211 = vunpack.c.l.b16 %v182
  %v1212 = vunpack.c.h.b16 %v182
  %v1213 = vunpack.c.l.b16 %v183
  %v1214 = vunpack.c.l.b16 %v184
  %v1215 = vunpack.c.h.b16 %v184
  %v1216 = vunpack.c.l.b16 %v185
  %v1217 = vunpack.c.l.b16 %v186
  %v1218 = vunpack.c.h.b16 %v186
  %v1219 = vunpack.c.l.b16 %v187
  %v1220 = vunpack.c.l.b16 %v188
  %v1221 = vunpack.c.h.b16 %v188
  %v1222 = vunpack.c.l.b16 %v189
  %v1223 = vunpack.c.l.b16 %v190
  %v1224 = vunpack.c.h.b16 %v190
  %v1225 = vunpack.c.l.b16 %v191
  %v1226 = vunpack.c.l.b16 %v192
  %v1227 = vunpack.c.h.b16 %v192
  %v1228 = vunpack.c.l.b16 %v193
  %v1229 = vunpack.c.l.b16 %v194
  %v1230 = vunpack.c.h.b16 %v194
  %v1231 = vunpack.c.l.b16 %v195
  %v1232 = vunpack.c.l.b16 %v196
  %v1233 = vunpack.c.h.b16 %v196
  %v1234 = vunpack.c.l.b16 %v197
  %v1235 = vunpack.c.l.b16 %v198
  %v1236 = vunpack.c.h.b16 %v198
  %v1237 = vunpack.c.l.b16 %v199
  %v1238 = vunpack.c.l.b16 %v200
  %v1239 = vunpack.c.h.b16 %v200
  %v1240 = vunpack.c.l.b16 %v201
  %v1241 = vunpack.c.l.b16 %v202
  %v1242 = vunpack.c.h.b16 %v202
  %v1243 = vunpack.c.l.b16 %v203
  %v1244 = vunpack.c.l.b16 %v204
  %v1245 = vunpack.c.h.b16 %v204
  %v1246 = vunpack.c.l.b16 %v205
  %v1247 = vunpack.c.l.b16 %v206
  %v1248 = vunpack.c.h.b16 %v206
  %v1249 = vunpack.c.l.b16 %v207
  %v1250 = vunpack.c.l.b16 %v208
  %v1251 = vunpack.c.h.b16 %v208
  %v1252 = vunpack.c.l.b16 %v209
  %v1253 = vunpack.c.l.b16 %v210
  %v1254 = vunpack.c.h.b16 %v210
  %v1255 = vunpack.c.l.b16 %v211
  %v1256 = vunpack.c.l.b16 %v212
  %v1257 = vunpack.c.h.b16 %v212
  %v1258 = vunpack.c.l.b16 %v213
  %v1259 = vunpack.c.l.b16 %v214
  %v1260 = vunpack.c.h.b16 %v214
  %v1261 = vunpack.c.l.b16 %v215
  %v1262 = vunpack.c.l.b16 %v216
  %v1263 = vunpack.c.h.b16 %v216
  %v1264 = vunpack.c.l.b16 %v217
  %v1265 = vunpack.c.l.b16 %v218
  %v1266 = vunpack.c.h.b16 %v218
  %v1267 = vunpack.c.l.b16 %v219
  %v1268 = vunpack.c.l.b16 %v220
  %v1269 = vunpack.c.h.b16 %v220
  %v1270 = vunpack.c.l.b16 %v221
  %v1271 = vunpack.c.l.b16 %v222
  %v1272 = vunpack.c.h.b16 %v222
  %v1273 = vunpack.c.l.b16 %v223
  %v1274 = vunpack.c.l.b16 %v224
  %v1275 = vunpack.c.h.b16 %v224
  %v1276 = vunpack.c.l.b16 %v225
  %v1277 = vunpack.c.l.b16 %v226
  %v1278 = vunpack.c.h.b16 %v226
  %v1279 = vunpack.c.l.b16 %v227
  %v1280 = vunpack.c.l.b16 %v228
  %v1281 = vunpack.c.h.b16 %v228
  %v1282 = vunpack.c.l.b16 %v229
  %v1283 = vunpack.c.l.b16 %v230
  %v1284 = vunpack.c.h.b16 %v230
  %v1285 = vunpack.c.l.b16 %v231
  %v1286 = vunpack.c.l.b16 %v232
  %v1287 = vunpack.c.h.b16 %v232
  %v1288 = vunpack.c.l.b16 %v233
  %v1289 = vunpack.c.l.b16 %v234
  %v1290 = vunpack.c.h.b16 %v234
  %v1291 = vunpack.c.l.b16 %v235
  %v1292 = vunpack.c.l.b16 %v236
  %v1293 = vunpack.c.h.b16 %v236
  %v1294 = vunpack.c.l.b16 %v237
  %v1295 = vunpack.c.l.b16 %v238
  %v1296 = vunpack.c.h.b16 %v238
  %v1297 = vunpack.c.l.b16 %v239
  %v1298 = vunpack.c.l.b16 %v240
  %v1299 = vunpack.c.h.b16 %v240
  %v1300 = vunpack.c.l.b16 %v241
  %v1301 = vunpack.c.l.b16 %v242
  %v1302 = vunpack.c.h.b16 %v242
  %v1303 = vunpack.c.l.b16 %v243
  %v1304 = vunpack.c.l.b16 %v244
  %v1305 = vunpack.c.h.b16 %v244
  %v1306 = vunpack.c.l.b16 %v245
  %v1307 = vunpack.c.l.b16 %v246
  %v1308 = vunpack.c.h.b16 %v246
  %v1309 = vunpack.c.l.b16 %v247
  %v1310 = vunpack.c.l.b16 %v248
  %v1311 = vunpack.c.h.b16 %v248
  %v1312 = vunpack.c.l.b16 %v249
  %v1313 = vunpack.c.l.b16 %v250
  %v1314 = vunpack.c.h.b16 %v250
  %v1315 = vunpack.c.l.b16 %v251
  %v1316 = vunpack.c.l.b16 %v252
  %v1317 = vunpack.c.h.b16 %v252
  %v1318 = vunpack.c.l.b16 %v253
  %v1319 = vunpack.c.l.b16 %v254
  %v1320 = vunpack.c.h.b16 %v254
  %v1321 = vunpack.c.l.b16 %v255
  %v1322 = vunpack.c.l.b16 %v256
  %v1323 = vunpack.c.h.b16 %v256
  %v1324 = vunpack.c.l.b16 %v257
  %v1325 = vunpack.c.l.b16 %v258
  %v1326 = vunpack.c.h.b16 %v258
  %v1327 = vunpack.c.l.b16 %v259
  %v1328 = vunpack.c.l.b16 %v260
  %v1329 = vunpack.c.h.b16 %v260
  %v1330 = vunpack.c.l.b16 %v261
  %v1331 = vunpack.c.l.b16 %v262
  %v1332 = vunpack.c.h.b16 %v262
  %v1333 = vunpack.c.l.b16 %v263
  %v1334 = vunpack.c.l.b16 %v264
  %v1335 = vunpack.c.h.b16 %v264
  %v1336 = vunpack.c.l.b16 %v265
  %v1337 = vunpack.c.l.b16 %v266
  %v1338 = vunpack.c.h.b16 %v266
  %v1339 = vunpack.c.l.b16 %v267
  %v1340 = vunpack.c.l.b16 %v268
  %v1341 = vunpack.c.h.b16 %v268
  %v1342 = vunpack.c.l.b16 %v269
  %v1343 = vunpack.c.l.b16 %v270
  %v1344 = vunpack.c.h.b16 %v270
  %v1345 = vunpack.c.l.b16 %v271
  %v1346 = vunpack.c.l.b16 %v272
  %v1347 = vunpack.c.h.b16 %v272
  %v1348 = vunpack.c.l.b16 %v273
  %v1349 = vunpack.c.l.b16 %v274
  %v1350 = vunpack.c.h.b16 %v274
  %v1351 = vunpack.c.l.b16 %v275
  %v1352 = vunpack.c.l.b16 %v276
  %v1353 = vunpack.c.h.b16 %v276
  %v1354 = vunpack.c.l.b16 %v277
  %v1355 = vunpack.c.l.b16 %v278
  %v1356 = vunpack.c.h.b16 %v278
  %v1357 = vunpack.c.l.b16 %v279
  %v1358 = vunpack.c.l.b16 %v280
  %v1359 = vunpack.c.h.b16 %v280
  %v1360 = vunpack.c.l.b16 %v281
  %v1361 = vunpack.c.l.b16 %v282
  %v1362 = vunpack.c.h.b16 %v282
  %v1363 = vunpack.c.l.b16 %v283
  %v1364 = vunpack.c.l.b16 %v284
  %v1365 = vunpack.c.h.b16 %v284
  %v1366 = vunpack.c.l.b16 %v285
  %v1367 = vunpack.c.l.b16 %v286
  %v1368 = vunpack.c.h.b16 %v286
  %v1369 = vunpack.c.l.b16 %v287
  %v1370 = vunpack.c.l.b16 %v288
  %v1371 = vunpack.c.h.b16 %v288
  %v1372 = vunpack.c.l.b16 %v289
  %v1373 = vunpack.c.l.b16 %v290
  %v1374 = vunpack.c.h.b16 %v290
  %v1375 = vunpack.c.l.b16 %v291
  %v1376 = vunpack.c.l.b16 %v292
  %v1377 = vunpack.c.h.b16 %v292
  %v1378 = vunpack.c.l.b16 %v293
  %v1379 = vunpack.c.l.b16 %v294
  %v1380 = vunpack.c.h.b16 %v294
  %v1381 = vunpack.c.l.b16 %v295
  %v1382 = vunpack.c.l.b16 %v296
  %v1383 = vunpack.c.h.b16 %v296
  %v1384 = vunpack.c.l.b16 %v297
  %v1385 = vunpack.c.l.b16 %v298
  %v1386 = vunpack.c.h.b16 %v298
  %v1387 = vunpack.c.l.b16 %v299
  %v1388 = vunpack.c.l.b16 %v300
  %v1389 = vunpack.c.h.b16 %v300
  %v1390 = vunpack.c.l.b16 %v301
  %v1391 = vunpack.c.l.b16 %v302
  %v1392 = vunpack.c.h.b16 %v302
  %v1393 = vunpack.c.l.b16 %v303
  %v1394 = vunpack.c.l.b16 %v304
  %v1395 = vunpack.c.h.b16 %v304
  %v1396 = vunpack.c.l.b16 %v305
  %v1397 = vunpack.c.l.b16 %v306
  %v1398 = vunpack.c.h.b16 %v306
  %v1399 = vunpack.c.l.b16 %v307
  %v1400 = vunpack.c.l.b16 %v308
  %v1401 = vunpack.c.h.b16 %v308
  %v1402 = vunpack.c.l.b16 %v309
  %v1403 = vunpack.c.l.b16 %v310
  %v1404 = vunpack.c.h.b16 %v310
  %v1405 = vunpack.c.l.b16 %v311
  %v1406 = vunpack.c.l.b16 %v312
  %v1407 = vunpack.c.h.b16 %v312
  %v1408 = vunpack.c.l.b16 %v313
  %v1409 = vunpack.c.l.b16 %v314
  %v1410 = vunpack.c.h.b16 %v314
  %v1411 = vunpack.c.l.b16 %v315
  %v1412 = vunpack.c.l.b16 %v316
  %v1413 = vunpack.c.h.b16 %v316
  %v1414 = vunpack.c.l.b16 %v317
  %v1415 = vunpack.c.l.b16 %v318
  %v1416 = vunpack.c.h.b16 %v318
  %v1417 = vunpack.c.l.b16 %v319
  %v1418 = vunpack.c.l.b16 %v320
  %v1419 = vunpack.c.h.b16 %v320
  %v1420 = vunpack.c.l.b16 %v321
  %v1421 = vunpack.c.l.b16 %v322
  %v1422 = vunpack.c.h.b16 %v322
  %v1423 = vunpack.c.l.b16 %v323
  %v1424 = vunpack.c.l.b16 %v324
  %v1425 = vunpack.c.h.b16 %v324
  %v1426 = vunpack.c.l.b16 %v325
  %v1427 = vunpack.c.l.b16 %v326
  %v1428 = vunpack.c.h.b16 %v326
  %v1429 = vunpack.c.l.b16 %v327
  %v1430 = vunpack.c.l.b16 %v328
  %v1431 = vunpack.c.h.b16 %v328
  %v1432 = vunpack.c.l.b16 %v329
  %v1433 = vunpack.c.l.b16 %v330
  %v1434 = vunpack.c.h.b16 %v330
  %v1435 = vunpack.c.l.b16 %v331
  %v1436 = vunpack.c.l.b16 %v332
  %v1437 = vunpack.c.h.b16 %v332
  %v1438 = vunpack.c.l.b16 %v333
  %v1439 = vunpack.c.l.b16 %v334
  %v1440 = vunpack.c.h.b16 %v334
  %v1441 = vunpack.c.l.b16 %v335
  %v1442 = vunpack.c.l.b16 %v336
  %v1443 = vunpack.c.h.b16 %v336
  %v1444 = vunpack.c.l.b16 %v337
  %v1445 = vunpack.c.l.b16 %v338
  %v1446 = vunpack.c.h.b16 %v338
  %v1447 = vunpack.c.l.b16 %v339
  %v1448 = vunpack.c.l.b16 %v340
  %v1449 = vunpack.c.h.b16 %v340
  %v1450 = vunpack.c.l.b16 %v341
  %v1451 = vunpack.c.l.b16 %v342
  %v1452 = vunpack.c.h.b16 %v342
  %v1453 = vunpack.c.l.b16 %v343
  %v1454 = vunpack.c.l.b16 %v344
  %v1455 = vunpack.c.h.b16 %v344
  %v1456 = vunpack.c.l.b16 %v345
  %v1457 = vunpack.c.l.b16 %v346
  %v1458 = vunpack.c.h.b16 %v346
  %v1459 = vunpack.c.l.b16 %v347
  %v1460 = vunpack.c.l.b16 %v348
  %v1461 = vunpack.c.h.b16 %v348
  %v1462 = vunpack.c.l.b16 %v349
  %v1463 = vunpack.c.l.b16 %v350
  %v1464 = vunpack.c.h.b16 %v350
  %v1465 = vunpack.c.l.b16 %v351
  %v1466 = vunpack.c.l.b16 %v352
  %v1467 = vunpack.c.h.b16 %v352
  %v1468 = vunpack.c.l.b16 %v353
  %v1469 = vunpack.c.l.b16 %v354
  %v1470 = vunpack.c.h.b16 %v354
  %v1471 = vunpack.c.l.b16 %v355
  %v1472 = vunpack.c.l.b16 %v356
  %v1473 = vunpack.c.h.b16 %v356
  %v1474 = vunpack.c.l.b16 %v357
  %v1475 = vunpack.c.l.b16 %v358
  %v1476 = vunpack.c.h.b16 %v358
  %v1477 = vunpack.c.l.b16 %v359
  %v1478 = vunpack.c.l.b16 %v360
  %v1479 = vunpack.c.h.b16 %v360
  %v1480 = vunpack.c.l.b16 %v361
  %v1481 = vunpack.c.l.b16 %v362
  %v1482 = vunpack.c.h.b16 %v362
  %v1483 = vunpack.c.l.b16 %v363
  %v1484 = vunpack.c.l.b16 %v364
  %v1485 = vunpack.c.h.b16 %v364
  %v1486 = vunpack.c.l.b16 %v365
  %v1487 = vunpack.c.l.b16 %v366
  %v1488 = vunpack.c.h.b16 %v366
  %v1489 = vunpack.c.l.b16 %v367
  %v1490 = vunpack.c.l.b16 %v368
  %v1491 = vunpack.c.h.b16 %v368
  %v1492 = vunpack.c.l.b16 %v369
  %v1493 = vunpack.c.l.b16 %v370
  %v1494 = vunpack.c.h.b16 %v370
  %v1495 = vunpack.c.l.b16 %v371
  %v1496 = vunpack.c.l.b16 %v372
  %v1497 = vunpack.c.h.b16 %v372
  %v1498 = vunpack.c.l.b16 %v373
  %v1499 = vunpack.c.l.b16 %v374
  %v1500 = vunpack.c.h.b16 %v374
  %v1501 = vunpack.c.l.b16 %v375
  %v1502 = vunpack.c.l.b16 %v376
  %v1503 = vunpack.c.h.b16 %v376
  %v1504 = vunpack.c.l.b16 %v377
  %v1505 = vunpack.c.l.b16 %v378
  %v1506 = vunpack.c.h.b16 %v378
  %v1507 = vunpack.c.l.b16 %v379
  %v1508 = vunpack.c.l.b16 %v380
  %v1509 = vunpack.c.h.b16 %v380
  %v1510 = vunpack.c.l.b16 %v381
  %v1511 = vunpack.c.l.b16 %v382
  %v1512 = vunpack.c.h.b16 %v382
  %v1513 = vunpack.c.l.b16 %v383
  %v1514 = vunpack.c.l.b16 %v384
  %v1515 = vunpack.c.h.b16 %v384
  %v1516 = vunpack.c.l.b16 %v385
  %v1517 = vunpack.c.l.b16 %v386
  %v1518 = vunpack.c.h.b16 %v386
  %v1519 = vunpack.c.l.b16 %v387
  %v1520 = vunpack.c.l.b16 %v388
  %v1521 = vunpack.c.h.b16 %v388
  %v1522 = vunpack.c.l.b16 %v389
  %v1523 = vunpack.c.l.b16 %v390
  %v1524 = vunpack.c.h.b16 %v390
  %v1525 = vunpack.c.l.b16 %v391
  %v1526 = vunpack.c.l.b16 %v392
  %v1527 = vunpack.c.h.b16 %v392
  %v1528 = vunpack.c.l.b16 %v393
  %v1529 = vunpack.c.l.b16 %v394
  %v1530 = vunpack.c.h.b16 %v394
  %v1531 = vunpack.c.l.b16 %v395
  %v1532 = vunpack.c.l.b16 %v396
  %v1533 = vunpack.c.h.b16 %v396
  %v1534 = vunpack.c.l.b16 %v397
  %v1535 = vunpack.c.l.b16 %v398
  %v1536 = vunpack.c.h.b16 %v398
  %v1537 = vunpack.c.l.b16 %v399
  %v1538 = vunpack.c.l.b16 %v400
  %v1539 = vunpack.c.h.b16 %v400
  %v1540 = vunpack.c.l.b16 %v401
  %v1541 = vunpack.c.l.b16 %v402
  %v1542 = vunpack.c.h.b16 %v402
  %v1543 = vunpack.c.l.b16 %v403
  %v1544 = vunpack.c.l.b16 %v404
  %v1545 = vunpack.c.h.b16 %v404
  %v1546 = vunpack.c.l.b16 %v405
  %v1547 = vunpack.c.l.b16 %v406
  %v1548 = vunpack.c.h.b16 %v406
  %v1549 = vunpack.c.l.b16 %v407
  %v1550 = vunpack.c.l.b16 %v408
  %v1551 = vunpack.c.h.b16 %v408
  %v1552 = vunpack.c.l.b16 %v409
  %v1553 = vunpack.c.l.b16 %v410
  %v1554 = vunpack.c.h.b16 %v410
  %v1555 = vunpack.c.l.b16 %v411
  %v1556 = vunpack.c.l.b16 %v412
  %v1557 = vunpack.c.h.b16 %v412
  %v1558 = vunpack.c.l.b16 %v413
  %v1559 = vunpack.c.l.b16 %v414
  %v1560 = vunpack.c.h.b16 %v414
  %v1561 = vunpack.c.l.b16 %v415
  %v1562 = vunpack.c.l.b16 %v416
  %v1563 = vunpack.c.h.b16 %v416
  %v1564 = vunpack.c.l.b16 %v417
  %v1565 = vunpack.c.l.b16 %v418
  %v1566 = vunpack.c.h.b16 %v418
  %v1567 = vunpack.c.l.b16 %v419
  %v1568 = vunpack.c.l.b16 %v420
  %v1569 = vunpack.c.h.b16 %v420
  %v1570 = vunpack.c.l.b16 %v421
  %v1571 = vunpack.c.l.b16 %v422
  %v1572 = vunpack.c.h.b16 %v422
  %v1573 = vunpack.c.l.b16 %v423
  %v1574 = vunpack.c.l.b16 %v424
  %v1575 = vunpack.c.h.b16 %v424
  %v1576 = vunpack.c.l.b16 %v425
  %v1577 = vunpack.c.l.b16 %v426
  %v1578 = vunpack.c.h.b16 %v426
  %v1579 = vunpack.c.l.b16 %v427
  %v1580 = vunpack.c.l.b16 %v428
  %v1581 = vunpack.c.h.b16 %v428
  %v1582 = vunpack.c.l.b16 %v429
  %v1583 = vunpack.c.l.b16 %v430
  %v1584 = vunpack.c.h.b16 %v430
  %v1585 = vunpack.c.l.b16 %v431
  %v1586 = vunpack.c.l.b16 %v432
  %v1587 = vunpack.c.h.b16 %v432
  %v1588 = vunpack.c.l.b16 %v433
  %v1589 = vunpack.c.l.b16 %v434
  %v1590 = vunpack.c.h.b16 %v434
  %v1591 = vunpack.c.l.b16 %v435
  %v1592 = vunpack.c.l.b16 %v436
  %v1593 = vunpack.c.h.b16 %v436
  %v1594 = vunpack.c.l.b16 %v437
  %v1595 = vpack.c.b16 %v1022, %v1019
  %v1596 = vpack.c.b16 %v1023, %v1020
  %v1597 = vpack.c.b16 %v1024, %v1021
  %v1598 = vpack.c.b16 %v1028, %v1025
  %v1599 = vpack.c.b16 %v1029, %v1026
  %v1600 = vpack.c.b16 %v1030, %v1027
  %v1601 = vpack.c.b16 %v1034, %v1031
  %v1602 = vpack.c.b16 %v1035, %v1032
  %v1603 = vpack.c.b16 %v1036, %v1033
  %v1604 = vpack.c.b16 %v1040, %v1037
  %v1605 = vpack.c.b16 %v1041, %v1038
  %v1606 = vpack.c.b16 %v1042, %v1039
  %v1607 = vpack.c.b16 %v1046, %v1043
  %v1608 = vpack.c.b16 %v1047, %v1044
  %v1609 = vpack.c.b16 %v1048, %v1045
  %v1610 = vpack.c.b16 %v1052, %v1049
  %v1611 = vpack.c.b16 %v1053, %v1050
  %v1612 = vpack.c.b16 %v1054, %v1051
  %v1613 = vpack.c.b16 %v1058, %v1055
  %v1614 = vpack.c.b16 %v1059, %v1056
  %v1615 = vpack.c.b16 %v1060, %v1057
  %v1616 = vpack.c.b16 %v1064, %v1061
  %v1617 = vpack.c.b16 %v1065, %v1062
  %v1618 = vpack.c.b16 %v1066, %v1063
  %v1619 = vpack.c.b16 %v1070, %v1067
  %v1620 = vpack.c.b16 %v1071, %v1068
  %v1621 = vpack.c.b16 %v1072, %v1069
  %v1622 = vpack.c.b16 %v1076, %v1073
  %v1623 = vpack.c.b16 %v1077, %v1074
  %v1624 = vpack.c.b16 %v1078, %v1075
  %v1625 = vpack.c.b16 %v1082, %v1079
  %v1626 = vpack.c.b16 %v1083, %v1080
  %v1627 = vpack.c.b16 %v1084, %v1081
  %v1628 = vpack.c.b16 %v1088, %v1085
  %v1629 = vpack.c.b16 %v1089, %v1086
  %v1630 = vpack.c.b16 %v1090, %v1087
  %v1631 = vpack.c.b16 %v1094, %v1091
  %v1632 = vpack.c.b16 %v1095, %v1092
  %v1633 = vpack.c.b16 %v1096, %v1093
  %v1634 = vpack.c.b16 %v1100, %v1097
  %v1635 = vpack.c.b16 %v1101, %v1098
  %v1636 = vpack.c.b16 %v1102, %v1099
  %v1637 = vpack.c.b16 %v1106, %v1103
  %v1638 = vpack.c.b16 %v1107, %v1104
  %v1639 = vpack.c.b16 %v1108, %v1105
  %v1640 = vpack.c.b16 %v1112, %v1109
  %v1641 = vpack.c.b16 %v1113, %v1110
  %v1642 = vpack.c.b16 %v1114, %v1111
  %v1643 = vpack.c.b16 %v1118, %v1115
  %v1644 = vpack.c.b16 %v1119, %v1116
  %v1645 = vpack.c.b16 %v1120, %v1117
  %v1646 = vpack.c.b16 %v1124, %v1121
  %v1647 = vpack.c.b16 %v1125, %v1122
  %v1648 = vpack.c.b16 %v1126, %v1123
  %v1649 = vpack.c.b16 %v1130, %v1127
  %v1650 = vpack.c.b16 %v1131, %v1128
  %v1651 = vpack.c.b16 %v1132, %v1129
  %v1652 = vpack.c.b16 %v1136, %v1133
  %v1653 = vpack.c.b16 %v1137, %v1134
  %v1654 = vpack.c.b16 %v1138, %v1135
  %v1655 = vpack.c.b16 %v1142, %v1139
  %v1656 = vpack.c.b16 %v1143, %v1140
  %v1657 = vpack.c.b16 %v1144, %v1141
  %v1658 = vpack.c.b16 %v1148, %v1145
  %v1659 = vpack.c.b16 %v1149, %v1146
  %v1660 = vpack.c.b16 %v1150, %v1147
  %v1661 = vpack.c.b16 %v1154, %v1151
  %v1662 = vpack.c.b16 %v1155, %v1152
  %v1663 = vpack.c.b16 %v1156, %v1153
  %v1664 = vpack.c.b16 %v1160, %v1157
  %v1665 = vpack.c.b16 %v1161, %v1158
  %v1666 = vpack.c.b16 %v1162, %v1159
  %v1667 = vpack.c.b16 %v1166, %v1163
  %v1668 = vpack.c.b16 %v1167, %v1164
  %v1669 = vpack.c.b16 %v1168, %v1165
  %v1670 = vpack.c.b16 %v1172, %v1169
  %v1671 = vpack.c.b16 %v1173, %v1170
  %v1672 = vpack.c.b16 %v1174, %v1171
  %v1673 = vpack.c.b16 %v1178, %v1175
  %v1674 = vpack.c.b16 %v1179, %v1176
  %v1675 = vpack.c.b16 %v1180, %v1177
  %v1676 = vpack.c.b16 %v1184, %v1181
  %v1677 = vpack.c.b16 %v1185, %v1182
  %v1678 = vpack.c.b16 %v1186, %v1183
  %v1679 = vpack.c.b16 %v1190, %v1187
  %v1680 = vpack.c.b16 %v1191, %v1188
  %v1681 = vpack.c.b16 %v1192, %v1189
  %v1682 = vpack.c.b16 %v1196, %v1193
  %v1683 = vpack.c.b16 %v1197, %v1194
  %v1684 = vpack.c.b16 %v1198, %v1195
  %v1685 = vpack.c.b16 %v1202, %v1199
  %v1686 = vpack.c.b16 %v1203, %v1200
  %v1687 = vpack.c.b16 %v1204, %v1201
  %v1688 = vpack.c.b16 %v1208, %v1205
  %v1689 = vpack.c.b16 %v1209, %v1206
  %v1690 = vpack.c.b16 %v1210, %v1207
  %v1691 = vpack.c.b16 %v1214, %v1211
  %v1692 = vpack.c.b16 %v1215, %v1212
  %v1693 = vpack.c.b16 %v1216, %v1213
  %v1694 = vpack.c.b16 %v1220, %v1217
  %v1695 = vpack.c.b16 %v1221, %v1218
  %v1696 = vpack.c.b16 %v1222, %v1219
  %v1697 = vpack.c.b16 %v1226, %v1223
  %v1698 = vpack.c.b16 %v1227, %v1224
  %v1699 = vpack.c.b16 %v1228, %v1225
  %v1700 = vpack.c.b16 %v1232, %v1229
  %v1701 = vpack.c.b16 %v1233, %v1230
  %v1702 = vpack.c.b16 %v1234, %v1231
  %v1703 = vpack.c.b16 %v1238, %v1235
  %v1704 = vpack.c.b16 %v1239, %v1236
  %v1705 = vpack.c.b16 %v1240, %v1237
  %v1706 = vpack.c.b16 %v1244, %v1241
  %v1707 = vpack.c.b16 %v1245, %v1242
  %v1708 = vpack.c.b16 %v1246, %v1243
  %v1709 = vpack.c.b16 %v1250, %v1247
  %v1710 = vpack.c.b16 %v1251, %v1248
  %v1711 = vpack.c.b16 %v1252, %v1249
  %v1712 = vpack.c.b16 %v1256, %v1253
  %v1713 = vpack.c.b16 %v1257, %v1254
  %v1714 = vpack.c.b16 %v1258, %v1255
  %v1715 = vpack.c.b16 %v1262, %v1259
  %v1716 = vpack.c.b16 %v1263, %v1260
  %v1717 = vpack.c.b16 %v1264, %v1261
  %v1718 = vpack.c.b16 %v1268, %v1265
  %v1719 = vpack.c.b16 %v1269, %v1266
  %v1720 = vpack.c.b16 %v1270, %v1267
  %v1721 = vpack.c.b16 %v1274, %v1271
  %v1722 = vpack.c.b16 %v1275, %v1272
  %v1723 = vpack.c.b16 %v1276, %v1273
  %v1724 = vpack.c.b16 %v1280, %v1277
  %v1725 = vpack.c.b16 %v1281, %v1278
  %v1726 = vpack.c.b16 %v1282, %v1279
  %v1727 = vpack.c.b16 %v1286, %v1283
  %v1728 = vpack.c.b16 %v1287, %v1284
  %v1729 = vpack.c.b16 %v1288, %v1285
  %v1730 = vpack.c.b16 %v1292, %v1289
  %v1731 = vpack.c.b16 %v1293, %v1290
  %v1732 = vpack.c.b16 %v1294, %v1291
  %v1733 = vpack.c.b16 %v1298, %v1295
  %v1734 = vpack.c.b16 %v1299, %v1296
  %v1735 = vpack.c.b16 %v1300, %v1297
  %v1736 = vpack.c.b16 %v1304, %v1301
  %v1737 = vpack.c.b16 %v1305, %v1302
  %v1738 = vpack.c.b16 %v1306, %v1303
  %v1739 = vpack.c.b16 %v1310, %v1307
  %v1740 = vpack.c.b16 %v1311, %v1308
  %v1741 = vpack.c.b16 %v1312, %v1309
  %v1742 = vpack.c.b16 %v1316, %v1313
  %v1743 = vpack.c.b16 %v1317, %v1314
  %v1744 = vpack.c.b16 %v1318, %v1315
  %v1745 = vpack.c.b16 %v1322, %v1319
  %v1746 = vpack.c.b16 %v1323, %v1320
  %v1747 = vpack.c.b16 %v1324, %v1321
  %v1748 = vpack.c.b16 %v1328, %v1325
  %v1749 = vpack.c.b16 %v1329, %v1326
  %v1750 = vpack.c.b16 %v1330, %v1327
  %v1751 = vpack.c.b16 %v1334, %v1331
  %v1752 = vpack.c.b16 %v1335, %v1332
  %v1753 = vpack.c.b16 %v1336, %v1333
  %v1754 = vpack.c.b16 %v1340, %v1337
  %v1755 = vpack.c.b16 %v1341, %v1338
  %v1756 = vpack.c.b16 %v1342, %v1339
  %v1757 = vpack.c.b16 %v1346, %v1343
  %v1758 = vpack.c.b16 %v1347, %v1344
  %v1759 = vpack.c.b16 %v1348, %v1345
  %v1760 = vpack.c.b16 %v1352, %v1349
  %v1761 = vpack.c.b16 %v1353, %v1350
  %v1762 = vpack.c.b16 %v1354, %v1351
  %v1763 = vpack.c.b16 %v1358, %v1355
  %v1764 = vpack.c.b16 %v1359, %v1356
  %v1765 = vpack.c.b16 %v1360, %v1357
  %v1766 = vpack.c.b16 %v1364, %v1361
  %v1767 = vpack.c.b16 %v1365, %v1362
  %v1768 = vpack.c.b16 %v1366, %v1363
  %v1769 = vpack.c.b16 %v1370, %v1367
  %v1770 = vpack.c.b16 %v1371, %v1368
  %v1771 = vpack.c.b16 %v1372, %v1369
  %v1772 = vpack.c.b16 %v1376, %v1373
  %v1773 = vpack.c.b16 %v1377, %v1374
  %v1774 = vpack.c.b16 %v1378, %v1375
  %v1775 = vpack.c.b16 %v1382, %v1379
  %v1776 = vpack.c.b16 %v1383, %v1380
  %v1777 = vpack.c.b16 %v1384, %v1381
  %v1778 = vpack.c.b16 %v1388, %v1385
  %v1779 = vpack.c.b16 %v1389, %v1386
  %v1780 = vpack.c.b16 %v1390, %v1387
  %v1781 = vpack.c.b16 %v1394, %v1391
  %v1782 = vpack.c.b16 %v1395, %v1392
  %v1783 = vpack.c.b16 %v1396, %v1393
  %v1784 = vpack.c.b16 %v1400, %v1397
  %v1785 = vpack.c.b16 %v1401, %v1398
  %v1786 = vpack.c.b16 %v1402, %v1399
  %v1787 = vpack.c.b16 %v1406, %v1403
  %v1788 = vpack.c.b16 %v1407, %v1404
  %v1789 = vpack.c.b16 %v1408, %v1405
  %v1790 = vpack.c.b16 %v1412, %v1409
  %v1791 = vpack.c.b16 %v1413, %v1410
  %v1792 = vpack.c.b16 %v1414, %v1411
  %v1793 = vpack.c.b16 %v1418, %v1415
  %v1794 = vpack.c.b16 %v1419, %v1416
  %v1795 = vpack.c.b16 %v1420, %v1417
  %v1796 = vpack.c.b16 %v1424, %v1421
  %v1797 = vpack.c.b16 %v1425, %v1422
  %v1798 = vpack.c.b16 %v1426, %v1423
  %v1799 = vpack.c.b16 %v1430, %v1427
  %v1800 = vpack.c.b16 %v1431, %v1428
  %v1801 = vpack.c.b16 %v1432, %v1429
  %v1802 = vpack.c.b16 %v1436, %v1433
  %v1803 = vpack.c.b16 %v1437, %v1434
  %v1804 = vpack.c.b16 %v1438, %v1435
  %v1805 = vpack.c.b16 %v1442, %v1439
  %v1806 = vpack.c.b16 %v1443, %v1440
  %v1807 = vpack.c.b16 %v1444, %v1441
  %v1808 = vpack.c.b16 %v1448, %v1445
  %v1809 = vpack.c.b16 %v1449, %v1446
  %v1810 = vpack.c.b16 %v1450, %v1447
  %v1811 = vpack.c.b16 %v1454, %v1451
  %v1812 = vpack.c.b16 %v1455, %v1452
  %v1813 = vpack.c.b16 %v1456, %v1453
  %v1814 = vpack.c.b16 %v1460, %v1457
  %v1815 = vpack.c.b16 %v1461, %v1458
  %v1816 = vpack.c.b16 %v1462, %v1459
  %v1817 = vpack.c.b16 %v1466, %v1463
  %v1818 = vpack.c.b16 %v1467, %v1464
  %v1819 = vpack.c.b16 %v1468, %v1465
  %v1820 = vpack.c.b16 %v1472, %v1469
  %v1821 = vpack.c.b16 %v1473, %v1470
  %v1822 = vpack.c.b16 %v1474, %v1471
  %v1823 = vpack.c.b16 %v1478, %v1475
  %v1824 = vpack.c.b16 %v1479, %v1476
  %v1825 = vpack.c.b16 %v1480, %v1477
  %v1826 = vpack.c.b16 %v1484, %v1481
  %v1827 = vpack.c.b16 %v1485, %v1482
  %v1828 = vpack.c.b16 %v1486, %v1483
  %v1829 = vpack.c.b16 %v1490, %v1487
  %v1830 = vpack.c.b16 %v1491, %v1488
  %v1831 = vpack.c.b16 %v1492, %v1489
  %v1832 = vpack.c.b16 %v1496, %v1493
  %v1833 = vpack.c.b16 %v1497, %v1494
  %v1834 = vpack.c.b16 %v1498, %v1495
  %v1835 = vpack.c.b16 %v1502, %v1499
  %v1836 = vpack.c.b16 %v1503, %v1500
  %v1837 = vpack.c.b16 %v1504, %v1501
  %v1838 = vpack.c.b16 %v1508, %v1505
  %v1839 = vpack.c.b16 %v1509, %v1506
  %v1840 = vpack.c.b16 %v1510, %v1507
  %v1841 = vpack.c.b16 %v1514, %v1511
  %v1842 = vpack.c.b16 %v1515, %v1512
  %v1843 = vpack.c.b16 %v1516, %v1513
  %v1844 = vpack.c.b16 %v1520, %v1517
  %v1845 = vpack.c.b16 %v1521, %v1518
  %v1846 = vpack.c.b16 %v1522, %v1519
  %v1847 = vpack.c.b16 %v1526, %v1523
  %v1848 = vpack.c.b16 %v1527, %v1524
  %v1849 = vpack.c.b16 %v1528, %v1525
  %v1850 = vpack.c.b16 %v1532, %v1529
  %v1851 = vpack.c.b16 %v1533, %v1530
  %v1852 = vpack.c.b16 %v1534, %v1531
  %v1853 = vpack.c.b16 %v1538, %v1535
  %v1854 = vpack.c.b16 %v1539, %v1536
  %v1855 = vpack.c.b16 %v1540, %v1537
  %v1856 = vpack.c.b16 %v1544, %v1541
  %v1857 = vpack.c.b16 %v1545, %v1542
  %v1858 = vpack.c.b16 %v1546, %v1543
  %v1859 = vpack.c.b16 %v1550, %v1547
  %v1860 = vpack.c.b16 %v1551, %v1548
  %v1861 = vpack.c.b16 %v1552, %v1549
  %v1862 = vpack.c.b16 %v1556, %v1553
  %v1863 = vpack.c.b16 %v1557, %v1554
  %v1864 = vpack.c.b16 %v1558, %v1555
  %v1865 = vpack.c.b16 %v1562, %v1559
  %v1866 = vpack.c.b16 %v1563, %v1560
  %v1867 = vpack.c.b16 %v1564, %v1561
  %v1868 = vpack.c.b16 %v1568, %v1565
  %v1869 = vpack.c.b16 %v1569, %v1566
  %v1870 = vpack.c.b16 %v1570, %v1567
  %v1871 = vpack.c.b16 %v1574, %v1571
  %v1872 = vpack.c.b16 %v1575, %v1572
  %v1873 = vpack.c.b16 %v1576, %v1573
  %v1874 = vpack.c.b16 %v1580, %v1577
  %v1875 = vpack.c.b16 %v1581, %v1578
  %v1876 = vpack.c.b16 %v1582, %v1579
  %v1877 = vpack.c.b16 %v1586, %v1583
  %v1878 = vpack.c.b16 %v1587, %v1584
  %v1879 = vpack.c.b16 %v1588, %v1585
  %v1880 = vpack.c.b16 %v1592, %v1589
  %v1881 = vpack.c.b16 %v1593, %v1590
  %v1882 = vpack.c.b16 %v1594, %v1591
  %2171 = vmatprep.subr.bf16.mxu0 %v1617
  %2172 = vmatpush1.bf16.msra.mxu0 %v1616
  %2173 = vmatprep.subr.bf16.mxu0 %v1614
  %2174 = vmatpush1.bf16.msra.mxu0 %v1613
  %2175 = vmatprep.subr.bf16.mxu0 %v1611
  %2176 = vmatpush1.bf16.msra.mxu0 %v1610
  %2177 = vmatprep.subr.bf16.mxu0 %v1608
  %2178 = vmatpush1.bf16.msra.mxu0 %v1607
  %2179 = vmatprep.subr.bf16.mxu0 %v1605
  %2180 = vmatpush1.bf16.msra.mxu0 %v1604
  %2181 = vmatprep.subr.bf16.mxu0 %v1602
  %2182 = vmatpush1.bf16.msra.mxu0 %v1601
  %2183 = vmatprep.subr.bf16.mxu0 %v1599
  %2184 = vmatpush1.bf16.msra.mxu0 %v1598
  %2185 = vmatprep.subr.bf16.mxu0 %v1596
  %2186 = vmatpush1.bf16.msra.mxu0 %v1595
  %2187 = vmatprep.subr.bf16.mxu0 %v1641
  %2188 = vmatpush2.bf16.msra.mxu0 %v1640
  %2189 = vmatprep.subr.bf16.mxu0 %v1638
  %2190 = vmatpush2.bf16.msra.mxu0 %v1637
  %2191 = vmatprep.subr.bf16.mxu0 %v1635
  %2192 = vmatpush2.bf16.msra.mxu0 %v1634
  %2193 = vmatprep.subr.bf16.mxu0 %v1632
  %2194 = vmatpush2.bf16.msra.mxu0 %v1631
  %2195 = vmatprep.subr.bf16.mxu0 %v1629
  %2196 = vmatpush2.bf16.msra.mxu0 %v1628
  %2197 = vmatprep.subr.bf16.mxu0 %v1626
  %2198 = vmatpush2.bf16.msra.mxu0 %v1625
  %2199 = vmatprep.subr.bf16.mxu0 %v1623
  %2200 = vmatpush2.bf16.msra.mxu0 %v1622
  %2201 = vmatprep.subr.bf16.mxu0 %v1620
  %2202 = vmatpush2.bf16.msra.mxu0 %v1619
  %2203 = vmatprep.mubr.bf16.mxu0 %v564
  %2204 = vmatmul.mubr.bf16.gmra.mxu0 %v563
  %v2205 = vpop.f32.mrf.mxu0
  %v2206 = vadd.f32 %v443, %v2205
  %v2207 = vpop.f32.mrf.mxu0
  %v2208 = vadd.f32 %v447, %v2207
  %v2209 = vpop.f32.mrf.mxu0
  %v2210 = vadd.f32 %v443, %v2209
  %v2211 = vpop.f32.mrf.mxu0
  %v2212 = vadd.f32 %v447, %v2211
  %2213 = vmatprep.mubr.bf16.mxu0 %v576
  %2214 = vmatmul.mubr.bf16.gmra.mxu0 %v575
  %v2215 = vpop.f32.mrf.mxu0
  %v2216 = vadd.f32 %v443, %v2215
  %v2217 = vpop.f32.mrf.mxu0
  %v2218 = vadd.f32 %v447, %v2217
  %v2219 = vpop.f32.mrf.mxu0
  %v2220 = vadd.f32 %v443, %v2219
  %v2221 = vpop.f32.mrf.mxu0
  %v2222 = vadd.f32 %v447, %v2221
  %2223 = vmatprep.mubr.bf16.mxu0 %v588
  %2224 = vmatmul.mubr.bf16.gmra.mxu0 %v587
  %v2225 = vpop.f32.mrf.mxu0
  %v2226 = vadd.f32 %v443, %v2225
  %v2227 = vpop.f32.mrf.mxu0
  %v2228 = vadd.f32 %v447, %v2227
  %v2229 = vpop.f32.mrf.mxu0
  %v2230 = vadd.f32 %v443, %v2229
  %v2231 = vpop.f32.mrf.mxu0
  %v2232 = vadd.f32 %v447, %v2231
  %2233 = vdwg.mxu0
  %2234 = vmatprep.subr.bf16.mxu0 %v1665
  %2235 = vmatpush1.bf16.msra.mxu0 %v1664
  %2236 = vmatprep.subr.bf16.mxu0 %v1662
  %2237 = vmatpush1.bf16.msra.mxu0 %v1661
  %2238 = vmatprep.subr.bf16.mxu0 %v1659
  %2239 = vmatpush1.bf16.msra.mxu0 %v1658
  %2240 = vmatprep.subr.bf16.mxu0 %v1656
  %2241 = vmatpush1.bf16.msra.mxu0 %v1655
  %2242 = vmatprep.subr.bf16.mxu0 %v1653
  %2243 = vmatpush1.bf16.msra.mxu0 %v1652
  %2244 = vmatprep.subr.bf16.mxu0 %v1650
  %2245 = vmatpush1.bf16.msra.mxu0 %v1649
  %2246 = vmatprep.subr.bf16.mxu0 %v1647
  %2247 = vmatpush1.bf16.msra.mxu0 %v1646
  %2248 = vmatprep.subr.bf16.mxu0 %v1644
  %2249 = vmatpush1.bf16.msra.mxu0 %v1643
  %2250 = vmatprep.subr.bf16.mxu0 %v1689
  %2251 = vmatpush2.bf16.msra.mxu0 %v1688
  %2252 = vmatprep.subr.bf16.mxu0 %v1686
  %2253 = vmatpush2.bf16.msra.mxu0 %v1685
  %2254 = vmatprep.subr.bf16.mxu0 %v1683
  %2255 = vmatpush2.bf16.msra.mxu0 %v1682
  %2256 = vmatprep.subr.bf16.mxu0 %v1680
  %2257 = vmatpush2.bf16.msra.mxu0 %v1679
  %2258 = vmatprep.subr.bf16.mxu0 %v1677
  %2259 = vmatpush2.bf16.msra.mxu0 %v1676
  %2260 = vmatprep.subr.bf16.mxu0 %v1674
  %2261 = vmatpush2.bf16.msra.mxu0 %v1673
  %2262 = vmatprep.subr.bf16.mxu0 %v1671
  %2263 = vmatpush2.bf16.msra.mxu0 %v1670
  %2264 = vmatprep.subr.bf16.mxu0 %v1668
  %2265 = vmatpush2.bf16.msra.mxu0 %v1667
  %2266 = vmatprep.mubr.bf16.mxu0 %v566
  %2267 = vmatmul.mubr.bf16.gmra.mxu0 %v565
  %v2268 = vpop.f32.mrf.mxu0
  %v2269 = vadd.f32 %v2206, %v2268
  %v2270 = vpop.f32.mrf.mxu0
  %v2271 = vadd.f32 %v2208, %v2270
  %v2272 = vpop.f32.mrf.mxu0
  %v2273 = vadd.f32 %v2210, %v2272
  %v2274 = vpop.f32.mrf.mxu0
  %v2275 = vadd.f32 %v2212, %v2274
  %2276 = vmatprep.mubr.bf16.mxu0 %v578
  %2277 = vmatmul.mubr.bf16.gmra.mxu0 %v577
  %v2278 = vpop.f32.mrf.mxu0
  %v2279 = vadd.f32 %v2216, %v2278
  %v2280 = vpop.f32.mrf.mxu0
  %v2281 = vadd.f32 %v2218, %v2280
  %v2282 = vpop.f32.mrf.mxu0
  %v2283 = vadd.f32 %v2220, %v2282
  %v2284 = vpop.f32.mrf.mxu0
  %v2285 = vadd.f32 %v2222, %v2284
  %2286 = vmatprep.mubr.bf16.mxu0 %v590
  %2287 = vmatmul.mubr.bf16.gmra.mxu0 %v589
  %v2288 = vpop.f32.mrf.mxu0
  %v2289 = vadd.f32 %v2226, %v2288
  %v2290 = vpop.f32.mrf.mxu0
  %v2291 = vadd.f32 %v2228, %v2290
  %v2292 = vpop.f32.mrf.mxu0
  %v2293 = vadd.f32 %v2230, %v2292
  %v2294 = vpop.f32.mrf.mxu0
  %v2295 = vadd.f32 %v2232, %v2294
  %2296 = vdwg.mxu0
  %2297 = vmatprep.subr.bf16.mxu0 %v1713
  %2298 = vmatpush1.bf16.msra.mxu0 %v1712
  %2299 = vmatprep.subr.bf16.mxu0 %v1710
  %2300 = vmatpush1.bf16.msra.mxu0 %v1709
  %2301 = vmatprep.subr.bf16.mxu0 %v1707
  %2302 = vmatpush1.bf16.msra.mxu0 %v1706
  %2303 = vmatprep.subr.bf16.mxu0 %v1704
  %2304 = vmatpush1.bf16.msra.mxu0 %v1703
  %2305 = vmatprep.subr.bf16.mxu0 %v1701
  %2306 = vmatpush1.bf16.msra.mxu0 %v1700
  %2307 = vmatprep.subr.bf16.mxu0 %v1698
  %2308 = vmatpush1.bf16.msra.mxu0 %v1697
  %2309 = vmatprep.subr.bf16.mxu0 %v1695
  %2310 = vmatpush1.bf16.msra.mxu0 %v1694
  %2311 = vmatprep.subr.bf16.mxu0 %v1692
  %2312 = vmatpush1.bf16.msra.mxu0 %v1691
  %2313 = vmatprep.subr.bf16.mxu0 %v1737
  %2314 = vmatpush2.bf16.msra.mxu0 %v1736
  %2315 = vmatprep.subr.bf16.mxu0 %v1734
  %2316 = vmatpush2.bf16.msra.mxu0 %v1733
  %2317 = vmatprep.subr.bf16.mxu0 %v1731
  %2318 = vmatpush2.bf16.msra.mxu0 %v1730
  %2319 = vmatprep.subr.bf16.mxu0 %v1728
  %2320 = vmatpush2.bf16.msra.mxu0 %v1727
  %2321 = vmatprep.subr.bf16.mxu0 %v1725
  %2322 = vmatpush2.bf16.msra.mxu0 %v1724
  %2323 = vmatprep.subr.bf16.mxu0 %v1722
  %2324 = vmatpush2.bf16.msra.mxu0 %v1721
  %2325 = vmatprep.subr.bf16.mxu0 %v1719
  %2326 = vmatpush2.bf16.msra.mxu0 %v1718
  %2327 = vmatprep.subr.bf16.mxu0 %v1716
  %2328 = vmatpush2.bf16.msra.mxu0 %v1715
  %2329 = vmatprep.mubr.bf16.mxu0 %v568
  %2330 = vmatmul.mubr.bf16.gmra.mxu0 %v567
  %v2331 = vpop.f32.mrf.mxu0
  %v2332 = vadd.f32 %v2269, %v2331
  %v2333 = vpop.f32.mrf.mxu0
  %v2334 = vadd.f32 %v2271, %v2333
  %v2335 = vpop.f32.mrf.mxu0
  %v2336 = vadd.f32 %v2273, %v2335
  %v2337 = vpop.f32.mrf.mxu0
  %v2338 = vadd.f32 %v2275, %v2337
  %2339 = vmatprep.mubr.bf16.mxu0 %v580
  %2340 = vmatmul.mubr.bf16.gmra.mxu0 %v579
  %v2341 = vpop.f32.mrf.mxu0
  %v2342 = vadd.f32 %v2279, %v2341
  %v2343 = vpop.f32.mrf.mxu0
  %v2344 = vadd.f32 %v2281, %v2343
  %v2345 = vpop.f32.mrf.mxu0
  %v2346 = vadd.f32 %v2283, %v2345
  %v2347 = vpop.f32.mrf.mxu0
  %v2348 = vadd.f32 %v2285, %v2347
  %2349 = vmatprep.mubr.bf16.mxu0 %v592
  %2350 = vmatmul.mubr.bf16.gmra.mxu0 %v591
  %v2351 = vpop.f32.mrf.mxu0
  %v2352 = vadd.f32 %v2289, %v2351
  %v2353 = vpop.f32.mrf.mxu0
  %v2354 = vadd.f32 %v2291, %v2353
  %v2355 = vpop.f32.mrf.mxu0
  %v2356 = vadd.f32 %v2293, %v2355
  %v2357 = vpop.f32.mrf.mxu0
  %v2358 = vadd.f32 %v2295, %v2357
  %2359 = vdwg.mxu0
  %2360 = vmatprep.subr.bf16.mxu0 %v1761
  %2361 = vmatpush1.bf16.msra.mxu0 %v1760
  %2362 = vmatprep.subr.bf16.mxu0 %v1758
  %2363 = vmatpush1.bf16.msra.mxu0 %v1757
  %2364 = vmatprep.subr.bf16.mxu0 %v1755
  %2365 = vmatpush1.bf16.msra.mxu0 %v1754
  %2366 = vmatprep.subr.bf16.mxu0 %v1752
  %2367 = vmatpush1.bf16.msra.mxu0 %v1751
  %2368 = vmatprep.subr.bf16.mxu0 %v1749
  %2369 = vmatpush1.bf16.msra.mxu0 %v1748
  %2370 = vmatprep.subr.bf16.mxu0 %v1746
  %2371 = vmatpush1.bf16.msra.mxu0 %v1745
  %2372 = vmatprep.subr.bf16.mxu0 %v1743
  %2373 = vmatpush1.bf16.msra.mxu0 %v1742
  %2374 = vmatprep.subr.bf16.mxu0 %v1740
  %2375 = vmatpush1.bf16.msra.mxu0 %v1739
  %2376 = vmatprep.subr.bf16.mxu0 %v1785
  %2377 = vmatpush2.bf16.msra.mxu0 %v1784
  %2378 = vmatprep.subr.bf16.mxu0 %v1782
  %2379 = vmatpush2.bf16.msra.mxu0 %v1781
  %2380 = vmatprep.subr.bf16.mxu0 %v1779
  %2381 = vmatpush2.bf16.msra.mxu0 %v1778
  %2382 = vmatprep.subr.bf16.mxu0 %v1776
  %2383 = vmatpush2.bf16.msra.mxu0 %v1775
  %2384 = vmatprep.subr.bf16.mxu0 %v1773
  %2385 = vmatpush2.bf16.msra.mxu0 %v1772
  %2386 = vmatprep.subr.bf16.mxu0 %v1770
  %2387 = vmatpush2.bf16.msra.mxu0 %v1769
  %2388 = vmatprep.subr.bf16.mxu0 %v1767
  %2389 = vmatpush2.bf16.msra.mxu0 %v1766
  %2390 = vmatprep.subr.bf16.mxu0 %v1764
  %2391 = vmatpush2.bf16.msra.mxu0 %v1763
  %2392 = vmatprep.mubr.bf16.mxu0 %v570
  %2393 = vmatmul.mubr.bf16.gmra.mxu0 %v569
  %v2394 = vpop.f32.mrf.mxu0
  %v2395 = vadd.f32 %v2332, %v2394
  %v2396 = vpop.f32.mrf.mxu0
  %v2397 = vadd.f32 %v2334, %v2396
  %v2398 = vpop.f32.mrf.mxu0
  %v2399 = vadd.f32 %v2336, %v2398
  %v2400 = vpop.f32.mrf.mxu0
  %v2401 = vadd.f32 %v2338, %v2400
  %2402 = vmatprep.mubr.bf16.mxu0 %v582
  %2403 = vmatmul.mubr.bf16.gmra.mxu0 %v581
  %v2404 = vpop.f32.mrf.mxu0
  %v2405 = vadd.f32 %v2342, %v2404
  %v2406 = vpop.f32.mrf.mxu0
  %v2407 = vadd.f32 %v2344, %v2406
  %v2408 = vpop.f32.mrf.mxu0
  %v2409 = vadd.f32 %v2346, %v2408
  %v2410 = vpop.f32.mrf.mxu0
  %v2411 = vadd.f32 %v2348, %v2410
  %2412 = vmatprep.mubr.bf16.mxu0 %v594
  %2413 = vmatmul.mubr.bf16.gmra.mxu0 %v593
  %v2414 = vpop.f32.mrf.mxu0
  %v2415 = vadd.f32 %v2352, %v2414
  %v2416 = vpop.f32.mrf.mxu0
  %v2417 = vadd.f32 %v2354, %v2416
  %v2418 = vpop.f32.mrf.mxu0
  %v2419 = vadd.f32 %v2356, %v2418
  %v2420 = vpop.f32.mrf.mxu0
  %v2421 = vadd.f32 %v2358, %v2420
  %2422 = vdwg.mxu0
  %2423 = vmatprep.subr.bf16.mxu0 %v1809
  %2424 = vmatpush1.bf16.msra.mxu0 %v1808
  %2425 = vmatprep.subr.bf16.mxu0 %v1806
  %2426 = vmatpush1.bf16.msra.mxu0 %v1805
  %2427 = vmatprep.subr.bf16.mxu0 %v1803
  %2428 = vmatpush1.bf16.msra.mxu0 %v1802
  %2429 = vmatprep.subr.bf16.mxu0 %v1800
  %2430 = vmatpush1.bf16.msra.mxu0 %v1799
  %2431 = vmatprep.subr.bf16.mxu0 %v1797
  %2432 = vmatpush1.bf16.msra.mxu0 %v1796
  %2433 = vmatprep.subr.bf16.mxu0 %v1794
  %2434 = vmatpush1.bf16.msra.mxu0 %v1793
  %2435 = vmatprep.subr.bf16.mxu0 %v1791
  %2436 = vmatpush1.bf16.msra.mxu0 %v1790
  %2437 = vmatprep.subr.bf16.mxu0 %v1788
  %2438 = vmatpush1.bf16.msra.mxu0 %v1787
  %2439 = vmatprep.subr.bf16.mxu0 %v1833
  %2440 = vmatpush2.bf16.msra.mxu0 %v1832
  %2441 = vmatprep.subr.bf16.mxu0 %v1830
  %2442 = vmatpush2.bf16.msra.mxu0 %v1829
  %2443 = vmatprep.subr.bf16.mxu0 %v1827
  %2444 = vmatpush2.bf16.msra.mxu0 %v1826
  %2445 = vmatprep.subr.bf16.mxu0 %v1824
  %2446 = vmatpush2.bf16.msra.mxu0 %v1823
  %2447 = vmatprep.subr.bf16.mxu0 %v1821
  %2448 = vmatpush2.bf16.msra.mxu0 %v1820
  %2449 = vmatprep.subr.bf16.mxu0 %v1818
  %2450 = vmatpush2.bf16.msra.mxu0 %v1817
  %2451 = vmatprep.subr.bf16.mxu0 %v1815
  %2452 = vmatpush2.bf16.msra.mxu0 %v1814
  %2453 = vmatprep.subr.bf16.mxu0 %v1812
  %2454 = vmatpush2.bf16.msra.mxu0 %v1811
  %2455 = vmatprep.mubr.bf16.mxu0 %v572
  %2456 = vmatmul.mubr.bf16.gmra.mxu0 %v571
  %v2457 = vpop.f32.mrf.mxu0
  %v2458 = vadd.f32 %v2395, %v2457
  %v2459 = vpop.f32.mrf.mxu0
  %v2460 = vadd.f32 %v2397, %v2459
  %v2461 = vpop.f32.mrf.mxu0
  %v2462 = vadd.f32 %v2399, %v2461
  %v2463 = vpop.f32.mrf.mxu0
  %v2464 = vadd.f32 %v2401, %v2463
  %2465 = vmatprep.mubr.bf16.mxu0 %v584
  %2466 = vmatmul.mubr.bf16.gmra.mxu0 %v583
  %v2467 = vpop.f32.mrf.mxu0
  %v2468 = vadd.f32 %v2405, %v2467
  %v2469 = vpop.f32.mrf.mxu0
  %v2470 = vadd.f32 %v2407, %v2469
  %v2471 = vpop.f32.mrf.mxu0
  %v2472 = vadd.f32 %v2409, %v2471
  %v2473 = vpop.f32.mrf.mxu0
  %v2474 = vadd.f32 %v2411, %v2473
  %2475 = vmatprep.mubr.bf16.mxu0 %v596
  %2476 = vmatmul.mubr.bf16.gmra.mxu0 %v595
  %v2477 = vpop.f32.mrf.mxu0
  %v2478 = vadd.f32 %v2415, %v2477
  %v2479 = vpop.f32.mrf.mxu0
  %v2480 = vadd.f32 %v2417, %v2479
  %v2481 = vpop.f32.mrf.mxu0
  %v2482 = vadd.f32 %v2419, %v2481
  %v2483 = vpop.f32.mrf.mxu0
  %v2484 = vadd.f32 %v2421, %v2483
  %2485 = vdwg.mxu0
  %2486 = vmatprep.subr.bf16.mxu0 %v1857
  %2487 = vmatpush1.bf16.msra.mxu0 %v1856
  %2488 = vmatprep.subr.bf16.mxu0 %v1854
  %2489 = vmatpush1.bf16.msra.mxu0 %v1853
  %2490 = vmatprep.subr.bf16.mxu0 %v1851
  %2491 = vmatpush1.bf16.msra.mxu0 %v1850
  %2492 = vmatprep.subr.bf16.mxu0 %v1848
  %2493 = vmatpush1.bf16.msra.mxu0 %v1847
  %2494 = vmatprep.subr.bf16.mxu0 %v1845
  %2495 = vmatpush1.bf16.msra.mxu0 %v1844
  %2496 = vmatprep.subr.bf16.mxu0 %v1842
  %2497 = vmatpush1.bf16.msra.mxu0 %v1841
  %2498 = vmatprep.subr.bf16.mxu0 %v1839
  %2499 = vmatpush1.bf16.msra.mxu0 %v1838
  %2500 = vmatprep.subr.bf16.mxu0 %v1836
  %2501 = vmatpush1.bf16.msra.mxu0 %v1835
  %2502 = vmatprep.subr.bf16.mxu0 %v1881
  %2503 = vmatpush2.bf16.msra.mxu0 %v1880
  %2504 = vmatprep.subr.bf16.mxu0 %v1878
  %2505 = vmatpush2.bf16.msra.mxu0 %v1877
  %2506 = vmatprep.subr.bf16.mxu0 %v1875
  %2507 = vmatpush2.bf16.msra.mxu0 %v1874
  %2508 = vmatprep.subr.bf16.mxu0 %v1872
  %2509 = vmatpush2.bf16.msra.mxu0 %v1871
  %2510 = vmatprep.subr.bf16.mxu0 %v1869
  %2511 = vmatpush2.bf16.msra.mxu0 %v1868
  %2512 = vmatprep.subr.bf16.mxu0 %v1866
  %2513 = vmatpush2.bf16.msra.mxu0 %v1865
  %2514 = vmatprep.subr.bf16.mxu0 %v1863
  %2515 = vmatpush2.bf16.msra.mxu0 %v1862
  %2516 = vmatprep.subr.bf16.mxu0 %v1860
  %2517 = vmatpush2.bf16.msra.mxu0 %v1859
  %2518 = vmatprep.mubr.bf16.mxu0 %v574
  %2519 = vmatmul.mubr.bf16.gmra.mxu0 %v573
  %v2520 = vpop.f32.mrf.mxu0
  %v2521 = vadd.f32 %v2458, %v2520
  %v2522 = vpop.f32.mrf.mxu0
  %v2523 = vadd.f32 %v2460, %v2522
  %v2524 = vpop.f32.mrf.mxu0
  %v2525 = vadd.f32 %v2462, %v2524
  %v2526 = vpop.f32.mrf.mxu0
  %v2527 = vadd.f32 %v2464, %v2526
  %2528 = vmatprep.mubr.bf16.mxu0 %v586
  %2529 = vmatmul.mubr.bf16.gmra.mxu0 %v585
  %v2530 = vpop.f32.mrf.mxu0
  %v2531 = vadd.f32 %v2468, %v2530
  %v2532 = vpop.f32.mrf.mxu0
  %v2533 = vadd.f32 %v2470, %v2532
  %v2534 = vpop.f32.mrf.mxu0
  %v2535 = vadd.f32 %v2472, %v2534
  %v2536 = vpop.f32.mrf.mxu0
  %v2537 = vadd.f32 %v2474, %v2536
  %2538 = vmatprep.mubr.bf16.mxu0 %v598
  %2539 = vmatmul.mubr.bf16.gmra.mxu0 %v597
  %v2540 = vpop.f32.mrf.mxu0
  %v2541 = vadd.f32 %v2478, %v2540
  %v2542 = vpop.f32.mrf.mxu0
  %v2543 = vadd.f32 %v2480, %v2542
  %v2544 = vpop.f32.mrf.mxu0
  %v2545 = vadd.f32 %v2482, %v2544
  %v2546 = vpop.f32.mrf.mxu0
  %v2547 = vadd.f32 %v2484, %v2546
  %2548 = vdwg.mxu0
  %2549 = vmatprep.subr.bf16.mxu0 0
  %2550 = vmatpush1.bf16.msra.mxu0 %v1618
  %2551 = vmatprep.subr.bf16.mxu0 0
  %2552 = vmatpush1.bf16.msra.mxu0 %v1615
  %2553 = vmatprep.subr.bf16.mxu0 0
  %2554 = vmatpush1.bf16.msra.mxu0 %v1612
  %2555 = vmatprep.subr.bf16.mxu0 0
  %2556 = vmatpush1.bf16.msra.mxu0 %v1609
  %2557 = vmatprep.subr.bf16.mxu0 0
  %2558 = vmatpush1.bf16.msra.mxu0 %v1606
  %2559 = vmatprep.subr.bf16.mxu0 0
  %2560 = vmatpush1.bf16.msra.mxu0 %v1603
  %2561 = vmatprep.subr.bf16.mxu0 0
  %2562 = vmatpush1.bf16.msra.mxu0 %v1600
  %2563 = vmatprep.subr.bf16.mxu0 0
  %2564 = vmatpush1.bf16.msra.mxu0 %v1597
  %2565 = vmatprep.subr.bf16.mxu0 0
  %2566 = vmatpush2.bf16.msra.mxu0 %v1642
  %2567 = vmatprep.subr.bf16.mxu0 0
  %2568 = vmatpush2.bf16.msra.mxu0 %v1639
  %2569 = vmatprep.subr.bf16.mxu0 0
  %2570 = vmatpush2.bf16.msra.mxu0 %v1636
  %2571 = vmatprep.subr.bf16.mxu0 0
  %2572 = vmatpush2.bf16.msra.mxu0 %v1633
  %2573 = vmatprep.subr.bf16.mxu0 0
  %2574 = vmatpush2.bf16.msra.mxu0 %v1630
  %2575 = vmatprep.subr.bf16.mxu0 0
  %2576 = vmatpush2.bf16.msra.mxu0 %v1627
  %2577 = vmatprep.subr.bf16.mxu0 0
  %2578 = vmatpush2.bf16.msra.mxu0 %v1624
  %2579 = vmatprep.subr.bf16.mxu0 0
  %2580 = vmatpush2.bf16.msra.mxu0 %v1621
  %2581 = vmatprep.mubr.bf16.mxu0 %v564
  %2582 = vmatmul.mubr.bf16.gmra.mxu0 %v563
  %v2583 = vpop.f32.mrf.mxu0
  %v2584 = vadd.f32 %v451, %v2583
  %v2585 = vpop.f32.mrf.mxu0
  %v2586 = vpop.f32.mrf.mxu0
  %v2587 = vadd.f32 %v451, %v2586
  %v2588 = vpop.f32.mrf.mxu0
  %2589 = vmatprep.mubr.bf16.mxu0 %v576
  %2590 = vmatmul.mubr.bf16.gmra.mxu0 %v575
  %v2591 = vpop.f32.mrf.mxu0
  %v2592 = vadd.f32 %v451, %v2591
  %v2593 = vpop.f32.mrf.mxu0
  %v2594 = vpop.f32.mrf.mxu0
  %v2595 = vadd.f32 %v451, %v2594
  %v2596 = vpop.f32.mrf.mxu0
  %2597 = vmatprep.mubr.bf16.mxu0 %v588
  %2598 = vmatmul.mubr.bf16.gmra.mxu0 %v587
  %v2599 = vpop.f32.mrf.mxu0
  %v2600 = vadd.f32 %v451, %v2599
  %v2601 = vpop.f32.mrf.mxu0
  %v2602 = vpop.f32.mrf.mxu0
  %v2603 = vadd.f32 %v451, %v2602
  %v2604 = vpop.f32.mrf.mxu0
  %2605 = vdwg.mxu0
  %2606 = vmatprep.subr.bf16.mxu0 0
  %2607 = vmatpush1.bf16.msra.mxu0 %v1666
  %2608 = vmatprep.subr.bf16.mxu0 0
  %2609 = vmatpush1.bf16.msra.mxu0 %v1663
  %2610 = vmatprep.subr.bf16.mxu0 0
  %2611 = vmatpush1.bf16.msra.mxu0 %v1660
  %2612 = vmatprep.subr.bf16.mxu0 0
  %2613 = vmatpush1.bf16.msra.mxu0 %v1657
  %2614 = vmatprep.subr.bf16.mxu0 0
  %2615 = vmatpush1.bf16.msra.mxu0 %v1654
  %2616 = vmatprep.subr.bf16.mxu0 0
  %2617 = vmatpush1.bf16.msra.mxu0 %v1651
  %2618 = vmatprep.subr.bf16.mxu0 0
  %2619 = vmatpush1.bf16.msra.mxu0 %v1648
  %2620 = vmatprep.subr.bf16.mxu0 0
  %2621 = vmatpush1.bf16.msra.mxu0 %v1645
  %2622 = vmatprep.subr.bf16.mxu0 0
  %2623 = vmatpush2.bf16.msra.mxu0 %v1690
  %2624 = vmatprep.subr.bf16.mxu0 0
  %2625 = vmatpush2.bf16.msra.mxu0 %v1687
  %2626 = vmatprep.subr.bf16.mxu0 0
  %2627 = vmatpush2.bf16.msra.mxu0 %v1684
  %2628 = vmatprep.subr.bf16.mxu0 0
  %2629 = vmatpush2.bf16.msra.mxu0 %v1681
  %2630 = vmatprep.subr.bf16.mxu0 0
  %2631 = vmatpush2.bf16.msra.mxu0 %v1678
  %2632 = vmatprep.subr.bf16.mxu0 0
  %2633 = vmatpush2.bf16.msra.mxu0 %v1675
  %2634 = vmatprep.subr.bf16.mxu0 0
  %2635 = vmatpush2.bf16.msra.mxu0 %v1672
  %2636 = vmatprep.subr.bf16.mxu0 0
  %2637 = vmatpush2.bf16.msra.mxu0 %v1669
  %2638 = vmatprep.mubr.bf16.mxu0 %v566
  %2639 = vmatmul.mubr.bf16.gmra.mxu0 %v565
  %v2640 = vpop.f32.mrf.mxu0
  %v2641 = vadd.f32 %v2584, %v2640
  %v2642 = vpop.f32.mrf.mxu0
  %v2643 = vpop.f32.mrf.mxu0
  %v2644 = vadd.f32 %v2587, %v2643
  %v2645 = vpop.f32.mrf.mxu0
  %2646 = vmatprep.mubr.bf16.mxu0 %v578
  %2647 = vmatmul.mubr.bf16.gmra.mxu0 %v577
  %v2648 = vpop.f32.mrf.mxu0
  %v2649 = vadd.f32 %v2592, %v2648
  %v2650 = vpop.f32.mrf.mxu0
  %v2651 = vpop.f32.mrf.mxu0
  %v2652 = vadd.f32 %v2595, %v2651
  %v2653 = vpop.f32.mrf.mxu0
  %2654 = vmatprep.mubr.bf16.mxu0 %v590
  %2655 = vmatmul.mubr.bf16.gmra.mxu0 %v589
  %v2656 = vpop.f32.mrf.mxu0
  %v2657 = vadd.f32 %v2600, %v2656
  %v2658 = vpop.f32.mrf.mxu0
  %v2659 = vpop.f32.mrf.mxu0
  %v2660 = vadd.f32 %v2603, %v2659
  %v2661 = vpop.f32.mrf.mxu0
  %2662 = vdwg.mxu0
  %2663 = vmatprep.subr.bf16.mxu0 0
  %2664 = vmatpush1.bf16.msra.mxu0 %v1714
  %2665 = vmatprep.subr.bf16.mxu0 0
  %2666 = vmatpush1.bf16.msra.mxu0 %v1711
  %2667 = vmatprep.subr.bf16.mxu0 0
  %2668 = vmatpush1.bf16.msra.mxu0 %v1708
  %2669 = vmatprep.subr.bf16.mxu0 0
  %2670 = vmatpush1.bf16.msra.mxu0 %v1705
  %2671 = vmatprep.subr.bf16.mxu0 0
  %2672 = vmatpush1.bf16.msra.mxu0 %v1702
  %2673 = vmatprep.subr.bf16.mxu0 0
  %2674 = vmatpush1.bf16.msra.mxu0 %v1699
  %2675 = vmatprep.subr.bf16.mxu0 0
  %2676 = vmatpush1.bf16.msra.mxu0 %v1696
  %2677 = vmatprep.subr.bf16.mxu0 0
  %2678 = vmatpush1.bf16.msra.mxu0 %v1693
  %2679 = vmatprep.subr.bf16.mxu0 0
  %2680 = vmatpush2.bf16.msra.mxu0 %v1738
  %2681 = vmatprep.subr.bf16.mxu0 0
  %2682 = vmatpush2.bf16.msra.mxu0 %v1735
  %2683 = vmatprep.subr.bf16.mxu0 0
  %2684 = vmatpush2.bf16.msra.mxu0 %v1732
  %2685 = vmatprep.subr.bf16.mxu0 0
  %2686 = vmatpush2.bf16.msra.mxu0 %v1729
  %2687 = vmatprep.subr.bf16.mxu0 0
  %2688 = vmatpush2.bf16.msra.mxu0 %v1726
  %2689 = vmatprep.subr.bf16.mxu0 0
  %2690 = vmatpush2.bf16.msra.mxu0 %v1723
  %2691 = vmatprep.subr.bf16.mxu0 0
  %2692 = vmatpush2.bf16.msra.mxu0 %v1720
  %2693 = vmatprep.subr.bf16.mxu0 0
  %2694 = vmatpush2.bf16.msra.mxu0 %v1717
  %2695 = vmatprep.mubr.bf16.mxu0 %v568
  %2696 = vmatmul.mubr.bf16.gmra.mxu0 %v567
  %v2697 = vpop.f32.mrf.mxu0
  %v2698 = vadd.f32 %v2641, %v2697
  %v2699 = vpop.f32.mrf.mxu0
  %v2700 = vpop.f32.mrf.mxu0
  %v2701 = vadd.f32 %v2644, %v2700
  %v2702 = vpop.f32.mrf.mxu0
  %2703 = vmatprep.mubr.bf16.mxu0 %v580
  %2704 = vmatmul.mubr.bf16.gmra.mxu0 %v579
  %v2705 = vpop.f32.mrf.mxu0
  %v2706 = vadd.f32 %v2649, %v2705
  %v2707 = vpop.f32.mrf.mxu0
  %v2708 = vpop.f32.mrf.mxu0
  %v2709 = vadd.f32 %v2652, %v2708
  %v2710 = vpop.f32.mrf.mxu0
  %2711 = vmatprep.mubr.bf16.mxu0 %v592
  %2712 = vmatmul.mubr.bf16.gmra.mxu0 %v591
  %v2713 = vpop.f32.mrf.mxu0
  %v2714 = vadd.f32 %v2657, %v2713
  %v2715 = vpop.f32.mrf.mxu0
  %v2716 = vpop.f32.mrf.mxu0
  %v2717 = vadd.f32 %v2660, %v2716
  %v2718 = vpop.f32.mrf.mxu0
  %2719 = vdwg.mxu0
  %2720 = vmatprep.subr.bf16.mxu0 0
  %2721 = vmatpush1.bf16.msra.mxu0 %v1762
  %2722 = vmatprep.subr.bf16.mxu0 0
  %2723 = vmatpush1.bf16.msra.mxu0 %v1759
  %2724 = vmatprep.subr.bf16.mxu0 0
  %2725 = vmatpush1.bf16.msra.mxu0 %v1756
  %2726 = vmatprep.subr.bf16.mxu0 0
  %2727 = vmatpush1.bf16.msra.mxu0 %v1753
  %2728 = vmatprep.subr.bf16.mxu0 0
  %2729 = vmatpush1.bf16.msra.mxu0 %v1750
  %2730 = vmatprep.subr.bf16.mxu0 0
  %2731 = vmatpush1.bf16.msra.mxu0 %v1747
  %2732 = vmatprep.subr.bf16.mxu0 0
  %2733 = vmatpush1.bf16.msra.mxu0 %v1744
  %2734 = vmatprep.subr.bf16.mxu0 0
  %2735 = vmatpush1.bf16.msra.mxu0 %v1741
  %2736 = vmatprep.subr.bf16.mxu0 0
  %2737 = vmatpush2.bf16.msra.mxu0 %v1786
  %2738 = vmatprep.subr.bf16.mxu0 0
  %2739 = vmatpush2.bf16.msra.mxu0 %v1783
  %2740 = vmatprep.subr.bf16.mxu0 0
  %2741 = vmatpush2.bf16.msra.mxu0 %v1780
  %2742 = vmatprep.subr.bf16.mxu0 0
  %2743 = vmatpush2.bf16.msra.mxu0 %v1777
  %2744 = vmatprep.subr.bf16.mxu0 0
  %2745 = vmatpush2.bf16.msra.mxu0 %v1774
  %2746 = vmatprep.subr.bf16.mxu0 0
  %2747 = vmatpush2.bf16.msra.mxu0 %v1771
  %2748 = vmatprep.subr.bf16.mxu0 0
  %2749 = vmatpush2.bf16.msra.mxu0 %v1768
  %2750 = vmatprep.subr.bf16.mxu0 0
  %2751 = vmatpush2.bf16.msra.mxu0 %v1765
  %2752 = vmatprep.mubr.bf16.mxu0 %v570
  %2753 = vmatmul.mubr.bf16.gmra.mxu0 %v569
  %v2754 = vpop.f32.mrf.mxu0
  %v2755 = vadd.f32 %v2698, %v2754
  %v2756 = vpop.f32.mrf.mxu0
  %v2757 = vpop.f32.mrf.mxu0
  %v2758 = vadd.f32 %v2701, %v2757
  %v2759 = vpop.f32.mrf.mxu0
  %2760 = vmatprep.mubr.bf16.mxu0 %v582
  %2761 = vmatmul.mubr.bf16.gmra.mxu0 %v581
  %v2762 = vpop.f32.mrf.mxu0
  %v2763 = vadd.f32 %v2706, %v2762
  %v2764 = vpop.f32.mrf.mxu0
  %v2765 = vpop.f32.mrf.mxu0
  %v2766 = vadd.f32 %v2709, %v2765
  %v2767 = vpop.f32.mrf.mxu0
  %2768 = vmatprep.mubr.bf16.mxu0 %v594
  %2769 = vmatmul.mubr.bf16.gmra.mxu0 %v593
  %v2770 = vpop.f32.mrf.mxu0
  %v2771 = vadd.f32 %v2714, %v2770
  %v2772 = vpop.f32.mrf.mxu0
  %v2773 = vpop.f32.mrf.mxu0
  %v2774 = vadd.f32 %v2717, %v2773
  %v2775 = vpop.f32.mrf.mxu0
  %2776 = vdwg.mxu0
  %2777 = vmatprep.subr.bf16.mxu0 0
  %2778 = vmatpush1.bf16.msra.mxu0 %v1810
  %2779 = vmatprep.subr.bf16.mxu0 0
  %2780 = vmatpush1.bf16.msra.mxu0 %v1807
  %2781 = vmatprep.subr.bf16.mxu0 0
  %2782 = vmatpush1.bf16.msra.mxu0 %v1804
  %2783 = vmatprep.subr.bf16.mxu0 0
  %2784 = vmatpush1.bf16.msra.mxu0 %v1801
  %2785 = vmatprep.subr.bf16.mxu0 0
  %2786 = vmatpush1.bf16.msra.mxu0 %v1798
  %2787 = vmatprep.subr.bf16.mxu0 0
  %2788 = vmatpush1.bf16.msra.mxu0 %v1795
  %2789 = vmatprep.subr.bf16.mxu0 0
  %2790 = vmatpush1.bf16.msra.mxu0 %v1792
  %2791 = vmatprep.subr.bf16.mxu0 0
  %2792 = vmatpush1.bf16.msra.mxu0 %v1789
  %2793 = vmatprep.subr.bf16.mxu0 0
  %2794 = vmatpush2.bf16.msra.mxu0 %v1834
  %2795 = vmatprep.subr.bf16.mxu0 0
  %2796 = vmatpush2.bf16.msra.mxu0 %v1831
  %2797 = vmatprep.subr.bf16.mxu0 0
  %2798 = vmatpush2.bf16.msra.mxu0 %v1828
  %2799 = vmatprep.subr.bf16.mxu0 0
  %2800 = vmatpush2.bf16.msra.mxu0 %v1825
  %2801 = vmatprep.subr.bf16.mxu0 0
  %2802 = vmatpush2.bf16.msra.mxu0 %v1822
  %2803 = vmatprep.subr.bf16.mxu0 0
  %2804 = vmatpush2.bf16.msra.mxu0 %v1819
  %2805 = vmatprep.subr.bf16.mxu0 0
  %2806 = vmatpush2.bf16.msra.mxu0 %v1816
  %2807 = vmatprep.subr.bf16.mxu0 0
  %2808 = vmatpush2.bf16.msra.mxu0 %v1813
  %2809 = vmatprep.mubr.bf16.mxu0 %v572
  %2810 = vmatmul.mubr.bf16.gmra.mxu0 %v571
  %v2811 = vpop.f32.mrf.mxu0
  %v2812 = vadd.f32 %v2755, %v2811
  %v2813 = vpop.f32.mrf.mxu0
  %v2814 = vpop.f32.mrf.mxu0
  %v2815 = vadd.f32 %v2758, %v2814
  %v2816 = vpop.f32.mrf.mxu0
  %2817 = vmatprep.mubr.bf16.mxu0 %v584
  %2818 = vmatmul.mubr.bf16.gmra.mxu0 %v583
  %v2819 = vpop.f32.mrf.mxu0
  %v2820 = vadd.f32 %v2763, %v2819
  %v2821 = vpop.f32.mrf.mxu0
  %v2822 = vpop.f32.mrf.mxu0
  %v2823 = vadd.f32 %v2766, %v2822
  %v2824 = vpop.f32.mrf.mxu0
  %2825 = vmatprep.mubr.bf16.mxu0 %v596
  %2826 = vmatmul.mubr.bf16.gmra.mxu0 %v595
  %v2827 = vpop.f32.mrf.mxu0
  %v2828 = vadd.f32 %v2771, %v2827
  %v2829 = vpop.f32.mrf.mxu0
  %v2830 = vpop.f32.mrf.mxu0
  %v2831 = vadd.f32 %v2774, %v2830
  %v2832 = vpop.f32.mrf.mxu0
  %2833 = vdwg.mxu0
  %2834 = vmatprep.subr.bf16.mxu0 0
  %2835 = vmatpush1.bf16.msra.mxu0 %v1858
  %2836 = vmatprep.subr.bf16.mxu0 0
  %2837 = vmatpush1.bf16.msra.mxu0 %v1855
  %2838 = vmatprep.subr.bf16.mxu0 0
  %2839 = vmatpush1.bf16.msra.mxu0 %v1852
  %2840 = vmatprep.subr.bf16.mxu0 0
  %2841 = vmatpush1.bf16.msra.mxu0 %v1849
  %2842 = vmatprep.subr.bf16.mxu0 0
  %2843 = vmatpush1.bf16.msra.mxu0 %v1846
  %2844 = vmatprep.subr.bf16.mxu0 0
  %2845 = vmatpush1.bf16.msra.mxu0 %v1843
  %2846 = vmatprep.subr.bf16.mxu0 0
  %2847 = vmatpush1.bf16.msra.mxu0 %v1840
  %2848 = vmatprep.subr.bf16.mxu0 0
  %2849 = vmatpush1.bf16.msra.mxu0 %v1837
  %2850 = vmatprep.subr.bf16.mxu0 0
  %2851 = vmatpush2.bf16.msra.mxu0 %v1882
  %2852 = vmatprep.subr.bf16.mxu0 0
  %2853 = vmatpush2.bf16.msra.mxu0 %v1879
  %2854 = vmatprep.subr.bf16.mxu0 0
  %2855 = vmatpush2.bf16.msra.mxu0 %v1876
  %2856 = vmatprep.subr.bf16.mxu0 0
  %2857 = vmatpush2.bf16.msra.mxu0 %v1873
  %2858 = vmatprep.subr.bf16.mxu0 0
  %2859 = vmatpush2.bf16.msra.mxu0 %v1870
  %2860 = vmatprep.subr.bf16.mxu0 0
  %2861 = vmatpush2.bf16.msra.mxu0 %v1867
  %2862 = vmatprep.subr.bf16.mxu0 0
  %2863 = vmatpush2.bf16.msra.mxu0 %v1864
  %2864 = vmatprep.subr.bf16.mxu0 0
  %2865 = vmatpush2.bf16.msra.mxu0 %v1861
  %2866 = vmatprep.mubr.bf16.mxu0 %v574
  %2867 = vmatmul.mubr.bf16.gmra.mxu0 %v573
  %v2868 = vpop.f32.mrf.mxu0
  %v2869 = vadd.f32 %v2812, %v2868
  %v2870 = vpop.f32.mrf.mxu0
  %v2871 = vpop.f32.mrf.mxu0
  %v2872 = vadd.f32 %v2815, %v2871
  %v2873 = vpop.f32.mrf.mxu0
  %2874 = vmatprep.mubr.bf16.mxu0 %v586
  %2875 = vmatmul.mubr.bf16.gmra.mxu0 %v585
  %v2876 = vpop.f32.mrf.mxu0
  %v2877 = vadd.f32 %v2820, %v2876
  %v2878 = vpop.f32.mrf.mxu0
  %v2879 = vpop.f32.mrf.mxu0
  %v2880 = vadd.f32 %v2823, %v2879
  %v2881 = vpop.f32.mrf.mxu0
  %2882 = vmatprep.mubr.bf16.mxu0 %v598
  %2883 = vmatmul.mubr.bf16.gmra.mxu0 %v597
  %v2884 = vpop.f32.mrf.mxu0
  %v2885 = vadd.f32 %v2828, %v2884
  %v2886 = vpop.f32.mrf.mxu0
  %v2887 = vpop.f32.mrf.mxu0
  %v2888 = vadd.f32 %v2831, %v2887
  %v2889 = vpop.f32.mrf.mxu0
  %2890 = vdwg.mxu0
  %v2891 = vld [vmem:[%s3] sm:$0xff]
  %v2892 = vld [vmem:[%s3 + $0x8] sm:$0xff]
  %v2893 = vld [vmem:[%s3 + $0x10] sm:$0xff]
  %v2894 = vld [vmem:[%s3 + $0x18] sm:$0xff]
  %v2895 = vld [vmem:[%s3 + $0x20] sm:$0xff]
  %v2896 = vld [vmem:[%s3 + $0x28] sm:$0xff]
  %v2897 = vld [vmem:[%s3 + $0x30] sm:$0xff]
  %v2898 = vld [vmem:[%s3 + $0x38] sm:$0xff]
  %v2899 = vld [vmem:[%s3 + $0x40] sm:$0xff]
  %v2900 = vld [vmem:[%s3 + $0x48] sm:$0xff]
  %v2901 = vld [vmem:[%s3 + $0x50] sm:$0xff]
  %v2902 = vld [vmem:[%s3 + $0x58] sm:$0xff]
  %v2903 = vld [vmem:[%s3 + $0x60] sm:$0xff]
  %v2904 = vld [vmem:[%s3 + $0x68] sm:$0xff]
  %v2905 = vld [vmem:[%s3 + $0x70] sm:$0xff]
  %v2906 = vld [vmem:[%s3 + $0x78] sm:$0xff]
  %v2907 = vld [vmem:[%s3 + $0x80] sm:$0xff]
  %v2908 = vld [vmem:[%s3 + $0x88] sm:$0xff]
  %v2909 = vadd.f32 %v2521, %v2891
  %v2910 = vadd.f32 %v2523, %v2892
  %v2911 = vadd.f32 %v2869, %v2893
  %v2912 = vadd.f32 %v2525, %v2894
  %v2913 = vadd.f32 %v2527, %v2895
  %v2914 = vadd.f32 %v2872, %v2896
  %v2915 = vadd.f32 %v2531, %v2897
  %v2916 = vadd.f32 %v2533, %v2898
  %v2917 = vadd.f32 %v2877, %v2899
  %v2918 = vadd.f32 %v2535, %v2900
  %v2919 = vadd.f32 %v2537, %v2901
  %v2920 = vadd.f32 %v2880, %v2902
  %v2921 = vadd.f32 %v2541, %v2903
  %v2922 = vadd.f32 %v2543, %v2904
  %v2923 = vadd.f32 %v2885, %v2905
  %v2924 = vadd.f32 %v2545, %v2906
  %v2925 = vadd.f32 %v2547, %v2907
  %v2926 = vadd.f32 %v2888, %v2908
  %2927 = vst [vmem:[%s4] sm:$0xff] %v2909
  %2928 = vst [vmem:[%s4 + $0x8] sm:$0xff] %v2910
  %2929 = vst [vmem:[%s4 + $0x10] sm:$0xff] %v2911
  %2930 = vst [vmem:[%s4 + $0x18] sm:$0xff] %v2912
  %2931 = vst [vmem:[%s4 + $0x20] sm:$0xff] %v2913
  %2932 = vst [vmem:[%s4 + $0x28] sm:$0xff] %v2914
  %2933 = vst [vmem:[%s4 + $0x30] sm:$0xff] %v2915
  %2934 = vst [vmem:[%s4 + $0x38] sm:$0xff] %v2916
  %2935 = vst [vmem:[%s4 + $0x40] sm:$0xff] %v2917
  %2936 = vst [vmem:[%s4 + $0x48] sm:$0xff] %v2918
  %2937 = vst [vmem:[%s4 + $0x50] sm:$0xff] %v2919
  %2938 = vst [vmem:[%s4 + $0x58] sm:$0xff] %v2920
  %2939 = vst [vmem:[%s4 + $0x60] sm:$0xff] %v2921
  %2940 = vst [vmem:[%s4 + $0x68] sm:$0xff] %v2922
  %2941 = vst [vmem:[%s4 + $0x70] sm:$0xff] %v2923
  %2942 = vst [vmem:[%s4 + $0x78] sm:$0xff] %v2924
  %2943 = vst [vmem:[%s4 + $0x80] sm:$0xff] %v2925
  %2944 = vst [vmem:[%s4 + $0x88] sm:$0xff] %v2926
  // Predicated region
  $region18: #{closed_call.20} parent=0 // pred_check
    _
  $region19: #{closed_call.20} parent=0 // pred_check_branch
    %2946 = sbr.rel (0) target = $region21
  $region20: #{closed_call.20} parent=0 // pred_region
    _
  $region21: #{closed_call.20} parent=0 // pred_fallthru
    _
  // Predicated region
  $region22: #{closed_call.20} parent=0 // pred_check
    _
  $region23: #{closed_call.20} parent=0 // pred_check_branch
    %2948 = sbr.rel (0) target = $region25
  $region24: #{closed_call.20} parent=0 // pred_region
    _
  $region25: #{closed_call.20} parent=0 // pred_fallthru
    _

</llo_original>
